<compile_context>
chip_gen: v5e
topology: v5e:2x2
jax: 0.10.0
libtpu: 0.0.40
codegen_flags: <defaults>
</compile_context>

<pallas_src>
import jax
import jax.numpy as jnp
from jax import lax
from jax.experimental import pallas as pl
from jax.experimental.pallas import tpu as pltpu

N_FFT = 256
HOP = 64
BN_EPS = 1e-5


# ----------------------------- Pallas kernels ------------------------------

def _stft_logmag_kernel(fr_ref, wr_ref, wi_ref, o_ref):
    """One (batch, channel) slab: DFT matmuls + magnitude + clipped log."""
    fr = fr_ref[0]                      # (T, N_FFT)
    wr = wr_ref[...]                    # (F, N_FFT)
    wi = wi_ref[...]
    # Contract both operands on their last (lane) dim -> no transpose.
    dn = (((1,), (1,)), ((), ()))
    re = lax.dot_general(wr, fr, dn, preferred_element_type=jnp.float32)  # (F, T)
    im = lax.dot_general(wi, fr, dn, preferred_element_type=jnp.float32)
    mag = jnp.sqrt(re * re + im * im)
    o_ref[0] = jnp.maximum(jnp.log(jnp.maximum(mag, 1e-8)), 0.0)


def _make_conv_bn_kernel(act, has_residual):
    """Fused conv-as-matmul (Cout,K)@(K,P) + BN affine (+residual) (+ELU)."""
    def kernel(*refs):
        if has_residual:
            p_ref, w_ref, s_ref, t_ref, r_ref, o_ref = refs
        else:
            p_ref, w_ref, s_ref, t_ref, o_ref = refs
        patches = p_ref[0]              # (K, P)
        w = w_ref[...]                  # (Cout, K)
        acc = lax.dot_general(w, patches, (((1,), (0,)), ((), ())),
                              preferred_element_type=jnp.float32)  # (Cout, P)
        y = acc * s_ref[...] + t_ref[...]       # folded conv-bias + BatchNorm
        if has_residual:
            y = y + r_ref[0]
        if act == "elu":
            y = jnp.where(y > 0, y, jnp.exp(jnp.minimum(y, 0.0)) - 1.0)
        o_ref[0] = y.astype(o_ref.dtype)
    return kernel


def _gnet_kernel(x_ref, w0_ref, b0_ref, w1_ref, b1_ref, o_ref):
    """Fused g_net head: Linear(128,32) -> ReLU -> Linear(32,5)."""
    dn = (((1,), (1,)), ((), ()))       # contract last dims (no transpose)
    h = lax.dot_general(x_ref[...], w0_ref[...], dn,
                        preferred_element_type=jnp.float32) + b0_ref[...]
    h = jnp.maximum(h, 0.0)
    o_ref[...] = lax.dot_general(h, w1_ref[...], dn,
                                 preferred_element_type=jnp.float32) + b1_ref[...]


# ------------------------------- wrappers -----------------------------------

def stft_logmag(x):
    """x: (B, C, L) -> (B, C, 129, T). Matches torch_stft + clip/log/clip."""
    B, C, L = x.shape
    T = (L - N_FFT) // HOP + 1
    F = N_FFT // 2 + 1
    n = jnp.arange(N_FFT)
    idx = jnp.arange(T)[:, None] * HOP + n[None, :]              # (T, N_FFT)
    frames = x[:, :, idx].reshape(B * C, T, N_FFT).astype(jnp.float32)
    ang = 2.0 * jnp.pi * jnp.arange(F)[:, None] * n[None, :] / N_FFT
    wr = jnp.cos(ang).astype(jnp.float32)                        # (F, N_FFT)
    wi = jnp.sin(ang).astype(jnp.float32)

    out = pl.pallas_call(
        _stft_logmag_kernel,
        out_shape=jax.ShapeDtypeStruct((B * C, F, T), jnp.float32),
        grid=(B * C,),
        in_specs=[
            pl.BlockSpec((1, T, N_FFT), lambda i: (i, 0, 0)),
            pl.BlockSpec((F, N_FFT), lambda i: (0, 0)),
            pl.BlockSpec((F, N_FFT), lambda i: (0, 0)),
        ],
        out_specs=pl.BlockSpec((1, F, T), lambda i: (i, 0, 0)),
        compiler_params=pltpu.CompilerParams(dimension_semantics=("parallel",)),
    )(frames, wr, wi)
    return out.reshape(B, C, F, T)


def _im2col_3x3(x, stride):
    """(B, C, H, W) -> patches (B, C*9, Hout*Wout) for a 3x3 / pad=1 conv."""
    B, C, H, W = x.shape
    Hout = (H - 1) // stride + 1
    Wout = (W - 1) // stride + 1
    xp = jnp.pad(x, ((0, 0), (0, 0), (1, 1), (1, 1)))
    cols = []
    for dy in range(3):
        for dx in range(3):
            cols.append(xp[:, :,
                           dy: dy + stride * (Hout - 1) + 1: stride,
                           dx: dx + stride * (Wout - 1) + 1: stride])
    patches = jnp.stack(cols, axis=2)                 # (B, C, 9, Hout, Wout)
    return patches.reshape(B, C * 9, Hout * Wout), Hout, Wout


def conv3x3_bn_act(x, w, b, bn, *, stride=1, act="none", residual=None):
    """Fused Conv2d(3x3, pad=1) + inference BatchNorm (+residual) (+ELU)."""
    B, Cin, _, _ = x.shape
    Cout = w.shape[0]
    gamma, beta, mean, var = bn

    patches, Hout, Wout = _im2col_3x3(x.astype(jnp.float32), stride)
    K, P = Cin * 9, Hout * Wout

    # Fold conv bias + BN into one per-channel (scale, shift).
    scale = (gamma / jnp.sqrt(var + BN_EPS)).astype(jnp.float32)
    shift = (beta + scale * (b - mean)).astype(jnp.float32)

    args = [patches,
            w.reshape(Cout, K).astype(jnp.float32),
            scale.reshape(Cout, 1),
            shift.reshape(Cout, 1)]
    in_specs = [
        pl.BlockSpec((1, K, P), lambda bb: (bb, 0, 0)),
        pl.BlockSpec((Cout, K), lambda bb: (0, 0)),
        pl.BlockSpec((Cout, 1), lambda bb: (0, 0)),
        pl.BlockSpec((Cout, 1), lambda bb: (0, 0)),
    ]
    has_res = residual is not None
    if has_res:
        args.append(residual.reshape(B, Cout, P).astype(jnp.float32))
        in_specs.append(pl.BlockSpec((1, Cout, P), lambda bb: (bb, 0, 0)))

    out = pl.pallas_call(
        _make_conv_bn_kernel(act, has_res),
        out_shape=jax.ShapeDtypeStruct((B, Cout, P), jnp.float32),
        grid=(B,),
        in_specs=in_specs,
        out_specs=pl.BlockSpec((1, Cout, P), lambda bb: (bb, 0, 0)),
        compiler_params=pltpu.CompilerParams(dimension_semantics=("parallel",)),
    )(*args)
    return out.reshape(B, Cout, Hout, Wout)


def maxpool2x2(x):
    B, C, H, W = x.shape
    Hc, Wc = (H // 2) * 2, (W // 2) * 2
    xt = x[:, :, :Hc, :Wc].reshape(B, C, H // 2, 2, W // 2, 2)
    return xt.max(axis=(3, 5))


def res_block(x, p, *, stride, pooling):
    (c1w, c1b), bn1, (c2w, c2b), bn2, (dsw, dsb), dsbn = p
    a = conv3x3_bn_act(x, c1w, c1b, bn1, stride=stride, act="elu")
    r = conv3x3_bn_act(x, dsw, dsb, dsbn, stride=stride, act="none")
    out = conv3x3_bn_act(a, c2w, c2b, bn2, stride=1, act="none", residual=r)
    if pooling:
        out = maxpool2x2(out)
    # TODO(synk): nn.Dropout(0.5) train-mode random masking not implemented (identity at inference).
    return out


def gnet_head(x, w0, b0, w1, b1):
    B = x.shape[0]
    # Tiny fused MLP: grid-less pallas_call, full-array VMEM blocks.
    return pl.pallas_call(
        _gnet_kernel,
        out_shape=jax.ShapeDtypeStruct((B, w1.shape[0]), jnp.float32),
    )(x.astype(jnp.float32), w0, b0.reshape(1, -1), w1, b1.reshape(1, -1))


def mldg_forward(x, params):
    s = stft_logmag(x)                                           # (B, 2, 129, T)
    (w, b), bn = params["conv1"]
    h = conv3x3_bn_act(s, w, b, bn, stride=1, act="elu")         # (B, 6, 129, T)
    h = res_block(h, params["block2"], stride=2, pooling=False)  # (B, 8, 65, 22)
    h = res_block(h, params["block3"], stride=2, pooling=True)   # (B, 16, 16, 5)
    h = res_block(h, params["block4"], stride=2, pooling=True)   # (B, 32, 4, 1)
    feat = h.reshape(h.shape[0], -1)                             # (B, 128)
    assert feat.shape[1] == 128
    w0, b0 = params["g0"]
    w1, b1 = params["g2"]
    return gnet_head(feat, w0, b0, w1, b1)                       # (B, 5)


# ------------------------------ parameters -----------------------------------

def init_params(key):
    keys = iter(jax.random.split(key, 64))

    def conv(cout, cin):
        w = 0.1 * jax.random.normal(next(keys), (cout, cin, 3, 3), jnp.float32)
        b = 0.1 * jax.random.normal(next(keys), (cout,), jnp.float32)
        return (w, b)

    def bn(c):
        gamma = 1.0 + 0.1 * jax.random.normal(next(keys), (c,), jnp.float32)
        beta = 0.1 * jax.random.normal(next(keys), (c,), jnp.float32)
        mean = jnp.zeros((c,), jnp.float32)     # fresh running stats
        var = jnp.ones((c,), jnp.float32)
        return (gamma, beta, mean, var)

    def block(cout, cin):
        return (conv(cout, cin), bn(cout),      # conv1 + bn1
                conv(cout, cout), bn(cout),     # conv2 + bn2
                conv(cout, cin), bn(cout))      # downsample conv + bn

    return {
        "conv1": (conv(6, 2), bn(6)),
        "block2": block(8, 6),
        "block3": block(16, 8),
        "block4": block(32, 16),
        "g0": (0.1 * jax.random.normal(next(keys), (32, 128), jnp.float32),
               0.1 * jax.random.normal(next(keys), (32,), jnp.float32)),
        "g2": (0.1 * jax.random.normal(next(keys), (5, 32), jnp.float32),
               0.1 * jax.random.normal(next(keys), (5,), jnp.float32)),
    }


# --------------------------- pure-JAX reference ------------------------------

def _ref_stft_logmag(x):
    B, C, L = x.shape
    T = (L - N_FFT) // HOP + 1
    F = N_FFT // 2 + 1
    n = jnp.arange(N_FFT)
    idx = jnp.arange(T)[:, None] * HOP + n[None, :]
    frames = x[:, :, idx]                                        # (B, C, T, N_FFT)
    ang = 2.0 * jnp.pi * jnp.arange(F)[:, None] * n[None, :] / N_FFT
    re = jnp.einsum("bctn,fn->bcft", frames, jnp.cos(ang),
                    precision=lax.Precision.HIGHEST)
    im = jnp.einsum("bctn,fn->bcft", frames, jnp.sin(ang),
                    precision=lax.Precision.HIGHEST)
    mag = jnp.sqrt(re * re + im * im)
    return jnp.maximum(jnp.log(jnp.maximum(mag, 1e-8)), 0.0)


def _ref_conv_bn_act(x, w, b, bn, *, stride, act, residual=None):
    gamma, beta, mean, var = bn
    y = lax.conv_general_dilated(x, w, (stride, stride), ((1, 1), (1, 1)),
                                 dimension_numbers=("NCHW", "OIHW", "NCHW"),
                                 precision=lax.Precision.HIGHEST)
    y = y + b.reshape(1, -1, 1, 1)
    scale = (gamma / jnp.sqrt(var + BN_EPS)).reshape(1, -1, 1, 1)
    y = scale * (y - mean.reshape(1, -1, 1, 1)) + beta.reshape(1, -1, 1, 1)
    if residual is not None:
        y = y + residual
    if act == "elu":
        y = jnp.where(y > 0, y, jnp.exp(jnp.minimum(y, 0.0)) - 1.0)
    return y


def _ref_res_block(x, p, *, stride, pooling):
    (c1w, c1b), bn1, (c2w, c2b), bn2, (dsw, dsb), dsbn = p
    a = _ref_conv_bn_act(x, c1w, c1b, bn1, stride=stride, act="elu")
    r = _ref_conv_bn_act(x, dsw, dsb, dsbn, stride=stride, act="none")
    out = _ref_conv_bn_act(a, c2w, c2b, bn2, stride=1, act="none", residual=r)
    if pooling:
        out = maxpool2x2(out)
    return out


def ref_forward(x, params):
    s = _ref_stft_logmag(x)
    (w, b), bn = params["conv1"]
    h = _ref_conv_bn_act(s, w, b, bn, stride=1, act="elu")
    h = _ref_res_block(h, params["block2"], stride=2, pooling=False)
    h = _ref_res_block(h, params["block3"], stride=2, pooling=True)
    h = _ref_res_block(h, params["block4"], stride=2, pooling=True)
    feat = h.reshape(h.shape[0], -1)
    w0, b0 = params["g0"]
    w1, b1 = params["g2"]
    hh = jnp.maximum(jnp.dot(feat, w0.T, precision=lax.Precision.HIGHEST) + b0, 0.0)
    return jnp.dot(hh, w1.T, precision=lax.Precision.HIGHEST) + b1


# --------------------------------- main --------------------------------------

if __name__ == "__main__":
    # 30-second, 2-channel sleep epoch (L=3000): STFT -> (B,2,129,43); the
    # conv stack shrinks it to (B,32,4,1) = 128 features, as g_net requires.
    B, C, L = 2, 2, 3000
    key = jax.random.PRNGKey(0)
    k_x, k_p = jax.random.split(key)
    x = jax.random.normal(k_x, (B, C, L), dtype=jnp.float32)
    params = init_params(k_p)

    out = jax.block_until_ready(jax.jit(mldg_forward)(x, params))
    assert out.shape == (B, 5)
    assert bool(jnp.all(jnp.isfinite(out)))

    ref = jax.block_until_ready(jax.jit(ref_forward)(x, params))
    max_err = float(jnp.max(jnp.abs(out - ref)))
    assert jnp.allclose(out, ref, atol=5e-2, rtol=5e-2), f"max abs err {max_err}"

    print("KERNEL_OK")
</pallas_src>

<mosaic_0001>
module attributes {stable_mosaic.version = 11 : i64} {
  func.func @_stft_logmag_kernel(%arg0: i32, %arg1: memref<1x43x256xf32, #tpu.memory_space<vmem>>, %arg2: memref<129x256xf32, #tpu.memory_space<vmem>>, %arg3: memref<129x256xf32, #tpu.memory_space<vmem>>, %arg4: memref<1x129x43xf32, #tpu.memory_space<vmem>>) attributes {dimension_semantics = [#tpu.dimension_semantics<parallel>], iteration_bounds = array<i64: 4>, scalar_prefetch = 0 : i64, scratch_operands = 0 : i64, tpu.core_type = #tpu.core_type<tc>, window_params = [{transform_indices = @transform_0, window_bounds = array<i64: 1, 43, 256>}, {pipeline_mode = #tpu.pipeline_mode<synchronous>, transform_indices = @transform_1, window_bounds = array<i64: 129, 256>}, {pipeline_mode = #tpu.pipeline_mode<synchronous>, transform_indices = @transform_2, window_bounds = array<i64: 129, 256>}, {transform_indices = @transform_3, window_bounds = array<i64: 1, 129, 43>}]} {
    %c0 = arith.constant 0 : index
    %c0_0 = arith.constant 0 : index
    %c0_1 = arith.constant 0 : index
    %0 = vector.load %arg1[%c0, %c0_0, %c0_1] : memref<1x43x256xf32, #tpu.memory_space<vmem>>, vector<1x43x256xf32>
    %1 = vector.shape_cast %0 : vector<1x43x256xf32> to vector<43x256xf32>
    %c0_2 = arith.constant 0 : index
    %c0_3 = arith.constant 0 : index
    %2 = vector.load %arg2[%c0_2, %c0_3] : memref<129x256xf32, #tpu.memory_space<vmem>>, vector<129x256xf32>
    %c0_4 = arith.constant 0 : index
    %c0_5 = arith.constant 0 : index
    %3 = vector.load %arg3[%c0_4, %c0_5] : memref<129x256xf32, #tpu.memory_space<vmem>>, vector<129x256xf32>
    %cst = arith.constant dense<0.000000e+00> : vector<129x43xf32>
    %4 = tpu.matmul %2, %1, %cst {dimension_numbers = #tpu.dot_dimension_numbers<[1], [1], [0], [0], [0, 0, 1, 0], [], []>} : vector<129x256xf32>, vector<43x256xf32>, vector<129x43xf32> -> vector<129x43xf32>
    %cst_6 = arith.constant dense<0.000000e+00> : vector<129x43xf32>
    %5 = tpu.matmul %3, %1, %cst_6 {dimension_numbers = #tpu.dot_dimension_numbers<[1], [1], [0], [0], [0, 0, 1, 0], [], []>} : vector<129x256xf32>, vector<43x256xf32>, vector<129x43xf32> -> vector<129x43xf32>
    %6 = arith.mulf %4, %4 : vector<129x43xf32>
    %7 = arith.mulf %5, %5 : vector<129x43xf32>
    %8 = arith.addf %6, %7 : vector<129x43xf32>
    %9 = math.sqrt %8 : vector<129x43xf32>
    %cst_7 = arith.constant 9.99999993E-9 : f32
    %10 = vector.broadcast %cst_7 : f32 to vector<129x43xf32>
    %11 = arith.maximumf %9, %10 : vector<129x43xf32>
    %12 = math.log %11 : vector<129x43xf32>
    %cst_8 = arith.constant 0.000000e+00 : f32
    %13 = vector.broadcast %cst_8 : f32 to vector<129x43xf32>
    %14 = arith.maximumf %12, %13 : vector<129x43xf32>
    %c0_9 = arith.constant 0 : index
    %c0_10 = arith.constant 0 : index
    %c0_11 = arith.constant 0 : index
    %15 = vector.load %arg4[%c0_9, %c0_10, %c0_11] : memref<1x129x43xf32, #tpu.memory_space<vmem>>, vector<1x129x43xf32>
    %16 = vector.shape_cast %15 : vector<1x129x43xf32> to vector<129x43xf32>
    %17 = vector.shape_cast %14 : vector<129x43xf32> to vector<1x129x43xf32>
    tpu.vector_store %arg4[%c0_9, %c0_10, %c0_11], %17 {strides = array<i32>} : memref<1x129x43xf32, #tpu.memory_space<vmem>>, vector<1x129x43xf32>,
    return
  }
  func.func @transform_0(%arg0: i32) -> (i32, i32, i32) {
    %c0_i32 = arith.constant 0 : i32
    %c0_i32_0 = arith.constant 0 : i32
    %c0_i32_1 = arith.constant 0 : i32
    return %arg0, %c0_i32, %c0_i32_0 : i32, i32, i32
  }
  func.func @transform_1(%arg0: i32) -> (i32, i32) {
    %c0_i32 = arith.constant 0 : i32
    %c0_i32_0 = arith.constant 0 : i32
    %c0_i32_1 = arith.constant 0 : i32
    return %c0_i32, %c0_i32_0 : i32, i32
  }
  func.func @transform_2(%arg0: i32) -> (i32, i32) {
    %c0_i32 = arith.constant 0 : i32
    %c0_i32_0 = arith.constant 0 : i32
    %c0_i32_1 = arith.constant 0 : i32
    return %c0_i32, %c0_i32_0 : i32, i32
  }
  func.func @transform_3(%arg0: i32) -> (i32, i32, i32) {
    %c0_i32 = arith.constant 0 : i32
    %c0_i32_0 = arith.constant 0 : i32
    %c0_i32_1 = arith.constant 0 : i32
    return %arg0, %c0_i32, %c0_i32_0 : i32, i32, i32
  }
}

module attributes {stable_mosaic.version = 11 : i64} {
  func.func @kernel(%arg0: i32, %arg1: memref<1x18x5547xf32, #tpu.memory_space<vmem>>, %arg2: memref<6x18xf32, #tpu.memory_space<vmem>>, %arg3: memref<6x1xf32, #tpu.memory_space<vmem>>, %arg4: memref<6x1xf32, #tpu.memory_space<vmem>>, %arg5: memref<1x6x5547xf32, #tpu.memory_space<vmem>>) attributes {dimension_semantics = [#tpu.dimension_semantics<parallel>], iteration_bounds = array<i64: 2>, scalar_prefetch = 0 : i64, scratch_operands = 0 : i64, tpu.core_type = #tpu.core_type<tc>, window_params = [{transform_indices = @transform_0, window_bounds = array<i64: 1, 18, 5547>}, {pipeline_mode = #tpu.pipeline_mode<synchronous>, transform_indices = @transform_1, window_bounds = array<i64: 6, 18>}, {pipeline_mode = #tpu.pipeline_mode<synchronous>, transform_indices = @transform_2, window_bounds = array<i64: 6, 1>}, {pipeline_mode = #tpu.pipeline_mode<synchronous>, transform_indices = @transform_3, window_bounds = array<i64: 6, 1>}, {transform_indices = @transform_4, window_bounds = array<i64: 1, 6, 5547>}]} {
    %c0 = arith.constant 0 : index
    %c0_0 = arith.constant 0 : index
    %c0_1 = arith.constant 0 : index
    %0 = vector.load %arg1[%c0, %c0_0, %c0_1] : memref<1x18x5547xf32, #tpu.memory_space<vmem>>, vector<1x18x5547xf32>
    %1 = vector.shape_cast %0 : vector<1x18x5547xf32> to vector<18x5547xf32>
    %c0_2 = arith.constant 0 : index
    %c0_3 = arith.constant 0 : index
    %2 = vector.load %arg2[%c0_2, %c0_3] : memref<6x18xf32, #tpu.memory_space<vmem>>, vector<6x18xf32>
    %cst = arith.constant dense<0.000000e+00> : vector<6x5547xf32>
    %3 = tpu.matmul %2, %1, %cst {dimension_numbers = #tpu.dot_dimension_numbers<[1], [0], [0], [1], [0, 0, 1, 1], [], []>} : vector<6x18xf32>, vector<18x5547xf32>, vector<6x5547xf32> -> vector<6x5547xf32>
    %c0_4 = arith.constant 0 : index
    %c0_5 = arith.constant 0 : index
    %4 = vector.load %arg3[%c0_4, %c0_5] : memref<6x1xf32, #tpu.memory_space<vmem>>, vector<6x1xf32>
    %5 = vector.broadcast %4 : vector<6x1xf32> to vector<6x5547xf32>
    %6 = arith.mulf %3, %5 : vector<6x5547xf32>
    %c0_6 = arith.constant 0 : index
    %c0_7 = arith.constant 0 : index
    %7 = vector.load %arg4[%c0_6, %c0_7] : memref<6x1xf32, #tpu.memory_space<vmem>>, vector<6x1xf32>
    %8 = vector.broadcast %7 : vector<6x1xf32> to vector<6x5547xf32>
    %9 = arith.addf %6, %8 : vector<6x5547xf32>
    %cst_8 = arith.constant 0.000000e+00 : f32
    %10 = vector.broadcast %cst_8 : f32 to vector<6x5547xf32>
    %11 = arith.cmpf ogt, %9, %10 : vector<6x5547xf32>
    %cst_9 = arith.constant 0.000000e+00 : f32
    %12 = vector.broadcast %cst_9 : f32 to vector<6x5547xf32>
    %13 = arith.minimumf %9, %12 : vector<6x5547xf32>
    %14 = math.exp %13 : vector<6x5547xf32>
    %cst_10 = arith.constant 1.000000e+00 : f32
    %15 = vector.broadcast %cst_10 : f32 to vector<6x5547xf32>
    %16 = arith.subf %14, %15 : vector<6x5547xf32>
    %17 = arith.select %11, %9, %16 : vector<6x5547xi1>, vector<6x5547xf32>
    %c0_11 = arith.constant 0 : index
    %c0_12 = arith.constant 0 : index
    %c0_13 = arith.constant 0 : index
    %18 = vector.load %arg5[%c0_11, %c0_12, %c0_13] : memref<1x6x5547xf32, #tpu.memory_space<vmem>>, vector<1x6x5547xf32>
    %19 = vector.shape_cast %18 : vector<1x6x5547xf32> to vector<6x5547xf32>
    %20 = vector.shape_cast %17 : vector<6x5547xf32> to vector<1x6x5547xf32>
    tpu.vector_store %arg5[%c0_11, %c0_12, %c0_13], %20 {strides = array<i32>} : memref<1x6x5547xf32, #tpu.memory_space<vmem>>, vector<1x6x5547xf32>,
    return
  }
  func.func @transform_0(%arg0: i32) -> (i32, i32, i32) {
    %c0_i32 = arith.constant 0 : i32
    %c0_i32_0 = arith.constant 0 : i32
    %c0_i32_1 = arith.constant 0 : i32
    return %arg0, %c0_i32, %c0_i32_0 : i32, i32, i32
  }
  func.func @transform_1(%arg0: i32) -> (i32, i32) {
    %c0_i32 = arith.constant 0 : i32
    %c0_i32_0 = arith.constant 0 : i32
    %c0_i32_1 = arith.constant 0 : i32
    return %c0_i32, %c0_i32_0 : i32, i32
  }
  func.func @transform_2(%arg0: i32) -> (i32, i32) {
    %c0_i32 = arith.constant 0 : i32
    %c0_i32_0 = arith.constant 0 : i32
    %c0_i32_1 = arith.constant 0 : i32
    return %c0_i32, %c0_i32_0 : i32, i32
  }
  func.func @transform_3(%arg0: i32) -> (i32, i32) {
    %c0_i32 = arith.constant 0 : i32
    %c0_i32_0 = arith.constant 0 : i32
    %c0_i32_1 = arith.constant 0 : i32
    return %c0_i32, %c0_i32_0 : i32, i32
  }
  func.func @transform_4(%arg0: i32) -> (i32, i32, i32) {
    %c0_i32 = arith.constant 0 : i32
    %c0_i32_0 = arith.constant 0 : i32
    %c0_i32_1 = arith.constant 0 : i32
    return %arg0, %c0_i32, %c0_i32_0 : i32, i32, i32
  }
}

module attributes {stable_mosaic.version = 11 : i64} {
  func.func @kernel(%arg0: i32, %arg1: memref<1x54x1430xf32, #tpu.memory_space<vmem>>, %arg2: memref<8x54xf32, #tpu.memory_space<vmem>>, %arg3: memref<8x1xf32, #tpu.memory_space<vmem>>, %arg4: memref<8x1xf32, #tpu.memory_space<vmem>>, %arg5: memref<1x8x1430xf32, #tpu.memory_space<vmem>>) attributes {dimension_semantics = [#tpu.dimension_semantics<parallel>], iteration_bounds = array<i64: 2>, scalar_prefetch = 0 : i64, scratch_operands = 0 : i64, tpu.core_type = #tpu.core_type<tc>, window_params = [{transform_indices = @transform_0, window_bounds = array<i64: 1, 54, 1430>}, {pipeline_mode = #tpu.pipeline_mode<synchronous>, transform_indices = @transform_1, window_bounds = array<i64: 8, 54>}, {pipeline_mode = #tpu.pipeline_mode<synchronous>, transform_indices = @transform_2, window_bounds = array<i64: 8, 1>}, {pipeline_mode = #tpu.pipeline_mode<synchronous>, transform_indices = @transform_3, window_bounds = array<i64: 8, 1>}, {transform_indices = @transform_4, window_bounds = array<i64: 1, 8, 1430>}]} {
    %c0 = arith.constant 0 : index
    %c0_0 = arith.constant 0 : index
    %c0_1 = arith.constant 0 : index
    %0 = vector.load %arg1[%c0, %c0_0, %c0_1] : memref<1x54x1430xf32, #tpu.memory_space<vmem>>, vector<1x54x1430xf32>
    %1 = vector.shape_cast %0 : vector<1x54x1430xf32> to vector<54x1430xf32>
    %c0_2 = arith.constant 0 : index
    %c0_3 = arith.constant 0 : index
    %2 = vector.load %arg2[%c0_2, %c0_3] : memref<8x54xf32, #tpu.memory_space<vmem>>, vector<8x54xf32>
    %cst = arith.constant dense<0.000000e+00> : vector<8x1430xf32>
    %3 = tpu.matmul %2, %1, %cst {dimension_numbers = #tpu.dot_dimension_numbers<[1], [0], [0], [1], [0, 0, 1, 1], [], []>} : vector<8x54xf32>, vector<54x1430xf32>, vector<8x1430xf32> -> vector<8x1430xf32>
    %c0_4 = arith.constant 0 : index
    %c0_5 = arith.constant 0 : index
    %4 = vector.load %arg3[%c0_4, %c0_5] : memref<8x1xf32, #tpu.memory_space<vmem>>, vector<8x1xf32>
    %5 = vector.broadcast %4 : vector<8x1xf32> to vector<8x1430xf32>
    %6 = arith.mulf %3, %5 : vector<8x1430xf32>
    %c0_6 = arith.constant 0 : index
    %c0_7 = arith.constant 0 : index
    %7 = vector.load %arg4[%c0_6, %c0_7] : memref<8x1xf32, #tpu.memory_space<vmem>>, vector<8x1xf32>
    %8 = vector.broadcast %7 : vector<8x1xf32> to vector<8x1430xf32>
    %9 = arith.addf %6, %8 : vector<8x1430xf32>
    %cst_8 = arith.constant 0.000000e+00 : f32
    %10 = vector.broadcast %cst_8 : f32 to vector<8x1430xf32>
    %11 = arith.cmpf ogt, %9, %10 : vector<8x1430xf32>
    %cst_9 = arith.constant 0.000000e+00 : f32
    %12 = vector.broadcast %cst_9 : f32 to vector<8x1430xf32>
    %13 = arith.minimumf %9, %12 : vector<8x1430xf32>
    %14 = math.exp %13 : vector<8x1430xf32>
    %cst_10 = arith.constant 1.000000e+00 : f32
    %15 = vector.broadcast %cst_10 : f32 to vector<8x1430xf32>
    %16 = arith.subf %14, %15 : vector<8x1430xf32>
    %17 = arith.select %11, %9, %16 : vector<8x1430xi1>, vector<8x1430xf32>
    %c0_11 = arith.constant 0 : index
    %c0_12 = arith.constant 0 : index
    %c0_13 = arith.constant 0 : index
    %18 = vector.load %arg5[%c0_11, %c0_12, %c0_13] : memref<1x8x1430xf32, #tpu.memory_space<vmem>>, vector<1x8x1430xf32>
    %19 = vector.shape_cast %18 : vector<1x8x1430xf32> to vector<8x1430xf32>
    %20 = vector.shape_cast %17 : vector<8x1430xf32> to vector<1x8x1430xf32>
    tpu.vector_store %arg5[%c0_11, %c0_12, %c0_13], %20 {strides = array<i32>} : memref<1x8x1430xf32, #tpu.memory_space<vmem>>, vector<1x8x1430xf32>,
    return
  }
  func.func @transform_0(%arg0: i32) -> (i32, i32, i32) {
    %c0_i32 = arith.constant 0 : i32
    %c0_i32_0 = arith.constant 0 : i32
    %c0_i32_1 = arith.constant 0 : i32
    return %arg0, %c0_i32, %c0_i32_0 : i32, i32, i32
  }
  func.func @transform_1(%arg0: i32) -> (i32, i32) {
    %c0_i32 = arith.constant 0 : i32
    %c0_i32_0 = arith.constant 0 : i32
    %c0_i32_1 = arith.constant 0 : i32
    return %c0_i32, %c0_i32_0 : i32, i32
  }
  func.func @transform_2(%arg0: i32) -> (i32, i32) {
    %c0_i32 = arith.constant 0 : i32
    %c0_i32_0 = arith.constant 0 : i32
    %c0_i32_1 = arith.constant 0 : i32
    return %c0_i32, %c0_i32_0 : i32, i32
  }
  func.func @transform_3(%arg0: i32) -> (i32, i32) {
    %c0_i32 = arith.constant 0 : i32
    %c0_i32_0 = arith.constant 0 : i32
    %c0_i32_1 = arith.constant 0 : i32
    return %c0_i32, %c0_i32_0 : i32, i32
  }
  func.func @transform_4(%arg0: i32) -> (i32, i32, i32) {
    %c0_i32 = arith.constant 0 : i32
    %c0_i32_0 = arith.constant 0 : i32
    %c0_i32_1 = arith.constant 0 : i32
    return %arg0, %c0_i32, %c0_i32_0 : i32, i32, i32
  }
}

module attributes {stable_mosaic.version = 11 : i64} {
  func.func @kernel(%arg0: i32, %arg1: memref<1x54x1430xf32, #tpu.memory_space<vmem>>, %arg2: memref<8x54xf32, #tpu.memory_space<vmem>>, %arg3: memref<8x1xf32, #tpu.memory_space<vmem>>, %arg4: memref<8x1xf32, #tpu.memory_space<vmem>>, %arg5: memref<1x8x1430xf32, #tpu.memory_space<vmem>>) attributes {dimension_semantics = [#tpu.dimension_semantics<parallel>], iteration_bounds = array<i64: 2>, scalar_prefetch = 0 : i64, scratch_operands = 0 : i64, tpu.core_type = #tpu.core_type<tc>, window_params = [{transform_indices = @transform_0, window_bounds = array<i64: 1, 54, 1430>}, {pipeline_mode = #tpu.pipeline_mode<synchronous>, transform_indices = @transform_1, window_bounds = array<i64: 8, 54>}, {pipeline_mode = #tpu.pipeline_mode<synchronous>, transform_indices = @transform_2, window_bounds = array<i64: 8, 1>}, {pipeline_mode = #tpu.pipeline_mode<synchronous>, transform_indices = @transform_3, window_bounds = array<i64: 8, 1>}, {transform_indices = @transform_4, window_bounds = array<i64: 1, 8, 1430>}]} {
    %c0 = arith.constant 0 : index
    %c0_0 = arith.constant 0 : index
    %c0_1 = arith.constant 0 : index
    %0 = vector.load %arg1[%c0, %c0_0, %c0_1] : memref<1x54x1430xf32, #tpu.memory_space<vmem>>, vector<1x54x1430xf32>
    %1 = vector.shape_cast %0 : vector<1x54x1430xf32> to vector<54x1430xf32>
    %c0_2 = arith.constant 0 : index
    %c0_3 = arith.constant 0 : index
    %2 = vector.load %arg2[%c0_2, %c0_3] : memref<8x54xf32, #tpu.memory_space<vmem>>, vector<8x54xf32>
    %cst = arith.constant dense<0.000000e+00> : vector<8x1430xf32>
    %3 = tpu.matmul %2, %1, %cst {dimension_numbers = #tpu.dot_dimension_numbers<[1], [0], [0], [1], [0, 0, 1, 1], [], []>} : vector<8x54xf32>, vector<54x1430xf32>, vector<8x1430xf32> -> vector<8x1430xf32>
    %c0_4 = arith.constant 0 : index
    %c0_5 = arith.constant 0 : index
    %4 = vector.load %arg3[%c0_4, %c0_5] : memref<8x1xf32, #tpu.memory_space<vmem>>, vector<8x1xf32>
    %5 = vector.broadcast %4 : vector<8x1xf32> to vector<8x1430xf32>
    %6 = arith.mulf %3, %5 : vector<8x1430xf32>
    %c0_6 = arith.constant 0 : index
    %c0_7 = arith.constant 0 : index
    %7 = vector.load %arg4[%c0_6, %c0_7] : memref<8x1xf32, #tpu.memory_space<vmem>>, vector<8x1xf32>
    %8 = vector.broadcast %7 : vector<8x1xf32> to vector<8x1430xf32>
    %9 = arith.addf %6, %8 : vector<8x1430xf32>
    %c0_8 = arith.constant 0 : index
    %c0_9 = arith.constant 0 : index
    %c0_10 = arith.constant 0 : index
    %10 = vector.load %arg5[%c0_8, %c0_9, %c0_10] : memref<1x8x1430xf32, #tpu.memory_space<vmem>>, vector<1x8x1430xf32>
    %11 = vector.shape_cast %10 : vector<1x8x1430xf32> to vector<8x1430xf32>
    %12 = vector.shape_cast %9 : vector<8x1430xf32> to vector<1x8x1430xf32>
    tpu.vector_store %arg5[%c0_8, %c0_9, %c0_10], %12 {strides = array<i32>} : memref<1x8x1430xf32, #tpu.memory_space<vmem>>, vector<1x8x1430xf32>,
    return
  }
  func.func @transform_0(%arg0: i32) -> (i32, i32, i32) {
    %c0_i32 = arith.constant 0 : i32
    %c0_i32_0 = arith.constant 0 : i32
    %c0_i32_1 = arith.constant 0 : i32
    return %arg0, %c0_i32, %c0_i32_0 : i32, i32, i32
  }
  func.func @transform_1(%arg0: i32) -> (i32, i32) {
    %c0_i32 = arith.constant 0 : i32
    %c0_i32_0 = arith.constant 0 : i32
    %c0_i32_1 = arith.constant 0 : i32
    return %c0_i32, %c0_i32_0 : i32, i32
  }
  func.func @transform_2(%arg0: i32) -> (i32, i32) {
    %c0_i32 = arith.constant 0 : i32
    %c0_i32_0 = arith.constant 0 : i32
    %c0_i32_1 = arith.constant 0 : i32
    return %c0_i32, %c0_i32_0 : i32, i32
  }
  func.func @transform_3(%arg0: i32) -> (i32, i32) {
    %c0_i32 = arith.constant 0 : i32
    %c0_i32_0 = arith.constant 0 : i32
    %c0_i32_1 = arith.constant 0 : i32
    return %c0_i32, %c0_i32_0 : i32, i32
  }
  func.func @transform_4(%arg0: i32) -> (i32, i32, i32) {
    %c0_i32 = arith.constant 0 : i32
    %c0_i32_0 = arith.constant 0 : i32
    %c0_i32_1 = arith.constant 0 : i32
    return %arg0, %c0_i32, %c0_i32_0 : i32, i32, i32
  }
}

module attributes {stable_mosaic.version = 11 : i64} {
  func.func @kernel(%arg0: i32, %arg1: memref<1x72x1430xf32, #tpu.memory_space<vmem>>, %arg2: memref<8x72xf32, #tpu.memory_space<vmem>>, %arg3: memref<8x1xf32, #tpu.memory_space<vmem>>, %arg4: memref<8x1xf32, #tpu.memory_space<vmem>>, %arg5: memref<1x8x1430xf32, #tpu.memory_space<vmem>>, %arg6: memref<1x8x1430xf32, #tpu.memory_space<vmem>>) attributes {dimension_semantics = [#tpu.dimension_semantics<parallel>], iteration_bounds = array<i64: 2>, scalar_prefetch = 0 : i64, scratch_operands = 0 : i64, tpu.core_type = #tpu.core_type<tc>, window_params = [{transform_indices = @transform_0, window_bounds = array<i64: 1, 72, 1430>}, {pipeline_mode = #tpu.pipeline_mode<synchronous>, transform_indices = @transform_1, window_bounds = array<i64: 8, 72>}, {pipeline_mode = #tpu.pipeline_mode<synchronous>, transform_indices = @transform_2, window_bounds = array<i64: 8, 1>}, {pipeline_mode = #tpu.pipeline_mode<synchronous>, transform_indices = @transform_3, window_bounds = array<i64: 8, 1>}, {transform_indices = @transform_4, window_bounds = array<i64: 1, 8, 1430>}, {transform_indices = @transform_5, window_bounds = array<i64: 1, 8, 1430>}]} {
    %c0 = arith.constant 0 : index
    %c0_0 = arith.constant 0 : index
    %c0_1 = arith.constant 0 : index
    %0 = vector.load %arg1[%c0, %c0_0, %c0_1] : memref<1x72x1430xf32, #tpu.memory_space<vmem>>, vector<1x72x1430xf32>
    %1 = vector.shape_cast %0 : vector<1x72x1430xf32> to vector<72x1430xf32>
    %c0_2 = arith.constant 0 : index
    %c0_3 = arith.constant 0 : index
    %2 = vector.load %arg2[%c0_2, %c0_3] : memref<8x72xf32, #tpu.memory_space<vmem>>, vector<8x72xf32>
    %cst = arith.constant dense<0.000000e+00> : vector<8x1430xf32>
    %3 = tpu.matmul %2, %1, %cst {dimension_numbers = #tpu.dot_dimension_numbers<[1], [0], [0], [1], [0, 0, 1, 1], [], []>} : vector<8x72xf32>, vector<72x1430xf32>, vector<8x1430xf32> -> vector<8x1430xf32>
    %c0_4 = arith.constant 0 : index
    %c0_5 = arith.constant 0 : index
    %4 = vector.load %arg3[%c0_4, %c0_5] : memref<8x1xf32, #tpu.memory_space<vmem>>, vector<8x1xf32>
    %5 = vector.broadcast %4 : vector<8x1xf32> to vector<8x1430xf32>
    %6 = arith.mulf %3, %5 : vector<8x1430xf32>
    %c0_6 = arith.constant 0 : index
    %c0_7 = arith.constant 0 : index
    %7 = vector.load %arg4[%c0_6, %c0_7] : memref<8x1xf32, #tpu.memory_space<vmem>>, vector<8x1xf32>
    %8 = vector.broadcast %7 : vector<8x1xf32> to vector<8x1430xf32>
    %9 = arith.addf %6, %8 : vector<8x1430xf32>
    %c0_8 = arith.constant 0 : index
    %c0_9 = arith.constant 0 : index
    %c0_10 = arith.constant 0 : index
    %10 = vector.load %arg5[%c0_8, %c0_9, %c0_10] : memref<1x8x1430xf32, #tpu.memory_space<vmem>>, vector<1x8x1430xf32>
    %11 = vector.shape_cast %10 : vector<1x8x1430xf32> to vector<8x1430xf32>
    %12 = arith.addf %9, %11 : vector<8x1430xf32>
    %c0_11 = arith.constant 0 : index
    %c0_12 = arith.constant 0 : index
    %c0_13 = arith.constant 0 : index
    %13 = vector.load %arg6[%c0_11, %c0_12, %c0_13] : memref<1x8x1430xf32, #tpu.memory_space<vmem>>, vector<1x8x1430xf32>
    %14 = vector.shape_cast %13 : vector<1x8x1430xf32> to vector<8x1430xf32>
    %15 = vector.shape_cast %12 : vector<8x1430xf32> to vector<1x8x1430xf32>
    tpu.vector_store %arg6[%c0_11, %c0_12, %c0_13], %15 {strides = array<i32>} : memref<1x8x1430xf32, #tpu.memory_space<vmem>>, vector<1x8x1430xf32>,
    return
  }
  func.func @transform_0(%arg0: i32) -> (i32, i32, i32) {
    %c0_i32 = arith.constant 0 : i32
    %c0_i32_0 = arith.constant 0 : i32
    %c0_i32_1 = arith.constant 0 : i32
    return %arg0, %c0_i32, %c0_i32_0 : i32, i32, i32
  }
  func.func @transform_1(%arg0: i32) -> (i32, i32) {
    %c0_i32 = arith.constant 0 : i32
    %c0_i32_0 = arith.constant 0 : i32
    %c0_i32_1 = arith.constant 0 : i32
    return %c0_i32, %c0_i32_0 : i32, i32
  }
  func.func @transform_2(%arg0: i32) -> (i32, i32) {
    %c0_i32 = arith.constant 0 : i32
    %c0_i32_0 = arith.constant 0 : i32
    %c0_i32_1 = arith.constant 0 : i32
    return %c0_i32, %c0_i32_0 : i32, i32
  }
  func.func @transform_3(%arg0: i32) -> (i32, i32) {
    %c0_i32 = arith.constant 0 : i32
    %c0_i32_0 = arith.constant 0 : i32
    %c0_i32_1 = arith.constant 0 : i32
    return %c0_i32, %c0_i32_0 : i32, i32
  }
  func.func @transform_4(%arg0: i32) -> (i32, i32, i32) {
    %c0_i32 = arith.constant 0 : i32
    %c0_i32_0 = arith.constant 0 : i32
    %c0_i32_1 = arith.constant 0 : i32
    return %arg0, %c0_i32, %c0_i32_0 : i32, i32, i32
  }
  func.func @transform_5(%arg0: i32) -> (i32, i32, i32) {
    %c0_i32 = arith.constant 0 : i32
    %c0_i32_0 = arith.constant 0 : i32
    %c0_i32_1 = arith.constant 0 : i32
    return %arg0, %c0_i32, %c0_i32_0 : i32, i32, i32
  }
}

module attributes {stable_mosaic.version = 11 : i64} {
  func.func @kernel(%arg0: i32, %arg1: memref<1x72x363xf32, #tpu.memory_space<vmem>>, %arg2: memref<16x72xf32, #tpu.memory_space<vmem>>, %arg3: memref<16x1xf32, #tpu.memory_space<vmem>>, %arg4: memref<16x1xf32, #tpu.memory_space<vmem>>, %arg5: memref<1x16x363xf32, #tpu.memory_space<vmem>>) attributes {dimension_semantics = [#tpu.dimension_semantics<parallel>], iteration_bounds = array<i64: 2>, scalar_prefetch = 0 : i64, scratch_operands = 0 : i64, tpu.core_type = #tpu.core_type<tc>, window_params = [{transform_indices = @transform_0, window_bounds = array<i64: 1, 72, 363>}, {pipeline_mode = #tpu.pipeline_mode<synchronous>, transform_indices = @transform_1, window_bounds = array<i64: 16, 72>}, {pipeline_mode = #tpu.pipeline_mode<synchronous>, transform_indices = @transform_2, window_bounds = array<i64: 16, 1>}, {pipeline_mode = #tpu.pipeline_mode<synchronous>, transform_indices = @transform_3, window_bounds = array<i64: 16, 1>}, {transform_indices = @transform_4, window_bounds = array<i64: 1, 16, 363>}]} {
    %c0 = arith.constant 0 : index
    %c0_0 = arith.constant 0 : index
    %c0_1 = arith.constant 0 : index
    %0 = vector.load %arg1[%c0, %c0_0, %c0_1] : memref<1x72x363xf32, #tpu.memory_space<vmem>>, vector<1x72x363xf32>
    %1 = vector.shape_cast %0 : vector<1x72x363xf32> to vector<72x363xf32>
    %c0_2 = arith.constant 0 : index
    %c0_3 = arith.constant 0 : index
    %2 = vector.load %arg2[%c0_2, %c0_3] : memref<16x72xf32, #tpu.memory_space<vmem>>, vector<16x72xf32>
    %cst = arith.constant dense<0.000000e+00> : vector<16x363xf32>
    %3 = tpu.matmul %2, %1, %cst {dimension_numbers = #tpu.dot_dimension_numbers<[1], [0], [0], [1], [0, 0, 1, 1], [], []>} : vector<16x72xf32>, vector<72x363xf32>, vector<16x363xf32> -> vector<16x363xf32>
    %c0_4 = arith.constant 0 : index
    %c0_5 = arith.constant 0 : index
    %4 = vector.load %arg3[%c0_4, %c0_5] : memref<16x1xf32, #tpu.memory_space<vmem>>, vector<16x1xf32>
    %5 = vector.broadcast %4 : vector<16x1xf32> to vector<16x363xf32>
    %6 = arith.mulf %3, %5 : vector<16x363xf32>
    %c0_6 = arith.constant 0 : index
    %c0_7 = arith.constant 0 : index
    %7 = vector.load %arg4[%c0_6, %c0_7] : memref<16x1xf32, #tpu.memory_space<vmem>>, vector<16x1xf32>
    %8 = vector.broadcast %7 : vector<16x1xf32> to vector<16x363xf32>
    %9 = arith.addf %6, %8 : vector<16x363xf32>
    %cst_8 = arith.constant 0.000000e+00 : f32
    %10 = vector.broadcast %cst_8 : f32 to vector<16x363xf32>
    %11 = arith.cmpf ogt, %9, %10 : vector<16x363xf32>
    %cst_9 = arith.constant 0.000000e+00 : f32
    %12 = vector.broadcast %cst_9 : f32 to vector<16x363xf32>
    %13 = arith.minimumf %9, %12 : vector<16x363xf32>
    %14 = math.exp %13 : vector<16x363xf32>
    %cst_10 = arith.constant 1.000000e+00 : f32
    %15 = vector.broadcast %cst_10 : f32 to vector<16x363xf32>
    %16 = arith.subf %14, %15 : vector<16x363xf32>
    %17 = arith.select %11, %9, %16 : vector<16x363xi1>, vector<16x363xf32>
    %c0_11 = arith.constant 0 : index
    %c0_12 = arith.constant 0 : index
    %c0_13 = arith.constant 0 : index
    %18 = vector.load %arg5[%c0_11, %c0_12, %c0_13] : memref<1x16x363xf32, #tpu.memory_space<vmem>>, vector<1x16x363xf32>
    %19 = vector.shape_cast %18 : vector<1x16x363xf32> to vector<16x363xf32>
    %20 = vector.shape_cast %17 : vector<16x363xf32> to vector<1x16x363xf32>
    tpu.vector_store %arg5[%c0_11, %c0_12, %c0_13], %20 {strides = array<i32>} : memref<1x16x363xf32, #tpu.memory_space<vmem>>, vector<1x16x363xf32>,
    return
  }
  func.func @transform_0(%arg0: i32) -> (i32, i32, i32) {
    %c0_i32 = arith.constant 0 : i32
    %c0_i32_0 = arith.constant 0 : i32
    %c0_i32_1 = arith.constant 0 : i32
    return %arg0, %c0_i32, %c0_i32_0 : i32, i32, i32
  }
  func.func @transform_1(%arg0: i32) -> (i32, i32) {
    %c0_i32 = arith.constant 0 : i32
    %c0_i32_0 = arith.constant 0 : i32
    %c0_i32_1 = arith.constant 0 : i32
    return %c0_i32, %c0_i32_0 : i32, i32
  }
  func.func @transform_2(%arg0: i32) -> (i32, i32) {
    %c0_i32 = arith.constant 0 : i32
    %c0_i32_0 = arith.constant 0 : i32
    %c0_i32_1 = arith.constant 0 : i32
    return %c0_i32, %c0_i32_0 : i32, i32
  }
  func.func @transform_3(%arg0: i32) -> (i32, i32) {
    %c0_i32 = arith.constant 0 : i32
    %c0_i32_0 = arith.constant 0 : i32
    %c0_i32_1 = arith.constant 0 : i32
    return %c0_i32, %c0_i32_0 : i32, i32
  }
  func.func @transform_4(%arg0: i32) -> (i32, i32, i32) {
    %c0_i32 = arith.constant 0 : i32
    %c0_i32_0 = arith.constant 0 : i32
    %c0_i32_1 = arith.constant 0 : i32
    return %arg0, %c0_i32, %c0_i32_0 : i32, i32, i32
  }
}

module attributes {stable_mosaic.version = 11 : i64} {
  func.func @kernel(%arg0: i32, %arg1: memref<1x72x363xf32, #tpu.memory_space<vmem>>, %arg2: memref<16x72xf32, #tpu.memory_space<vmem>>, %arg3: memref<16x1xf32, #tpu.memory_space<vmem>>, %arg4: memref<16x1xf32, #tpu.memory_space<vmem>>, %arg5: memref<1x16x363xf32, #tpu.memory_space<vmem>>) attributes {dimension_semantics = [#tpu.dimension_semantics<parallel>], iteration_bounds = array<i64: 2>, scalar_prefetch = 0 : i64, scratch_operands = 0 : i64, tpu.core_type = #tpu.core_type<tc>, window_params = [{transform_indices = @transform_0, window_bounds = array<i64: 1, 72, 363>}, {pipeline_mode = #tpu.pipeline_mode<synchronous>, transform_indices = @transform_1, window_bounds = array<i64: 16, 72>}, {pipeline_mode = #tpu.pipeline_mode<synchronous>, transform_indices = @transform_2, window_bounds = array<i64: 16, 1>}, {pipeline_mode = #tpu.pipeline_mode<synchronous>, transform_indices = @transform_3, window_bounds = array<i64: 16, 1>}, {transform_indices = @transform_4, window_bounds = array<i64: 1, 16, 363>}]} {
    %c0 = arith.constant 0 : index
    %c0_0 = arith.constant 0 : index
    %c0_1 = arith.constant 0 : index
    %0 = vector.load %arg1[%c0, %c0_0, %c0_1] : memref<1x72x363xf32, #tpu.memory_space<vmem>>, vector<1x72x363xf32>
    %1 = vector.shape_cast %0 : vector<1x72x363xf32> to vector<72x363xf32>
    %c0_2 = arith.constant 0 : index
    %c0_3 = arith.constant 0 : index
    %2 = vector.load %arg2[%c0_2, %c0_3] : memref<16x72xf32, #tpu.memory_space<vmem>>, vector<16x72xf32>
    %cst = arith.constant dense<0.000000e+00> : vector<16x363xf32>
    %3 = tpu.matmul %2, %1, %cst {dimension_numbers = #tpu.dot_dimension_numbers<[1], [0], [0], [1], [0, 0, 1, 1], [], []>} : vector<16x72xf32>, vector<72x363xf32>, vector<16x363xf32> -> vector<16x363xf32>
    %c0_4 = arith.constant 0 : index
    %c0_5 = arith.constant 0 : index
    %4 = vector.load %arg3[%c0_4, %c0_5] : memref<16x1xf32, #tpu.memory_space<vmem>>, vector<16x1xf32>
    %5 = vector.broadcast %4 : vector<16x1xf32> to vector<16x363xf32>
    %6 = arith.mulf %3, %5 : vector<16x363xf32>
    %c0_6 = arith.constant 0 : index
    %c0_7 = arith.constant 0 : index
    %7 = vector.load %arg4[%c0_6, %c0_7] : memref<16x1xf32, #tpu.memory_space<vmem>>, vector<16x1xf32>
    %8 = vector.broadcast %7 : vector<16x1xf32> to vector<16x363xf32>
    %9 = arith.addf %6, %8 : vector<16x363xf32>
    %c0_8 = arith.constant 0 : index
    %c0_9 = arith.constant 0 : index
    %c0_10 = arith.constant 0 : index
    %10 = vector.load %arg5[%c0_8, %c0_9, %c0_10] : memref<1x16x363xf32, #tpu.memory_space<vmem>>, vector<1x16x363xf32>
    %11 = vector.shape_cast %10 : vector<1x16x363xf32> to vector<16x363xf32>
    %12 = vector.shape_cast %9 : vector<16x363xf32> to vector<1x16x363xf32>
    tpu.vector_store %arg5[%c0_8, %c0_9, %c0_10], %12 {strides = array<i32>} : memref<1x16x363xf32, #tpu.memory_space<vmem>>, vector<1x16x363xf32>,
    return
  }
  func.func @transform_0(%arg0: i32) -> (i32, i32, i32) {
    %c0_i32 = arith.constant 0 : i32
    %c0_i32_0 = arith.constant 0 : i32
    %c0_i32_1 = arith.constant 0 : i32
    return %arg0, %c0_i32, %c0_i32_0 : i32, i32, i32
  }
  func.func @transform_1(%arg0: i32) -> (i32, i32) {
    %c0_i32 = arith.constant 0 : i32
    %c0_i32_0 = arith.constant 0 : i32
    %c0_i32_1 = arith.constant 0 : i32
    return %c0_i32, %c0_i32_0 : i32, i32
  }
  func.func @transform_2(%arg0: i32) -> (i32, i32) {
    %c0_i32 = arith.constant 0 : i32
    %c0_i32_0 = arith.constant 0 : i32
    %c0_i32_1 = arith.constant 0 : i32
    return %c0_i32, %c0_i32_0 : i32, i32
  }
  func.func @transform_3(%arg0: i32) -> (i32, i32) {
    %c0_i32 = arith.constant 0 : i32
    %c0_i32_0 = arith.constant 0 : i32
    %c0_i32_1 = arith.constant 0 : i32
    return %c0_i32, %c0_i32_0 : i32, i32
  }
  func.func @transform_4(%arg0: i32) -> (i32, i32, i32) {
    %c0_i32 = arith.constant 0 : i32
    %c0_i32_0 = arith.constant 0 : i32
    %c0_i32_1 = arith.constant 0 : i32
    return %arg0, %c0_i32, %c0_i32_0 : i32, i32, i32
  }
}

module attributes {stable_mosaic.version = 11 : i64} {
  func.func @kernel(%arg0: i32, %arg1: memref<1x144x363xf32, #tpu.memory_space<vmem>>, %arg2: memref<16x144xf32, #tpu.memory_space<vmem>>, %arg3: memref<16x1xf32, #tpu.memory_space<vmem>>, %arg4: memref<16x1xf32, #tpu.memory_space<vmem>>, %arg5: memref<1x16x363xf32, #tpu.memory_space<vmem>>, %arg6: memref<1x16x363xf32, #tpu.memory_space<vmem>>) attributes {dimension_semantics = [#tpu.dimension_semantics<parallel>], iteration_bounds = array<i64: 2>, scalar_prefetch = 0 : i64, scratch_operands = 0 : i64, tpu.core_type = #tpu.core_type<tc>, window_params = [{transform_indices = @transform_0, window_bounds = array<i64: 1, 144, 363>}, {pipeline_mode = #tpu.pipeline_mode<synchronous>, transform_indices = @transform_1, window_bounds = array<i64: 16, 144>}, {pipeline_mode = #tpu.pipeline_mode<synchronous>, transform_indices = @transform_2, window_bounds = array<i64: 16, 1>}, {pipeline_mode = #tpu.pipeline_mode<synchronous>, transform_indices = @transform_3, window_bounds = array<i64: 16, 1>}, {transform_indices = @transform_4, window_bounds = array<i64: 1, 16, 363>}, {transform_indices = @transform_5, window_bounds = array<i64: 1, 16, 363>}]} {
    %c0 = arith.constant 0 : index
    %c0_0 = arith.constant 0 : index
    %c0_1 = arith.constant 0 : index
    %0 = vector.load %arg1[%c0, %c0_0, %c0_1] : memref<1x144x363xf32, #tpu.memory_space<vmem>>, vector<1x144x363xf32>
    %1 = vector.shape_cast %0 : vector<1x144x363xf32> to vector<144x363xf32>
    %c0_2 = arith.constant 0 : index
    %c0_3 = arith.constant 0 : index
    %2 = vector.load %arg2[%c0_2, %c0_3] : memref<16x144xf32, #tpu.memory_space<vmem>>, vector<16x144xf32>
    %cst = arith.constant dense<0.000000e+00> : vector<16x363xf32>
    %3 = tpu.matmul %2, %1, %cst {dimension_numbers = #tpu.dot_dimension_numbers<[1], [0], [0], [1], [0, 0, 1, 1], [], []>} : vector<16x144xf32>, vector<144x363xf32>, vector<16x363xf32> -> vector<16x363xf32>
    %c0_4 = arith.constant 0 : index
    %c0_5 = arith.constant 0 : index
    %4 = vector.load %arg3[%c0_4, %c0_5] : memref<16x1xf32, #tpu.memory_space<vmem>>, vector<16x1xf32>
    %5 = vector.broadcast %4 : vector<16x1xf32> to vector<16x363xf32>
    %6 = arith.mulf %3, %5 : vector<16x363xf32>
    %c0_6 = arith.constant 0 : index
    %c0_7 = arith.constant 0 : index
    %7 = vector.load %arg4[%c0_6, %c0_7] : memref<16x1xf32, #tpu.memory_space<vmem>>, vector<16x1xf32>
    %8 = vector.broadcast %7 : vector<16x1xf32> to vector<16x363xf32>
    %9 = arith.addf %6, %8 : vector<16x363xf32>
    %c0_8 = arith.constant 0 : index
    %c0_9 = arith.constant 0 : index
    %c0_10 = arith.constant 0 : index
    %10 = vector.load %arg5[%c0_8, %c0_9, %c0_10] : memref<1x16x363xf32, #tpu.memory_space<vmem>>, vector<1x16x363xf32>
    %11 = vector.shape_cast %10 : vector<1x16x363xf32> to vector<16x363xf32>
    %12 = arith.addf %9, %11 : vector<16x363xf32>
    %c0_11 = arith.constant 0 : index
    %c0_12 = arith.constant 0 : index
    %c0_13 = arith.constant 0 : index
    %13 = vector.load %arg6[%c0_11, %c0_12, %c0_13] : memref<1x16x363xf32, #tpu.memory_space<vmem>>, vector<1x16x363xf32>
    %14 = vector.shape_cast %13 : vector<1x16x363xf32> to vector<16x363xf32>
    %15 = vector.shape_cast %12 : vector<16x363xf32> to vector<1x16x363xf32>
    tpu.vector_store %arg6[%c0_11, %c0_12, %c0_13], %15 {strides = array<i32>} : memref<1x16x363xf32, #tpu.memory_space<vmem>>, vector<1x16x363xf32>,
    return
  }
  func.func @transform_0(%arg0: i32) -> (i32, i32, i32) {
    %c0_i32 = arith.constant 0 : i32
    %c0_i32_0 = arith.constant 0 : i32
    %c0_i32_1 = arith.constant 0 : i32
    return %arg0, %c0_i32, %c0_i32_0 : i32, i32, i32
  }
  func.func @transform_1(%arg0: i32) -> (i32, i32) {
    %c0_i32 = arith.constant 0 : i32
    %c0_i32_0 = arith.constant 0 : i32
    %c0_i32_1 = arith.constant 0 : i32
    return %c0_i32, %c0_i32_0 : i32, i32
  }
  func.func @transform_2(%arg0: i32) -> (i32, i32) {
    %c0_i32 = arith.constant 0 : i32
    %c0_i32_0 = arith.constant 0 : i32
    %c0_i32_1 = arith.constant 0 : i32
    return %c0_i32, %c0_i32_0 : i32, i32
  }
  func.func @transform_3(%arg0: i32) -> (i32, i32) {
    %c0_i32 = arith.constant 0 : i32
    %c0_i32_0 = arith.constant 0 : i32
    %c0_i32_1 = arith.constant 0 : i32
    return %c0_i32, %c0_i32_0 : i32, i32
  }
  func.func @transform_4(%arg0: i32) -> (i32, i32, i32) {
    %c0_i32 = arith.constant 0 : i32
    %c0_i32_0 = arith.constant 0 : i32
    %c0_i32_1 = arith.constant 0 : i32
    return %arg0, %c0_i32, %c0_i32_0 : i32, i32, i32
  }
  func.func @transform_5(%arg0: i32) -> (i32, i32, i32) {
    %c0_i32 = arith.constant 0 : i32
    %c0_i32_0 = arith.constant 0 : i32
    %c0_i32_1 = arith.constant 0 : i32
    return %arg0, %c0_i32, %c0_i32_0 : i32, i32, i32
  }
}

module attributes {stable_mosaic.version = 11 : i64} {
  func.func @kernel(%arg0: i32, %arg1: memref<1x144x24xf32, #tpu.memory_space<vmem>>, %arg2: memref<32x144xf32, #tpu.memory_space<vmem>>, %arg3: memref<32x1xf32, #tpu.memory_space<vmem>>, %arg4: memref<32x1xf32, #tpu.memory_space<vmem>>, %arg5: memref<1x32x24xf32, #tpu.memory_space<vmem>>) attributes {dimension_semantics = [#tpu.dimension_semantics<parallel>], iteration_bounds = array<i64: 2>, scalar_prefetch = 0 : i64, scratch_operands = 0 : i64, tpu.core_type = #tpu.core_type<tc>, window_params = [{transform_indices = @transform_0, window_bounds = array<i64: 1, 144, 24>}, {pipeline_mode = #tpu.pipeline_mode<synchronous>, transform_indices = @transform_1, window_bounds = array<i64: 32, 144>}, {pipeline_mode = #tpu.pipeline_mode<synchronous>, transform_indices = @transform_2, window_bounds = array<i64: 32, 1>}, {pipeline_mode = #tpu.pipeline_mode<synchronous>, transform_indices = @transform_3, window_bounds = array<i64: 32, 1>}, {transform_indices = @transform_4, window_bounds = array<i64: 1, 32, 24>}]} {
    %c0 = arith.constant 0 : index
    %c0_0 = arith.constant 0 : index
    %c0_1 = arith.constant 0 : index
    %0 = vector.load %arg1[%c0, %c0_0, %c0_1] : memref<1x144x24xf32, #tpu.memory_space<vmem>>, vector<1x144x24xf32>
    %1 = vector.shape_cast %0 : vector<1x144x24xf32> to vector<144x24xf32>
    %c0_2 = arith.constant 0 : index
    %c0_3 = arith.constant 0 : index
    %2 = vector.load %arg2[%c0_2, %c0_3] : memref<32x144xf32, #tpu.memory_space<vmem>>, vector<32x144xf32>
    %cst = arith.constant dense<0.000000e+00> : vector<32x24xf32>
    %3 = tpu.matmul %2, %1, %cst {dimension_numbers = #tpu.dot_dimension_numbers<[1], [0], [0], [1], [0, 0, 1, 1], [], []>} : vector<32x144xf32>, vector<144x24xf32>, vector<32x24xf32> -> vector<32x24xf32>
    %c0_4 = arith.constant 0 : index
    %c0_5 = arith.constant 0 : index
    %4 = vector.load %arg3[%c0_4, %c0_5] : memref<32x1xf32, #tpu.memory_space<vmem>>, vector<32x1xf32>
    %5 = vector.broadcast %4 : vector<32x1xf32> to vector<32x24xf32>
    %6 = arith.mulf %3, %5 : vector<32x24xf32>
    %c0_6 = arith.constant 0 : index
    %c0_7 = arith.constant 0 : index
    %7 = vector.load %arg4[%c0_6, %c0_7] : memref<32x1xf32, #tpu.memory_space<vmem>>, vector<32x1xf32>
    %8 = vector.broadcast %7 : vector<32x1xf32> to vector<32x24xf32>
    %9 = arith.addf %6, %8 : vector<32x24xf32>
    %cst_8 = arith.constant 0.000000e+00 : f32
    %10 = vector.broadcast %cst_8 : f32 to vector<32x24xf32>
    %11 = arith.cmpf ogt, %9, %10 : vector<32x24xf32>
    %cst_9 = arith.constant 0.000000e+00 : f32
    %12 = vector.broadcast %cst_9 : f32 to vector<32x24xf32>
    %13 = arith.minimumf %9, %12 : vector<32x24xf32>
    %14 = math.exp %13 : vector<32x24xf32>
    %cst_10 = arith.constant 1.000000e+00 : f32
    %15 = vector.broadcast %cst_10 : f32 to vector<32x24xf32>
    %16 = arith.subf %14, %15 : vector<32x24xf32>
    %17 = arith.select %11, %9, %16 : vector<32x24xi1>, vector<32x24xf32>
    %c0_11 = arith.constant 0 : index
    %c0_12 = arith.constant 0 : index
    %c0_13 = arith.constant 0 : index
    %18 = vector.load %arg5[%c0_11, %c0_12, %c0_13] : memref<1x32x24xf32, #tpu.memory_space<vmem>>, vector<1x32x24xf32>
    %19 = vector.shape_cast %18 : vector<1x32x24xf32> to vector<32x24xf32>
    %20 = vector.shape_cast %17 : vector<32x24xf32> to vector<1x32x24xf32>
    tpu.vector_store %arg5[%c0_11, %c0_12, %c0_13], %20 {strides = array<i32>} : memref<1x32x24xf32, #tpu.memory_space<vmem>>, vector<1x32x24xf32>,
    return
  }
  func.func @transform_0(%arg0: i32) -> (i32, i32, i32) {
    %c0_i32 = arith.constant 0 : i32
    %c0_i32_0 = arith.constant 0 : i32
    %c0_i32_1 = arith.constant 0 : i32
    return %arg0, %c0_i32, %c0_i32_0 : i32, i32, i32
  }
  func.func @transform_1(%arg0: i32) -> (i32, i32) {
    %c0_i32 = arith.constant 0 : i32
    %c0_i32_0 = arith.constant 0 : i32
    %c0_i32_1 = arith.constant 0 : i32
    return %c0_i32, %c0_i32_0 : i32, i32
  }
  func.func @transform_2(%arg0: i32) -> (i32, i32) {
    %c0_i32 = arith.constant 0 : i32
    %c0_i32_0 = arith.constant 0 : i32
    %c0_i32_1 = arith.constant 0 : i32
    return %c0_i32, %c0_i32_0 : i32, i32
  }
  func.func @transform_3(%arg0: i32) -> (i32, i32) {
    %c0_i32 = arith.constant 0 : i32
    %c0_i32_0 = arith.constant 0 : i32
    %c0_i32_1 = arith.constant 0 : i32
    return %c0_i32, %c0_i32_0 : i32, i32
  }
  func.func @transform_4(%arg0: i32) -> (i32, i32, i32) {
    %c0_i32 = arith.constant 0 : i32
    %c0_i32_0 = arith.constant 0 : i32
    %c0_i32_1 = arith.constant 0 : i32
    return %arg0, %c0_i32, %c0_i32_0 : i32, i32, i32
  }
}

module attributes {stable_mosaic.version = 11 : i64} {
  func.func @kernel(%arg0: i32, %arg1: memref<1x288x24xf32, #tpu.memory_space<vmem>>, %arg2: memref<32x288xf32, #tpu.memory_space<vmem>>, %arg3: memref<32x1xf32, #tpu.memory_space<vmem>>, %arg4: memref<32x1xf32, #tpu.memory_space<vmem>>, %arg5: memref<1x32x24xf32, #tpu.memory_space<vmem>>, %arg6: memref<1x32x24xf32, #tpu.memory_space<vmem>>) attributes {dimension_semantics = [#tpu.dimension_semantics<parallel>], iteration_bounds = array<i64: 2>, scalar_prefetch = 0 : i64, scratch_operands = 0 : i64, tpu.core_type = #tpu.core_type<tc>, window_params = [{transform_indices = @transform_0, window_bounds = array<i64: 1, 288, 24>}, {pipeline_mode = #tpu.pipeline_mode<synchronous>, transform_indices = @transform_1, window_bounds = array<i64: 32, 288>}, {pipeline_mode = #tpu.pipeline_mode<synchronous>, transform_indices = @transform_2, window_bounds = array<i64: 32, 1>}, {pipeline_mode = #tpu.pipeline_mode<synchronous>, transform_indices = @transform_3, window_bounds = array<i64: 32, 1>}, {transform_indices = @transform_4, window_bounds = array<i64: 1, 32, 24>}, {transform_indices = @transform_5, window_bounds = array<i64: 1, 32, 24>}]} {
    %c0 = arith.constant 0 : index
    %c0_0 = arith.constant 0 : index
    %c0_1 = arith.constant 0 : index
    %0 = vector.load %arg1[%c0, %c0_0, %c0_1] : memref<1x288x24xf32, #tpu.memory_space<vmem>>, vector<1x288x24xf32>
    %1 = vector.shape_cast %0 : vector<1x288x24xf32> to vector<288x24xf32>
    %c0_2 = arith.constant 0 : index
    %c0_3 = arith.constant 0 : index
    %2 = vector.load %arg2[%c0_2, %c0_3] : memref<32x288xf32, #tpu.memory_space<vmem>>, vector<32x288xf32>
    %cst = arith.constant dense<0.000000e+00> : vector<32x24xf32>
    %3 = tpu.matmul %2, %1, %cst {dimension_numbers = #tpu.dot_dimension_numbers<[1], [0], [0], [1], [0, 0, 1, 1], [], []>} : vector<32x288xf32>, vector<288x24xf32>, vector<32x24xf32> -> vector<32x24xf32>
    %c0_4 = arith.constant 0 : index
    %c0_5 = arith.constant 0 : index
    %4 = vector.load %arg3[%c0_4, %c0_5] : memref<32x1xf32, #tpu.memory_space<vmem>>, vector<32x1xf32>
    %5 = vector.broadcast %4 : vector<32x1xf32> to vector<32x24xf32>
    %6 = arith.mulf %3, %5 : vector<32x24xf32>
    %c0_6 = arith.constant 0 : index
    %c0_7 = arith.constant 0 : index
    %7 = vector.load %arg4[%c0_6, %c0_7] : memref<32x1xf32, #tpu.memory_space<vmem>>, vector<32x1xf32>
    %8 = vector.broadcast %7 : vector<32x1xf32> to vector<32x24xf32>
    %9 = arith.addf %6, %8 : vector<32x24xf32>
    %c0_8 = arith.constant 0 : index
    %c0_9 = arith.constant 0 : index
    %c0_10 = arith.constant 0 : index
    %10 = vector.load %arg5[%c0_8, %c0_9, %c0_10] : memref<1x32x24xf32, #tpu.memory_space<vmem>>, vector<1x32x24xf32>
    %11 = vector.shape_cast %10 : vector<1x32x24xf32> to vector<32x24xf32>
    %12 = arith.addf %9, %11 : vector<32x24xf32>
    %c0_11 = arith.constant 0 : index
    %c0_12 = arith.constant 0 : index
    %c0_13 = arith.constant 0 : index
    %13 = vector.load %arg6[%c0_11, %c0_12, %c0_13] : memref<1x32x24xf32, #tpu.memory_space<vmem>>, vector<1x32x24xf32>
    %14 = vector.shape_cast %13 : vector<1x32x24xf32> to vector<32x24xf32>
    %15 = vector.shape_cast %12 : vector<32x24xf32> to vector<1x32x24xf32>
    tpu.vector_store %arg6[%c0_11, %c0_12, %c0_13], %15 {strides = array<i32>} : memref<1x32x24xf32, #tpu.memory_space<vmem>>, vector<1x32x24xf32>,
    return
  }
  func.func @transform_0(%arg0: i32) -> (i32, i32, i32) {
    %c0_i32 = arith.constant 0 : i32
    %c0_i32_0 = arith.constant 0 : i32
    %c0_i32_1 = arith.constant 0 : i32
    return %arg0, %c0_i32, %c0_i32_0 : i32, i32, i32
  }
  func.func @transform_1(%arg0: i32) -> (i32, i32) {
    %c0_i32 = arith.constant 0 : i32
    %c0_i32_0 = arith.constant 0 : i32
    %c0_i32_1 = arith.constant 0 : i32
    return %c0_i32, %c0_i32_0 : i32, i32
  }
  func.func @transform_2(%arg0: i32) -> (i32, i32) {
    %c0_i32 = arith.constant 0 : i32
    %c0_i32_0 = arith.constant 0 : i32
    %c0_i32_1 = arith.constant 0 : i32
    return %c0_i32, %c0_i32_0 : i32, i32
  }
  func.func @transform_3(%arg0: i32) -> (i32, i32) {
    %c0_i32 = arith.constant 0 : i32
    %c0_i32_0 = arith.constant 0 : i32
    %c0_i32_1 = arith.constant 0 : i32
    return %c0_i32, %c0_i32_0 : i32, i32
  }
  func.func @transform_4(%arg0: i32) -> (i32, i32, i32) {
    %c0_i32 = arith.constant 0 : i32
    %c0_i32_0 = arith.constant 0 : i32
    %c0_i32_1 = arith.constant 0 : i32
    return %arg0, %c0_i32, %c0_i32_0 : i32, i32, i32
  }
  func.func @transform_5(%arg0: i32) -> (i32, i32, i32) {
    %c0_i32 = arith.constant 0 : i32
    %c0_i32_0 = arith.constant 0 : i32
    %c0_i32_1 = arith.constant 0 : i32
    return %arg0, %c0_i32, %c0_i32_0 : i32, i32, i32
  }
}

module attributes {stable_mosaic.version = 11 : i64} {
  func.func @kernel(%arg0: i32, %arg1: memref<1x144x24xf32, #tpu.memory_space<vmem>>, %arg2: memref<32x144xf32, #tpu.memory_space<vmem>>, %arg3: memref<32x1xf32, #tpu.memory_space<vmem>>, %arg4: memref<32x1xf32, #tpu.memory_space<vmem>>, %arg5: memref<1x32x24xf32, #tpu.memory_space<vmem>>) attributes {dimension_semantics = [#tpu.dimension_semantics<parallel>], iteration_bounds = array<i64: 2>, scalar_prefetch = 0 : i64, scratch_operands = 0 : i64, tpu.core_type = #tpu.core_type<tc>, window_params = [{transform_indices = @transform_0, window_bounds = array<i64: 1, 144, 24>}, {pipeline_mode = #tpu.pipeline_mode<synchronous>, transform_indices = @transform_1, window_bounds = array<i64: 32, 144>}, {pipeline_mode = #tpu.pipeline_mode<synchronous>, transform_indices = @transform_2, window_bounds = array<i64: 32, 1>}, {pipeline_mode = #tpu.pipeline_mode<synchronous>, transform_indices = @transform_3, window_bounds = array<i64: 32, 1>}, {transform_indices = @transform_4, window_bounds = array<i64: 1, 32, 24>}]} {
    %c0 = arith.constant 0 : index
    %c0_0 = arith.constant 0 : index
    %c0_1 = arith.constant 0 : index
    %0 = vector.load %arg1[%c0, %c0_0, %c0_1] : memref<1x144x24xf32, #tpu.memory_space<vmem>>, vector<1x144x24xf32>
    %1 = vector.shape_cast %0 : vector<1x144x24xf32> to vector<144x24xf32>
    %c0_2 = arith.constant 0 : index
    %c0_3 = arith.constant 0 : index
    %2 = vector.load %arg2[%c0_2, %c0_3] : memref<32x144xf32, #tpu.memory_space<vmem>>, vector<32x144xf32>
    %cst = arith.constant dense<0.000000e+00> : vector<32x24xf32>
    %3 = tpu.matmul %2, %1, %cst {dimension_numbers = #tpu.dot_dimension_numbers<[1], [0], [0], [1], [0, 0, 1, 1], [], []>} : vector<32x144xf32>, vector<144x24xf32>, vector<32x24xf32> -> vector<32x24xf32>
    %c0_4 = arith.constant 0 : index
    %c0_5 = arith.constant 0 : index
    %4 = vector.load %arg3[%c0_4, %c0_5] : memref<32x1xf32, #tpu.memory_space<vmem>>, vector<32x1xf32>
    %5 = vector.broadcast %4 : vector<32x1xf32> to vector<32x24xf32>
    %6 = arith.mulf %3, %5 : vector<32x24xf32>
    %c0_6 = arith.constant 0 : index
    %c0_7 = arith.constant 0 : index
    %7 = vector.load %arg4[%c0_6, %c0_7] : memref<32x1xf32, #tpu.memory_space<vmem>>, vector<32x1xf32>
    %8 = vector.broadcast %7 : vector<32x1xf32> to vector<32x24xf32>
    %9 = arith.addf %6, %8 : vector<32x24xf32>
    %c0_8 = arith.constant 0 : index
    %c0_9 = arith.constant 0 : index
    %c0_10 = arith.constant 0 : index
    %10 = vector.load %arg5[%c0_8, %c0_9, %c0_10] : memref<1x32x24xf32, #tpu.memory_space<vmem>>, vector<1x32x24xf32>
    %11 = vector.shape_cast %10 : vector<1x32x24xf32> to vector<32x24xf32>
    %12 = vector.shape_cast %9 : vector<32x24xf32> to vector<1x32x24xf32>
    tpu.vector_store %arg5[%c0_8, %c0_9, %c0_10], %12 {strides = array<i32>} : memref<1x32x24xf32, #tpu.memory_space<vmem>>, vector<1x32x24xf32>,
    return
  }
  func.func @transform_0(%arg0: i32) -> (i32, i32, i32) {
    %c0_i32 = arith.constant 0 : i32
    %c0_i32_0 = arith.constant 0 : i32
    %c0_i32_1 = arith.constant 0 : i32
    return %arg0, %c0_i32, %c0_i32_0 : i32, i32, i32
  }
  func.func @transform_1(%arg0: i32) -> (i32, i32) {
    %c0_i32 = arith.constant 0 : i32
    %c0_i32_0 = arith.constant 0 : i32
    %c0_i32_1 = arith.constant 0 : i32
    return %c0_i32, %c0_i32_0 : i32, i32
  }
  func.func @transform_2(%arg0: i32) -> (i32, i32) {
    %c0_i32 = arith.constant 0 : i32
    %c0_i32_0 = arith.constant 0 : i32
    %c0_i32_1 = arith.constant 0 : i32
    return %c0_i32, %c0_i32_0 : i32, i32
  }
  func.func @transform_3(%arg0: i32) -> (i32, i32) {
    %c0_i32 = arith.constant 0 : i32
    %c0_i32_0 = arith.constant 0 : i32
    %c0_i32_1 = arith.constant 0 : i32
    return %c0_i32, %c0_i32_0 : i32, i32
  }
  func.func @transform_4(%arg0: i32) -> (i32, i32, i32) {
    %c0_i32 = arith.constant 0 : i32
    %c0_i32_0 = arith.constant 0 : i32
    %c0_i32_1 = arith.constant 0 : i32
    return %arg0, %c0_i32, %c0_i32_0 : i32, i32, i32
  }
}

module attributes {stable_mosaic.version = 11 : i64} {
  func.func @_gnet_kernel(%arg0: memref<2x128xf32, #tpu.memory_space<vmem>>, %arg1: memref<32x128xf32, #tpu.memory_space<vmem>>, %arg2: memref<1x32xf32, #tpu.memory_space<vmem>>, %arg3: memref<5x32xf32, #tpu.memory_space<vmem>>, %arg4: memref<1x5xf32, #tpu.memory_space<vmem>>, %arg5: memref<2x5xf32, #tpu.memory_space<vmem>>) attributes {dimension_semantics = [], scalar_prefetch = 0 : i64, scratch_operands = 0 : i64, tpu.core_type = #tpu.core_type<tc>} {
    %c0 = arith.constant 0 : index
    %c0_0 = arith.constant 0 : index
    %0 = vector.load %arg0[%c0, %c0_0] : memref<2x128xf32, #tpu.memory_space<vmem>>, vector<2x128xf32>
    %c0_1 = arith.constant 0 : index
    %c0_2 = arith.constant 0 : index
    %1 = vector.load %arg1[%c0_1, %c0_2] : memref<32x128xf32, #tpu.memory_space<vmem>>, vector<32x128xf32>
    %cst = arith.constant dense<0.000000e+00> : vector<2x32xf32>
    %2 = tpu.matmul %0, %1, %cst {dimension_numbers = #tpu.dot_dimension_numbers<[1], [1], [0], [0], [0, 0, 1, 0], [], []>} : vector<2x128xf32>, vector<32x128xf32>, vector<2x32xf32> -> vector<2x32xf32>
    %c0_3 = arith.constant 0 : index
    %c0_4 = arith.constant 0 : index
    %3 = vector.load %arg2[%c0_3, %c0_4] : memref<1x32xf32, #tpu.memory_space<vmem>>, vector<1x32xf32>
    %4 = vector.broadcast %3 : vector<1x32xf32> to vector<2x32xf32>
    %5 = arith.addf %2, %4 : vector<2x32xf32>
    %cst_5 = arith.constant 0.000000e+00 : f32
    %6 = vector.broadcast %cst_5 : f32 to vector<2x32xf32>
    %7 = arith.maximumf %5, %6 : vector<2x32xf32>
    %c0_6 = arith.constant 0 : index
    %c0_7 = arith.constant 0 : index
    %8 = vector.load %arg3[%c0_6, %c0_7] : memref<5x32xf32, #tpu.memory_space<vmem>>, vector<5x32xf32>
    %cst_8 = arith.constant dense<0.000000e+00> : vector<2x5xf32>
    %9 = tpu.matmul %7, %8, %cst_8 {dimension_numbers = #tpu.dot_dimension_numbers<[1], [1], [0], [0], [0, 0, 1, 0], [], []>} : vector<2x32xf32>, vector<5x32xf32>, vector<2x5xf32> -> vector<2x5xf32>
    %c0_9 = arith.constant 0 : index
    %c0_10 = arith.constant 0 : index
    %10 = vector.load %arg4[%c0_9, %c0_10] : memref<1x5xf32, #tpu.memory_space<vmem>>, vector<1x5xf32>
    %11 = vector.broadcast %10 : vector<1x5xf32> to vector<2x5xf32>
    %12 = arith.addf %9, %11 : vector<2x5xf32>
    %c0_11 = arith.constant 0 : index
    %c0_12 = arith.constant 0 : index
    %13 = vector.load %arg5[%c0_11, %c0_12] : memref<2x5xf32, #tpu.memory_space<vmem>>, vector<2x5xf32>
    tpu.vector_store %arg5[%c0_11, %c0_12], %12 {strides = array<i32>} : memref<2x5xf32, #tpu.memory_space<vmem>>, vector<2x5xf32>,
    return
  }
}

</mosaic_0001>

<llo_original>
// kernel: mldg_forward.12
$region0: #{mldg_forward.12}
  #allocation0 [shape = 'u32[]', space=smem, size = 0x4, offset = 0x4, fixed_abs, tag = 'smem constant byte address 0x4 - core index']
  #allocation1 [shape = 'u32[72,128]{1,0:T(1,128)}', space=vmem, size = 0x9000, scoped, tag = 'internal scratch']
  %s0 = inlined_call_operand.vmem [shape: f32[4,43,256], index: 0, kind: input, shape index: {}]
  %s1 = inlined_call_operand.vmem [shape: f32[129,256], index: 1, kind: input, shape index: {}]
  %s2 = inlined_call_operand.vmem [shape: f32[129,256], index: 2, kind: input, shape index: {}]
  %s3 = inlined_call_operand.vmem [shape: f32[4,129,43], index: 3, kind: output, shape index: {}]
  %s4 = sld [smem:[#allocation0]]
  $region45: #{mldg_forward.12} parent=0
    _
  %s6 = ssub.s32 1, %s4
  %s7 = scalar_select 0, %s6, %s4
  loop: start=0, step=1, limit=6
  $region2: #{mldg_forward.12} parent=0 // loop_pre_header
    _
  $region3: #{mldg_forward.12} parent=0 // loop_header
    %s9 = sphi 0, %s13
    %p10 = scmp.ge.s32.totalorder %s9, 6
    %s19 = sphi 0, %s21
    %s22 = sphi 0, %s19
    %s23 = sphi 0, %s22
    %s39 = sphi 0, %s23
    %s43 = sphi 0, %s43
    %s45 = sphi 0, %s43
    %s46 = sphi 0, %s45
    %s60 = sphi 0, %s46
    %s64 = sphi 0, %s64
    %s66 = sphi 0, %s64
    %s67 = sphi 0, %s66
    %s81 = sphi 0, %s67
    %s87 = sphi 0, %s89
    %s90 = sphi 0, %s87
    %s91 = sphi 0, %s90
    %s107 = sphi 0, %s91
  $region4: #{mldg_forward.12} parent=0 // loop_header_branch
    %12 = sbr.rel (%p10) target = $region8
  $region5: #{mldg_forward.12} parent=0 // loop_body
    %s14 = ssub.s32 %s9, 1
    %s15 = ssub.s32 %s9, 2
    %s16 = sadd.s32 %s9, 1
    %s17 = ssub.s32 %s9, %s16
    %p18 = scmp.eq.s32.totalorder %s17, 0
    %s20 = sadd.s32 %s19, 1
    %s21 = scalar_select %p18, %s19, %s20
    %p24 = pneg %p18
    %p25 = scmp.eq.s32.totalorder %s9, 3
    %p26 = por %p24, %p25
    %p27 = scmp.ne.s32.totalorder %s19, %s22
    %p28 = scmp.eq.s32.totalorder %s9, 0
    %p29 = por %p27, %p28
    %p30 = scmp.ne.s32.totalorder %s19, %s22
    %p31 = scmp.eq.s32.totalorder %s14, 3
    %p32 = por %p30, %p31
    %p33 = scmp.ne.s32.totalorder %s22, %s23
    %p34 = scmp.eq.s32.totalorder %s14, 0
    %p35 = por %p33, %p34
    %p36 = scmp.ne.s32.totalorder %s22, %s23
    %p37 = scmp.eq.s32.totalorder %s15, 3
    %p38 = por %p36, %p37
    %p40 = scmp.ne.s32.totalorder %s23, %s39
    %p41 = scmp.eq.s32.totalorder %s15, 0
    %p42 = por %p40, %p41
    %s44 = sadd.s32 %s43, 1
    %p47 = scmp.eq.s32.totalorder %s9, 3
    %p48 = scmp.ne.s32.totalorder %s43, %s45
    %p49 = scmp.eq.s32.totalorder %s9, 0
    %p50 = por %p48, %p49
    %p51 = scmp.ne.s32.totalorder %s43, %s45
    %p52 = scmp.eq.s32.totalorder %s14, 3
    %p53 = por %p51, %p52
    %p54 = scmp.ne.s32.totalorder %s45, %s46
    %p55 = scmp.eq.s32.totalorder %s14, 0
    %p56 = por %p54, %p55
    %p57 = scmp.ne.s32.totalorder %s45, %s46
    %p58 = scmp.eq.s32.totalorder %s15, 3
    %p59 = por %p57, %p58
    %p61 = scmp.ne.s32.totalorder %s46, %s60
    %p62 = scmp.eq.s32.totalorder %s15, 0
    %p63 = por %p61, %p62
    %s65 = sadd.s32 %s64, 1
    %p68 = scmp.eq.s32.totalorder %s9, 3
    %p69 = scmp.ne.s32.totalorder %s64, %s66
    %p70 = scmp.eq.s32.totalorder %s9, 0
    %p71 = por %p69, %p70
    %p72 = scmp.ne.s32.totalorder %s64, %s66
    %p73 = scmp.eq.s32.totalorder %s14, 3
    %p74 = por %p72, %p73
    %p75 = scmp.ne.s32.totalorder %s66, %s67
    %p76 = scmp.eq.s32.totalorder %s14, 0
    %p77 = por %p75, %p76
    %p78 = scmp.ne.s32.totalorder %s66, %s67
    %p79 = scmp.eq.s32.totalorder %s15, 3
    %p80 = por %p78, %p79
    %p82 = scmp.ne.s32.totalorder %s67, %s81
    %p83 = scmp.eq.s32.totalorder %s15, 0
    %p84 = por %p82, %p83
    %s85 = ssub.s32 %s9, %s16
    %p86 = scmp.eq.s32.totalorder %s85, 0
    %s88 = sadd.s32 %s87, 1
    %s89 = scalar_select %p86, %s87, %s88
    %p92 = pneg %p86
    %p93 = scmp.eq.s32.totalorder %s9, 3
    %p94 = por %p92, %p93
    %p95 = scmp.ne.s32.totalorder %s87, %s90
    %p96 = scmp.eq.s32.totalorder %s9, 0
    %p97 = por %p95, %p96
    %p98 = scmp.ne.s32.totalorder %s87, %s90
    %p99 = scmp.eq.s32.totalorder %s14, 3
    %p100 = por %p98, %p99
    %p101 = scmp.ne.s32.totalorder %s90, %s91
    %p102 = scmp.eq.s32.totalorder %s14, 0
    %p103 = por %p101, %p102
    %p104 = scmp.ne.s32.totalorder %s90, %s91
    %p105 = scmp.eq.s32.totalorder %s15, 3
    %p106 = por %p104, %p105
    %p108 = scmp.ne.s32.totalorder %s91, %s107
    %p109 = scmp.eq.s32.totalorder %s15, 0
    %p110 = por %p108, %p109
    %p111 = scmp.le.s32.totalorder 1, %s9
    %p112 = scmp.lt.s32.totalorder %s9, 5
    %p113 = pnand %p111, %p112
    %p114 = pneg %p113
    // Predicated region
    $region9: #{mldg_forward.12} parent=5 // pred_check
      _
    $region10: #{mldg_forward.12} parent=5 // pred_check_branch
      %116 = sbr.rel (%p113) target = $region12
    $region11: #{mldg_forward.12} parent=5 // pred_region
      %s117 = ssub.s32 %s9, 1
      // Predicated region
      $region13: #{mldg_forward.12} parent=11 // pred_check
        %p118 = pneg %p56
      $region14: #{mldg_forward.12} parent=11 // pred_check_branch
        %120 = sbr.rel (%p118) target = $region16
      $region15: #{mldg_forward.12} parent=11 // pred_region
        _
      $region16: #{mldg_forward.12} parent=11 // pred_fallthru
        _
      // Predicated region
      $region17: #{mldg_forward.12} parent=11 // pred_check
        %p121 = pneg %p77
      $region18: #{mldg_forward.12} parent=11 // pred_check_branch
        %123 = sbr.rel (%p121) target = $region20
      $region19: #{mldg_forward.12} parent=11 // pred_region
        _
      $region20: #{mldg_forward.12} parent=11 // pred_fallthru
        _
    $region12: #{mldg_forward.12} parent=5 // pred_fallthru
      _
    %p124 = scmp.lt.s32.totalorder %s9, 4
    // Predicated region
    $region21: #{mldg_forward.12} parent=5 // pred_check
      %p125 = pneg %p124
    $region22: #{mldg_forward.12} parent=5 // pred_check_branch
      %127 = sbr.rel (%p125) target = $region24
    $region23: #{mldg_forward.12} parent=5 // pred_region
      // Predicated region
      $region25: #{mldg_forward.12} parent=23 // pred_check
        %p128 = pneg %p29
      $region26: #{mldg_forward.12} parent=23 // pred_check_branch
        %130 = sbr.rel (%p128) target = $region28
      $region27: #{mldg_forward.12} parent=23 // pred_region
        %p131 = scmp.lt.s32.totalorder %s9, 3
        %s132 = scalar_select %p131, %s9, 3
        %s133 = smul.addr %s132, 12
        %s134 = smul.addr %s133, 8
        %s135 = scalar_lea.vmem %s0, %s134
      $region28: #{mldg_forward.12} parent=23 // pred_fallthru
        _
    $region24: #{mldg_forward.12} parent=5 // pred_fallthru
      _
    %p136 = scmp.le.s32.totalorder 1, %s9
    %p137 = scmp.lt.s32.totalorder %s9, 5
    %p138 = pnand %p136, %p137
    %p139 = pneg %p138
    // Predicated region
    $region29: #{mldg_forward.12} parent=5 // pred_check
      _
    $region30: #{mldg_forward.12} parent=5 // pred_check_branch
      %141 = sbr.rel (%p138) target = $region32
    $region31: #{mldg_forward.12} parent=5 // pred_region
      %s142 = ssub.s32 %s9, 1
      %p143 = scmp.lt.s32.totalorder %s14, 3
      %s144 = scalar_select %p143, %s14, 3
      %s145 = smul.addr %s144, 12
      %s146 = smul.addr %s145, 8
      %s147 = scalar_lea.vmem %s0, %s146
      %p148 = pneg %p35
      %p149 = pneg %p32
      %p150 = pneg %p56
      %p151 = pneg %p53
      %p152 = pneg %p77
      %p153 = pneg %p74
      %p154 = pneg %p103
      %p155 = pneg %p100
      %p156 = scmp.lt.s32.totalorder %s14, 3
      %s157 = scalar_select %p156, %s14, 3
      %s158 = smul.addr %s157, 17
      %s159 = smul.addr %s158, 8
      %s160 = scalar_lea.vmem %s3, %s159
      %p161 = scmp.lt.s32.totalorder %s14, 3
      %s162 = scalar_select %p161, %s14, 3
      %s163 = smul.addr %s162, 12
      %s164 = smul.addr %s163, 8
      %s165 = scalar_lea.vmem %s0, %s164
      %p166 = scmp.lt.s32.totalorder %s14, 3
      %s167 = scalar_select %p166, %s14, 3
      %s168 = smul.addr %s167, 17
      %s169 = smul.addr %s168, 8
      %s170 = scalar_lea.vmem %s3, %s169
      %v171 = vld [vmem:[%s165] sm:$0xff]
      %v172 = vld [vmem:[%s165 + $0x8] sm:$0xff]
      %v173 = vld [vmem:[%s165 + $0x10] sm:$0xff]
      %v174 = vld [vmem:[%s165 + $0x18] sm:$0xff]
      %v175 = vld [vmem:[%s165 + $0x20] sm:$0xff]
      %v176 = vld [vmem:[%s165 + $0x28] sm:$0xff]
      %v177 = vld [vmem:[%s165 + $0x30] sm:$0xff]
      %v178 = vld [vmem:[%s165 + $0x38] sm:$0xff]
      %v179 = vld [vmem:[%s165 + $0x40] sm:$0xff]
      %v180 = vld [vmem:[%s165 + $0x48] sm:$0xff]
      %v181 = vld [vmem:[%s165 + $0x50] sm:$0x7]
      %v182 = vld [vmem:[%s165 + $0x58] sm:$0x7]
      %v183 = vld [vmem:[%s1] sm:$0xff]
      %v184 = vld [vmem:[%s1 + $0x8] sm:$0xff]
      %v185 = vld [vmem:[%s1 + $0x10] sm:$0xff]
      %v186 = vld [vmem:[%s1 + $0x18] sm:$0xff]
      %v187 = vld [vmem:[%s1 + $0x20] sm:$0xff]
      %v188 = vld [vmem:[%s1 + $0x28] sm:$0xff]
      %v189 = vld [vmem:[%s1 + $0x30] sm:$0xff]
      %v190 = vld [vmem:[%s1 + $0x38] sm:$0xff]
      %v191 = vld [vmem:[%s1 + $0x40] sm:$0xff]
      %v192 = vld [vmem:[%s1 + $0x48] sm:$0xff]
      %v193 = vld [vmem:[%s1 + $0x50] sm:$0xff]
      %v194 = vld [vmem:[%s1 + $0x58] sm:$0xff]
      %v195 = vld [vmem:[%s1 + $0x60] sm:$0xff]
      %v196 = vld [vmem:[%s1 + $0x68] sm:$0xff]
      %v197 = vld [vmem:[%s1 + $0x70] sm:$0xff]
      %v198 = vld [vmem:[%s1 + $0x78] sm:$0xff]
      %v199 = vld [vmem:[%s1 + $0x80] sm:$0xff]
      %v200 = vld [vmem:[%s1 + $0x88] sm:$0xff]
      %v201 = vld [vmem:[%s1 + $0x90] sm:$0xff]
      %v202 = vld [vmem:[%s1 + $0x98] sm:$0xff]
      %v203 = vld [vmem:[%s1 + $0xa0] sm:$0xff]
      %v204 = vld [vmem:[%s1 + $0xa8] sm:$0xff]
      %v205 = vld [vmem:[%s1 + $0xb0] sm:$0xff]
      %v206 = vld [vmem:[%s1 + $0xb8] sm:$0xff]
      %v207 = vld [vmem:[%s1 + $0xc0] sm:$0xff]
      %v208 = vld [vmem:[%s1 + $0xc8] sm:$0xff]
      %v209 = vld [vmem:[%s1 + $0xd0] sm:$0xff]
      %v210 = vld [vmem:[%s1 + $0xd8] sm:$0xff]
      %v211 = vld [vmem:[%s1 + $0xe0] sm:$0xff]
      %v212 = vld [vmem:[%s1 + $0xe8] sm:$0xff]
      %v213 = vld [vmem:[%s1 + $0xf0] sm:$0xff]
      %v214 = vld [vmem:[%s1 + $0xf8] sm:$0xff]
      %v215 = vld [vmem:[%s1 + $0x100] sm:$0x1]
      %v216 = vld [vmem:[%s1 + $0x108] sm:$0x1]
      %v217 = vld [vmem:[%s2] sm:$0xff]
      %v218 = vld [vmem:[%s2 + $0x8] sm:$0xff]
      %v219 = vld [vmem:[%s2 + $0x10] sm:$0xff]
      %v220 = vld [vmem:[%s2 + $0x18] sm:$0xff]
      %v221 = vld [vmem:[%s2 + $0x20] sm:$0xff]
      %v222 = vld [vmem:[%s2 + $0x28] sm:$0xff]
      %v223 = vld [vmem:[%s2 + $0x30] sm:$0xff]
      %v224 = vld [vmem:[%s2 + $0x38] sm:$0xff]
      %v225 = vld [vmem:[%s2 + $0x40] sm:$0xff]
      %v226 = vld [vmem:[%s2 + $0x48] sm:$0xff]
      %v227 = vld [vmem:[%s2 + $0x50] sm:$0xff]
      %v228 = vld [vmem:[%s2 + $0x58] sm:$0xff]
      %v229 = vld [vmem:[%s2 + $0x60] sm:$0xff]
      %v230 = vld [vmem:[%s2 + $0x68] sm:$0xff]
      %v231 = vld [vmem:[%s2 + $0x70] sm:$0xff]
      %v232 = vld [vmem:[%s2 + $0x78] sm:$0xff]
      %v233 = vld [vmem:[%s2 + $0x80] sm:$0xff]
      %v234 = vld [vmem:[%s2 + $0x88] sm:$0xff]
      %v235 = vld [vmem:[%s2 + $0x90] sm:$0xff]
      %v236 = vld [vmem:[%s2 + $0x98] sm:$0xff]
      %v237 = vld [vmem:[%s2 + $0xa0] sm:$0xff]
      %v238 = vld [vmem:[%s2 + $0xa8] sm:$0xff]
      %v239 = vld [vmem:[%s2 + $0xb0] sm:$0xff]
      %v240 = vld [vmem:[%s2 + $0xb8] sm:$0xff]
      %v241 = vld [vmem:[%s2 + $0xc0] sm:$0xff]
      %v242 = vld [vmem:[%s2 + $0xc8] sm:$0xff]
      %v243 = vld [vmem:[%s2 + $0xd0] sm:$0xff]
      %v244 = vld [vmem:[%s2 + $0xd8] sm:$0xff]
      %v245 = vld [vmem:[%s2 + $0xe0] sm:$0xff]
      %v246 = vld [vmem:[%s2 + $0xe8] sm:$0xff]
      %v247 = vld [vmem:[%s2 + $0xf0] sm:$0xff]
      %v248 = vld [vmem:[%s2 + $0xf8] sm:$0xff]
      %v249 = vld [vmem:[%s2 + $0x100] sm:$0x1]
      %v250 = vld [vmem:[%s2 + $0x108] sm:$0x1]
      %251 = vmatpush.xpose.msra.mxu0 0.0
      %252 = vmatpush.xpose.msra.mxu0 0.0
      %253 = vmatpush.xpose.msra.mxu0 0.0
      %254 = vmatpush.xpose.msra.mxu0 0.0
      %255 = vmatpush.xpose.msra.mxu0 0.0
      %256 = vmatpush.xpose.msra.mxu0 0.0
      %257 = vmatpush.xpose.msra.mxu0 0.0
      %258 = vmatpush.xpose.msra.mxu0 0.0
      %259 = vmatpush.xpose.msra.mxu0 0.0
      %260 = vmatpush.xpose.msra.mxu0 0.0
      %261 = vmatpush.xpose.msra.mxu0 %v181
      %262 = vmatpush.xpose.msra.mxu0 %v179
      %263 = vmatpush.xpose.msra.mxu0 %v177
      %264 = vmatpush.xpose.msra.mxu0 %v175
      %265 = vmatpush.xpose.msra.mxu0 %v173
      %266 = vmatpush.xpose.msra.mxu0 %v171
      %267 = vmatmul.f32.gmra.mxu0 %v183
      %v268 = vpop.f32.mrf.mxu0
      %v269 = vadd.f32 0.0, %v268
      %270 = vmatmul.f32.gmra.mxu0 %v185
      %v271 = vpop.f32.mrf.mxu0
      %v272 = vadd.f32 0.0, %v271
      %273 = vmatmul.f32.gmra.mxu0 %v187
      %v274 = vpop.f32.mrf.mxu0
      %v275 = vadd.f32 0.0, %v274
      %276 = vmatmul.f32.gmra.mxu0 %v189
      %v277 = vpop.f32.mrf.mxu0
      %v278 = vadd.f32 0.0, %v277
      %279 = vmatmul.f32.gmra.mxu0 %v191
      %v280 = vpop.f32.mrf.mxu0
      %v281 = vadd.f32 0.0, %v280
      %282 = vmatmul.f32.gmra.mxu0 %v193
      %v283 = vpop.f32.mrf.mxu0
      %v284 = vadd.f32 0.0, %v283
      %285 = vmatmul.f32.gmra.mxu0 %v195
      %v286 = vpop.f32.mrf.mxu0
      %v287 = vadd.f32 0.0, %v286
      %288 = vmatmul.f32.gmra.mxu0 %v197
      %v289 = vpop.f32.mrf.mxu0
      %v290 = vadd.f32 0.0, %v289
      %291 = vmatmul.f32.gmra.mxu0 %v199
      %v292 = vpop.f32.mrf.mxu0
      %v293 = vadd.f32 0.0, %v292
      %294 = vmatmul.f32.gmra.mxu0 %v201
      %v295 = vpop.f32.mrf.mxu0
      %v296 = vadd.f32 0.0, %v295
      %297 = vmatmul.f32.gmra.mxu0 %v203
      %v298 = vpop.f32.mrf.mxu0
      %v299 = vadd.f32 0.0, %v298
      %300 = vmatmul.f32.gmra.mxu0 %v205
      %v301 = vpop.f32.mrf.mxu0
      %v302 = vadd.f32 0.0, %v301
      %303 = vmatmul.f32.gmra.mxu0 %v207
      %v304 = vpop.f32.mrf.mxu0
      %v305 = vadd.f32 0.0, %v304
      %306 = vmatmul.f32.gmra.mxu0 %v209
      %v307 = vpop.f32.mrf.mxu0
      %v308 = vadd.f32 0.0, %v307
      %309 = vmatmul.f32.gmra.mxu0 %v211
      %v310 = vpop.f32.mrf.mxu0
      %v311 = vadd.f32 0.0, %v310
      %312 = vmatmul.f32.gmra.mxu0 %v213
      %v313 = vpop.f32.mrf.mxu0
      %v314 = vadd.f32 0.0, %v313
      %315 = vmatmul.f32.gmra.mxu0 %v215
      %v316 = vpop.f32.mrf.mxu0
      %v317 = vadd.f32 0.0, %v316
      %318 = vdwg.mxu0
      %319 = vmatpush.xpose.msra.mxu0 0.0
      %320 = vmatpush.xpose.msra.mxu0 0.0
      %321 = vmatpush.xpose.msra.mxu0 0.0
      %322 = vmatpush.xpose.msra.mxu0 0.0
      %323 = vmatpush.xpose.msra.mxu0 0.0
      %324 = vmatpush.xpose.msra.mxu0 0.0
      %325 = vmatpush.xpose.msra.mxu0 0.0
      %326 = vmatpush.xpose.msra.mxu0 0.0
      %327 = vmatpush.xpose.msra.mxu0 0.0
      %328 = vmatpush.xpose.msra.mxu0 0.0
      %329 = vmatpush.xpose.msra.mxu0 %v182
      %330 = vmatpush.xpose.msra.mxu0 %v180
      %331 = vmatpush.xpose.msra.mxu0 %v178
      %332 = vmatpush.xpose.msra.mxu0 %v176
      %333 = vmatpush.xpose.msra.mxu0 %v174
      %334 = vmatpush.xpose.msra.mxu0 %v172
      %335 = vmatmul.f32.gmra.mxu0 %v184
      %v336 = vpop.f32.mrf.mxu0
      %v337 = vadd.f32 %v269, %v336
      %338 = vmatmul.f32.gmra.mxu0 %v186
      %v339 = vpop.f32.mrf.mxu0
      %v340 = vadd.f32 %v272, %v339
      %341 = vmatmul.f32.gmra.mxu0 %v188
      %v342 = vpop.f32.mrf.mxu0
      %v343 = vadd.f32 %v275, %v342
      %344 = vmatmul.f32.gmra.mxu0 %v190
      %v345 = vpop.f32.mrf.mxu0
      %v346 = vadd.f32 %v278, %v345
      %347 = vmatmul.f32.gmra.mxu0 %v192
      %v348 = vpop.f32.mrf.mxu0
      %v349 = vadd.f32 %v281, %v348
      %350 = vmatmul.f32.gmra.mxu0 %v194
      %v351 = vpop.f32.mrf.mxu0
      %v352 = vadd.f32 %v284, %v351
      %353 = vmatmul.f32.gmra.mxu0 %v196
      %v354 = vpop.f32.mrf.mxu0
      %v355 = vadd.f32 %v287, %v354
      %356 = vmatmul.f32.gmra.mxu0 %v198
      %v357 = vpop.f32.mrf.mxu0
      %v358 = vadd.f32 %v290, %v357
      %359 = vmatmul.f32.gmra.mxu0 %v200
      %v360 = vpop.f32.mrf.mxu0
      %v361 = vadd.f32 %v293, %v360
      %362 = vmatmul.f32.gmra.mxu0 %v202
      %v363 = vpop.f32.mrf.mxu0
      %v364 = vadd.f32 %v296, %v363
      %365 = vmatmul.f32.gmra.mxu0 %v204
      %v366 = vpop.f32.mrf.mxu0
      %v367 = vadd.f32 %v299, %v366
      %368 = vmatmul.f32.gmra.mxu0 %v206
      %v369 = vpop.f32.mrf.mxu0
      %v370 = vadd.f32 %v302, %v369
      %371 = vmatmul.f32.gmra.mxu0 %v208
      %v372 = vpop.f32.mrf.mxu0
      %v373 = vadd.f32 %v305, %v372
      %374 = vmatmul.f32.gmra.mxu0 %v210
      %v375 = vpop.f32.mrf.mxu0
      %v376 = vadd.f32 %v308, %v375
      %377 = vmatmul.f32.gmra.mxu0 %v212
      %v378 = vpop.f32.mrf.mxu0
      %v379 = vadd.f32 %v311, %v378
      %380 = vmatmul.f32.gmra.mxu0 %v214
      %v381 = vpop.f32.mrf.mxu0
      %v382 = vadd.f32 %v314, %v381
      %383 = vmatmul.f32.gmra.mxu0 %v216
      %v384 = vpop.f32.mrf.mxu0
      %v385 = vadd.f32 %v317, %v384
      %386 = vdwg.mxu0
      %387 = vmatpush.xpose.msra.mxu0 0.0
      %388 = vmatpush.xpose.msra.mxu0 0.0
      %389 = vmatpush.xpose.msra.mxu0 0.0
      %390 = vmatpush.xpose.msra.mxu0 0.0
      %391 = vmatpush.xpose.msra.mxu0 0.0
      %392 = vmatpush.xpose.msra.mxu0 0.0
      %393 = vmatpush.xpose.msra.mxu0 0.0
      %394 = vmatpush.xpose.msra.mxu0 0.0
      %395 = vmatpush.xpose.msra.mxu0 0.0
      %396 = vmatpush.xpose.msra.mxu0 0.0
      %397 = vmatpush.xpose.msra.mxu0 %v181
      %398 = vmatpush.xpose.msra.mxu0 %v179
      %399 = vmatpush.xpose.msra.mxu0 %v177
      %400 = vmatpush.xpose.msra.mxu0 %v175
      %401 = vmatpush.xpose.msra.mxu0 %v173
      %402 = vmatpush.xpose.msra.mxu0 %v171
      %403 = vmatmul.f32.gmra.mxu0 %v217
      %v404 = vpop.f32.mrf.mxu0
      %v405 = vadd.f32 0.0, %v404
      %406 = vmatmul.f32.gmra.mxu0 %v219
      %v407 = vpop.f32.mrf.mxu0
      %v408 = vadd.f32 0.0, %v407
      %409 = vmatmul.f32.gmra.mxu0 %v221
      %v410 = vpop.f32.mrf.mxu0
      %v411 = vadd.f32 0.0, %v410
      %412 = vmatmul.f32.gmra.mxu0 %v223
      %v413 = vpop.f32.mrf.mxu0
      %v414 = vadd.f32 0.0, %v413
      %415 = vmatmul.f32.gmra.mxu0 %v225
      %v416 = vpop.f32.mrf.mxu0
      %v417 = vadd.f32 0.0, %v416
      %418 = vmatmul.f32.gmra.mxu0 %v227
      %v419 = vpop.f32.mrf.mxu0
      %v420 = vadd.f32 0.0, %v419
      %421 = vmatmul.f32.gmra.mxu0 %v229
      %v422 = vpop.f32.mrf.mxu0
      %v423 = vadd.f32 0.0, %v422
      %424 = vmatmul.f32.gmra.mxu0 %v231
      %v425 = vpop.f32.mrf.mxu0
      %v426 = vadd.f32 0.0, %v425
      %427 = vmatmul.f32.gmra.mxu0 %v233
      %v428 = vpop.f32.mrf.mxu0
      %v429 = vadd.f32 0.0, %v428
      %430 = vmatmul.f32.gmra.mxu0 %v235
      %v431 = vpop.f32.mrf.mxu0
      %v432 = vadd.f32 0.0, %v431
      %433 = vmatmul.f32.gmra.mxu0 %v237
      %v434 = vpop.f32.mrf.mxu0
      %v435 = vadd.f32 0.0, %v434
      %436 = vmatmul.f32.gmra.mxu0 %v239
      %v437 = vpop.f32.mrf.mxu0
      %v438 = vadd.f32 0.0, %v437
      %439 = vmatmul.f32.gmra.mxu0 %v241
      %v440 = vpop.f32.mrf.mxu0
      %v441 = vadd.f32 0.0, %v440
      %442 = vmatmul.f32.gmra.mxu0 %v243
      %v443 = vpop.f32.mrf.mxu0
      %v444 = vadd.f32 0.0, %v443
      %445 = vmatmul.f32.gmra.mxu0 %v245
      %v446 = vpop.f32.mrf.mxu0
      %v447 = vadd.f32 0.0, %v446
      %448 = vmatmul.f32.gmra.mxu0 %v247
      %v449 = vpop.f32.mrf.mxu0
      %v450 = vadd.f32 0.0, %v449
      %451 = vmatmul.f32.gmra.mxu0 %v249
      %v452 = vpop.f32.mrf.mxu0
      %v453 = vadd.f32 0.0, %v452
      %454 = vdwg.mxu0
      %455 = vmatpush.xpose.msra.mxu0 0.0
      %456 = vmatpush.xpose.msra.mxu0 0.0
      %457 = vmatpush.xpose.msra.mxu0 0.0
      %458 = vmatpush.xpose.msra.mxu0 0.0
      %459 = vmatpush.xpose.msra.mxu0 0.0
      %460 = vmatpush.xpose.msra.mxu0 0.0
      %461 = vmatpush.xpose.msra.mxu0 0.0
      %462 = vmatpush.xpose.msra.mxu0 0.0
      %463 = vmatpush.xpose.msra.mxu0 0.0
      %464 = vmatpush.xpose.msra.mxu0 0.0
      %465 = vmatpush.xpose.msra.mxu0 %v182
      %466 = vmatpush.xpose.msra.mxu0 %v180
      %467 = vmatpush.xpose.msra.mxu0 %v178
      %468 = vmatpush.xpose.msra.mxu0 %v176
      %469 = vmatpush.xpose.msra.mxu0 %v174
      %470 = vmatpush.xpose.msra.mxu0 %v172
      %471 = vmatmul.f32.gmra.mxu0 %v218
      %v472 = vpop.f32.mrf.mxu0
      %v473 = vadd.f32 %v405, %v472
      %474 = vmatmul.f32.gmra.mxu0 %v220
      %v475 = vpop.f32.mrf.mxu0
      %v476 = vadd.f32 %v408, %v475
      %477 = vmatmul.f32.gmra.mxu0 %v222
      %v478 = vpop.f32.mrf.mxu0
      %v479 = vadd.f32 %v411, %v478
      %480 = vmatmul.f32.gmra.mxu0 %v224
      %v481 = vpop.f32.mrf.mxu0
      %v482 = vadd.f32 %v414, %v481
      %483 = vmatmul.f32.gmra.mxu0 %v226
      %v484 = vpop.f32.mrf.mxu0
      %v485 = vadd.f32 %v417, %v484
      %486 = vmatmul.f32.gmra.mxu0 %v228
      %v487 = vpop.f32.mrf.mxu0
      %v488 = vadd.f32 %v420, %v487
      %489 = vmatmul.f32.gmra.mxu0 %v230
      %v490 = vpop.f32.mrf.mxu0
      %v491 = vadd.f32 %v423, %v490
      %492 = vmatmul.f32.gmra.mxu0 %v232
      %v493 = vpop.f32.mrf.mxu0
      %v494 = vadd.f32 %v426, %v493
      %495 = vmatmul.f32.gmra.mxu0 %v234
      %v496 = vpop.f32.mrf.mxu0
      %v497 = vadd.f32 %v429, %v496
      %498 = vmatmul.f32.gmra.mxu0 %v236
      %v499 = vpop.f32.mrf.mxu0
      %v500 = vadd.f32 %v432, %v499
      %501 = vmatmul.f32.gmra.mxu0 %v238
      %v502 = vpop.f32.mrf.mxu0
      %v503 = vadd.f32 %v435, %v502
      %504 = vmatmul.f32.gmra.mxu0 %v240
      %v505 = vpop.f32.mrf.mxu0
      %v506 = vadd.f32 %v438, %v505
      %507 = vmatmul.f32.gmra.mxu0 %v242
      %v508 = vpop.f32.mrf.mxu0
      %v509 = vadd.f32 %v441, %v508
      %510 = vmatmul.f32.gmra.mxu0 %v244
      %v511 = vpop.f32.mrf.mxu0
      %v512 = vadd.f32 %v444, %v511
      %513 = vmatmul.f32.gmra.mxu0 %v246
      %v514 = vpop.f32.mrf.mxu0
      %v515 = vadd.f32 %v447, %v514
      %516 = vmatmul.f32.gmra.mxu0 %v248
      %v517 = vpop.f32.mrf.mxu0
      %v518 = vadd.f32 %v450, %v517
      %519 = vmatmul.f32.gmra.mxu0 %v250
      %v520 = vpop.f32.mrf.mxu0
      %v521 = vadd.f32 %v453, %v520
      %522 = vdwg.mxu0
      %v523 = vmul.f32 %v337, %v337
      %v524 = vmul.f32 %v340, %v340
      %v525 = vmul.f32 %v343, %v343
      %v526 = vmul.f32 %v346, %v346
      %v527 = vmul.f32 %v349, %v349
      %v528 = vmul.f32 %v352, %v352
      %v529 = vmul.f32 %v355, %v355
      %v530 = vmul.f32 %v358, %v358
      %v531 = vmul.f32 %v361, %v361
      %v532 = vmul.f32 %v364, %v364
      %v533 = vmul.f32 %v367, %v367
      %v534 = vmul.f32 %v370, %v370
      %v535 = vmul.f32 %v373, %v373
      %v536 = vmul.f32 %v376, %v376
      %v537 = vmul.f32 %v379, %v379
      %v538 = vmul.f32 %v382, %v382
      %v539 = vmul.f32 %v385, %v385
      %v540 = vmul.f32 %v473, %v473
      %v541 = vmul.f32 %v476, %v476
      %v542 = vmul.f32 %v479, %v479
      %v543 = vmul.f32 %v482, %v482
      %v544 = vmul.f32 %v485, %v485
      %v545 = vmul.f32 %v488, %v488
      %v546 = vmul.f32 %v491, %v491
      %v547 = vmul.f32 %v494, %v494
      %v548 = vmul.f32 %v497, %v497
      %v549 = vmul.f32 %v500, %v500
      %v550 = vmul.f32 %v503, %v503
      %v551 = vmul.f32 %v506, %v506
      %v552 = vmul.f32 %v509, %v509
      %v553 = vmul.f32 %v512, %v512
      %v554 = vmul.f32 %v515, %v515
      %v555 = vmul.f32 %v518, %v518
      %v556 = vmul.f32 %v521, %v521
      %v557 = vadd.f32 %v523, %v540
      %v558 = vadd.f32 %v524, %v541
      %v559 = vadd.f32 %v525, %v542
      %v560 = vadd.f32 %v526, %v543
      %v561 = vadd.f32 %v527, %v544
      %v562 = vadd.f32 %v528, %v545
      %v563 = vadd.f32 %v529, %v546
      %v564 = vadd.f32 %v530, %v547
      %v565 = vadd.f32 %v531, %v548
      %v566 = vadd.f32 %v532, %v549
      %v567 = vadd.f32 %v533, %v550
      %v568 = vadd.f32 %v534, %v551
      %v569 = vadd.f32 %v535, %v552
      %v570 = vadd.f32 %v536, %v553
      %v571 = vadd.f32 %v537, %v554
      %v572 = vadd.f32 %v538, %v555
      %v573 = vadd.f32 %v539, %v556
      %v574 = vrsqrt.pop %v557
      %v575 = vmul.f32 %v574, %v557
      %v576 = vmul.f32 %v575, %v574
      %v577 = vmul.f32 0.5, %v576
      %v578 = vsub.f32 1.5, %v577
      %v579 = vmul.f32 %v574, %v578
      %v580 = vmul.f32 %v557, %v579
      %vm581 = vcmp.eq.f32.partialorder %v557, inf
      %v582 = vsel %vm581, %v557, %v580
      %vm583 = vcmp.eq.f32.partialorder %v557, 0.0
      %v584 = vand.u32 %v557, 2147483648
      %v585 = vsel %vm583, %v584, %v582
      %v586 = vrsqrt.pop %v558
      %v587 = vmul.f32 %v586, %v558
      %v588 = vmul.f32 %v587, %v586
      %v589 = vmul.f32 0.5, %v588
      %v590 = vsub.f32 1.5, %v589
      %v591 = vmul.f32 %v586, %v590
      %v592 = vmul.f32 %v558, %v591
      %vm593 = vcmp.eq.f32.partialorder %v558, inf
      %v594 = vsel %vm593, %v558, %v592
      %vm595 = vcmp.eq.f32.partialorder %v558, 0.0
      %v596 = vand.u32 %v558, 2147483648
      %v597 = vsel %vm595, %v596, %v594
      %v598 = vrsqrt.pop %v559
      %v599 = vmul.f32 %v598, %v559
      %v600 = vmul.f32 %v599, %v598
      %v601 = vmul.f32 0.5, %v600
      %v602 = vsub.f32 1.5, %v601
      %v603 = vmul.f32 %v598, %v602
      %v604 = vmul.f32 %v559, %v603
      %vm605 = vcmp.eq.f32.partialorder %v559, inf
      %v606 = vsel %vm605, %v559, %v604
      %vm607 = vcmp.eq.f32.partialorder %v559, 0.0
      %v608 = vand.u32 %v559, 2147483648
      %v609 = vsel %vm607, %v608, %v606
      %v610 = vrsqrt.pop %v560
      %v611 = vmul.f32 %v610, %v560
      %v612 = vmul.f32 %v611, %v610
      %v613 = vmul.f32 0.5, %v612
      %v614 = vsub.f32 1.5, %v613
      %v615 = vmul.f32 %v610, %v614
      %v616 = vmul.f32 %v560, %v615
      %vm617 = vcmp.eq.f32.partialorder %v560, inf
      %v618 = vsel %vm617, %v560, %v616
      %vm619 = vcmp.eq.f32.partialorder %v560, 0.0
      %v620 = vand.u32 %v560, 2147483648
      %v621 = vsel %vm619, %v620, %v618
      %v622 = vrsqrt.pop %v561
      %v623 = vmul.f32 %v622, %v561
      %v624 = vmul.f32 %v623, %v622
      %v625 = vmul.f32 0.5, %v624
      %v626 = vsub.f32 1.5, %v625
      %v627 = vmul.f32 %v622, %v626
      %v628 = vmul.f32 %v561, %v627
      %vm629 = vcmp.eq.f32.partialorder %v561, inf
      %v630 = vsel %vm629, %v561, %v628
      %vm631 = vcmp.eq.f32.partialorder %v561, 0.0
      %v632 = vand.u32 %v561, 2147483648
      %v633 = vsel %vm631, %v632, %v630
      %v634 = vrsqrt.pop %v562
      %v635 = vmul.f32 %v634, %v562
      %v636 = vmul.f32 %v635, %v634
      %v637 = vmul.f32 0.5, %v636
      %v638 = vsub.f32 1.5, %v637
      %v639 = vmul.f32 %v634, %v638
      %v640 = vmul.f32 %v562, %v639
      %vm641 = vcmp.eq.f32.partialorder %v562, inf
      %v642 = vsel %vm641, %v562, %v640
      %vm643 = vcmp.eq.f32.partialorder %v562, 0.0
      %v644 = vand.u32 %v562, 2147483648
      %v645 = vsel %vm643, %v644, %v642
      %v646 = vrsqrt.pop %v563
      %v647 = vmul.f32 %v646, %v563
      %v648 = vmul.f32 %v647, %v646
      %v649 = vmul.f32 0.5, %v648
      %v650 = vsub.f32 1.5, %v649
      %v651 = vmul.f32 %v646, %v650
      %v652 = vmul.f32 %v563, %v651
      %vm653 = vcmp.eq.f32.partialorder %v563, inf
      %v654 = vsel %vm653, %v563, %v652
      %vm655 = vcmp.eq.f32.partialorder %v563, 0.0
      %v656 = vand.u32 %v563, 2147483648
      %v657 = vsel %vm655, %v656, %v654
      %v658 = vrsqrt.pop %v564
      %v659 = vmul.f32 %v658, %v564
      %v660 = vmul.f32 %v659, %v658
      %v661 = vmul.f32 0.5, %v660
      %v662 = vsub.f32 1.5, %v661
      %v663 = vmul.f32 %v658, %v662
      %v664 = vmul.f32 %v564, %v663
      %vm665 = vcmp.eq.f32.partialorder %v564, inf
      %v666 = vsel %vm665, %v564, %v664
      %vm667 = vcmp.eq.f32.partialorder %v564, 0.0
      %v668 = vand.u32 %v564, 2147483648
      %v669 = vsel %vm667, %v668, %v666
      %v670 = vrsqrt.pop %v565
      %v671 = vmul.f32 %v670, %v565
      %v672 = vmul.f32 %v671, %v670
      %v673 = vmul.f32 0.5, %v672
      %v674 = vsub.f32 1.5, %v673
      %v675 = vmul.f32 %v670, %v674
      %v676 = vmul.f32 %v565, %v675
      %vm677 = vcmp.eq.f32.partialorder %v565, inf
      %v678 = vsel %vm677, %v565, %v676
      %vm679 = vcmp.eq.f32.partialorder %v565, 0.0
      %v680 = vand.u32 %v565, 2147483648
      %v681 = vsel %vm679, %v680, %v678
      %v682 = vrsqrt.pop %v566
      %v683 = vmul.f32 %v682, %v566
      %v684 = vmul.f32 %v683, %v682
      %v685 = vmul.f32 0.5, %v684
      %v686 = vsub.f32 1.5, %v685
      %v687 = vmul.f32 %v682, %v686
      %v688 = vmul.f32 %v566, %v687
      %vm689 = vcmp.eq.f32.partialorder %v566, inf
      %v690 = vsel %vm689, %v566, %v688
      %vm691 = vcmp.eq.f32.partialorder %v566, 0.0
      %v692 = vand.u32 %v566, 2147483648
      %v693 = vsel %vm691, %v692, %v690
      %v694 = vrsqrt.pop %v567
      %v695 = vmul.f32 %v694, %v567
      %v696 = vmul.f32 %v695, %v694
      %v697 = vmul.f32 0.5, %v696
      %v698 = vsub.f32 1.5, %v697
      %v699 = vmul.f32 %v694, %v698
      %v700 = vmul.f32 %v567, %v699
      %vm701 = vcmp.eq.f32.partialorder %v567, inf
      %v702 = vsel %vm701, %v567, %v700
      %vm703 = vcmp.eq.f32.partialorder %v567, 0.0
      %v704 = vand.u32 %v567, 2147483648
      %v705 = vsel %vm703, %v704, %v702
      %v706 = vrsqrt.pop %v568
      %v707 = vmul.f32 %v706, %v568
      %v708 = vmul.f32 %v707, %v706
      %v709 = vmul.f32 0.5, %v708
      %v710 = vsub.f32 1.5, %v709
      %v711 = vmul.f32 %v706, %v710
      %v712 = vmul.f32 %v568, %v711
      %vm713 = vcmp.eq.f32.partialorder %v568, inf
      %v714 = vsel %vm713, %v568, %v712
      %vm715 = vcmp.eq.f32.partialorder %v568, 0.0
      %v716 = vand.u32 %v568, 2147483648
      %v717 = vsel %vm715, %v716, %v714
      %v718 = vrsqrt.pop %v569
      %v719 = vmul.f32 %v718, %v569
      %v720 = vmul.f32 %v719, %v718
      %v721 = vmul.f32 0.5, %v720
      %v722 = vsub.f32 1.5, %v721
      %v723 = vmul.f32 %v718, %v722
      %v724 = vmul.f32 %v569, %v723
      %vm725 = vcmp.eq.f32.partialorder %v569, inf
      %v726 = vsel %vm725, %v569, %v724
      %vm727 = vcmp.eq.f32.partialorder %v569, 0.0
      %v728 = vand.u32 %v569, 2147483648
      %v729 = vsel %vm727, %v728, %v726
      %v730 = vrsqrt.pop %v570
      %v731 = vmul.f32 %v730, %v570
      %v732 = vmul.f32 %v731, %v730
      %v733 = vmul.f32 0.5, %v732
      %v734 = vsub.f32 1.5, %v733
      %v735 = vmul.f32 %v730, %v734
      %v736 = vmul.f32 %v570, %v735
      %vm737 = vcmp.eq.f32.partialorder %v570, inf
      %v738 = vsel %vm737, %v570, %v736
      %vm739 = vcmp.eq.f32.partialorder %v570, 0.0
      %v740 = vand.u32 %v570, 2147483648
      %v741 = vsel %vm739, %v740, %v738
      %v742 = vrsqrt.pop %v571
      %v743 = vmul.f32 %v742, %v571
      %v744 = vmul.f32 %v743, %v742
      %v745 = vmul.f32 0.5, %v744
      %v746 = vsub.f32 1.5, %v745
      %v747 = vmul.f32 %v742, %v746
      %v748 = vmul.f32 %v571, %v747
      %vm749 = vcmp.eq.f32.partialorder %v571, inf
      %v750 = vsel %vm749, %v571, %v748
      %vm751 = vcmp.eq.f32.partialorder %v571, 0.0
      %v752 = vand.u32 %v571, 2147483648
      %v753 = vsel %vm751, %v752, %v750
      %v754 = vrsqrt.pop %v572
      %v755 = vmul.f32 %v754, %v572
      %v756 = vmul.f32 %v755, %v754
      %v757 = vmul.f32 0.5, %v756
      %v758 = vsub.f32 1.5, %v757
      %v759 = vmul.f32 %v754, %v758
      %v760 = vmul.f32 %v572, %v759
      %vm761 = vcmp.eq.f32.partialorder %v572, inf
      %v762 = vsel %vm761, %v572, %v760
      %vm763 = vcmp.eq.f32.partialorder %v572, 0.0
      %v764 = vand.u32 %v572, 2147483648
      %v765 = vsel %vm763, %v764, %v762
      %v766 = vrsqrt.pop %v573
      %v767 = vmul.f32 %v766, %v573
      %v768 = vmul.f32 %v767, %v766
      %v769 = vmul.f32 0.5, %v768
      %v770 = vsub.f32 1.5, %v769
      %v771 = vmul.f32 %v766, %v770
      %v772 = vmul.f32 %v573, %v771
      %vm773 = vcmp.eq.f32.partialorder %v573, inf
      %v774 = vsel %vm773, %v573, %v772
      %vm775 = vcmp.eq.f32.partialorder %v573, 0.0
      %v776 = vand.u32 %v573, 2147483648
      %v777 = vsel %vm775, %v776, %v774
      %v778 = vmax.f32 %v585, 1e-08
      %v779 = vmax.f32 %v597, 1e-08
      %v780 = vmax.f32 %v609, 1e-08
      %v781 = vmax.f32 %v621, 1e-08
      %v782 = vmax.f32 %v633, 1e-08
      %v783 = vmax.f32 %v645, 1e-08
      %v784 = vmax.f32 %v657, 1e-08
      %v785 = vmax.f32 %v669, 1e-08
      %v786 = vmax.f32 %v681, 1e-08
      %v787 = vmax.f32 %v693, 1e-08
      %v788 = vmax.f32 %v705, 1e-08
      %v789 = vmax.f32 %v717, 1e-08
      %v790 = vmax.f32 %v729, 1e-08
      %v791 = vmax.f32 %v741, 1e-08
      %v792 = vmax.f32 %v753, 1e-08
      %v793 = vmax.f32 %v765, 1e-08
      %v794 = vmax.f32 %v777, 1e-08
      %v795 = vlog2.pop %v778
      %v796 = vmul.f32 %v795, 0.6931472
      %v797 = vlog2.pop %v779
      %v798 = vmul.f32 %v797, 0.6931472
      %v799 = vlog2.pop %v780
      %v800 = vmul.f32 %v799, 0.6931472
      %v801 = vlog2.pop %v781
      %v802 = vmul.f32 %v801, 0.6931472
      %v803 = vlog2.pop %v782
      %v804 = vmul.f32 %v803, 0.6931472
      %v805 = vlog2.pop %v783
      %v806 = vmul.f32 %v805, 0.6931472
      %v807 = vlog2.pop %v784
      %v808 = vmul.f32 %v807, 0.6931472
      %v809 = vlog2.pop %v785
      %v810 = vmul.f32 %v809, 0.6931472
      %v811 = vlog2.pop %v786
      %v812 = vmul.f32 %v811, 0.6931472
      %v813 = vlog2.pop %v787
      %v814 = vmul.f32 %v813, 0.6931472
      %v815 = vlog2.pop %v788
      %v816 = vmul.f32 %v815, 0.6931472
      %v817 = vlog2.pop %v789
      %v818 = vmul.f32 %v817, 0.6931472
      %v819 = vlog2.pop %v790
      %v820 = vmul.f32 %v819, 0.6931472
      %v821 = vlog2.pop %v791
      %v822 = vmul.f32 %v821, 0.6931472
      %v823 = vlog2.pop %v792
      %v824 = vmul.f32 %v823, 0.6931472
      %v825 = vlog2.pop %v793
      %v826 = vmul.f32 %v825, 0.6931472
      %v827 = vlog2.pop %v794
      %v828 = vmul.f32 %v827, 0.6931472
      %v829 = vmax.f32 %v796, 0.0
      %v830 = vmax.f32 %v798, 0.0
      %v831 = vmax.f32 %v800, 0.0
      %v832 = vmax.f32 %v802, 0.0
      %v833 = vmax.f32 %v804, 0.0
      %v834 = vmax.f32 %v806, 0.0
      %v835 = vmax.f32 %v808, 0.0
      %v836 = vmax.f32 %v810, 0.0
      %v837 = vmax.f32 %v812, 0.0
      %v838 = vmax.f32 %v814, 0.0
      %v839 = vmax.f32 %v816, 0.0
      %v840 = vmax.f32 %v818, 0.0
      %v841 = vmax.f32 %v820, 0.0
      %v842 = vmax.f32 %v822, 0.0
      %v843 = vmax.f32 %v824, 0.0
      %v844 = vmax.f32 %v826, 0.0
      %v845 = vmax.f32 %v828, 0.0
      %vm846 = vcmask 351232
      %847 = vst.msk [vmem:[%s170] sm:$0xff] %vm846, %v829
      %848 = vst.msk [vmem:[%s170 + $0x8] sm:$0xff] %vm846, %v830
      %849 = vst.msk [vmem:[%s170 + $0x10] sm:$0xff] %vm846, %v831
      %850 = vst.msk [vmem:[%s170 + $0x18] sm:$0xff] %vm846, %v832
      %851 = vst.msk [vmem:[%s170 + $0x20] sm:$0xff] %vm846, %v833
      %852 = vst.msk [vmem:[%s170 + $0x28] sm:$0xff] %vm846, %v834
      %853 = vst.msk [vmem:[%s170 + $0x30] sm:$0xff] %vm846, %v835
      %854 = vst.msk [vmem:[%s170 + $0x38] sm:$0xff] %vm846, %v836
      %855 = vst.msk [vmem:[%s170 + $0x40] sm:$0xff] %vm846, %v837
      %856 = vst.msk [vmem:[%s170 + $0x48] sm:$0xff] %vm846, %v838
      %857 = vst.msk [vmem:[%s170 + $0x50] sm:$0xff] %vm846, %v839
      %858 = vst.msk [vmem:[%s170 + $0x58] sm:$0xff] %vm846, %v840
      %859 = vst.msk [vmem:[%s170 + $0x60] sm:$0xff] %vm846, %v841
      %860 = vst.msk [vmem:[%s170 + $0x68] sm:$0xff] %vm846, %v842
      %861 = vst.msk [vmem:[%s170 + $0x70] sm:$0xff] %vm846, %v843
      %862 = vst.msk [vmem:[%s170 + $0x78] sm:$0xff] %vm846, %v844
      %vm863 = vcmask 344064
      %864 = vst.msk [vmem:[%s170 + $0x80] sm:$0x1] %vm863, %v845
      %p865 = scmp.lt.s32.totalorder %s14, 3
      %s866 = scalar_select %p865, %s14, 3
      %s867 = smul.addr %s866, 17
      %s868 = smul.addr %s867, 8
      %s869 = scalar_lea.vmem %s3, %s868
      // Predicated region
      $region33: #{mldg_forward.12} parent=31 // pred_check
        %p870 = pneg %p100
      $region34: #{mldg_forward.12} parent=31 // pred_check_branch
        %872 = sbr.rel (%p870) target = $region36
      $region35: #{mldg_forward.12} parent=31 // pred_region
        _
      $region36: #{mldg_forward.12} parent=31 // pred_fallthru
        _
    $region32: #{mldg_forward.12} parent=5 // pred_fallthru
      _
    %p873 = scmp.le.s32.totalorder 2, %s9
    // Predicated region
    $region37: #{mldg_forward.12} parent=5 // pred_check
      %p874 = pneg %p873
    $region38: #{mldg_forward.12} parent=5 // pred_check_branch
      %876 = sbr.rel (%p874) target = $region40
    $region39: #{mldg_forward.12} parent=5 // pred_region
      %s877 = ssub.s32 %s9, 2
      // Predicated region
      $region41: #{mldg_forward.12} parent=39 // pred_check
        %p878 = pneg %p106
      $region42: #{mldg_forward.12} parent=39 // pred_check_branch
        %880 = sbr.rel (%p878) target = $region44
      $region43: #{mldg_forward.12} parent=39 // pred_region
        %p881 = scmp.lt.s32.totalorder %s15, 3
        %s882 = scalar_select %p881, %s15, 3
        %s883 = smul.addr %s882, 17
        %s884 = smul.addr %s883, 8
        %s885 = scalar_lea.vmem %s3, %s884
      $region44: #{mldg_forward.12} parent=39 // pred_fallthru
        _
    $region40: #{mldg_forward.12} parent=5 // pred_fallthru
      _
  $region6: #{mldg_forward.12} parent=0 // loop_footer
    %s13 = sadd.s32 1, %s9
  $region7: #{mldg_forward.12} parent=0 // loop_footer_branch
    %8 = sbr.rel target = $region3
  $region8: #{mldg_forward.12} parent=0 // loop_exit
    _

// kernel: mldg_forward.13
$region0: #{mldg_forward.13}
  #allocation0 [shape = 'u32[]', space=smem, size = 0x4, offset = 0x4, fixed_abs, tag = 'smem constant byte address 0x4 - core index']
  #allocation1 [shape = 'u32[72,128]{1,0:T(1,128)}', space=vmem, size = 0x9000, scoped, tag = 'internal scratch']
  %s0 = inlined_call_operand.vmem [shape: f32[2,18,5547], index: 0, kind: input, shape index: {}]
  %s1 = inlined_call_operand.vmem [shape: f32[6,18], index: 1, kind: input, shape index: {}]
  %s2 = inlined_call_operand.vmem [shape: f32[6,1], index: 2, kind: input, shape index: {}]
  %s3 = inlined_call_operand.vmem [shape: f32[6,1], index: 3, kind: input, shape index: {}]
  %s4 = inlined_call_operand.vmem [shape: f32[2,6,5547], index: 4, kind: output, shape index: {}]
  %s5 = sld [smem:[#allocation0]]
  $region49: #{mldg_forward.13} parent=0
    _
  %s7 = ssub.s32 1, %s5
  %s8 = scalar_select 0, %s7, %s5
  loop: start=0, step=1, limit=4
  $region2: #{mldg_forward.13} parent=0 // loop_pre_header
    _
  $region3: #{mldg_forward.13} parent=0 // loop_header
    %s10 = sphi 0, %s14
    %p11 = scmp.ge.s32.totalorder %s10, 4
    %s20 = sphi 0, %s22
    %s23 = sphi 0, %s20
    %s24 = sphi 0, %s23
    %s40 = sphi 0, %s24
    %s44 = sphi 0, %s44
    %s46 = sphi 0, %s44
    %s47 = sphi 0, %s46
    %s61 = sphi 0, %s47
    %s65 = sphi 0, %s65
    %s67 = sphi 0, %s65
    %s68 = sphi 0, %s67
    %s82 = sphi 0, %s68
    %s86 = sphi 0, %s86
    %s88 = sphi 0, %s86
    %s89 = sphi 0, %s88
    %s103 = sphi 0, %s89
    %s109 = sphi 0, %s111
    %s112 = sphi 0, %s109
    %s113 = sphi 0, %s112
    %s129 = sphi 0, %s113
  $region4: #{mldg_forward.13} parent=0 // loop_header_branch
    %13 = sbr.rel (%p11) target = $region8
  $region5: #{mldg_forward.13} parent=0 // loop_body
    %s15 = ssub.s32 %s10, 1
    %s16 = ssub.s32 %s10, 2
    %s17 = sadd.s32 %s10, 1
    %s18 = ssub.s32 %s10, %s17
    %p19 = scmp.eq.s32.totalorder %s18, 0
    %s21 = sadd.s32 %s20, 1
    %s22 = scalar_select %p19, %s20, %s21
    %p25 = pneg %p19
    %p26 = scmp.eq.s32.totalorder %s10, 1
    %p27 = por %p25, %p26
    %p28 = scmp.ne.s32.totalorder %s20, %s23
    %p29 = scmp.eq.s32.totalorder %s10, 0
    %p30 = por %p28, %p29
    %p31 = scmp.ne.s32.totalorder %s20, %s23
    %p32 = scmp.eq.s32.totalorder %s15, 1
    %p33 = por %p31, %p32
    %p34 = scmp.ne.s32.totalorder %s23, %s24
    %p35 = scmp.eq.s32.totalorder %s15, 0
    %p36 = por %p34, %p35
    %p37 = scmp.ne.s32.totalorder %s23, %s24
    %p38 = scmp.eq.s32.totalorder %s16, 1
    %p39 = por %p37, %p38
    %p41 = scmp.ne.s32.totalorder %s24, %s40
    %p42 = scmp.eq.s32.totalorder %s16, 0
    %p43 = por %p41, %p42
    %s45 = sadd.s32 %s44, 1
    %p48 = scmp.eq.s32.totalorder %s10, 1
    %p49 = scmp.ne.s32.totalorder %s44, %s46
    %p50 = scmp.eq.s32.totalorder %s10, 0
    %p51 = por %p49, %p50
    %p52 = scmp.ne.s32.totalorder %s44, %s46
    %p53 = scmp.eq.s32.totalorder %s15, 1
    %p54 = por %p52, %p53
    %p55 = scmp.ne.s32.totalorder %s46, %s47
    %p56 = scmp.eq.s32.totalorder %s15, 0
    %p57 = por %p55, %p56
    %p58 = scmp.ne.s32.totalorder %s46, %s47
    %p59 = scmp.eq.s32.totalorder %s16, 1
    %p60 = por %p58, %p59
    %p62 = scmp.ne.s32.totalorder %s47, %s61
    %p63 = scmp.eq.s32.totalorder %s16, 0
    %p64 = por %p62, %p63
    %s66 = sadd.s32 %s65, 1
    %p69 = scmp.eq.s32.totalorder %s10, 1
    %p70 = scmp.ne.s32.totalorder %s65, %s67
    %p71 = scmp.eq.s32.totalorder %s10, 0
    %p72 = por %p70, %p71
    %p73 = scmp.ne.s32.totalorder %s65, %s67
    %p74 = scmp.eq.s32.totalorder %s15, 1
    %p75 = por %p73, %p74
    %p76 = scmp.ne.s32.totalorder %s67, %s68
    %p77 = scmp.eq.s32.totalorder %s15, 0
    %p78 = por %p76, %p77
    %p79 = scmp.ne.s32.totalorder %s67, %s68
    %p80 = scmp.eq.s32.totalorder %s16, 1
    %p81 = por %p79, %p80
    %p83 = scmp.ne.s32.totalorder %s68, %s82
    %p84 = scmp.eq.s32.totalorder %s16, 0
    %p85 = por %p83, %p84
    %s87 = sadd.s32 %s86, 1
    %p90 = scmp.eq.s32.totalorder %s10, 1
    %p91 = scmp.ne.s32.totalorder %s86, %s88
    %p92 = scmp.eq.s32.totalorder %s10, 0
    %p93 = por %p91, %p92
    %p94 = scmp.ne.s32.totalorder %s86, %s88
    %p95 = scmp.eq.s32.totalorder %s15, 1
    %p96 = por %p94, %p95
    %p97 = scmp.ne.s32.totalorder %s88, %s89
    %p98 = scmp.eq.s32.totalorder %s15, 0
    %p99 = por %p97, %p98
    %p100 = scmp.ne.s32.totalorder %s88, %s89
    %p101 = scmp.eq.s32.totalorder %s16, 1
    %p102 = por %p100, %p101
    %p104 = scmp.ne.s32.totalorder %s89, %s103
    %p105 = scmp.eq.s32.totalorder %s16, 0
    %p106 = por %p104, %p105
    %s107 = ssub.s32 %s10, %s17
    %p108 = scmp.eq.s32.totalorder %s107, 0
    %s110 = sadd.s32 %s109, 1
    %s111 = scalar_select %p108, %s109, %s110
    %p114 = pneg %p108
    %p115 = scmp.eq.s32.totalorder %s10, 1
    %p116 = por %p114, %p115
    %p117 = scmp.ne.s32.totalorder %s109, %s112
    %p118 = scmp.eq.s32.totalorder %s10, 0
    %p119 = por %p117, %p118
    %p120 = scmp.ne.s32.totalorder %s109, %s112
    %p121 = scmp.eq.s32.totalorder %s15, 1
    %p122 = por %p120, %p121
    %p123 = scmp.ne.s32.totalorder %s112, %s113
    %p124 = scmp.eq.s32.totalorder %s15, 0
    %p125 = por %p123, %p124
    %p126 = scmp.ne.s32.totalorder %s112, %s113
    %p127 = scmp.eq.s32.totalorder %s16, 1
    %p128 = por %p126, %p127
    %p130 = scmp.ne.s32.totalorder %s113, %s129
    %p131 = scmp.eq.s32.totalorder %s16, 0
    %p132 = por %p130, %p131
    %p133 = scmp.le.s32.totalorder 1, %s10
    %p134 = scmp.lt.s32.totalorder %s10, 3
    %p135 = pnand %p133, %p134
    %p136 = pneg %p135
    // Predicated region
    $region9: #{mldg_forward.13} parent=5 // pred_check
      _
    $region10: #{mldg_forward.13} parent=5 // pred_check_branch
      %138 = sbr.rel (%p135) target = $region12
    $region11: #{mldg_forward.13} parent=5 // pred_region
      %s139 = ssub.s32 %s10, 1
      // Predicated region
      $region13: #{mldg_forward.13} parent=11 // pred_check
        %p140 = pneg %p57
      $region14: #{mldg_forward.13} parent=11 // pred_check_branch
        %142 = sbr.rel (%p140) target = $region16
      $region15: #{mldg_forward.13} parent=11 // pred_region
        _
      $region16: #{mldg_forward.13} parent=11 // pred_fallthru
        _
      // Predicated region
      $region17: #{mldg_forward.13} parent=11 // pred_check
        %p143 = pneg %p78
      $region18: #{mldg_forward.13} parent=11 // pred_check_branch
        %145 = sbr.rel (%p143) target = $region20
      $region19: #{mldg_forward.13} parent=11 // pred_region
        _
      $region20: #{mldg_forward.13} parent=11 // pred_fallthru
        _
      // Predicated region
      $region21: #{mldg_forward.13} parent=11 // pred_check
        %p146 = pneg %p99
      $region22: #{mldg_forward.13} parent=11 // pred_check_branch
        %148 = sbr.rel (%p146) target = $region24
      $region23: #{mldg_forward.13} parent=11 // pred_region
        _
      $region24: #{mldg_forward.13} parent=11 // pred_fallthru
        _
    $region12: #{mldg_forward.13} parent=5 // pred_fallthru
      _
    %p149 = scmp.lt.s32.totalorder %s10, 2
    // Predicated region
    $region25: #{mldg_forward.13} parent=5 // pred_check
      %p150 = pneg %p149
    $region26: #{mldg_forward.13} parent=5 // pred_check_branch
      %152 = sbr.rel (%p150) target = $region28
    $region27: #{mldg_forward.13} parent=5 // pred_region
      // Predicated region
      $region29: #{mldg_forward.13} parent=27 // pred_check
        %p153 = pneg %p30
      $region30: #{mldg_forward.13} parent=27 // pred_check_branch
        %155 = sbr.rel (%p153) target = $region32
      $region31: #{mldg_forward.13} parent=27 // pred_region
        %p156 = scmp.lt.s32.totalorder %s10, 1
        %s157 = scalar_select %p156, %s10, 1
        %s158 = smul.addr %s157, 132
        %s159 = smul.addr %s158, 8
        %s160 = scalar_lea.vmem %s0, %s159
      $region32: #{mldg_forward.13} parent=27 // pred_fallthru
        _
    $region28: #{mldg_forward.13} parent=5 // pred_fallthru
      _
    %p161 = scmp.le.s32.totalorder 1, %s10
    %p162 = scmp.lt.s32.totalorder %s10, 3
    %p163 = pnand %p161, %p162
    %p164 = pneg %p163
    // Predicated region
    $region33: #{mldg_forward.13} parent=5 // pred_check
      _
    $region34: #{mldg_forward.13} parent=5 // pred_check_branch
      %166 = sbr.rel (%p163) target = $region36
    $region35: #{mldg_forward.13} parent=5 // pred_region
      %s167 = ssub.s32 %s10, 1
      %p168 = scmp.lt.s32.totalorder %s15, 1
      %s169 = scalar_select %p168, %s15, 1
      %s170 = smul.addr %s169, 132
      %s171 = smul.addr %s170, 8
      %s172 = scalar_lea.vmem %s0, %s171
      %p173 = pneg %p36
      %p174 = pneg %p33
      %p175 = pneg %p57
      %p176 = pneg %p54
      %p177 = pneg %p78
      %p178 = pneg %p75
      %p179 = pneg %p99
      %p180 = pneg %p96
      %p181 = pneg %p125
      %p182 = pneg %p122
      %p183 = scmp.lt.s32.totalorder %s15, 1
      %s184 = scalar_select %p183, %s15, 1
      %s185 = smul.addr %s184, 44
      %s186 = smul.addr %s185, 8
      %s187 = scalar_lea.vmem %s4, %s186
      %p188 = scmp.lt.s32.totalorder %s15, 1
      %s189 = scalar_select %p188, %s15, 1
      %s190 = smul.addr %s189, 132
      %s191 = smul.addr %s190, 8
      %s192 = scalar_lea.vmem %s0, %s191
      %p193 = scmp.lt.s32.totalorder %s15, 1
      %s194 = scalar_select %p193, %s15, 1
      %s195 = smul.addr %s194, 44
      %s196 = smul.addr %s195, 8
      %s197 = scalar_lea.vmem %s4, %s196
      %v198 = vld [vmem:[%s192] sm:$0xff]
      %v199 = vld [vmem:[%s192 + $0x8] sm:$0xff]
      %v200 = vld [vmem:[%s192 + $0x10] sm:$0xff]
      %v201 = vld [vmem:[%s192 + $0x18] sm:$0xff]
      %v202 = vld [vmem:[%s192 + $0x20] sm:$0xff]
      %v203 = vld [vmem:[%s192 + $0x28] sm:$0xff]
      %v204 = vld [vmem:[%s192 + $0x30] sm:$0xff]
      %v205 = vld [vmem:[%s192 + $0x38] sm:$0xff]
      %v206 = vld [vmem:[%s192 + $0x40] sm:$0xff]
      %v207 = vld [vmem:[%s192 + $0x48] sm:$0xff]
      %v208 = vld [vmem:[%s192 + $0x50] sm:$0xff]
      %v209 = vld [vmem:[%s192 + $0x58] sm:$0xff]
      %v210 = vld [vmem:[%s192 + $0x60] sm:$0xff]
      %v211 = vld [vmem:[%s192 + $0x68] sm:$0xff]
      %v212 = vld [vmem:[%s192 + $0x70] sm:$0xff]
      %v213 = vld [vmem:[%s192 + $0x78] sm:$0xff]
      %v214 = vld [vmem:[%s192 + $0x80] sm:$0xff]
      %v215 = vld [vmem:[%s192 + $0x88] sm:$0xff]
      %v216 = vld [vmem:[%s192 + $0x90] sm:$0xff]
      %v217 = vld [vmem:[%s192 + $0x98] sm:$0xff]
      %v218 = vld [vmem:[%s192 + $0xa0] sm:$0xff]
      %v219 = vld [vmem:[%s192 + $0xa8] sm:$0xff]
      %v220 = vld [vmem:[%s192 + $0xb0] sm:$0xff]
      %v221 = vld [vmem:[%s192 + $0xb8] sm:$0xff]
      %v222 = vld [vmem:[%s192 + $0xc0] sm:$0xff]
      %v223 = vld [vmem:[%s192 + $0xc8] sm:$0xff]
      %v224 = vld [vmem:[%s192 + $0xd0] sm:$0xff]
      %v225 = vld [vmem:[%s192 + $0xd8] sm:$0xff]
      %v226 = vld [vmem:[%s192 + $0xe0] sm:$0xff]
      %v227 = vld [vmem:[%s192 + $0xe8] sm:$0xff]
      %v228 = vld [vmem:[%s192 + $0xf0] sm:$0xff]
      %v229 = vld [vmem:[%s192 + $0xf8] sm:$0xff]
      %v230 = vld [vmem:[%s192 + $0x100] sm:$0xff]
      %v231 = vld [vmem:[%s192 + $0x108] sm:$0xff]
      %v232 = vld [vmem:[%s192 + $0x110] sm:$0xff]
      %v233 = vld [vmem:[%s192 + $0x118] sm:$0xff]
      %v234 = vld [vmem:[%s192 + $0x120] sm:$0xff]
      %v235 = vld [vmem:[%s192 + $0x128] sm:$0xff]
      %v236 = vld [vmem:[%s192 + $0x130] sm:$0xff]
      %v237 = vld [vmem:[%s192 + $0x138] sm:$0xff]
      %v238 = vld [vmem:[%s192 + $0x140] sm:$0xff]
      %v239 = vld [vmem:[%s192 + $0x148] sm:$0xff]
      %v240 = vld [vmem:[%s192 + $0x150] sm:$0xff]
      %v241 = vld [vmem:[%s192 + $0x158] sm:$0xff]
      %v242 = vld [vmem:[%s192 + $0x160] sm:$0xff]
      %v243 = vld [vmem:[%s192 + $0x168] sm:$0xff]
      %v244 = vld [vmem:[%s192 + $0x170] sm:$0xff]
      %v245 = vld [vmem:[%s192 + $0x178] sm:$0xff]
      %v246 = vld [vmem:[%s192 + $0x180] sm:$0xff]
      %v247 = vld [vmem:[%s192 + $0x188] sm:$0xff]
      %v248 = vld [vmem:[%s192 + $0x190] sm:$0xff]
      %v249 = vld [vmem:[%s192 + $0x198] sm:$0xff]
      %v250 = vld [vmem:[%s192 + $0x1a0] sm:$0xff]
      %v251 = vld [vmem:[%s192 + $0x1a8] sm:$0xff]
      %v252 = vld [vmem:[%s192 + $0x1b0] sm:$0xff]
      %v253 = vld [vmem:[%s192 + $0x1b8] sm:$0xff]
      %v254 = vld [vmem:[%s192 + $0x1c0] sm:$0xff]
      %v255 = vld [vmem:[%s192 + $0x1c8] sm:$0xff]
      %v256 = vld [vmem:[%s192 + $0x1d0] sm:$0xff]
      %v257 = vld [vmem:[%s192 + $0x1d8] sm:$0xff]
      %v258 = vld [vmem:[%s192 + $0x1e0] sm:$0xff]
      %v259 = vld [vmem:[%s192 + $0x1e8] sm:$0xff]
      %v260 = vld [vmem:[%s192 + $0x1f0] sm:$0xff]
      %v261 = vld [vmem:[%s192 + $0x1f8] sm:$0xff]
      %v262 = vld [vmem:[%s192 + $0x200] sm:$0xff]
      %v263 = vld [vmem:[%s192 + $0x208] sm:$0xff]
      %v264 = vld [vmem:[%s192 + $0x210] sm:$0xff]
      %v265 = vld [vmem:[%s192 + $0x218] sm:$0xff]
      %v266 = vld [vmem:[%s192 + $0x220] sm:$0xff]
      %v267 = vld [vmem:[%s192 + $0x228] sm:$0xff]
      %v268 = vld [vmem:[%s192 + $0x230] sm:$0xff]
      %v269 = vld [vmem:[%s192 + $0x238] sm:$0xff]
      %v270 = vld [vmem:[%s192 + $0x240] sm:$0xff]
      %v271 = vld [vmem:[%s192 + $0x248] sm:$0xff]
      %v272 = vld [vmem:[%s192 + $0x250] sm:$0xff]
      %v273 = vld [vmem:[%s192 + $0x258] sm:$0xff]
      %v274 = vld [vmem:[%s192 + $0x260] sm:$0xff]
      %v275 = vld [vmem:[%s192 + $0x268] sm:$0xff]
      %v276 = vld [vmem:[%s192 + $0x270] sm:$0xff]
      %v277 = vld [vmem:[%s192 + $0x278] sm:$0xff]
      %v278 = vld [vmem:[%s192 + $0x280] sm:$0xff]
      %v279 = vld [vmem:[%s192 + $0x288] sm:$0xff]
      %v280 = vld [vmem:[%s192 + $0x290] sm:$0xff]
      %v281 = vld [vmem:[%s192 + $0x298] sm:$0xff]
      %v282 = vld [vmem:[%s192 + $0x2a0] sm:$0xff]
      %v283 = vld [vmem:[%s192 + $0x2a8] sm:$0xff]
      %v284 = vld [vmem:[%s192 + $0x2b0] sm:$0xff]
      %v285 = vld [vmem:[%s192 + $0x2b8] sm:$0xff]
      %v286 = vld [vmem:[%s192 + $0x2c0] sm:$0x3]
      %v287 = vld [vmem:[%s192 + $0x2c8] sm:$0x3]
      %v288 = vld [vmem:[%s192 + $0x2d0] sm:$0x3]
      %v289 = vld [vmem:[%s192 + $0x2d8] sm:$0x3]
      %v290 = vld [vmem:[%s192 + $0x2e0] sm:$0x3]
      %v291 = vld [vmem:[%s192 + $0x2e8] sm:$0x3]
      %v292 = vld [vmem:[%s192 + $0x2f0] sm:$0x3]
      %v293 = vld [vmem:[%s192 + $0x2f8] sm:$0x3]
      %v294 = vld [vmem:[%s192 + $0x300] sm:$0x3]
      %v295 = vld [vmem:[%s192 + $0x308] sm:$0x3]
      %v296 = vld [vmem:[%s192 + $0x310] sm:$0x3]
      %v297 = vld [vmem:[%s192 + $0x318] sm:$0x3]
      %v298 = vld [vmem:[%s192 + $0x320] sm:$0x3]
      %v299 = vld [vmem:[%s192 + $0x328] sm:$0x3]
      %v300 = vld [vmem:[%s192 + $0x330] sm:$0x3]
      %v301 = vld [vmem:[%s192 + $0x338] sm:$0x3]
      %v302 = vld [vmem:[%s192 + $0x340] sm:$0x3]
      %v303 = vld [vmem:[%s192 + $0x348] sm:$0x3]
      %v304 = vld [vmem:[%s192 + $0x350] sm:$0x3]
      %v305 = vld [vmem:[%s192 + $0x358] sm:$0x3]
      %v306 = vld [vmem:[%s192 + $0x360] sm:$0x3]
      %v307 = vld [vmem:[%s192 + $0x368] sm:$0x3]
      %v308 = vld [vmem:[%s192 + $0x370] sm:$0x3]
      %v309 = vld [vmem:[%s192 + $0x378] sm:$0x3]
      %v310 = vld [vmem:[%s192 + $0x380] sm:$0x3]
      %v311 = vld [vmem:[%s192 + $0x388] sm:$0x3]
      %v312 = vld [vmem:[%s192 + $0x390] sm:$0x3]
      %v313 = vld [vmem:[%s192 + $0x398] sm:$0x3]
      %v314 = vld [vmem:[%s192 + $0x3a0] sm:$0x3]
      %v315 = vld [vmem:[%s192 + $0x3a8] sm:$0x3]
      %v316 = vld [vmem:[%s192 + $0x3b0] sm:$0x3]
      %v317 = vld [vmem:[%s192 + $0x3b8] sm:$0x3]
      %v318 = vld [vmem:[%s192 + $0x3c0] sm:$0x3]
      %v319 = vld [vmem:[%s192 + $0x3c8] sm:$0x3]
      %v320 = vld [vmem:[%s192 + $0x3d0] sm:$0x3]
      %v321 = vld [vmem:[%s192 + $0x3d8] sm:$0x3]
      %v322 = vld [vmem:[%s192 + $0x3e0] sm:$0x3]
      %v323 = vld [vmem:[%s192 + $0x3e8] sm:$0x3]
      %v324 = vld [vmem:[%s192 + $0x3f0] sm:$0x3]
      %v325 = vld [vmem:[%s192 + $0x3f8] sm:$0x3]
      %v326 = vld [vmem:[%s192 + $0x400] sm:$0x3]
      %v327 = vld [vmem:[%s192 + $0x408] sm:$0x3]
      %v328 = vld [vmem:[%s192 + $0x410] sm:$0x3]
      %v329 = vld [vmem:[%s192 + $0x418] sm:$0x3]
      %v330 = vld [vmem:[%s1] sm:$0x3f]
      %vm331 = vcmask 146432
      %v333 = vsel %vm331, %v330, 0
      %vm335 = vcmask 1041408
      %v337 = vsel %vm335, %v286, 0
      %v340 = vsel %vm335, %v287, 0
      %v343 = vsel %vm335, %v288, 0
      %v346 = vsel %vm335, %v289, 0
      %v349 = vsel %vm335, %v290, 0
      %v352 = vsel %vm335, %v291, 0
      %v355 = vsel %vm335, %v292, 0
      %v358 = vsel %vm335, %v293, 0
      %v361 = vsel %vm335, %v294, 0
      %v364 = vsel %vm335, %v295, 0
      %v367 = vsel %vm335, %v296, 0
      %v370 = vsel %vm335, %v297, 0
      %v373 = vsel %vm335, %v298, 0
      %v376 = vsel %vm335, %v299, 0
      %v379 = vsel %vm335, %v300, 0
      %v382 = vsel %vm335, %v301, 0
      %v385 = vsel %vm335, %v302, 0
      %v388 = vsel %vm335, %v303, 0
      %v391 = vsel %vm335, %v304, 0
      %v394 = vsel %vm335, %v305, 0
      %v397 = vsel %vm335, %v306, 0
      %v400 = vsel %vm335, %v307, 0
      %v403 = vsel %vm335, %v308, 0
      %v406 = vsel %vm335, %v309, 0
      %v409 = vsel %vm335, %v310, 0
      %v412 = vsel %vm335, %v311, 0
      %v415 = vsel %vm335, %v312, 0
      %v418 = vsel %vm335, %v313, 0
      %v421 = vsel %vm335, %v314, 0
      %v424 = vsel %vm335, %v315, 0
      %v427 = vsel %vm335, %v316, 0
      %v430 = vsel %vm335, %v317, 0
      %v433 = vsel %vm335, %v318, 0
      %v436 = vsel %vm335, %v319, 0
      %v439 = vsel %vm335, %v320, 0
      %v442 = vsel %vm335, %v321, 0
      %v445 = vsel %vm335, %v322, 0
      %v448 = vsel %vm335, %v323, 0
      %v451 = vsel %vm335, %v324, 0
      %v454 = vsel %vm335, %v325, 0
      %v457 = vsel %vm335, %v326, 0
      %v460 = vsel %vm335, %v327, 0
      %v463 = vsel %vm335, %v328, 0
      %v466 = vsel %vm335, %v329, 0
      %468 = vmatpush.msra.mxu0 0.0
      %469 = vmatpush.msra.mxu0 0.0
      %470 = vmatpush.msra.mxu0 0.0
      %471 = vmatpush.msra.mxu0 0.0
      %472 = vmatpush.msra.mxu0 0.0
      %473 = vmatpush.msra.mxu0 0.0
      %474 = vmatpush.msra.mxu0 0.0
      %475 = vmatpush.msra.mxu0 0.0
      %476 = vmatpush.msra.mxu0 0.0
      %477 = vmatpush.msra.mxu0 0.0
      %478 = vmatpush.msra.mxu0 0.0
      %479 = vmatpush.msra.mxu0 0.0
      %480 = vmatpush.msra.mxu0 0.0
      %481 = vmatpush.msra.mxu0 %v337
      %482 = vmatpush.msra.mxu0 %v242
      %483 = vmatpush.msra.mxu0 %v198
      %484 = vmatmul.f32.gmra.mxu0 %v333
      %v485 = vpop.f32.mrf.mxu0
      %v486 = vadd.f32 0.0, %v485
      %487 = vdwg.mxu0
      %488 = vmatpush.msra.mxu0 0.0
      %489 = vmatpush.msra.mxu0 0.0
      %490 = vmatpush.msra.mxu0 0.0
      %491 = vmatpush.msra.mxu0 0.0
      %492 = vmatpush.msra.mxu0 0.0
      %493 = vmatpush.msra.mxu0 0.0
      %494 = vmatpush.msra.mxu0 0.0
      %495 = vmatpush.msra.mxu0 0.0
      %496 = vmatpush.msra.mxu0 0.0
      %497 = vmatpush.msra.mxu0 0.0
      %498 = vmatpush.msra.mxu0 0.0
      %499 = vmatpush.msra.mxu0 0.0
      %500 = vmatpush.msra.mxu0 0.0
      %501 = vmatpush.msra.mxu0 %v340
      %502 = vmatpush.msra.mxu0 %v243
      %503 = vmatpush.msra.mxu0 %v199
      %504 = vmatmul.f32.gmra.mxu0 %v333
      %v505 = vpop.f32.mrf.mxu0
      %v506 = vadd.f32 0.0, %v505
      %507 = vdwg.mxu0
      %508 = vmatpush.msra.mxu0 0.0
      %509 = vmatpush.msra.mxu0 0.0
      %510 = vmatpush.msra.mxu0 0.0
      %511 = vmatpush.msra.mxu0 0.0
      %512 = vmatpush.msra.mxu0 0.0
      %513 = vmatpush.msra.mxu0 0.0
      %514 = vmatpush.msra.mxu0 0.0
      %515 = vmatpush.msra.mxu0 0.0
      %516 = vmatpush.msra.mxu0 0.0
      %517 = vmatpush.msra.mxu0 0.0
      %518 = vmatpush.msra.mxu0 0.0
      %519 = vmatpush.msra.mxu0 0.0
      %520 = vmatpush.msra.mxu0 0.0
      %521 = vmatpush.msra.mxu0 %v343
      %522 = vmatpush.msra.mxu0 %v244
      %523 = vmatpush.msra.mxu0 %v200
      %524 = vmatmul.f32.gmra.mxu0 %v333
      %v525 = vpop.f32.mrf.mxu0
      %v526 = vadd.f32 0.0, %v525
      %527 = vdwg.mxu0
      %528 = vmatpush.msra.mxu0 0.0
      %529 = vmatpush.msra.mxu0 0.0
      %530 = vmatpush.msra.mxu0 0.0
      %531 = vmatpush.msra.mxu0 0.0
      %532 = vmatpush.msra.mxu0 0.0
      %533 = vmatpush.msra.mxu0 0.0
      %534 = vmatpush.msra.mxu0 0.0
      %535 = vmatpush.msra.mxu0 0.0
      %536 = vmatpush.msra.mxu0 0.0
      %537 = vmatpush.msra.mxu0 0.0
      %538 = vmatpush.msra.mxu0 0.0
      %539 = vmatpush.msra.mxu0 0.0
      %540 = vmatpush.msra.mxu0 0.0
      %541 = vmatpush.msra.mxu0 %v346
      %542 = vmatpush.msra.mxu0 %v245
      %543 = vmatpush.msra.mxu0 %v201
      %544 = vmatmul.f32.gmra.mxu0 %v333
      %v545 = vpop.f32.mrf.mxu0
      %v546 = vadd.f32 0.0, %v545
      %547 = vdwg.mxu0
      %548 = vmatpush.msra.mxu0 0.0
      %549 = vmatpush.msra.mxu0 0.0
      %550 = vmatpush.msra.mxu0 0.0
      %551 = vmatpush.msra.mxu0 0.0
      %552 = vmatpush.msra.mxu0 0.0
      %553 = vmatpush.msra.mxu0 0.0
      %554 = vmatpush.msra.mxu0 0.0
      %555 = vmatpush.msra.mxu0 0.0
      %556 = vmatpush.msra.mxu0 0.0
      %557 = vmatpush.msra.mxu0 0.0
      %558 = vmatpush.msra.mxu0 0.0
      %559 = vmatpush.msra.mxu0 0.0
      %560 = vmatpush.msra.mxu0 0.0
      %561 = vmatpush.msra.mxu0 %v349
      %562 = vmatpush.msra.mxu0 %v246
      %563 = vmatpush.msra.mxu0 %v202
      %564 = vmatmul.f32.gmra.mxu0 %v333
      %v565 = vpop.f32.mrf.mxu0
      %v566 = vadd.f32 0.0, %v565
      %567 = vdwg.mxu0
      %568 = vmatpush.msra.mxu0 0.0
      %569 = vmatpush.msra.mxu0 0.0
      %570 = vmatpush.msra.mxu0 0.0
      %571 = vmatpush.msra.mxu0 0.0
      %572 = vmatpush.msra.mxu0 0.0
      %573 = vmatpush.msra.mxu0 0.0
      %574 = vmatpush.msra.mxu0 0.0
      %575 = vmatpush.msra.mxu0 0.0
      %576 = vmatpush.msra.mxu0 0.0
      %577 = vmatpush.msra.mxu0 0.0
      %578 = vmatpush.msra.mxu0 0.0
      %579 = vmatpush.msra.mxu0 0.0
      %580 = vmatpush.msra.mxu0 0.0
      %581 = vmatpush.msra.mxu0 %v352
      %582 = vmatpush.msra.mxu0 %v247
      %583 = vmatpush.msra.mxu0 %v203
      %584 = vmatmul.f32.gmra.mxu0 %v333
      %v585 = vpop.f32.mrf.mxu0
      %v586 = vadd.f32 0.0, %v585
      %587 = vdwg.mxu0
      %588 = vmatpush.msra.mxu0 0.0
      %589 = vmatpush.msra.mxu0 0.0
      %590 = vmatpush.msra.mxu0 0.0
      %591 = vmatpush.msra.mxu0 0.0
      %592 = vmatpush.msra.mxu0 0.0
      %593 = vmatpush.msra.mxu0 0.0
      %594 = vmatpush.msra.mxu0 0.0
      %595 = vmatpush.msra.mxu0 0.0
      %596 = vmatpush.msra.mxu0 0.0
      %597 = vmatpush.msra.mxu0 0.0
      %598 = vmatpush.msra.mxu0 0.0
      %599 = vmatpush.msra.mxu0 0.0
      %600 = vmatpush.msra.mxu0 0.0
      %601 = vmatpush.msra.mxu0 %v355
      %602 = vmatpush.msra.mxu0 %v248
      %603 = vmatpush.msra.mxu0 %v204
      %604 = vmatmul.f32.gmra.mxu0 %v333
      %v605 = vpop.f32.mrf.mxu0
      %v606 = vadd.f32 0.0, %v605
      %607 = vdwg.mxu0
      %608 = vmatpush.msra.mxu0 0.0
      %609 = vmatpush.msra.mxu0 0.0
      %610 = vmatpush.msra.mxu0 0.0
      %611 = vmatpush.msra.mxu0 0.0
      %612 = vmatpush.msra.mxu0 0.0
      %613 = vmatpush.msra.mxu0 0.0
      %614 = vmatpush.msra.mxu0 0.0
      %615 = vmatpush.msra.mxu0 0.0
      %616 = vmatpush.msra.mxu0 0.0
      %617 = vmatpush.msra.mxu0 0.0
      %618 = vmatpush.msra.mxu0 0.0
      %619 = vmatpush.msra.mxu0 0.0
      %620 = vmatpush.msra.mxu0 0.0
      %621 = vmatpush.msra.mxu0 %v358
      %622 = vmatpush.msra.mxu0 %v249
      %623 = vmatpush.msra.mxu0 %v205
      %624 = vmatmul.f32.gmra.mxu0 %v333
      %v625 = vpop.f32.mrf.mxu0
      %v626 = vadd.f32 0.0, %v625
      %627 = vdwg.mxu0
      %628 = vmatpush.msra.mxu0 0.0
      %629 = vmatpush.msra.mxu0 0.0
      %630 = vmatpush.msra.mxu0 0.0
      %631 = vmatpush.msra.mxu0 0.0
      %632 = vmatpush.msra.mxu0 0.0
      %633 = vmatpush.msra.mxu0 0.0
      %634 = vmatpush.msra.mxu0 0.0
      %635 = vmatpush.msra.mxu0 0.0
      %636 = vmatpush.msra.mxu0 0.0
      %637 = vmatpush.msra.mxu0 0.0
      %638 = vmatpush.msra.mxu0 0.0
      %639 = vmatpush.msra.mxu0 0.0
      %640 = vmatpush.msra.mxu0 0.0
      %641 = vmatpush.msra.mxu0 %v361
      %642 = vmatpush.msra.mxu0 %v250
      %643 = vmatpush.msra.mxu0 %v206
      %644 = vmatmul.f32.gmra.mxu0 %v333
      %v645 = vpop.f32.mrf.mxu0
      %v646 = vadd.f32 0.0, %v645
      %647 = vdwg.mxu0
      %648 = vmatpush.msra.mxu0 0.0
      %649 = vmatpush.msra.mxu0 0.0
      %650 = vmatpush.msra.mxu0 0.0
      %651 = vmatpush.msra.mxu0 0.0
      %652 = vmatpush.msra.mxu0 0.0
      %653 = vmatpush.msra.mxu0 0.0
      %654 = vmatpush.msra.mxu0 0.0
      %655 = vmatpush.msra.mxu0 0.0
      %656 = vmatpush.msra.mxu0 0.0
      %657 = vmatpush.msra.mxu0 0.0
      %658 = vmatpush.msra.mxu0 0.0
      %659 = vmatpush.msra.mxu0 0.0
      %660 = vmatpush.msra.mxu0 0.0
      %661 = vmatpush.msra.mxu0 %v364
      %662 = vmatpush.msra.mxu0 %v251
      %663 = vmatpush.msra.mxu0 %v207
      %664 = vmatmul.f32.gmra.mxu0 %v333
      %v665 = vpop.f32.mrf.mxu0
      %v666 = vadd.f32 0.0, %v665
      %667 = vdwg.mxu0
      %668 = vmatpush.msra.mxu0 0.0
      %669 = vmatpush.msra.mxu0 0.0
      %670 = vmatpush.msra.mxu0 0.0
      %671 = vmatpush.msra.mxu0 0.0
      %672 = vmatpush.msra.mxu0 0.0
      %673 = vmatpush.msra.mxu0 0.0
      %674 = vmatpush.msra.mxu0 0.0
      %675 = vmatpush.msra.mxu0 0.0
      %676 = vmatpush.msra.mxu0 0.0
      %677 = vmatpush.msra.mxu0 0.0
      %678 = vmatpush.msra.mxu0 0.0
      %679 = vmatpush.msra.mxu0 0.0
      %680 = vmatpush.msra.mxu0 0.0
      %681 = vmatpush.msra.mxu0 %v367
      %682 = vmatpush.msra.mxu0 %v252
      %683 = vmatpush.msra.mxu0 %v208
      %684 = vmatmul.f32.gmra.mxu0 %v333
      %v685 = vpop.f32.mrf.mxu0
      %v686 = vadd.f32 0.0, %v685
      %687 = vdwg.mxu0
      %688 = vmatpush.msra.mxu0 0.0
      %689 = vmatpush.msra.mxu0 0.0
      %690 = vmatpush.msra.mxu0 0.0
      %691 = vmatpush.msra.mxu0 0.0
      %692 = vmatpush.msra.mxu0 0.0
      %693 = vmatpush.msra.mxu0 0.0
      %694 = vmatpush.msra.mxu0 0.0
      %695 = vmatpush.msra.mxu0 0.0
      %696 = vmatpush.msra.mxu0 0.0
      %697 = vmatpush.msra.mxu0 0.0
      %698 = vmatpush.msra.mxu0 0.0
      %699 = vmatpush.msra.mxu0 0.0
      %700 = vmatpush.msra.mxu0 0.0
      %701 = vmatpush.msra.mxu0 %v370
      %702 = vmatpush.msra.mxu0 %v253
      %703 = vmatpush.msra.mxu0 %v209
      %704 = vmatmul.f32.gmra.mxu0 %v333
      %v705 = vpop.f32.mrf.mxu0
      %v706 = vadd.f32 0.0, %v705
      %707 = vdwg.mxu0
      %708 = vmatpush.msra.mxu0 0.0
      %709 = vmatpush.msra.mxu0 0.0
      %710 = vmatpush.msra.mxu0 0.0
      %711 = vmatpush.msra.mxu0 0.0
      %712 = vmatpush.msra.mxu0 0.0
      %713 = vmatpush.msra.mxu0 0.0
      %714 = vmatpush.msra.mxu0 0.0
      %715 = vmatpush.msra.mxu0 0.0
      %716 = vmatpush.msra.mxu0 0.0
      %717 = vmatpush.msra.mxu0 0.0
      %718 = vmatpush.msra.mxu0 0.0
      %719 = vmatpush.msra.mxu0 0.0
      %720 = vmatpush.msra.mxu0 0.0
      %721 = vmatpush.msra.mxu0 %v373
      %722 = vmatpush.msra.mxu0 %v254
      %723 = vmatpush.msra.mxu0 %v210
      %724 = vmatmul.f32.gmra.mxu0 %v333
      %v725 = vpop.f32.mrf.mxu0
      %v726 = vadd.f32 0.0, %v725
      %727 = vdwg.mxu0
      %728 = vmatpush.msra.mxu0 0.0
      %729 = vmatpush.msra.mxu0 0.0
      %730 = vmatpush.msra.mxu0 0.0
      %731 = vmatpush.msra.mxu0 0.0
      %732 = vmatpush.msra.mxu0 0.0
      %733 = vmatpush.msra.mxu0 0.0
      %734 = vmatpush.msra.mxu0 0.0
      %735 = vmatpush.msra.mxu0 0.0
      %736 = vmatpush.msra.mxu0 0.0
      %737 = vmatpush.msra.mxu0 0.0
      %738 = vmatpush.msra.mxu0 0.0
      %739 = vmatpush.msra.mxu0 0.0
      %740 = vmatpush.msra.mxu0 0.0
      %741 = vmatpush.msra.mxu0 %v376
      %742 = vmatpush.msra.mxu0 %v255
      %743 = vmatpush.msra.mxu0 %v211
      %744 = vmatmul.f32.gmra.mxu0 %v333
      %v745 = vpop.f32.mrf.mxu0
      %v746 = vadd.f32 0.0, %v745
      %747 = vdwg.mxu0
      %748 = vmatpush.msra.mxu0 0.0
      %749 = vmatpush.msra.mxu0 0.0
      %750 = vmatpush.msra.mxu0 0.0
      %751 = vmatpush.msra.mxu0 0.0
      %752 = vmatpush.msra.mxu0 0.0
      %753 = vmatpush.msra.mxu0 0.0
      %754 = vmatpush.msra.mxu0 0.0
      %755 = vmatpush.msra.mxu0 0.0
      %756 = vmatpush.msra.mxu0 0.0
      %757 = vmatpush.msra.mxu0 0.0
      %758 = vmatpush.msra.mxu0 0.0
      %759 = vmatpush.msra.mxu0 0.0
      %760 = vmatpush.msra.mxu0 0.0
      %761 = vmatpush.msra.mxu0 %v379
      %762 = vmatpush.msra.mxu0 %v256
      %763 = vmatpush.msra.mxu0 %v212
      %764 = vmatmul.f32.gmra.mxu0 %v333
      %v765 = vpop.f32.mrf.mxu0
      %v766 = vadd.f32 0.0, %v765
      %767 = vdwg.mxu0
      %768 = vmatpush.msra.mxu0 0.0
      %769 = vmatpush.msra.mxu0 0.0
      %770 = vmatpush.msra.mxu0 0.0
      %771 = vmatpush.msra.mxu0 0.0
      %772 = vmatpush.msra.mxu0 0.0
      %773 = vmatpush.msra.mxu0 0.0
      %774 = vmatpush.msra.mxu0 0.0
      %775 = vmatpush.msra.mxu0 0.0
      %776 = vmatpush.msra.mxu0 0.0
      %777 = vmatpush.msra.mxu0 0.0
      %778 = vmatpush.msra.mxu0 0.0
      %779 = vmatpush.msra.mxu0 0.0
      %780 = vmatpush.msra.mxu0 0.0
      %781 = vmatpush.msra.mxu0 %v382
      %782 = vmatpush.msra.mxu0 %v257
      %783 = vmatpush.msra.mxu0 %v213
      %784 = vmatmul.f32.gmra.mxu0 %v333
      %v785 = vpop.f32.mrf.mxu0
      %v786 = vadd.f32 0.0, %v785
      %787 = vdwg.mxu0
      %788 = vmatpush.msra.mxu0 0.0
      %789 = vmatpush.msra.mxu0 0.0
      %790 = vmatpush.msra.mxu0 0.0
      %791 = vmatpush.msra.mxu0 0.0
      %792 = vmatpush.msra.mxu0 0.0
      %793 = vmatpush.msra.mxu0 0.0
      %794 = vmatpush.msra.mxu0 0.0
      %795 = vmatpush.msra.mxu0 0.0
      %796 = vmatpush.msra.mxu0 0.0
      %797 = vmatpush.msra.mxu0 0.0
      %798 = vmatpush.msra.mxu0 0.0
      %799 = vmatpush.msra.mxu0 0.0
      %800 = vmatpush.msra.mxu0 0.0
      %801 = vmatpush.msra.mxu0 %v385
      %802 = vmatpush.msra.mxu0 %v258
      %803 = vmatpush.msra.mxu0 %v214
      %804 = vmatmul.f32.gmra.mxu0 %v333
      %v805 = vpop.f32.mrf.mxu0
      %v806 = vadd.f32 0.0, %v805
      %807 = vdwg.mxu0
      %808 = vmatpush.msra.mxu0 0.0
      %809 = vmatpush.msra.mxu0 0.0
      %810 = vmatpush.msra.mxu0 0.0
      %811 = vmatpush.msra.mxu0 0.0
      %812 = vmatpush.msra.mxu0 0.0
      %813 = vmatpush.msra.mxu0 0.0
      %814 = vmatpush.msra.mxu0 0.0
      %815 = vmatpush.msra.mxu0 0.0
      %816 = vmatpush.msra.mxu0 0.0
      %817 = vmatpush.msra.mxu0 0.0
      %818 = vmatpush.msra.mxu0 0.0
      %819 = vmatpush.msra.mxu0 0.0
      %820 = vmatpush.msra.mxu0 0.0
      %821 = vmatpush.msra.mxu0 %v388
      %822 = vmatpush.msra.mxu0 %v259
      %823 = vmatpush.msra.mxu0 %v215
      %824 = vmatmul.f32.gmra.mxu0 %v333
      %v825 = vpop.f32.mrf.mxu0
      %v826 = vadd.f32 0.0, %v825
      %827 = vdwg.mxu0
      %828 = vmatpush.msra.mxu0 0.0
      %829 = vmatpush.msra.mxu0 0.0
      %830 = vmatpush.msra.mxu0 0.0
      %831 = vmatpush.msra.mxu0 0.0
      %832 = vmatpush.msra.mxu0 0.0
      %833 = vmatpush.msra.mxu0 0.0
      %834 = vmatpush.msra.mxu0 0.0
      %835 = vmatpush.msra.mxu0 0.0
      %836 = vmatpush.msra.mxu0 0.0
      %837 = vmatpush.msra.mxu0 0.0
      %838 = vmatpush.msra.mxu0 0.0
      %839 = vmatpush.msra.mxu0 0.0
      %840 = vmatpush.msra.mxu0 0.0
      %841 = vmatpush.msra.mxu0 %v391
      %842 = vmatpush.msra.mxu0 %v260
      %843 = vmatpush.msra.mxu0 %v216
      %844 = vmatmul.f32.gmra.mxu0 %v333
      %v845 = vpop.f32.mrf.mxu0
      %v846 = vadd.f32 0.0, %v845
      %847 = vdwg.mxu0
      %848 = vmatpush.msra.mxu0 0.0
      %849 = vmatpush.msra.mxu0 0.0
      %850 = vmatpush.msra.mxu0 0.0
      %851 = vmatpush.msra.mxu0 0.0
      %852 = vmatpush.msra.mxu0 0.0
      %853 = vmatpush.msra.mxu0 0.0
      %854 = vmatpush.msra.mxu0 0.0
      %855 = vmatpush.msra.mxu0 0.0
      %856 = vmatpush.msra.mxu0 0.0
      %857 = vmatpush.msra.mxu0 0.0
      %858 = vmatpush.msra.mxu0 0.0
      %859 = vmatpush.msra.mxu0 0.0
      %860 = vmatpush.msra.mxu0 0.0
      %861 = vmatpush.msra.mxu0 %v394
      %862 = vmatpush.msra.mxu0 %v261
      %863 = vmatpush.msra.mxu0 %v217
      %864 = vmatmul.f32.gmra.mxu0 %v333
      %v865 = vpop.f32.mrf.mxu0
      %v866 = vadd.f32 0.0, %v865
      %867 = vdwg.mxu0
      %868 = vmatpush.msra.mxu0 0.0
      %869 = vmatpush.msra.mxu0 0.0
      %870 = vmatpush.msra.mxu0 0.0
      %871 = vmatpush.msra.mxu0 0.0
      %872 = vmatpush.msra.mxu0 0.0
      %873 = vmatpush.msra.mxu0 0.0
      %874 = vmatpush.msra.mxu0 0.0
      %875 = vmatpush.msra.mxu0 0.0
      %876 = vmatpush.msra.mxu0 0.0
      %877 = vmatpush.msra.mxu0 0.0
      %878 = vmatpush.msra.mxu0 0.0
      %879 = vmatpush.msra.mxu0 0.0
      %880 = vmatpush.msra.mxu0 0.0
      %881 = vmatpush.msra.mxu0 %v397
      %882 = vmatpush.msra.mxu0 %v262
      %883 = vmatpush.msra.mxu0 %v218
      %884 = vmatmul.f32.gmra.mxu0 %v333
      %v885 = vpop.f32.mrf.mxu0
      %v886 = vadd.f32 0.0, %v885
      %887 = vdwg.mxu0
      %888 = vmatpush.msra.mxu0 0.0
      %889 = vmatpush.msra.mxu0 0.0
      %890 = vmatpush.msra.mxu0 0.0
      %891 = vmatpush.msra.mxu0 0.0
      %892 = vmatpush.msra.mxu0 0.0
      %893 = vmatpush.msra.mxu0 0.0
      %894 = vmatpush.msra.mxu0 0.0
      %895 = vmatpush.msra.mxu0 0.0
      %896 = vmatpush.msra.mxu0 0.0
      %897 = vmatpush.msra.mxu0 0.0
      %898 = vmatpush.msra.mxu0 0.0
      %899 = vmatpush.msra.mxu0 0.0
      %900 = vmatpush.msra.mxu0 0.0
      %901 = vmatpush.msra.mxu0 %v400
      %902 = vmatpush.msra.mxu0 %v263
      %903 = vmatpush.msra.mxu0 %v219
      %904 = vmatmul.f32.gmra.mxu0 %v333
      %v905 = vpop.f32.mrf.mxu0
      %v906 = vadd.f32 0.0, %v905
      %907 = vdwg.mxu0
      %908 = vmatpush.msra.mxu0 0.0
      %909 = vmatpush.msra.mxu0 0.0
      %910 = vmatpush.msra.mxu0 0.0
      %911 = vmatpush.msra.mxu0 0.0
      %912 = vmatpush.msra.mxu0 0.0
      %913 = vmatpush.msra.mxu0 0.0
      %914 = vmatpush.msra.mxu0 0.0
      %915 = vmatpush.msra.mxu0 0.0
      %916 = vmatpush.msra.mxu0 0.0
      %917 = vmatpush.msra.mxu0 0.0
      %918 = vmatpush.msra.mxu0 0.0
      %919 = vmatpush.msra.mxu0 0.0
      %920 = vmatpush.msra.mxu0 0.0
      %921 = vmatpush.msra.mxu0 %v403
      %922 = vmatpush.msra.mxu0 %v264
      %923 = vmatpush.msra.mxu0 %v220
      %924 = vmatmul.f32.gmra.mxu0 %v333
      %v925 = vpop.f32.mrf.mxu0
      %v926 = vadd.f32 0.0, %v925
      %927 = vdwg.mxu0
      %928 = vmatpush.msra.mxu0 0.0
      %929 = vmatpush.msra.mxu0 0.0
      %930 = vmatpush.msra.mxu0 0.0
      %931 = vmatpush.msra.mxu0 0.0
      %932 = vmatpush.msra.mxu0 0.0
      %933 = vmatpush.msra.mxu0 0.0
      %934 = vmatpush.msra.mxu0 0.0
      %935 = vmatpush.msra.mxu0 0.0
      %936 = vmatpush.msra.mxu0 0.0
      %937 = vmatpush.msra.mxu0 0.0
      %938 = vmatpush.msra.mxu0 0.0
      %939 = vmatpush.msra.mxu0 0.0
      %940 = vmatpush.msra.mxu0 0.0
      %941 = vmatpush.msra.mxu0 %v406
      %942 = vmatpush.msra.mxu0 %v265
      %943 = vmatpush.msra.mxu0 %v221
      %944 = vmatmul.f32.gmra.mxu0 %v333
      %v945 = vpop.f32.mrf.mxu0
      %v946 = vadd.f32 0.0, %v945
      %947 = vdwg.mxu0
      %948 = vmatpush.msra.mxu0 0.0
      %949 = vmatpush.msra.mxu0 0.0
      %950 = vmatpush.msra.mxu0 0.0
      %951 = vmatpush.msra.mxu0 0.0
      %952 = vmatpush.msra.mxu0 0.0
      %953 = vmatpush.msra.mxu0 0.0
      %954 = vmatpush.msra.mxu0 0.0
      %955 = vmatpush.msra.mxu0 0.0
      %956 = vmatpush.msra.mxu0 0.0
      %957 = vmatpush.msra.mxu0 0.0
      %958 = vmatpush.msra.mxu0 0.0
      %959 = vmatpush.msra.mxu0 0.0
      %960 = vmatpush.msra.mxu0 0.0
      %961 = vmatpush.msra.mxu0 %v409
      %962 = vmatpush.msra.mxu0 %v266
      %963 = vmatpush.msra.mxu0 %v222
      %964 = vmatmul.f32.gmra.mxu0 %v333
      %v965 = vpop.f32.mrf.mxu0
      %v966 = vadd.f32 0.0, %v965
      %967 = vdwg.mxu0
      %968 = vmatpush.msra.mxu0 0.0
      %969 = vmatpush.msra.mxu0 0.0
      %970 = vmatpush.msra.mxu0 0.0
      %971 = vmatpush.msra.mxu0 0.0
      %972 = vmatpush.msra.mxu0 0.0
      %973 = vmatpush.msra.mxu0 0.0
      %974 = vmatpush.msra.mxu0 0.0
      %975 = vmatpush.msra.mxu0 0.0
      %976 = vmatpush.msra.mxu0 0.0
      %977 = vmatpush.msra.mxu0 0.0
      %978 = vmatpush.msra.mxu0 0.0
      %979 = vmatpush.msra.mxu0 0.0
      %980 = vmatpush.msra.mxu0 0.0
      %981 = vmatpush.msra.mxu0 %v412
      %982 = vmatpush.msra.mxu0 %v267
      %983 = vmatpush.msra.mxu0 %v223
      %984 = vmatmul.f32.gmra.mxu0 %v333
      %v985 = vpop.f32.mrf.mxu0
      %v986 = vadd.f32 0.0, %v985
      %987 = vdwg.mxu0
      %988 = vmatpush.msra.mxu0 0.0
      %989 = vmatpush.msra.mxu0 0.0
      %990 = vmatpush.msra.mxu0 0.0
      %991 = vmatpush.msra.mxu0 0.0
      %992 = vmatpush.msra.mxu0 0.0
      %993 = vmatpush.msra.mxu0 0.0
      %994 = vmatpush.msra.mxu0 0.0
      %995 = vmatpush.msra.mxu0 0.0
      %996 = vmatpush.msra.mxu0 0.0
      %997 = vmatpush.msra.mxu0 0.0
      %998 = vmatpush.msra.mxu0 0.0
      %999 = vmatpush.msra.mxu0 0.0
      %1000 = vmatpush.msra.mxu0 0.0
      %1001 = vmatpush.msra.mxu0 %v415
      %1002 = vmatpush.msra.mxu0 %v268
      %1003 = vmatpush.msra.mxu0 %v224
      %1004 = vmatmul.f32.gmra.mxu0 %v333
      %v1005 = vpop.f32.mrf.mxu0
      %v1006 = vadd.f32 0.0, %v1005
      %1007 = vdwg.mxu0
      %1008 = vmatpush.msra.mxu0 0.0
      %1009 = vmatpush.msra.mxu0 0.0
      %1010 = vmatpush.msra.mxu0 0.0
      %1011 = vmatpush.msra.mxu0 0.0
      %1012 = vmatpush.msra.mxu0 0.0
      %1013 = vmatpush.msra.mxu0 0.0
      %1014 = vmatpush.msra.mxu0 0.0
      %1015 = vmatpush.msra.mxu0 0.0
      %1016 = vmatpush.msra.mxu0 0.0
      %1017 = vmatpush.msra.mxu0 0.0
      %1018 = vmatpush.msra.mxu0 0.0
      %1019 = vmatpush.msra.mxu0 0.0
      %1020 = vmatpush.msra.mxu0 0.0
      %1021 = vmatpush.msra.mxu0 %v418
      %1022 = vmatpush.msra.mxu0 %v269
      %1023 = vmatpush.msra.mxu0 %v225
      %1024 = vmatmul.f32.gmra.mxu0 %v333
      %v1025 = vpop.f32.mrf.mxu0
      %v1026 = vadd.f32 0.0, %v1025
      %1027 = vdwg.mxu0
      %1028 = vmatpush.msra.mxu0 0.0
      %1029 = vmatpush.msra.mxu0 0.0
      %1030 = vmatpush.msra.mxu0 0.0
      %1031 = vmatpush.msra.mxu0 0.0
      %1032 = vmatpush.msra.mxu0 0.0
      %1033 = vmatpush.msra.mxu0 0.0
      %1034 = vmatpush.msra.mxu0 0.0
      %1035 = vmatpush.msra.mxu0 0.0
      %1036 = vmatpush.msra.mxu0 0.0
      %1037 = vmatpush.msra.mxu0 0.0
      %1038 = vmatpush.msra.mxu0 0.0
      %1039 = vmatpush.msra.mxu0 0.0
      %1040 = vmatpush.msra.mxu0 0.0
      %1041 = vmatpush.msra.mxu0 %v421
      %1042 = vmatpush.msra.mxu0 %v270
      %1043 = vmatpush.msra.mxu0 %v226
      %1044 = vmatmul.f32.gmra.mxu0 %v333
      %v1045 = vpop.f32.mrf.mxu0
      %v1046 = vadd.f32 0.0, %v1045
      %1047 = vdwg.mxu0
      %1048 = vmatpush.msra.mxu0 0.0
      %1049 = vmatpush.msra.mxu0 0.0
      %1050 = vmatpush.msra.mxu0 0.0
      %1051 = vmatpush.msra.mxu0 0.0
      %1052 = vmatpush.msra.mxu0 0.0
      %1053 = vmatpush.msra.mxu0 0.0
      %1054 = vmatpush.msra.mxu0 0.0
      %1055 = vmatpush.msra.mxu0 0.0
      %1056 = vmatpush.msra.mxu0 0.0
      %1057 = vmatpush.msra.mxu0 0.0
      %1058 = vmatpush.msra.mxu0 0.0
      %1059 = vmatpush.msra.mxu0 0.0
      %1060 = vmatpush.msra.mxu0 0.0
      %1061 = vmatpush.msra.mxu0 %v424
      %1062 = vmatpush.msra.mxu0 %v271
      %1063 = vmatpush.msra.mxu0 %v227
      %1064 = vmatmul.f32.gmra.mxu0 %v333
      %v1065 = vpop.f32.mrf.mxu0
      %v1066 = vadd.f32 0.0, %v1065
      %1067 = vdwg.mxu0
      %1068 = vmatpush.msra.mxu0 0.0
      %1069 = vmatpush.msra.mxu0 0.0
      %1070 = vmatpush.msra.mxu0 0.0
      %1071 = vmatpush.msra.mxu0 0.0
      %1072 = vmatpush.msra.mxu0 0.0
      %1073 = vmatpush.msra.mxu0 0.0
      %1074 = vmatpush.msra.mxu0 0.0
      %1075 = vmatpush.msra.mxu0 0.0
      %1076 = vmatpush.msra.mxu0 0.0
      %1077 = vmatpush.msra.mxu0 0.0
      %1078 = vmatpush.msra.mxu0 0.0
      %1079 = vmatpush.msra.mxu0 0.0
      %1080 = vmatpush.msra.mxu0 0.0
      %1081 = vmatpush.msra.mxu0 %v427
      %1082 = vmatpush.msra.mxu0 %v272
      %1083 = vmatpush.msra.mxu0 %v228
      %1084 = vmatmul.f32.gmra.mxu0 %v333
      %v1085 = vpop.f32.mrf.mxu0
      %v1086 = vadd.f32 0.0, %v1085
      %1087 = vdwg.mxu0
      %1088 = vmatpush.msra.mxu0 0.0
      %1089 = vmatpush.msra.mxu0 0.0
      %1090 = vmatpush.msra.mxu0 0.0
      %1091 = vmatpush.msra.mxu0 0.0
      %1092 = vmatpush.msra.mxu0 0.0
      %1093 = vmatpush.msra.mxu0 0.0
      %1094 = vmatpush.msra.mxu0 0.0
      %1095 = vmatpush.msra.mxu0 0.0
      %1096 = vmatpush.msra.mxu0 0.0
      %1097 = vmatpush.msra.mxu0 0.0
      %1098 = vmatpush.msra.mxu0 0.0
      %1099 = vmatpush.msra.mxu0 0.0
      %1100 = vmatpush.msra.mxu0 0.0
      %1101 = vmatpush.msra.mxu0 %v430
      %1102 = vmatpush.msra.mxu0 %v273
      %1103 = vmatpush.msra.mxu0 %v229
      %1104 = vmatmul.f32.gmra.mxu0 %v333
      %v1105 = vpop.f32.mrf.mxu0
      %v1106 = vadd.f32 0.0, %v1105
      %1107 = vdwg.mxu0
      %1108 = vmatpush.msra.mxu0 0.0
      %1109 = vmatpush.msra.mxu0 0.0
      %1110 = vmatpush.msra.mxu0 0.0
      %1111 = vmatpush.msra.mxu0 0.0
      %1112 = vmatpush.msra.mxu0 0.0
      %1113 = vmatpush.msra.mxu0 0.0
      %1114 = vmatpush.msra.mxu0 0.0
      %1115 = vmatpush.msra.mxu0 0.0
      %1116 = vmatpush.msra.mxu0 0.0
      %1117 = vmatpush.msra.mxu0 0.0
      %1118 = vmatpush.msra.mxu0 0.0
      %1119 = vmatpush.msra.mxu0 0.0
      %1120 = vmatpush.msra.mxu0 0.0
      %1121 = vmatpush.msra.mxu0 %v433
      %1122 = vmatpush.msra.mxu0 %v274
      %1123 = vmatpush.msra.mxu0 %v230
      %1124 = vmatmul.f32.gmra.mxu0 %v333
      %v1125 = vpop.f32.mrf.mxu0
      %v1126 = vadd.f32 0.0, %v1125
      %1127 = vdwg.mxu0
      %1128 = vmatpush.msra.mxu0 0.0
      %1129 = vmatpush.msra.mxu0 0.0
      %1130 = vmatpush.msra.mxu0 0.0
      %1131 = vmatpush.msra.mxu0 0.0
      %1132 = vmatpush.msra.mxu0 0.0
      %1133 = vmatpush.msra.mxu0 0.0
      %1134 = vmatpush.msra.mxu0 0.0
      %1135 = vmatpush.msra.mxu0 0.0
      %1136 = vmatpush.msra.mxu0 0.0
      %1137 = vmatpush.msra.mxu0 0.0
      %1138 = vmatpush.msra.mxu0 0.0
      %1139 = vmatpush.msra.mxu0 0.0
      %1140 = vmatpush.msra.mxu0 0.0
      %1141 = vmatpush.msra.mxu0 %v436
      %1142 = vmatpush.msra.mxu0 %v275
      %1143 = vmatpush.msra.mxu0 %v231
      %1144 = vmatmul.f32.gmra.mxu0 %v333
      %v1145 = vpop.f32.mrf.mxu0
      %v1146 = vadd.f32 0.0, %v1145
      %1147 = vdwg.mxu0
      %1148 = vmatpush.msra.mxu0 0.0
      %1149 = vmatpush.msra.mxu0 0.0
      %1150 = vmatpush.msra.mxu0 0.0
      %1151 = vmatpush.msra.mxu0 0.0
      %1152 = vmatpush.msra.mxu0 0.0
      %1153 = vmatpush.msra.mxu0 0.0
      %1154 = vmatpush.msra.mxu0 0.0
      %1155 = vmatpush.msra.mxu0 0.0
      %1156 = vmatpush.msra.mxu0 0.0
      %1157 = vmatpush.msra.mxu0 0.0
      %1158 = vmatpush.msra.mxu0 0.0
      %1159 = vmatpush.msra.mxu0 0.0
      %1160 = vmatpush.msra.mxu0 0.0
      %1161 = vmatpush.msra.mxu0 %v439
      %1162 = vmatpush.msra.mxu0 %v276
      %1163 = vmatpush.msra.mxu0 %v232
      %1164 = vmatmul.f32.gmra.mxu0 %v333
      %v1165 = vpop.f32.mrf.mxu0
      %v1166 = vadd.f32 0.0, %v1165
      %1167 = vdwg.mxu0
      %1168 = vmatpush.msra.mxu0 0.0
      %1169 = vmatpush.msra.mxu0 0.0
      %1170 = vmatpush.msra.mxu0 0.0
      %1171 = vmatpush.msra.mxu0 0.0
      %1172 = vmatpush.msra.mxu0 0.0
      %1173 = vmatpush.msra.mxu0 0.0
      %1174 = vmatpush.msra.mxu0 0.0
      %1175 = vmatpush.msra.mxu0 0.0
      %1176 = vmatpush.msra.mxu0 0.0
      %1177 = vmatpush.msra.mxu0 0.0
      %1178 = vmatpush.msra.mxu0 0.0
      %1179 = vmatpush.msra.mxu0 0.0
      %1180 = vmatpush.msra.mxu0 0.0
      %1181 = vmatpush.msra.mxu0 %v442
      %1182 = vmatpush.msra.mxu0 %v277
      %1183 = vmatpush.msra.mxu0 %v233
      %1184 = vmatmul.f32.gmra.mxu0 %v333
      %v1185 = vpop.f32.mrf.mxu0
      %v1186 = vadd.f32 0.0, %v1185
      %1187 = vdwg.mxu0
      %1188 = vmatpush.msra.mxu0 0.0
      %1189 = vmatpush.msra.mxu0 0.0
      %1190 = vmatpush.msra.mxu0 0.0
      %1191 = vmatpush.msra.mxu0 0.0
      %1192 = vmatpush.msra.mxu0 0.0
      %1193 = vmatpush.msra.mxu0 0.0
      %1194 = vmatpush.msra.mxu0 0.0
      %1195 = vmatpush.msra.mxu0 0.0
      %1196 = vmatpush.msra.mxu0 0.0
      %1197 = vmatpush.msra.mxu0 0.0
      %1198 = vmatpush.msra.mxu0 0.0
      %1199 = vmatpush.msra.mxu0 0.0
      %1200 = vmatpush.msra.mxu0 0.0
      %1201 = vmatpush.msra.mxu0 %v445
      %1202 = vmatpush.msra.mxu0 %v278
      %1203 = vmatpush.msra.mxu0 %v234
      %1204 = vmatmul.f32.gmra.mxu0 %v333
      %v1205 = vpop.f32.mrf.mxu0
      %v1206 = vadd.f32 0.0, %v1205
      %1207 = vdwg.mxu0
      %1208 = vmatpush.msra.mxu0 0.0
      %1209 = vmatpush.msra.mxu0 0.0
      %1210 = vmatpush.msra.mxu0 0.0
      %1211 = vmatpush.msra.mxu0 0.0
      %1212 = vmatpush.msra.mxu0 0.0
      %1213 = vmatpush.msra.mxu0 0.0
      %1214 = vmatpush.msra.mxu0 0.0
      %1215 = vmatpush.msra.mxu0 0.0
      %1216 = vmatpush.msra.mxu0 0.0
      %1217 = vmatpush.msra.mxu0 0.0
      %1218 = vmatpush.msra.mxu0 0.0
      %1219 = vmatpush.msra.mxu0 0.0
      %1220 = vmatpush.msra.mxu0 0.0
      %1221 = vmatpush.msra.mxu0 %v448
      %1222 = vmatpush.msra.mxu0 %v279
      %1223 = vmatpush.msra.mxu0 %v235
      %1224 = vmatmul.f32.gmra.mxu0 %v333
      %v1225 = vpop.f32.mrf.mxu0
      %v1226 = vadd.f32 0.0, %v1225
      %1227 = vdwg.mxu0
      %1228 = vmatpush.msra.mxu0 0.0
      %1229 = vmatpush.msra.mxu0 0.0
      %1230 = vmatpush.msra.mxu0 0.0
      %1231 = vmatpush.msra.mxu0 0.0
      %1232 = vmatpush.msra.mxu0 0.0
      %1233 = vmatpush.msra.mxu0 0.0
      %1234 = vmatpush.msra.mxu0 0.0
      %1235 = vmatpush.msra.mxu0 0.0
      %1236 = vmatpush.msra.mxu0 0.0
      %1237 = vmatpush.msra.mxu0 0.0
      %1238 = vmatpush.msra.mxu0 0.0
      %1239 = vmatpush.msra.mxu0 0.0
      %1240 = vmatpush.msra.mxu0 0.0
      %1241 = vmatpush.msra.mxu0 %v451
      %1242 = vmatpush.msra.mxu0 %v280
      %1243 = vmatpush.msra.mxu0 %v236
      %1244 = vmatmul.f32.gmra.mxu0 %v333
      %v1245 = vpop.f32.mrf.mxu0
      %v1246 = vadd.f32 0.0, %v1245
      %1247 = vdwg.mxu0
      %1248 = vmatpush.msra.mxu0 0.0
      %1249 = vmatpush.msra.mxu0 0.0
      %1250 = vmatpush.msra.mxu0 0.0
      %1251 = vmatpush.msra.mxu0 0.0
      %1252 = vmatpush.msra.mxu0 0.0
      %1253 = vmatpush.msra.mxu0 0.0
      %1254 = vmatpush.msra.mxu0 0.0
      %1255 = vmatpush.msra.mxu0 0.0
      %1256 = vmatpush.msra.mxu0 0.0
      %1257 = vmatpush.msra.mxu0 0.0
      %1258 = vmatpush.msra.mxu0 0.0
      %1259 = vmatpush.msra.mxu0 0.0
      %1260 = vmatpush.msra.mxu0 0.0
      %1261 = vmatpush.msra.mxu0 %v454
      %1262 = vmatpush.msra.mxu0 %v281
      %1263 = vmatpush.msra.mxu0 %v237
      %1264 = vmatmul.f32.gmra.mxu0 %v333
      %v1265 = vpop.f32.mrf.mxu0
      %v1266 = vadd.f32 0.0, %v1265
      %1267 = vdwg.mxu0
      %1268 = vmatpush.msra.mxu0 0.0
      %1269 = vmatpush.msra.mxu0 0.0
      %1270 = vmatpush.msra.mxu0 0.0
      %1271 = vmatpush.msra.mxu0 0.0
      %1272 = vmatpush.msra.mxu0 0.0
      %1273 = vmatpush.msra.mxu0 0.0
      %1274 = vmatpush.msra.mxu0 0.0
      %1275 = vmatpush.msra.mxu0 0.0
      %1276 = vmatpush.msra.mxu0 0.0
      %1277 = vmatpush.msra.mxu0 0.0
      %1278 = vmatpush.msra.mxu0 0.0
      %1279 = vmatpush.msra.mxu0 0.0
      %1280 = vmatpush.msra.mxu0 0.0
      %1281 = vmatpush.msra.mxu0 %v457
      %1282 = vmatpush.msra.mxu0 %v282
      %1283 = vmatpush.msra.mxu0 %v238
      %1284 = vmatmul.f32.gmra.mxu0 %v333
      %v1285 = vpop.f32.mrf.mxu0
      %v1286 = vadd.f32 0.0, %v1285
      %1287 = vdwg.mxu0
      %1288 = vmatpush.msra.mxu0 0.0
      %1289 = vmatpush.msra.mxu0 0.0
      %1290 = vmatpush.msra.mxu0 0.0
      %1291 = vmatpush.msra.mxu0 0.0
      %1292 = vmatpush.msra.mxu0 0.0
      %1293 = vmatpush.msra.mxu0 0.0
      %1294 = vmatpush.msra.mxu0 0.0
      %1295 = vmatpush.msra.mxu0 0.0
      %1296 = vmatpush.msra.mxu0 0.0
      %1297 = vmatpush.msra.mxu0 0.0
      %1298 = vmatpush.msra.mxu0 0.0
      %1299 = vmatpush.msra.mxu0 0.0
      %1300 = vmatpush.msra.mxu0 0.0
      %1301 = vmatpush.msra.mxu0 %v460
      %1302 = vmatpush.msra.mxu0 %v283
      %1303 = vmatpush.msra.mxu0 %v239
      %1304 = vmatmul.f32.gmra.mxu0 %v333
      %v1305 = vpop.f32.mrf.mxu0
      %v1306 = vadd.f32 0.0, %v1305
      %1307 = vdwg.mxu0
      %1308 = vmatpush.msra.mxu0 0.0
      %1309 = vmatpush.msra.mxu0 0.0
      %1310 = vmatpush.msra.mxu0 0.0
      %1311 = vmatpush.msra.mxu0 0.0
      %1312 = vmatpush.msra.mxu0 0.0
      %1313 = vmatpush.msra.mxu0 0.0
      %1314 = vmatpush.msra.mxu0 0.0
      %1315 = vmatpush.msra.mxu0 0.0
      %1316 = vmatpush.msra.mxu0 0.0
      %1317 = vmatpush.msra.mxu0 0.0
      %1318 = vmatpush.msra.mxu0 0.0
      %1319 = vmatpush.msra.mxu0 0.0
      %1320 = vmatpush.msra.mxu0 0.0
      %1321 = vmatpush.msra.mxu0 %v463
      %1322 = vmatpush.msra.mxu0 %v284
      %1323 = vmatpush.msra.mxu0 %v240
      %1324 = vmatmul.f32.gmra.mxu0 %v333
      %v1325 = vpop.f32.mrf.mxu0
      %v1326 = vadd.f32 0.0, %v1325
      %1327 = vdwg.mxu0
      %1328 = vmatpush.msra.mxu0 0.0
      %1329 = vmatpush.msra.mxu0 0.0
      %1330 = vmatpush.msra.mxu0 0.0
      %1331 = vmatpush.msra.mxu0 0.0
      %1332 = vmatpush.msra.mxu0 0.0
      %1333 = vmatpush.msra.mxu0 0.0
      %1334 = vmatpush.msra.mxu0 0.0
      %1335 = vmatpush.msra.mxu0 0.0
      %1336 = vmatpush.msra.mxu0 0.0
      %1337 = vmatpush.msra.mxu0 0.0
      %1338 = vmatpush.msra.mxu0 0.0
      %1339 = vmatpush.msra.mxu0 0.0
      %1340 = vmatpush.msra.mxu0 0.0
      %1341 = vmatpush.msra.mxu0 %v466
      %1342 = vmatpush.msra.mxu0 %v285
      %1343 = vmatpush.msra.mxu0 %v241
      %1344 = vmatmul.f32.gmra.mxu0 %v333
      %v1345 = vpop.f32.mrf.mxu0
      %v1346 = vadd.f32 0.0, %v1345
      %1347 = vdwg.mxu0
      %v1348 = vld [vmem:[%s2] sm:$0x3f]
      %1350 = vset.pattern.permute.xlu0 0
      %1351 = vperm.xlu0 %1350, %v1348
      %v1352 = vpop.permute.xlu0 %1351
      %v1354 = vmul.f32 %v486, %v1352
      %v1355 = vmul.f32 %v506, %v1352
      %v1356 = vmul.f32 %v526, %v1352
      %v1357 = vmul.f32 %v546, %v1352
      %v1358 = vmul.f32 %v566, %v1352
      %v1359 = vmul.f32 %v586, %v1352
      %v1360 = vmul.f32 %v606, %v1352
      %v1361 = vmul.f32 %v626, %v1352
      %v1362 = vmul.f32 %v646, %v1352
      %v1363 = vmul.f32 %v666, %v1352
      %v1364 = vmul.f32 %v686, %v1352
      %v1365 = vmul.f32 %v706, %v1352
      %v1366 = vmul.f32 %v726, %v1352
      %v1367 = vmul.f32 %v746, %v1352
      %v1368 = vmul.f32 %v766, %v1352
      %v1369 = vmul.f32 %v786, %v1352
      %v1370 = vmul.f32 %v806, %v1352
      %v1371 = vmul.f32 %v826, %v1352
      %v1372 = vmul.f32 %v846, %v1352
      %v1373 = vmul.f32 %v866, %v1352
      %v1374 = vmul.f32 %v886, %v1352
      %v1375 = vmul.f32 %v906, %v1352
      %v1376 = vmul.f32 %v926, %v1352
      %v1377 = vmul.f32 %v946, %v1352
      %v1378 = vmul.f32 %v966, %v1352
      %v1379 = vmul.f32 %v986, %v1352
      %v1380 = vmul.f32 %v1006, %v1352
      %v1381 = vmul.f32 %v1026, %v1352
      %v1382 = vmul.f32 %v1046, %v1352
      %v1383 = vmul.f32 %v1066, %v1352
      %v1384 = vmul.f32 %v1086, %v1352
      %v1385 = vmul.f32 %v1106, %v1352
      %v1386 = vmul.f32 %v1126, %v1352
      %v1387 = vmul.f32 %v1146, %v1352
      %v1388 = vmul.f32 %v1166, %v1352
      %v1389 = vmul.f32 %v1186, %v1352
      %v1390 = vmul.f32 %v1206, %v1352
      %v1391 = vmul.f32 %v1226, %v1352
      %v1392 = vmul.f32 %v1246, %v1352
      %v1393 = vmul.f32 %v1266, %v1352
      %v1394 = vmul.f32 %v1286, %v1352
      %v1395 = vmul.f32 %v1306, %v1352
      %v1396 = vmul.f32 %v1326, %v1352
      %v1397 = vmul.f32 %v1346, %v1352
      %v1398 = vld [vmem:[%s3] sm:$0x3f]
      %1400 = vset.pattern.permute.xlu0 0
      %1401 = vperm.xlu0 %1400, %v1398
      %v1402 = vpop.permute.xlu0 %1401
      %v1404 = vadd.f32 %v1354, %v1402
      %v1405 = vadd.f32 %v1355, %v1402
      %v1406 = vadd.f32 %v1356, %v1402
      %v1407 = vadd.f32 %v1357, %v1402
      %v1408 = vadd.f32 %v1358, %v1402
      %v1409 = vadd.f32 %v1359, %v1402
      %v1410 = vadd.f32 %v1360, %v1402
      %v1411 = vadd.f32 %v1361, %v1402
      %v1412 = vadd.f32 %v1362, %v1402
      %v1413 = vadd.f32 %v1363, %v1402
      %v1414 = vadd.f32 %v1364, %v1402
      %v1415 = vadd.f32 %v1365, %v1402
      %v1416 = vadd.f32 %v1366, %v1402
      %v1417 = vadd.f32 %v1367, %v1402
      %v1418 = vadd.f32 %v1368, %v1402
      %v1419 = vadd.f32 %v1369, %v1402
      %v1420 = vadd.f32 %v1370, %v1402
      %v1421 = vadd.f32 %v1371, %v1402
      %v1422 = vadd.f32 %v1372, %v1402
      %v1423 = vadd.f32 %v1373, %v1402
      %v1424 = vadd.f32 %v1374, %v1402
      %v1425 = vadd.f32 %v1375, %v1402
      %v1426 = vadd.f32 %v1376, %v1402
      %v1427 = vadd.f32 %v1377, %v1402
      %v1428 = vadd.f32 %v1378, %v1402
      %v1429 = vadd.f32 %v1379, %v1402
      %v1430 = vadd.f32 %v1380, %v1402
      %v1431 = vadd.f32 %v1381, %v1402
      %v1432 = vadd.f32 %v1382, %v1402
      %v1433 = vadd.f32 %v1383, %v1402
      %v1434 = vadd.f32 %v1384, %v1402
      %v1435 = vadd.f32 %v1385, %v1402
      %v1436 = vadd.f32 %v1386, %v1402
      %v1437 = vadd.f32 %v1387, %v1402
      %v1438 = vadd.f32 %v1388, %v1402
      %v1439 = vadd.f32 %v1389, %v1402
      %v1440 = vadd.f32 %v1390, %v1402
      %v1441 = vadd.f32 %v1391, %v1402
      %v1442 = vadd.f32 %v1392, %v1402
      %v1443 = vadd.f32 %v1393, %v1402
      %v1444 = vadd.f32 %v1394, %v1402
      %v1445 = vadd.f32 %v1395, %v1402
      %v1446 = vadd.f32 %v1396, %v1402
      %v1447 = vadd.f32 %v1397, %v1402
      %vm1448 = vcmp.gt.f32.partialorder %v1404, 0.0
      %vm1449 = vcmp.gt.f32.partialorder %v1405, 0.0
      %vm1450 = vcmp.gt.f32.partialorder %v1406, 0.0
      %vm1451 = vcmp.gt.f32.partialorder %v1407, 0.0
      %vm1452 = vcmp.gt.f32.partialorder %v1408, 0.0
      %vm1453 = vcmp.gt.f32.partialorder %v1409, 0.0
      %vm1454 = vcmp.gt.f32.partialorder %v1410, 0.0
      %vm1455 = vcmp.gt.f32.partialorder %v1411, 0.0
      %vm1456 = vcmp.gt.f32.partialorder %v1412, 0.0
      %vm1457 = vcmp.gt.f32.partialorder %v1413, 0.0
      %vm1458 = vcmp.gt.f32.partialorder %v1414, 0.0
      %vm1459 = vcmp.gt.f32.partialorder %v1415, 0.0
      %vm1460 = vcmp.gt.f32.partialorder %v1416, 0.0
      %vm1461 = vcmp.gt.f32.partialorder %v1417, 0.0
      %vm1462 = vcmp.gt.f32.partialorder %v1418, 0.0
      %vm1463 = vcmp.gt.f32.partialorder %v1419, 0.0
      %vm1464 = vcmp.gt.f32.partialorder %v1420, 0.0
      %vm1465 = vcmp.gt.f32.partialorder %v1421, 0.0
      %vm1466 = vcmp.gt.f32.partialorder %v1422, 0.0
      %vm1467 = vcmp.gt.f32.partialorder %v1423, 0.0
      %vm1468 = vcmp.gt.f32.partialorder %v1424, 0.0
      %vm1469 = vcmp.gt.f32.partialorder %v1425, 0.0
      %vm1470 = vcmp.gt.f32.partialorder %v1426, 0.0
      %vm1471 = vcmp.gt.f32.partialorder %v1427, 0.0
      %vm1472 = vcmp.gt.f32.partialorder %v1428, 0.0
      %vm1473 = vcmp.gt.f32.partialorder %v1429, 0.0
      %vm1474 = vcmp.gt.f32.partialorder %v1430, 0.0
      %vm1475 = vcmp.gt.f32.partialorder %v1431, 0.0
      %vm1476 = vcmp.gt.f32.partialorder %v1432, 0.0
      %vm1477 = vcmp.gt.f32.partialorder %v1433, 0.0
      %vm1478 = vcmp.gt.f32.partialorder %v1434, 0.0
      %vm1479 = vcmp.gt.f32.partialorder %v1435, 0.0
      %vm1480 = vcmp.gt.f32.partialorder %v1436, 0.0
      %vm1481 = vcmp.gt.f32.partialorder %v1437, 0.0
      %vm1482 = vcmp.gt.f32.partialorder %v1438, 0.0
      %vm1483 = vcmp.gt.f32.partialorder %v1439, 0.0
      %vm1484 = vcmp.gt.f32.partialorder %v1440, 0.0
      %vm1485 = vcmp.gt.f32.partialorder %v1441, 0.0
      %vm1486 = vcmp.gt.f32.partialorder %v1442, 0.0
      %vm1487 = vcmp.gt.f32.partialorder %v1443, 0.0
      %vm1488 = vcmp.gt.f32.partialorder %v1444, 0.0
      %vm1489 = vcmp.gt.f32.partialorder %v1445, 0.0
      %vm1490 = vcmp.gt.f32.partialorder %v1446, 0.0
      %vm1491 = vcmp.gt.f32.partialorder %v1447, 0.0
      %v1492 = vmin.f32 %v1404, 0.0
      %v1493 = vmin.f32 %v1405, 0.0
      %v1494 = vmin.f32 %v1406, 0.0
      %v1495 = vmin.f32 %v1407, 0.0
      %v1496 = vmin.f32 %v1408, 0.0
      %v1497 = vmin.f32 %v1409, 0.0
      %v1498 = vmin.f32 %v1410, 0.0
      %v1499 = vmin.f32 %v1411, 0.0
      %v1500 = vmin.f32 %v1412, 0.0
      %v1501 = vmin.f32 %v1413, 0.0
      %v1502 = vmin.f32 %v1414, 0.0
      %v1503 = vmin.f32 %v1415, 0.0
      %v1504 = vmin.f32 %v1416, 0.0
      %v1505 = vmin.f32 %v1417, 0.0
      %v1506 = vmin.f32 %v1418, 0.0
      %v1507 = vmin.f32 %v1419, 0.0
      %v1508 = vmin.f32 %v1420, 0.0
      %v1509 = vmin.f32 %v1421, 0.0
      %v1510 = vmin.f32 %v1422, 0.0
      %v1511 = vmin.f32 %v1423, 0.0
      %v1512 = vmin.f32 %v1424, 0.0
      %v1513 = vmin.f32 %v1425, 0.0
      %v1514 = vmin.f32 %v1426, 0.0
      %v1515 = vmin.f32 %v1427, 0.0
      %v1516 = vmin.f32 %v1428, 0.0
      %v1517 = vmin.f32 %v1429, 0.0
      %v1518 = vmin.f32 %v1430, 0.0
      %v1519 = vmin.f32 %v1431, 0.0
      %v1520 = vmin.f32 %v1432, 0.0
      %v1521 = vmin.f32 %v1433, 0.0
      %v1522 = vmin.f32 %v1434, 0.0
      %v1523 = vmin.f32 %v1435, 0.0
      %v1524 = vmin.f32 %v1436, 0.0
      %v1525 = vmin.f32 %v1437, 0.0
      %v1526 = vmin.f32 %v1438, 0.0
      %v1527 = vmin.f32 %v1439, 0.0
      %v1528 = vmin.f32 %v1440, 0.0
      %v1529 = vmin.f32 %v1441, 0.0
      %v1530 = vmin.f32 %v1442, 0.0
      %v1531 = vmin.f32 %v1443, 0.0
      %v1532 = vmin.f32 %v1444, 0.0
      %v1533 = vmin.f32 %v1445, 0.0
      %v1534 = vmin.f32 %v1446, 0.0
      %v1535 = vmin.f32 %v1447, 0.0
      %v1536 = vmul.f32 %v1492, 1.442695
      %v1537 = vpow.pop %v1536
      %v1538 = vmul.f32 %v1493, 1.442695
      %v1539 = vpow.pop %v1538
      %v1540 = vmul.f32 %v1494, 1.442695
      %v1541 = vpow.pop %v1540
      %v1542 = vmul.f32 %v1495, 1.442695
      %v1543 = vpow.pop %v1542
      %v1544 = vmul.f32 %v1496, 1.442695
      %v1545 = vpow.pop %v1544
      %v1546 = vmul.f32 %v1497, 1.442695
      %v1547 = vpow.pop %v1546
      %v1548 = vmul.f32 %v1498, 1.442695
      %v1549 = vpow.pop %v1548
      %v1550 = vmul.f32 %v1499, 1.442695
      %v1551 = vpow.pop %v1550
      %v1552 = vmul.f32 %v1500, 1.442695
      %v1553 = vpow.pop %v1552
      %v1554 = vmul.f32 %v1501, 1.442695
      %v1555 = vpow.pop %v1554
      %v1556 = vmul.f32 %v1502, 1.442695
      %v1557 = vpow.pop %v1556
      %v1558 = vmul.f32 %v1503, 1.442695
      %v1559 = vpow.pop %v1558
      %v1560 = vmul.f32 %v1504, 1.442695
      %v1561 = vpow.pop %v1560
      %v1562 = vmul.f32 %v1505, 1.442695
      %v1563 = vpow.pop %v1562
      %v1564 = vmul.f32 %v1506, 1.442695
      %v1565 = vpow.pop %v1564
      %v1566 = vmul.f32 %v1507, 1.442695
      %v1567 = vpow.pop %v1566
      %v1568 = vmul.f32 %v1508, 1.442695
      %v1569 = vpow.pop %v1568
      %v1570 = vmul.f32 %v1509, 1.442695
      %v1571 = vpow.pop %v1570
      %v1572 = vmul.f32 %v1510, 1.442695
      %v1573 = vpow.pop %v1572
      %v1574 = vmul.f32 %v1511, 1.442695
      %v1575 = vpow.pop %v1574
      %v1576 = vmul.f32 %v1512, 1.442695
      %v1577 = vpow.pop %v1576
      %v1578 = vmul.f32 %v1513, 1.442695
      %v1579 = vpow.pop %v1578
      %v1580 = vmul.f32 %v1514, 1.442695
      %v1581 = vpow.pop %v1580
      %v1582 = vmul.f32 %v1515, 1.442695
      %v1583 = vpow.pop %v1582
      %v1584 = vmul.f32 %v1516, 1.442695
      %v1585 = vpow.pop %v1584
      %v1586 = vmul.f32 %v1517, 1.442695
      %v1587 = vpow.pop %v1586
      %v1588 = vmul.f32 %v1518, 1.442695
      %v1589 = vpow.pop %v1588
      %v1590 = vmul.f32 %v1519, 1.442695
      %v1591 = vpow.pop %v1590
      %v1592 = vmul.f32 %v1520, 1.442695
      %v1593 = vpow.pop %v1592
      %v1594 = vmul.f32 %v1521, 1.442695
      %v1595 = vpow.pop %v1594
      %v1596 = vmul.f32 %v1522, 1.442695
      %v1597 = vpow.pop %v1596
      %v1598 = vmul.f32 %v1523, 1.442695
      %v1599 = vpow.pop %v1598
      %v1600 = vmul.f32 %v1524, 1.442695
      %v1601 = vpow.pop %v1600
      %v1602 = vmul.f32 %v1525, 1.442695
      %v1603 = vpow.pop %v1602
      %v1604 = vmul.f32 %v1526, 1.442695
      %v1605 = vpow.pop %v1604
      %v1606 = vmul.f32 %v1527, 1.442695
      %v1607 = vpow.pop %v1606
      %v1608 = vmul.f32 %v1528, 1.442695
      %v1609 = vpow.pop %v1608
      %v1610 = vmul.f32 %v1529, 1.442695
      %v1611 = vpow.pop %v1610
      %v1612 = vmul.f32 %v1530, 1.442695
      %v1613 = vpow.pop %v1612
      %v1614 = vmul.f32 %v1531, 1.442695
      %v1615 = vpow.pop %v1614
      %v1616 = vmul.f32 %v1532, 1.442695
      %v1617 = vpow.pop %v1616
      %v1618 = vmul.f32 %v1533, 1.442695
      %v1619 = vpow.pop %v1618
      %v1620 = vmul.f32 %v1534, 1.442695
      %v1621 = vpow.pop %v1620
      %v1622 = vmul.f32 %v1535, 1.442695
      %v1623 = vpow.pop %v1622
      %v1624 = vsub.f32 %v1537, 1.0
      %v1625 = vsub.f32 %v1539, 1.0
      %v1626 = vsub.f32 %v1541, 1.0
      %v1627 = vsub.f32 %v1543, 1.0
      %v1628 = vsub.f32 %v1545, 1.0
      %v1629 = vsub.f32 %v1547, 1.0
      %v1630 = vsub.f32 %v1549, 1.0
      %v1631 = vsub.f32 %v1551, 1.0
      %v1632 = vsub.f32 %v1553, 1.0
      %v1633 = vsub.f32 %v1555, 1.0
      %v1634 = vsub.f32 %v1557, 1.0
      %v1635 = vsub.f32 %v1559, 1.0
      %v1636 = vsub.f32 %v1561, 1.0
      %v1637 = vsub.f32 %v1563, 1.0
      %v1638 = vsub.f32 %v1565, 1.0
      %v1639 = vsub.f32 %v1567, 1.0
      %v1640 = vsub.f32 %v1569, 1.0
      %v1641 = vsub.f32 %v1571, 1.0
      %v1642 = vsub.f32 %v1573, 1.0
      %v1643 = vsub.f32 %v1575, 1.0
      %v1644 = vsub.f32 %v1577, 1.0
      %v1645 = vsub.f32 %v1579, 1.0
      %v1646 = vsub.f32 %v1581, 1.0
      %v1647 = vsub.f32 %v1583, 1.0
      %v1648 = vsub.f32 %v1585, 1.0
      %v1649 = vsub.f32 %v1587, 1.0
      %v1650 = vsub.f32 %v1589, 1.0
      %v1651 = vsub.f32 %v1591, 1.0
      %v1652 = vsub.f32 %v1593, 1.0
      %v1653 = vsub.f32 %v1595, 1.0
      %v1654 = vsub.f32 %v1597, 1.0
      %v1655 = vsub.f32 %v1599, 1.0
      %v1656 = vsub.f32 %v1601, 1.0
      %v1657 = vsub.f32 %v1603, 1.0
      %v1658 = vsub.f32 %v1605, 1.0
      %v1659 = vsub.f32 %v1607, 1.0
      %v1660 = vsub.f32 %v1609, 1.0
      %v1661 = vsub.f32 %v1611, 1.0
      %v1662 = vsub.f32 %v1613, 1.0
      %v1663 = vsub.f32 %v1615, 1.0
      %v1664 = vsub.f32 %v1617, 1.0
      %v1665 = vsub.f32 %v1619, 1.0
      %v1666 = vsub.f32 %v1621, 1.0
      %v1667 = vsub.f32 %v1623, 1.0
      %v1668 = vsel %vm1448, %v1404, %v1624
      %v1669 = vsel %vm1449, %v1405, %v1625
      %v1670 = vsel %vm1450, %v1406, %v1626
      %v1671 = vsel %vm1451, %v1407, %v1627
      %v1672 = vsel %vm1452, %v1408, %v1628
      %v1673 = vsel %vm1453, %v1409, %v1629
      %v1674 = vsel %vm1454, %v1410, %v1630
      %v1675 = vsel %vm1455, %v1411, %v1631
      %v1676 = vsel %vm1456, %v1412, %v1632
      %v1677 = vsel %vm1457, %v1413, %v1633
      %v1678 = vsel %vm1458, %v1414, %v1634
      %v1679 = vsel %vm1459, %v1415, %v1635
      %v1680 = vsel %vm1460, %v1416, %v1636
      %v1681 = vsel %vm1461, %v1417, %v1637
      %v1682 = vsel %vm1462, %v1418, %v1638
      %v1683 = vsel %vm1463, %v1419, %v1639
      %v1684 = vsel %vm1464, %v1420, %v1640
      %v1685 = vsel %vm1465, %v1421, %v1641
      %v1686 = vsel %vm1466, %v1422, %v1642
      %v1687 = vsel %vm1467, %v1423, %v1643
      %v1688 = vsel %vm1468, %v1424, %v1644
      %v1689 = vsel %vm1469, %v1425, %v1645
      %v1690 = vsel %vm1470, %v1426, %v1646
      %v1691 = vsel %vm1471, %v1427, %v1647
      %v1692 = vsel %vm1472, %v1428, %v1648
      %v1693 = vsel %vm1473, %v1429, %v1649
      %v1694 = vsel %vm1474, %v1430, %v1650
      %v1695 = vsel %vm1475, %v1431, %v1651
      %v1696 = vsel %vm1476, %v1432, %v1652
      %v1697 = vsel %vm1477, %v1433, %v1653
      %v1698 = vsel %vm1478, %v1434, %v1654
      %v1699 = vsel %vm1479, %v1435, %v1655
      %v1700 = vsel %vm1480, %v1436, %v1656
      %v1701 = vsel %vm1481, %v1437, %v1657
      %v1702 = vsel %vm1482, %v1438, %v1658
      %v1703 = vsel %vm1483, %v1439, %v1659
      %v1704 = vsel %vm1484, %v1440, %v1660
      %v1705 = vsel %vm1485, %v1441, %v1661
      %v1706 = vsel %vm1486, %v1442, %v1662
      %v1707 = vsel %vm1487, %v1443, %v1663
      %v1708 = vsel %vm1488, %v1444, %v1664
      %v1709 = vsel %vm1489, %v1445, %v1665
      %v1710 = vsel %vm1490, %v1446, %v1666
      %v1711 = vsel %vm1491, %v1447, %v1667
      %1712 = vst [vmem:[%s197] sm:$0x3f] %v1668
      %1713 = vst [vmem:[%s197 + $0x8] sm:$0x3f] %v1669
      %1714 = vst [vmem:[%s197 + $0x10] sm:$0x3f] %v1670
      %1715 = vst [vmem:[%s197 + $0x18] sm:$0x3f] %v1671
      %1716 = vst [vmem:[%s197 + $0x20] sm:$0x3f] %v1672
      %1717 = vst [vmem:[%s197 + $0x28] sm:$0x3f] %v1673
      %1718 = vst [vmem:[%s197 + $0x30] sm:$0x3f] %v1674
      %1719 = vst [vmem:[%s197 + $0x38] sm:$0x3f] %v1675
      %1720 = vst [vmem:[%s197 + $0x40] sm:$0x3f] %v1676
      %1721 = vst [vmem:[%s197 + $0x48] sm:$0x3f] %v1677
      %1722 = vst [vmem:[%s197 + $0x50] sm:$0x3f] %v1678
      %1723 = vst [vmem:[%s197 + $0x58] sm:$0x3f] %v1679
      %1724 = vst [vmem:[%s197 + $0x60] sm:$0x3f] %v1680
      %1725 = vst [vmem:[%s197 + $0x68] sm:$0x3f] %v1681
      %1726 = vst [vmem:[%s197 + $0x70] sm:$0x3f] %v1682
      %1727 = vst [vmem:[%s197 + $0x78] sm:$0x3f] %v1683
      %1728 = vst [vmem:[%s197 + $0x80] sm:$0x3f] %v1684
      %1729 = vst [vmem:[%s197 + $0x88] sm:$0x3f] %v1685
      %1730 = vst [vmem:[%s197 + $0x90] sm:$0x3f] %v1686
      %1731 = vst [vmem:[%s197 + $0x98] sm:$0x3f] %v1687
      %1732 = vst [vmem:[%s197 + $0xa0] sm:$0x3f] %v1688
      %1733 = vst [vmem:[%s197 + $0xa8] sm:$0x3f] %v1689
      %1734 = vst [vmem:[%s197 + $0xb0] sm:$0x3f] %v1690
      %1735 = vst [vmem:[%s197 + $0xb8] sm:$0x3f] %v1691
      %1736 = vst [vmem:[%s197 + $0xc0] sm:$0x3f] %v1692
      %1737 = vst [vmem:[%s197 + $0xc8] sm:$0x3f] %v1693
      %1738 = vst [vmem:[%s197 + $0xd0] sm:$0x3f] %v1694
      %1739 = vst [vmem:[%s197 + $0xd8] sm:$0x3f] %v1695
      %1740 = vst [vmem:[%s197 + $0xe0] sm:$0x3f] %v1696
      %1741 = vst [vmem:[%s197 + $0xe8] sm:$0x3f] %v1697
      %1742 = vst [vmem:[%s197 + $0xf0] sm:$0x3f] %v1698
      %1743 = vst [vmem:[%s197 + $0xf8] sm:$0x3f] %v1699
      %1744 = vst [vmem:[%s197 + $0x100] sm:$0x3f] %v1700
      %1745 = vst [vmem:[%s197 + $0x108] sm:$0x3f] %v1701
      %1746 = vst [vmem:[%s197 + $0x110] sm:$0x3f] %v1702
      %1747 = vst [vmem:[%s197 + $0x118] sm:$0x3f] %v1703
      %1748 = vst [vmem:[%s197 + $0x120] sm:$0x3f] %v1704
      %1749 = vst [vmem:[%s197 + $0x128] sm:$0x3f] %v1705
      %1750 = vst [vmem:[%s197 + $0x130] sm:$0x3f] %v1706
      %1751 = vst [vmem:[%s197 + $0x138] sm:$0x3f] %v1707
      %1752 = vst [vmem:[%s197 + $0x140] sm:$0x3f] %v1708
      %1753 = vst [vmem:[%s197 + $0x148] sm:$0x3f] %v1709
      %1754 = vst [vmem:[%s197 + $0x150] sm:$0x3f] %v1710
      %vm1755 = vcmask 349184
      %1756 = vst.msk [vmem:[%s197 + $0x158] sm:$0x3f] %vm1755, %v1711
      %p1757 = scmp.lt.s32.totalorder %s15, 1
      %s1758 = scalar_select %p1757, %s15, 1
      %s1759 = smul.addr %s1758, 44
      %s1760 = smul.addr %s1759, 8
      %s1761 = scalar_lea.vmem %s4, %s1760
      // Predicated region
      $region37: #{mldg_forward.13} parent=35 // pred_check
        %p1762 = pneg %p122
      $region38: #{mldg_forward.13} parent=35 // pred_check_branch
        %1764 = sbr.rel (%p1762) target = $region40
      $region39: #{mldg_forward.13} parent=35 // pred_region
        _
      $region40: #{mldg_forward.13} parent=35 // pred_fallthru
        _
    $region36: #{mldg_forward.13} parent=5 // pred_fallthru
      _
    %p1765 = scmp.le.s32.totalorder 2, %s10
    // Predicated region
    $region41: #{mldg_forward.13} parent=5 // pred_check
      %p1766 = pneg %p1765
    $region42: #{mldg_forward.13} parent=5 // pred_check_branch
      %1768 = sbr.rel (%p1766) target = $region44
    $region43: #{mldg_forward.13} parent=5 // pred_region
      %s1769 = ssub.s32 %s10, 2
      // Predicated region
      $region45: #{mldg_forward.13} parent=43 // pred_check
        %p1770 = pneg %p128
      $region46: #{mldg_forward.13} parent=43 // pred_check_branch
        %1772 = sbr.rel (%p1770) target = $region48
      $region47: #{mldg_forward.13} parent=43 // pred_region
        %p1773 = scmp.lt.s32.totalorder %s16, 1
        %s1774 = scalar_select %p1773, %s16, 1
        %s1775 = smul.addr %s1774, 44
        %s1776 = smul.addr %s1775, 8
        %s1777 = scalar_lea.vmem %s4, %s1776
      $region48: #{mldg_forward.13} parent=43 // pred_fallthru
        _
    $region44: #{mldg_forward.13} parent=5 // pred_fallthru
      _
  $region6: #{mldg_forward.13} parent=0 // loop_footer
    %s14 = sadd.s32 1, %s10
  $region7: #{mldg_forward.13} parent=0 // loop_footer_branch
    %9 = sbr.rel target = $region3
  $region8: #{mldg_forward.13} parent=0 // loop_exit
    _

// kernel: mldg_forward.14
$region0: #{mldg_forward.14}
  #allocation0 [shape = 'u32[]', space=smem, size = 0x4, offset = 0x4, fixed_abs, tag = 'smem constant byte address 0x4 - core index']
  #allocation1 [shape = 'u32[72,128]{1,0:T(1,128)}', space=vmem, size = 0x9000, scoped, tag = 'internal scratch']
  %s0 = inlined_call_operand.vmem [shape: f32[2,54,1430], index: 0, kind: input, shape index: {}]
  %s1 = inlined_call_operand.vmem [shape: f32[8,54], index: 1, kind: input, shape index: {}]
  %s2 = inlined_call_operand.vmem [shape: f32[8,1], index: 2, kind: input, shape index: {}]
  %s3 = inlined_call_operand.vmem [shape: f32[8,1], index: 3, kind: input, shape index: {}]
  %s4 = inlined_call_operand.vmem [shape: f32[2,8,1430], index: 4, kind: output, shape index: {}]
  %s5 = sld [smem:[#allocation0]]
  $region49: #{mldg_forward.14} parent=0
    _
  %s7 = ssub.s32 1, %s5
  %s8 = scalar_select 0, %s7, %s5
  loop: start=0, step=1, limit=4
  $region2: #{mldg_forward.14} parent=0 // loop_pre_header
    _
  $region3: #{mldg_forward.14} parent=0 // loop_header
    %s10 = sphi 0, %s14
    %p11 = scmp.ge.s32.totalorder %s10, 4
    %s20 = sphi 0, %s22
    %s23 = sphi 0, %s20
    %s24 = sphi 0, %s23
    %s40 = sphi 0, %s24
    %s44 = sphi 0, %s44
    %s46 = sphi 0, %s44
    %s47 = sphi 0, %s46
    %s61 = sphi 0, %s47
    %s65 = sphi 0, %s65
    %s67 = sphi 0, %s65
    %s68 = sphi 0, %s67
    %s82 = sphi 0, %s68
    %s86 = sphi 0, %s86
    %s88 = sphi 0, %s86
    %s89 = sphi 0, %s88
    %s103 = sphi 0, %s89
    %s109 = sphi 0, %s111
    %s112 = sphi 0, %s109
    %s113 = sphi 0, %s112
    %s129 = sphi 0, %s113
  $region4: #{mldg_forward.14} parent=0 // loop_header_branch
    %13 = sbr.rel (%p11) target = $region8
  $region5: #{mldg_forward.14} parent=0 // loop_body
    %s15 = ssub.s32 %s10, 1
    %s16 = ssub.s32 %s10, 2
    %s17 = sadd.s32 %s10, 1
    %s18 = ssub.s32 %s10, %s17
    %p19 = scmp.eq.s32.totalorder %s18, 0
    %s21 = sadd.s32 %s20, 1
    %s22 = scalar_select %p19, %s20, %s21
    %p25 = pneg %p19
    %p26 = scmp.eq.s32.totalorder %s10, 1
    %p27 = por %p25, %p26
    %p28 = scmp.ne.s32.totalorder %s20, %s23
    %p29 = scmp.eq.s32.totalorder %s10, 0
    %p30 = por %p28, %p29
    %p31 = scmp.ne.s32.totalorder %s20, %s23
    %p32 = scmp.eq.s32.totalorder %s15, 1
    %p33 = por %p31, %p32
    %p34 = scmp.ne.s32.totalorder %s23, %s24
    %p35 = scmp.eq.s32.totalorder %s15, 0
    %p36 = por %p34, %p35
    %p37 = scmp.ne.s32.totalorder %s23, %s24
    %p38 = scmp.eq.s32.totalorder %s16, 1
    %p39 = por %p37, %p38
    %p41 = scmp.ne.s32.totalorder %s24, %s40
    %p42 = scmp.eq.s32.totalorder %s16, 0
    %p43 = por %p41, %p42
    %s45 = sadd.s32 %s44, 1
    %p48 = scmp.eq.s32.totalorder %s10, 1
    %p49 = scmp.ne.s32.totalorder %s44, %s46
    %p50 = scmp.eq.s32.totalorder %s10, 0
    %p51 = por %p49, %p50
    %p52 = scmp.ne.s32.totalorder %s44, %s46
    %p53 = scmp.eq.s32.totalorder %s15, 1
    %p54 = por %p52, %p53
    %p55 = scmp.ne.s32.totalorder %s46, %s47
    %p56 = scmp.eq.s32.totalorder %s15, 0
    %p57 = por %p55, %p56
    %p58 = scmp.ne.s32.totalorder %s46, %s47
    %p59 = scmp.eq.s32.totalorder %s16, 1
    %p60 = por %p58, %p59
    %p62 = scmp.ne.s32.totalorder %s47, %s61
    %p63 = scmp.eq.s32.totalorder %s16, 0
    %p64 = por %p62, %p63
    %s66 = sadd.s32 %s65, 1
    %p69 = scmp.eq.s32.totalorder %s10, 1
    %p70 = scmp.ne.s32.totalorder %s65, %s67
    %p71 = scmp.eq.s32.totalorder %s10, 0
    %p72 = por %p70, %p71
    %p73 = scmp.ne.s32.totalorder %s65, %s67
    %p74 = scmp.eq.s32.totalorder %s15, 1
    %p75 = por %p73, %p74
    %p76 = scmp.ne.s32.totalorder %s67, %s68
    %p77 = scmp.eq.s32.totalorder %s15, 0
    %p78 = por %p76, %p77
    %p79 = scmp.ne.s32.totalorder %s67, %s68
    %p80 = scmp.eq.s32.totalorder %s16, 1
    %p81 = por %p79, %p80
    %p83 = scmp.ne.s32.totalorder %s68, %s82
    %p84 = scmp.eq.s32.totalorder %s16, 0
    %p85 = por %p83, %p84
    %s87 = sadd.s32 %s86, 1
    %p90 = scmp.eq.s32.totalorder %s10, 1
    %p91 = scmp.ne.s32.totalorder %s86, %s88
    %p92 = scmp.eq.s32.totalorder %s10, 0
    %p93 = por %p91, %p92
    %p94 = scmp.ne.s32.totalorder %s86, %s88
    %p95 = scmp.eq.s32.totalorder %s15, 1
    %p96 = por %p94, %p95
    %p97 = scmp.ne.s32.totalorder %s88, %s89
    %p98 = scmp.eq.s32.totalorder %s15, 0
    %p99 = por %p97, %p98
    %p100 = scmp.ne.s32.totalorder %s88, %s89
    %p101 = scmp.eq.s32.totalorder %s16, 1
    %p102 = por %p100, %p101
    %p104 = scmp.ne.s32.totalorder %s89, %s103
    %p105 = scmp.eq.s32.totalorder %s16, 0
    %p106 = por %p104, %p105
    %s107 = ssub.s32 %s10, %s17
    %p108 = scmp.eq.s32.totalorder %s107, 0
    %s110 = sadd.s32 %s109, 1
    %s111 = scalar_select %p108, %s109, %s110
    %p114 = pneg %p108
    %p115 = scmp.eq.s32.totalorder %s10, 1
    %p116 = por %p114, %p115
    %p117 = scmp.ne.s32.totalorder %s109, %s112
    %p118 = scmp.eq.s32.totalorder %s10, 0
    %p119 = por %p117, %p118
    %p120 = scmp.ne.s32.totalorder %s109, %s112
    %p121 = scmp.eq.s32.totalorder %s15, 1
    %p122 = por %p120, %p121
    %p123 = scmp.ne.s32.totalorder %s112, %s113
    %p124 = scmp.eq.s32.totalorder %s15, 0
    %p125 = por %p123, %p124
    %p126 = scmp.ne.s32.totalorder %s112, %s113
    %p127 = scmp.eq.s32.totalorder %s16, 1
    %p128 = por %p126, %p127
    %p130 = scmp.ne.s32.totalorder %s113, %s129
    %p131 = scmp.eq.s32.totalorder %s16, 0
    %p132 = por %p130, %p131
    %p133 = scmp.le.s32.totalorder 1, %s10
    %p134 = scmp.lt.s32.totalorder %s10, 3
    %p135 = pnand %p133, %p134
    %p136 = pneg %p135
    // Predicated region
    $region9: #{mldg_forward.14} parent=5 // pred_check
      _
    $region10: #{mldg_forward.14} parent=5 // pred_check_branch
      %138 = sbr.rel (%p135) target = $region12
    $region11: #{mldg_forward.14} parent=5 // pred_region
      %s139 = ssub.s32 %s10, 1
      // Predicated region
      $region13: #{mldg_forward.14} parent=11 // pred_check
        %p140 = pneg %p57
      $region14: #{mldg_forward.14} parent=11 // pred_check_branch
        %142 = sbr.rel (%p140) target = $region16
      $region15: #{mldg_forward.14} parent=11 // pred_region
        _
      $region16: #{mldg_forward.14} parent=11 // pred_fallthru
        _
      // Predicated region
      $region17: #{mldg_forward.14} parent=11 // pred_check
        %p143 = pneg %p78
      $region18: #{mldg_forward.14} parent=11 // pred_check_branch
        %145 = sbr.rel (%p143) target = $region20
      $region19: #{mldg_forward.14} parent=11 // pred_region
        _
      $region20: #{mldg_forward.14} parent=11 // pred_fallthru
        _
      // Predicated region
      $region21: #{mldg_forward.14} parent=11 // pred_check
        %p146 = pneg %p99
      $region22: #{mldg_forward.14} parent=11 // pred_check_branch
        %148 = sbr.rel (%p146) target = $region24
      $region23: #{mldg_forward.14} parent=11 // pred_region
        _
      $region24: #{mldg_forward.14} parent=11 // pred_fallthru
        _
    $region12: #{mldg_forward.14} parent=5 // pred_fallthru
      _
    %p149 = scmp.lt.s32.totalorder %s10, 2
    // Predicated region
    $region25: #{mldg_forward.14} parent=5 // pred_check
      %p150 = pneg %p149
    $region26: #{mldg_forward.14} parent=5 // pred_check_branch
      %152 = sbr.rel (%p150) target = $region28
    $region27: #{mldg_forward.14} parent=5 // pred_region
      // Predicated region
      $region29: #{mldg_forward.14} parent=27 // pred_check
        %p153 = pneg %p30
      $region30: #{mldg_forward.14} parent=27 // pred_check_branch
        %155 = sbr.rel (%p153) target = $region32
      $region31: #{mldg_forward.14} parent=27 // pred_region
        %p156 = scmp.lt.s32.totalorder %s10, 1
        %s157 = scalar_select %p156, %s10, 1
        %s158 = smul.addr %s157, 84
        %s159 = smul.addr %s158, 8
        %s160 = scalar_lea.vmem %s0, %s159
      $region32: #{mldg_forward.14} parent=27 // pred_fallthru
        _
    $region28: #{mldg_forward.14} parent=5 // pred_fallthru
      _
    %p161 = scmp.le.s32.totalorder 1, %s10
    %p162 = scmp.lt.s32.totalorder %s10, 3
    %p163 = pnand %p161, %p162
    %p164 = pneg %p163
    // Predicated region
    $region33: #{mldg_forward.14} parent=5 // pred_check
      _
    $region34: #{mldg_forward.14} parent=5 // pred_check_branch
      %166 = sbr.rel (%p163) target = $region36
    $region35: #{mldg_forward.14} parent=5 // pred_region
      %s167 = ssub.s32 %s10, 1
      %p168 = scmp.lt.s32.totalorder %s15, 1
      %s169 = scalar_select %p168, %s15, 1
      %s170 = smul.addr %s169, 84
      %s171 = smul.addr %s170, 8
      %s172 = scalar_lea.vmem %s0, %s171
      %p173 = pneg %p36
      %p174 = pneg %p33
      %p175 = pneg %p57
      %p176 = pneg %p54
      %p177 = pneg %p78
      %p178 = pneg %p75
      %p179 = pneg %p99
      %p180 = pneg %p96
      %p181 = pneg %p125
      %p182 = pneg %p122
      %p183 = scmp.lt.s32.totalorder %s15, 1
      %s184 = scalar_select %p183, %s15, 1
      %s185 = smul.addr %s184, 12
      %s186 = smul.addr %s185, 8
      %s187 = scalar_lea.vmem %s4, %s186
      %p188 = scmp.lt.s32.totalorder %s15, 1
      %s189 = scalar_select %p188, %s15, 1
      %s190 = smul.addr %s189, 84
      %s191 = smul.addr %s190, 8
      %s192 = scalar_lea.vmem %s0, %s191
      %p193 = scmp.lt.s32.totalorder %s15, 1
      %s194 = scalar_select %p193, %s15, 1
      %s195 = smul.addr %s194, 12
      %s196 = smul.addr %s195, 8
      %s197 = scalar_lea.vmem %s4, %s196
      %v198 = vld [vmem:[%s192] sm:$0xff]
      %v199 = vld [vmem:[%s192 + $0x8] sm:$0xff]
      %v200 = vld [vmem:[%s192 + $0x10] sm:$0xff]
      %v201 = vld [vmem:[%s192 + $0x18] sm:$0xff]
      %v202 = vld [vmem:[%s192 + $0x20] sm:$0xff]
      %v203 = vld [vmem:[%s192 + $0x28] sm:$0xff]
      %v204 = vld [vmem:[%s192 + $0x30] sm:$0xff]
      %v205 = vld [vmem:[%s192 + $0x38] sm:$0xff]
      %v206 = vld [vmem:[%s192 + $0x40] sm:$0xff]
      %v207 = vld [vmem:[%s192 + $0x48] sm:$0xff]
      %v208 = vld [vmem:[%s192 + $0x50] sm:$0xff]
      %v209 = vld [vmem:[%s192 + $0x58] sm:$0xff]
      %v210 = vld [vmem:[%s192 + $0x60] sm:$0xff]
      %v211 = vld [vmem:[%s192 + $0x68] sm:$0xff]
      %v212 = vld [vmem:[%s192 + $0x70] sm:$0xff]
      %v213 = vld [vmem:[%s192 + $0x78] sm:$0xff]
      %v214 = vld [vmem:[%s192 + $0x80] sm:$0xff]
      %v215 = vld [vmem:[%s192 + $0x88] sm:$0xff]
      %v216 = vld [vmem:[%s192 + $0x90] sm:$0xff]
      %v217 = vld [vmem:[%s192 + $0x98] sm:$0xff]
      %v218 = vld [vmem:[%s192 + $0xa0] sm:$0xff]
      %v219 = vld [vmem:[%s192 + $0xa8] sm:$0xff]
      %v220 = vld [vmem:[%s192 + $0xb0] sm:$0xff]
      %v221 = vld [vmem:[%s192 + $0xb8] sm:$0xff]
      %v222 = vld [vmem:[%s192 + $0xc0] sm:$0xff]
      %v223 = vld [vmem:[%s192 + $0xc8] sm:$0xff]
      %v224 = vld [vmem:[%s192 + $0xd0] sm:$0xff]
      %v225 = vld [vmem:[%s192 + $0xd8] sm:$0xff]
      %v226 = vld [vmem:[%s192 + $0xe0] sm:$0xff]
      %v227 = vld [vmem:[%s192 + $0xe8] sm:$0xff]
      %v228 = vld [vmem:[%s192 + $0xf0] sm:$0xff]
      %v229 = vld [vmem:[%s192 + $0xf8] sm:$0xff]
      %v230 = vld [vmem:[%s192 + $0x100] sm:$0xff]
      %v231 = vld [vmem:[%s192 + $0x108] sm:$0xff]
      %v232 = vld [vmem:[%s192 + $0x110] sm:$0xff]
      %v233 = vld [vmem:[%s192 + $0x118] sm:$0xff]
      %v234 = vld [vmem:[%s192 + $0x120] sm:$0xff]
      %v235 = vld [vmem:[%s192 + $0x128] sm:$0xff]
      %v236 = vld [vmem:[%s192 + $0x130] sm:$0xff]
      %v237 = vld [vmem:[%s192 + $0x138] sm:$0xff]
      %v238 = vld [vmem:[%s192 + $0x140] sm:$0xff]
      %v239 = vld [vmem:[%s192 + $0x148] sm:$0xff]
      %v240 = vld [vmem:[%s192 + $0x150] sm:$0xff]
      %v241 = vld [vmem:[%s192 + $0x158] sm:$0xff]
      %v242 = vld [vmem:[%s192 + $0x160] sm:$0xff]
      %v243 = vld [vmem:[%s192 + $0x168] sm:$0xff]
      %v244 = vld [vmem:[%s192 + $0x170] sm:$0xff]
      %v245 = vld [vmem:[%s192 + $0x178] sm:$0xff]
      %v246 = vld [vmem:[%s192 + $0x180] sm:$0xff]
      %v247 = vld [vmem:[%s192 + $0x188] sm:$0xff]
      %v248 = vld [vmem:[%s192 + $0x190] sm:$0xff]
      %v249 = vld [vmem:[%s192 + $0x198] sm:$0xff]
      %v250 = vld [vmem:[%s192 + $0x1a0] sm:$0xff]
      %v251 = vld [vmem:[%s192 + $0x1a8] sm:$0xff]
      %v252 = vld [vmem:[%s192 + $0x1b0] sm:$0xff]
      %v253 = vld [vmem:[%s192 + $0x1b8] sm:$0xff]
      %v254 = vld [vmem:[%s192 + $0x1c0] sm:$0xff]
      %v255 = vld [vmem:[%s192 + $0x1c8] sm:$0xff]
      %v256 = vld [vmem:[%s192 + $0x1d0] sm:$0xff]
      %v257 = vld [vmem:[%s192 + $0x1d8] sm:$0xff]
      %v258 = vld [vmem:[%s192 + $0x1e0] sm:$0xff]
      %v259 = vld [vmem:[%s192 + $0x1e8] sm:$0xff]
      %v260 = vld [vmem:[%s192 + $0x1f0] sm:$0xff]
      %v261 = vld [vmem:[%s192 + $0x1f8] sm:$0xff]
      %v262 = vld [vmem:[%s192 + $0x200] sm:$0xff]
      %v263 = vld [vmem:[%s192 + $0x208] sm:$0xff]
      %v264 = vld [vmem:[%s192 + $0x210] sm:$0xff]
      %v265 = vld [vmem:[%s192 + $0x218] sm:$0xff]
      %v266 = vld [vmem:[%s192 + $0x220] sm:$0xff]
      %v267 = vld [vmem:[%s192 + $0x228] sm:$0xff]
      %v268 = vld [vmem:[%s192 + $0x230] sm:$0xff]
      %v269 = vld [vmem:[%s192 + $0x238] sm:$0xff]
      %v270 = vld [vmem:[%s192 + $0x240] sm:$0x3f]
      %v271 = vld [vmem:[%s192 + $0x248] sm:$0x3f]
      %v272 = vld [vmem:[%s192 + $0x250] sm:$0x3f]
      %v273 = vld [vmem:[%s192 + $0x258] sm:$0x3f]
      %v274 = vld [vmem:[%s192 + $0x260] sm:$0x3f]
      %v275 = vld [vmem:[%s192 + $0x268] sm:$0x3f]
      %v276 = vld [vmem:[%s192 + $0x270] sm:$0x3f]
      %v277 = vld [vmem:[%s192 + $0x278] sm:$0x3f]
      %v278 = vld [vmem:[%s192 + $0x280] sm:$0x3f]
      %v279 = vld [vmem:[%s192 + $0x288] sm:$0x3f]
      %v280 = vld [vmem:[%s192 + $0x290] sm:$0x3f]
      %v281 = vld [vmem:[%s192 + $0x298] sm:$0x3f]
      %v282 = vld [vmem:[%s1] sm:$0xff]
      %vm283 = vcmask 441344
      %v285 = vsel %vm283, %v282, 0
      %vm287 = vcmask 1045504
      %v289 = vsel %vm287, %v270, 0
      %v292 = vsel %vm287, %v271, 0
      %v295 = vsel %vm287, %v272, 0
      %v298 = vsel %vm287, %v273, 0
      %v301 = vsel %vm287, %v274, 0
      %v304 = vsel %vm287, %v275, 0
      %v307 = vsel %vm287, %v276, 0
      %v310 = vsel %vm287, %v277, 0
      %v313 = vsel %vm287, %v278, 0
      %v316 = vsel %vm287, %v279, 0
      %v319 = vsel %vm287, %v280, 0
      %v322 = vsel %vm287, %v281, 0
      %324 = vmatpush.msra.mxu0 0.0
      %325 = vmatpush.msra.mxu0 0.0
      %326 = vmatpush.msra.mxu0 0.0
      %327 = vmatpush.msra.mxu0 0.0
      %328 = vmatpush.msra.mxu0 0.0
      %329 = vmatpush.msra.mxu0 0.0
      %330 = vmatpush.msra.mxu0 0.0
      %331 = vmatpush.msra.mxu0 0.0
      %332 = vmatpush.msra.mxu0 0.0
      %333 = vmatpush.msra.mxu0 %v289
      %334 = vmatpush.msra.mxu0 %v258
      %335 = vmatpush.msra.mxu0 %v246
      %336 = vmatpush.msra.mxu0 %v234
      %337 = vmatpush.msra.mxu0 %v222
      %338 = vmatpush.msra.mxu0 %v210
      %339 = vmatpush.msra.mxu0 %v198
      %340 = vmatmul.f32.gmra.mxu0 %v285
      %v341 = vpop.f32.mrf.mxu0
      %v342 = vadd.f32 0.0, %v341
      %343 = vdwg.mxu0
      %344 = vmatpush.msra.mxu0 0.0
      %345 = vmatpush.msra.mxu0 0.0
      %346 = vmatpush.msra.mxu0 0.0
      %347 = vmatpush.msra.mxu0 0.0
      %348 = vmatpush.msra.mxu0 0.0
      %349 = vmatpush.msra.mxu0 0.0
      %350 = vmatpush.msra.mxu0 0.0
      %351 = vmatpush.msra.mxu0 0.0
      %352 = vmatpush.msra.mxu0 0.0
      %353 = vmatpush.msra.mxu0 %v292
      %354 = vmatpush.msra.mxu0 %v259
      %355 = vmatpush.msra.mxu0 %v247
      %356 = vmatpush.msra.mxu0 %v235
      %357 = vmatpush.msra.mxu0 %v223
      %358 = vmatpush.msra.mxu0 %v211
      %359 = vmatpush.msra.mxu0 %v199
      %360 = vmatmul.f32.gmra.mxu0 %v285
      %v361 = vpop.f32.mrf.mxu0
      %v362 = vadd.f32 0.0, %v361
      %363 = vdwg.mxu0
      %364 = vmatpush.msra.mxu0 0.0
      %365 = vmatpush.msra.mxu0 0.0
      %366 = vmatpush.msra.mxu0 0.0
      %367 = vmatpush.msra.mxu0 0.0
      %368 = vmatpush.msra.mxu0 0.0
      %369 = vmatpush.msra.mxu0 0.0
      %370 = vmatpush.msra.mxu0 0.0
      %371 = vmatpush.msra.mxu0 0.0
      %372 = vmatpush.msra.mxu0 0.0
      %373 = vmatpush.msra.mxu0 %v295
      %374 = vmatpush.msra.mxu0 %v260
      %375 = vmatpush.msra.mxu0 %v248
      %376 = vmatpush.msra.mxu0 %v236
      %377 = vmatpush.msra.mxu0 %v224
      %378 = vmatpush.msra.mxu0 %v212
      %379 = vmatpush.msra.mxu0 %v200
      %380 = vmatmul.f32.gmra.mxu0 %v285
      %v381 = vpop.f32.mrf.mxu0
      %v382 = vadd.f32 0.0, %v381
      %383 = vdwg.mxu0
      %384 = vmatpush.msra.mxu0 0.0
      %385 = vmatpush.msra.mxu0 0.0
      %386 = vmatpush.msra.mxu0 0.0
      %387 = vmatpush.msra.mxu0 0.0
      %388 = vmatpush.msra.mxu0 0.0
      %389 = vmatpush.msra.mxu0 0.0
      %390 = vmatpush.msra.mxu0 0.0
      %391 = vmatpush.msra.mxu0 0.0
      %392 = vmatpush.msra.mxu0 0.0
      %393 = vmatpush.msra.mxu0 %v298
      %394 = vmatpush.msra.mxu0 %v261
      %395 = vmatpush.msra.mxu0 %v249
      %396 = vmatpush.msra.mxu0 %v237
      %397 = vmatpush.msra.mxu0 %v225
      %398 = vmatpush.msra.mxu0 %v213
      %399 = vmatpush.msra.mxu0 %v201
      %400 = vmatmul.f32.gmra.mxu0 %v285
      %v401 = vpop.f32.mrf.mxu0
      %v402 = vadd.f32 0.0, %v401
      %403 = vdwg.mxu0
      %404 = vmatpush.msra.mxu0 0.0
      %405 = vmatpush.msra.mxu0 0.0
      %406 = vmatpush.msra.mxu0 0.0
      %407 = vmatpush.msra.mxu0 0.0
      %408 = vmatpush.msra.mxu0 0.0
      %409 = vmatpush.msra.mxu0 0.0
      %410 = vmatpush.msra.mxu0 0.0
      %411 = vmatpush.msra.mxu0 0.0
      %412 = vmatpush.msra.mxu0 0.0
      %413 = vmatpush.msra.mxu0 %v301
      %414 = vmatpush.msra.mxu0 %v262
      %415 = vmatpush.msra.mxu0 %v250
      %416 = vmatpush.msra.mxu0 %v238
      %417 = vmatpush.msra.mxu0 %v226
      %418 = vmatpush.msra.mxu0 %v214
      %419 = vmatpush.msra.mxu0 %v202
      %420 = vmatmul.f32.gmra.mxu0 %v285
      %v421 = vpop.f32.mrf.mxu0
      %v422 = vadd.f32 0.0, %v421
      %423 = vdwg.mxu0
      %424 = vmatpush.msra.mxu0 0.0
      %425 = vmatpush.msra.mxu0 0.0
      %426 = vmatpush.msra.mxu0 0.0
      %427 = vmatpush.msra.mxu0 0.0
      %428 = vmatpush.msra.mxu0 0.0
      %429 = vmatpush.msra.mxu0 0.0
      %430 = vmatpush.msra.mxu0 0.0
      %431 = vmatpush.msra.mxu0 0.0
      %432 = vmatpush.msra.mxu0 0.0
      %433 = vmatpush.msra.mxu0 %v304
      %434 = vmatpush.msra.mxu0 %v263
      %435 = vmatpush.msra.mxu0 %v251
      %436 = vmatpush.msra.mxu0 %v239
      %437 = vmatpush.msra.mxu0 %v227
      %438 = vmatpush.msra.mxu0 %v215
      %439 = vmatpush.msra.mxu0 %v203
      %440 = vmatmul.f32.gmra.mxu0 %v285
      %v441 = vpop.f32.mrf.mxu0
      %v442 = vadd.f32 0.0, %v441
      %443 = vdwg.mxu0
      %444 = vmatpush.msra.mxu0 0.0
      %445 = vmatpush.msra.mxu0 0.0
      %446 = vmatpush.msra.mxu0 0.0
      %447 = vmatpush.msra.mxu0 0.0
      %448 = vmatpush.msra.mxu0 0.0
      %449 = vmatpush.msra.mxu0 0.0
      %450 = vmatpush.msra.mxu0 0.0
      %451 = vmatpush.msra.mxu0 0.0
      %452 = vmatpush.msra.mxu0 0.0
      %453 = vmatpush.msra.mxu0 %v307
      %454 = vmatpush.msra.mxu0 %v264
      %455 = vmatpush.msra.mxu0 %v252
      %456 = vmatpush.msra.mxu0 %v240
      %457 = vmatpush.msra.mxu0 %v228
      %458 = vmatpush.msra.mxu0 %v216
      %459 = vmatpush.msra.mxu0 %v204
      %460 = vmatmul.f32.gmra.mxu0 %v285
      %v461 = vpop.f32.mrf.mxu0
      %v462 = vadd.f32 0.0, %v461
      %463 = vdwg.mxu0
      %464 = vmatpush.msra.mxu0 0.0
      %465 = vmatpush.msra.mxu0 0.0
      %466 = vmatpush.msra.mxu0 0.0
      %467 = vmatpush.msra.mxu0 0.0
      %468 = vmatpush.msra.mxu0 0.0
      %469 = vmatpush.msra.mxu0 0.0
      %470 = vmatpush.msra.mxu0 0.0
      %471 = vmatpush.msra.mxu0 0.0
      %472 = vmatpush.msra.mxu0 0.0
      %473 = vmatpush.msra.mxu0 %v310
      %474 = vmatpush.msra.mxu0 %v265
      %475 = vmatpush.msra.mxu0 %v253
      %476 = vmatpush.msra.mxu0 %v241
      %477 = vmatpush.msra.mxu0 %v229
      %478 = vmatpush.msra.mxu0 %v217
      %479 = vmatpush.msra.mxu0 %v205
      %480 = vmatmul.f32.gmra.mxu0 %v285
      %v481 = vpop.f32.mrf.mxu0
      %v482 = vadd.f32 0.0, %v481
      %483 = vdwg.mxu0
      %484 = vmatpush.msra.mxu0 0.0
      %485 = vmatpush.msra.mxu0 0.0
      %486 = vmatpush.msra.mxu0 0.0
      %487 = vmatpush.msra.mxu0 0.0
      %488 = vmatpush.msra.mxu0 0.0
      %489 = vmatpush.msra.mxu0 0.0
      %490 = vmatpush.msra.mxu0 0.0
      %491 = vmatpush.msra.mxu0 0.0
      %492 = vmatpush.msra.mxu0 0.0
      %493 = vmatpush.msra.mxu0 %v313
      %494 = vmatpush.msra.mxu0 %v266
      %495 = vmatpush.msra.mxu0 %v254
      %496 = vmatpush.msra.mxu0 %v242
      %497 = vmatpush.msra.mxu0 %v230
      %498 = vmatpush.msra.mxu0 %v218
      %499 = vmatpush.msra.mxu0 %v206
      %500 = vmatmul.f32.gmra.mxu0 %v285
      %v501 = vpop.f32.mrf.mxu0
      %v502 = vadd.f32 0.0, %v501
      %503 = vdwg.mxu0
      %504 = vmatpush.msra.mxu0 0.0
      %505 = vmatpush.msra.mxu0 0.0
      %506 = vmatpush.msra.mxu0 0.0
      %507 = vmatpush.msra.mxu0 0.0
      %508 = vmatpush.msra.mxu0 0.0
      %509 = vmatpush.msra.mxu0 0.0
      %510 = vmatpush.msra.mxu0 0.0
      %511 = vmatpush.msra.mxu0 0.0
      %512 = vmatpush.msra.mxu0 0.0
      %513 = vmatpush.msra.mxu0 %v316
      %514 = vmatpush.msra.mxu0 %v267
      %515 = vmatpush.msra.mxu0 %v255
      %516 = vmatpush.msra.mxu0 %v243
      %517 = vmatpush.msra.mxu0 %v231
      %518 = vmatpush.msra.mxu0 %v219
      %519 = vmatpush.msra.mxu0 %v207
      %520 = vmatmul.f32.gmra.mxu0 %v285
      %v521 = vpop.f32.mrf.mxu0
      %v522 = vadd.f32 0.0, %v521
      %523 = vdwg.mxu0
      %524 = vmatpush.msra.mxu0 0.0
      %525 = vmatpush.msra.mxu0 0.0
      %526 = vmatpush.msra.mxu0 0.0
      %527 = vmatpush.msra.mxu0 0.0
      %528 = vmatpush.msra.mxu0 0.0
      %529 = vmatpush.msra.mxu0 0.0
      %530 = vmatpush.msra.mxu0 0.0
      %531 = vmatpush.msra.mxu0 0.0
      %532 = vmatpush.msra.mxu0 0.0
      %533 = vmatpush.msra.mxu0 %v319
      %534 = vmatpush.msra.mxu0 %v268
      %535 = vmatpush.msra.mxu0 %v256
      %536 = vmatpush.msra.mxu0 %v244
      %537 = vmatpush.msra.mxu0 %v232
      %538 = vmatpush.msra.mxu0 %v220
      %539 = vmatpush.msra.mxu0 %v208
      %540 = vmatmul.f32.gmra.mxu0 %v285
      %v541 = vpop.f32.mrf.mxu0
      %v542 = vadd.f32 0.0, %v541
      %543 = vdwg.mxu0
      %544 = vmatpush.msra.mxu0 0.0
      %545 = vmatpush.msra.mxu0 0.0
      %546 = vmatpush.msra.mxu0 0.0
      %547 = vmatpush.msra.mxu0 0.0
      %548 = vmatpush.msra.mxu0 0.0
      %549 = vmatpush.msra.mxu0 0.0
      %550 = vmatpush.msra.mxu0 0.0
      %551 = vmatpush.msra.mxu0 0.0
      %552 = vmatpush.msra.mxu0 0.0
      %553 = vmatpush.msra.mxu0 %v322
      %554 = vmatpush.msra.mxu0 %v269
      %555 = vmatpush.msra.mxu0 %v257
      %556 = vmatpush.msra.mxu0 %v245
      %557 = vmatpush.msra.mxu0 %v233
      %558 = vmatpush.msra.mxu0 %v221
      %559 = vmatpush.msra.mxu0 %v209
      %560 = vmatmul.f32.gmra.mxu0 %v285
      %v561 = vpop.f32.mrf.mxu0
      %v562 = vadd.f32 0.0, %v561
      %563 = vdwg.mxu0
      %v564 = vld [vmem:[%s2] sm:$0xff]
      %566 = vset.pattern.permute.xlu0 0
      %567 = vperm.xlu0 %566, %v564
      %v568 = vpop.permute.xlu0 %567
      %v570 = vmul.f32 %v342, %v568
      %v571 = vmul.f32 %v362, %v568
      %v572 = vmul.f32 %v382, %v568
      %v573 = vmul.f32 %v402, %v568
      %v574 = vmul.f32 %v422, %v568
      %v575 = vmul.f32 %v442, %v568
      %v576 = vmul.f32 %v462, %v568
      %v577 = vmul.f32 %v482, %v568
      %v578 = vmul.f32 %v502, %v568
      %v579 = vmul.f32 %v522, %v568
      %v580 = vmul.f32 %v542, %v568
      %v581 = vmul.f32 %v562, %v568
      %v582 = vld [vmem:[%s3] sm:$0xff]
      %584 = vset.pattern.permute.xlu0 0
      %585 = vperm.xlu0 %584, %v582
      %v586 = vpop.permute.xlu0 %585
      %v588 = vadd.f32 %v570, %v586
      %v589 = vadd.f32 %v571, %v586
      %v590 = vadd.f32 %v572, %v586
      %v591 = vadd.f32 %v573, %v586
      %v592 = vadd.f32 %v574, %v586
      %v593 = vadd.f32 %v575, %v586
      %v594 = vadd.f32 %v576, %v586
      %v595 = vadd.f32 %v577, %v586
      %v596 = vadd.f32 %v578, %v586
      %v597 = vadd.f32 %v579, %v586
      %v598 = vadd.f32 %v580, %v586
      %v599 = vadd.f32 %v581, %v586
      %vm600 = vcmp.gt.f32.partialorder %v588, 0.0
      %vm601 = vcmp.gt.f32.partialorder %v589, 0.0
      %vm602 = vcmp.gt.f32.partialorder %v590, 0.0
      %vm603 = vcmp.gt.f32.partialorder %v591, 0.0
      %vm604 = vcmp.gt.f32.partialorder %v592, 0.0
      %vm605 = vcmp.gt.f32.partialorder %v593, 0.0
      %vm606 = vcmp.gt.f32.partialorder %v594, 0.0
      %vm607 = vcmp.gt.f32.partialorder %v595, 0.0
      %vm608 = vcmp.gt.f32.partialorder %v596, 0.0
      %vm609 = vcmp.gt.f32.partialorder %v597, 0.0
      %vm610 = vcmp.gt.f32.partialorder %v598, 0.0
      %vm611 = vcmp.gt.f32.partialorder %v599, 0.0
      %v612 = vmin.f32 %v588, 0.0
      %v613 = vmin.f32 %v589, 0.0
      %v614 = vmin.f32 %v590, 0.0
      %v615 = vmin.f32 %v591, 0.0
      %v616 = vmin.f32 %v592, 0.0
      %v617 = vmin.f32 %v593, 0.0
      %v618 = vmin.f32 %v594, 0.0
      %v619 = vmin.f32 %v595, 0.0
      %v620 = vmin.f32 %v596, 0.0
      %v621 = vmin.f32 %v597, 0.0
      %v622 = vmin.f32 %v598, 0.0
      %v623 = vmin.f32 %v599, 0.0
      %v624 = vmul.f32 %v612, 1.442695
      %v625 = vpow.pop %v624
      %v626 = vmul.f32 %v613, 1.442695
      %v627 = vpow.pop %v626
      %v628 = vmul.f32 %v614, 1.442695
      %v629 = vpow.pop %v628
      %v630 = vmul.f32 %v615, 1.442695
      %v631 = vpow.pop %v630
      %v632 = vmul.f32 %v616, 1.442695
      %v633 = vpow.pop %v632
      %v634 = vmul.f32 %v617, 1.442695
      %v635 = vpow.pop %v634
      %v636 = vmul.f32 %v618, 1.442695
      %v637 = vpow.pop %v636
      %v638 = vmul.f32 %v619, 1.442695
      %v639 = vpow.pop %v638
      %v640 = vmul.f32 %v620, 1.442695
      %v641 = vpow.pop %v640
      %v642 = vmul.f32 %v621, 1.442695
      %v643 = vpow.pop %v642
      %v644 = vmul.f32 %v622, 1.442695
      %v645 = vpow.pop %v644
      %v646 = vmul.f32 %v623, 1.442695
      %v647 = vpow.pop %v646
      %v648 = vsub.f32 %v625, 1.0
      %v649 = vsub.f32 %v627, 1.0
      %v650 = vsub.f32 %v629, 1.0
      %v651 = vsub.f32 %v631, 1.0
      %v652 = vsub.f32 %v633, 1.0
      %v653 = vsub.f32 %v635, 1.0
      %v654 = vsub.f32 %v637, 1.0
      %v655 = vsub.f32 %v639, 1.0
      %v656 = vsub.f32 %v641, 1.0
      %v657 = vsub.f32 %v643, 1.0
      %v658 = vsub.f32 %v645, 1.0
      %v659 = vsub.f32 %v647, 1.0
      %v660 = vsel %vm600, %v588, %v648
      %v661 = vsel %vm601, %v589, %v649
      %v662 = vsel %vm602, %v590, %v650
      %v663 = vsel %vm603, %v591, %v651
      %v664 = vsel %vm604, %v592, %v652
      %v665 = vsel %vm605, %v593, %v653
      %v666 = vsel %vm606, %v594, %v654
      %v667 = vsel %vm607, %v595, %v655
      %v668 = vsel %vm608, %v596, %v656
      %v669 = vsel %vm609, %v597, %v657
      %v670 = vsel %vm610, %v598, %v658
      %v671 = vsel %vm611, %v599, %v659
      %672 = vst [vmem:[%s197] sm:$0xff] %v660
      %673 = vst [vmem:[%s197 + $0x8] sm:$0xff] %v661
      %674 = vst [vmem:[%s197 + $0x10] sm:$0xff] %v662
      %675 = vst [vmem:[%s197 + $0x18] sm:$0xff] %v663
      %676 = vst [vmem:[%s197 + $0x20] sm:$0xff] %v664
      %677 = vst [vmem:[%s197 + $0x28] sm:$0xff] %v665
      %678 = vst [vmem:[%s197 + $0x30] sm:$0xff] %v666
      %679 = vst [vmem:[%s197 + $0x38] sm:$0xff] %v667
      %680 = vst [vmem:[%s197 + $0x40] sm:$0xff] %v668
      %681 = vst [vmem:[%s197 + $0x48] sm:$0xff] %v669
      %682 = vst [vmem:[%s197 + $0x50] sm:$0xff] %v670
      %vm683 = vcmask 179200
      %684 = vst.msk [vmem:[%s197 + $0x58] sm:$0xff] %vm683, %v671
      %p685 = scmp.lt.s32.totalorder %s15, 1
      %s686 = scalar_select %p685, %s15, 1
      %s687 = smul.addr %s686, 12
      %s688 = smul.addr %s687, 8
      %s689 = scalar_lea.vmem %s4, %s688
      // Predicated region
      $region37: #{mldg_forward.14} parent=35 // pred_check
        %p690 = pneg %p122
      $region38: #{mldg_forward.14} parent=35 // pred_check_branch
        %692 = sbr.rel (%p690) target = $region40
      $region39: #{mldg_forward.14} parent=35 // pred_region
        _
      $region40: #{mldg_forward.14} parent=35 // pred_fallthru
        _
    $region36: #{mldg_forward.14} parent=5 // pred_fallthru
      _
    %p693 = scmp.le.s32.totalorder 2, %s10
    // Predicated region
    $region41: #{mldg_forward.14} parent=5 // pred_check
      %p694 = pneg %p693
    $region42: #{mldg_forward.14} parent=5 // pred_check_branch
      %696 = sbr.rel (%p694) target = $region44
    $region43: #{mldg_forward.14} parent=5 // pred_region
      %s697 = ssub.s32 %s10, 2
      // Predicated region
      $region45: #{mldg_forward.14} parent=43 // pred_check
        %p698 = pneg %p128
      $region46: #{mldg_forward.14} parent=43 // pred_check_branch
        %700 = sbr.rel (%p698) target = $region48
      $region47: #{mldg_forward.14} parent=43 // pred_region
        %p701 = scmp.lt.s32.totalorder %s16, 1
        %s702 = scalar_select %p701, %s16, 1
        %s703 = smul.addr %s702, 12
        %s704 = smul.addr %s703, 8
        %s705 = scalar_lea.vmem %s4, %s704
      $region48: #{mldg_forward.14} parent=43 // pred_fallthru
        _
    $region44: #{mldg_forward.14} parent=5 // pred_fallthru
      _
  $region6: #{mldg_forward.14} parent=0 // loop_footer
    %s14 = sadd.s32 1, %s10
  $region7: #{mldg_forward.14} parent=0 // loop_footer_branch
    %9 = sbr.rel target = $region3
  $region8: #{mldg_forward.14} parent=0 // loop_exit
    _

// kernel: mldg_forward.15
$region0: #{mldg_forward.15}
  #allocation0 [shape = 'u32[]', space=smem, size = 0x4, offset = 0x4, fixed_abs, tag = 'smem constant byte address 0x4 - core index']
  #allocation1 [shape = 'u32[72,128]{1,0:T(1,128)}', space=vmem, size = 0x9000, scoped, tag = 'internal scratch']
  %s0 = inlined_call_operand.vmem [shape: f32[2,54,1430], index: 0, kind: input, shape index: {}]
  %s1 = inlined_call_operand.vmem [shape: f32[8,54], index: 1, kind: input, shape index: {}]
  %s2 = inlined_call_operand.vmem [shape: f32[8,1], index: 2, kind: input, shape index: {}]
  %s3 = inlined_call_operand.vmem [shape: f32[8,1], index: 3, kind: input, shape index: {}]
  %s4 = inlined_call_operand.vmem [shape: f32[2,8,1430], index: 4, kind: output, shape index: {}]
  %s5 = sld [smem:[#allocation0]]
  $region49: #{mldg_forward.15} parent=0
    _
  %s7 = ssub.s32 1, %s5
  %s8 = scalar_select 0, %s7, %s5
  loop: start=0, step=1, limit=4
  $region2: #{mldg_forward.15} parent=0 // loop_pre_header
    _
  $region3: #{mldg_forward.15} parent=0 // loop_header
    %s10 = sphi 0, %s14
    %p11 = scmp.ge.s32.totalorder %s10, 4
    %s20 = sphi 0, %s22
    %s23 = sphi 0, %s20
    %s24 = sphi 0, %s23
    %s40 = sphi 0, %s24
    %s44 = sphi 0, %s44
    %s46 = sphi 0, %s44
    %s47 = sphi 0, %s46
    %s61 = sphi 0, %s47
    %s65 = sphi 0, %s65
    %s67 = sphi 0, %s65
    %s68 = sphi 0, %s67
    %s82 = sphi 0, %s68
    %s86 = sphi 0, %s86
    %s88 = sphi 0, %s86
    %s89 = sphi 0, %s88
    %s103 = sphi 0, %s89
    %s109 = sphi 0, %s111
    %s112 = sphi 0, %s109
    %s113 = sphi 0, %s112
    %s129 = sphi 0, %s113
  $region4: #{mldg_forward.15} parent=0 // loop_header_branch
    %13 = sbr.rel (%p11) target = $region8
  $region5: #{mldg_forward.15} parent=0 // loop_body
    %s15 = ssub.s32 %s10, 1
    %s16 = ssub.s32 %s10, 2
    %s17 = sadd.s32 %s10, 1
    %s18 = ssub.s32 %s10, %s17
    %p19 = scmp.eq.s32.totalorder %s18, 0
    %s21 = sadd.s32 %s20, 1
    %s22 = scalar_select %p19, %s20, %s21
    %p25 = pneg %p19
    %p26 = scmp.eq.s32.totalorder %s10, 1
    %p27 = por %p25, %p26
    %p28 = scmp.ne.s32.totalorder %s20, %s23
    %p29 = scmp.eq.s32.totalorder %s10, 0
    %p30 = por %p28, %p29
    %p31 = scmp.ne.s32.totalorder %s20, %s23
    %p32 = scmp.eq.s32.totalorder %s15, 1
    %p33 = por %p31, %p32
    %p34 = scmp.ne.s32.totalorder %s23, %s24
    %p35 = scmp.eq.s32.totalorder %s15, 0
    %p36 = por %p34, %p35
    %p37 = scmp.ne.s32.totalorder %s23, %s24
    %p38 = scmp.eq.s32.totalorder %s16, 1
    %p39 = por %p37, %p38
    %p41 = scmp.ne.s32.totalorder %s24, %s40
    %p42 = scmp.eq.s32.totalorder %s16, 0
    %p43 = por %p41, %p42
    %s45 = sadd.s32 %s44, 1
    %p48 = scmp.eq.s32.totalorder %s10, 1
    %p49 = scmp.ne.s32.totalorder %s44, %s46
    %p50 = scmp.eq.s32.totalorder %s10, 0
    %p51 = por %p49, %p50
    %p52 = scmp.ne.s32.totalorder %s44, %s46
    %p53 = scmp.eq.s32.totalorder %s15, 1
    %p54 = por %p52, %p53
    %p55 = scmp.ne.s32.totalorder %s46, %s47
    %p56 = scmp.eq.s32.totalorder %s15, 0
    %p57 = por %p55, %p56
    %p58 = scmp.ne.s32.totalorder %s46, %s47
    %p59 = scmp.eq.s32.totalorder %s16, 1
    %p60 = por %p58, %p59
    %p62 = scmp.ne.s32.totalorder %s47, %s61
    %p63 = scmp.eq.s32.totalorder %s16, 0
    %p64 = por %p62, %p63
    %s66 = sadd.s32 %s65, 1
    %p69 = scmp.eq.s32.totalorder %s10, 1
    %p70 = scmp.ne.s32.totalorder %s65, %s67
    %p71 = scmp.eq.s32.totalorder %s10, 0
    %p72 = por %p70, %p71
    %p73 = scmp.ne.s32.totalorder %s65, %s67
    %p74 = scmp.eq.s32.totalorder %s15, 1
    %p75 = por %p73, %p74
    %p76 = scmp.ne.s32.totalorder %s67, %s68
    %p77 = scmp.eq.s32.totalorder %s15, 0
    %p78 = por %p76, %p77
    %p79 = scmp.ne.s32.totalorder %s67, %s68
    %p80 = scmp.eq.s32.totalorder %s16, 1
    %p81 = por %p79, %p80
    %p83 = scmp.ne.s32.totalorder %s68, %s82
    %p84 = scmp.eq.s32.totalorder %s16, 0
    %p85 = por %p83, %p84
    %s87 = sadd.s32 %s86, 1
    %p90 = scmp.eq.s32.totalorder %s10, 1
    %p91 = scmp.ne.s32.totalorder %s86, %s88
    %p92 = scmp.eq.s32.totalorder %s10, 0
    %p93 = por %p91, %p92
    %p94 = scmp.ne.s32.totalorder %s86, %s88
    %p95 = scmp.eq.s32.totalorder %s15, 1
    %p96 = por %p94, %p95
    %p97 = scmp.ne.s32.totalorder %s88, %s89
    %p98 = scmp.eq.s32.totalorder %s15, 0
    %p99 = por %p97, %p98
    %p100 = scmp.ne.s32.totalorder %s88, %s89
    %p101 = scmp.eq.s32.totalorder %s16, 1
    %p102 = por %p100, %p101
    %p104 = scmp.ne.s32.totalorder %s89, %s103
    %p105 = scmp.eq.s32.totalorder %s16, 0
    %p106 = por %p104, %p105
    %s107 = ssub.s32 %s10, %s17
    %p108 = scmp.eq.s32.totalorder %s107, 0
    %s110 = sadd.s32 %s109, 1
    %s111 = scalar_select %p108, %s109, %s110
    %p114 = pneg %p108
    %p115 = scmp.eq.s32.totalorder %s10, 1
    %p116 = por %p114, %p115
    %p117 = scmp.ne.s32.totalorder %s109, %s112
    %p118 = scmp.eq.s32.totalorder %s10, 0
    %p119 = por %p117, %p118
    %p120 = scmp.ne.s32.totalorder %s109, %s112
    %p121 = scmp.eq.s32.totalorder %s15, 1
    %p122 = por %p120, %p121
    %p123 = scmp.ne.s32.totalorder %s112, %s113
    %p124 = scmp.eq.s32.totalorder %s15, 0
    %p125 = por %p123, %p124
    %p126 = scmp.ne.s32.totalorder %s112, %s113
    %p127 = scmp.eq.s32.totalorder %s16, 1
    %p128 = por %p126, %p127
    %p130 = scmp.ne.s32.totalorder %s113, %s129
    %p131 = scmp.eq.s32.totalorder %s16, 0
    %p132 = por %p130, %p131
    %p133 = scmp.le.s32.totalorder 1, %s10
    %p134 = scmp.lt.s32.totalorder %s10, 3
    %p135 = pnand %p133, %p134
    %p136 = pneg %p135
    // Predicated region
    $region9: #{mldg_forward.15} parent=5 // pred_check
      _
    $region10: #{mldg_forward.15} parent=5 // pred_check_branch
      %138 = sbr.rel (%p135) target = $region12
    $region11: #{mldg_forward.15} parent=5 // pred_region
      %s139 = ssub.s32 %s10, 1
      // Predicated region
      $region13: #{mldg_forward.15} parent=11 // pred_check
        %p140 = pneg %p57
      $region14: #{mldg_forward.15} parent=11 // pred_check_branch
        %142 = sbr.rel (%p140) target = $region16
      $region15: #{mldg_forward.15} parent=11 // pred_region
        _
      $region16: #{mldg_forward.15} parent=11 // pred_fallthru
        _
      // Predicated region
      $region17: #{mldg_forward.15} parent=11 // pred_check
        %p143 = pneg %p78
      $region18: #{mldg_forward.15} parent=11 // pred_check_branch
        %145 = sbr.rel (%p143) target = $region20
      $region19: #{mldg_forward.15} parent=11 // pred_region
        _
      $region20: #{mldg_forward.15} parent=11 // pred_fallthru
        _
      // Predicated region
      $region21: #{mldg_forward.15} parent=11 // pred_check
        %p146 = pneg %p99
      $region22: #{mldg_forward.15} parent=11 // pred_check_branch
        %148 = sbr.rel (%p146) target = $region24
      $region23: #{mldg_forward.15} parent=11 // pred_region
        _
      $region24: #{mldg_forward.15} parent=11 // pred_fallthru
        _
    $region12: #{mldg_forward.15} parent=5 // pred_fallthru
      _
    %p149 = scmp.lt.s32.totalorder %s10, 2
    // Predicated region
    $region25: #{mldg_forward.15} parent=5 // pred_check
      %p150 = pneg %p149
    $region26: #{mldg_forward.15} parent=5 // pred_check_branch
      %152 = sbr.rel (%p150) target = $region28
    $region27: #{mldg_forward.15} parent=5 // pred_region
      // Predicated region
      $region29: #{mldg_forward.15} parent=27 // pred_check
        %p153 = pneg %p30
      $region30: #{mldg_forward.15} parent=27 // pred_check_branch
        %155 = sbr.rel (%p153) target = $region32
      $region31: #{mldg_forward.15} parent=27 // pred_region
        %p156 = scmp.lt.s32.totalorder %s10, 1
        %s157 = scalar_select %p156, %s10, 1
        %s158 = smul.addr %s157, 84
        %s159 = smul.addr %s158, 8
        %s160 = scalar_lea.vmem %s0, %s159
      $region32: #{mldg_forward.15} parent=27 // pred_fallthru
        _
    $region28: #{mldg_forward.15} parent=5 // pred_fallthru
      _
    %p161 = scmp.le.s32.totalorder 1, %s10
    %p162 = scmp.lt.s32.totalorder %s10, 3
    %p163 = pnand %p161, %p162
    %p164 = pneg %p163
    // Predicated region
    $region33: #{mldg_forward.15} parent=5 // pred_check
      _
    $region34: #{mldg_forward.15} parent=5 // pred_check_branch
      %166 = sbr.rel (%p163) target = $region36
    $region35: #{mldg_forward.15} parent=5 // pred_region
      %s167 = ssub.s32 %s10, 1
      %p168 = scmp.lt.s32.totalorder %s15, 1
      %s169 = scalar_select %p168, %s15, 1
      %s170 = smul.addr %s169, 84
      %s171 = smul.addr %s170, 8
      %s172 = scalar_lea.vmem %s0, %s171
      %p173 = pneg %p36
      %p174 = pneg %p33
      %p175 = pneg %p57
      %p176 = pneg %p54
      %p177 = pneg %p78
      %p178 = pneg %p75
      %p179 = pneg %p99
      %p180 = pneg %p96
      %p181 = pneg %p125
      %p182 = pneg %p122
      %p183 = scmp.lt.s32.totalorder %s15, 1
      %s184 = scalar_select %p183, %s15, 1
      %s185 = smul.addr %s184, 12
      %s186 = smul.addr %s185, 8
      %s187 = scalar_lea.vmem %s4, %s186
      %p188 = scmp.lt.s32.totalorder %s15, 1
      %s189 = scalar_select %p188, %s15, 1
      %s190 = smul.addr %s189, 84
      %s191 = smul.addr %s190, 8
      %s192 = scalar_lea.vmem %s0, %s191
      %p193 = scmp.lt.s32.totalorder %s15, 1
      %s194 = scalar_select %p193, %s15, 1
      %s195 = smul.addr %s194, 12
      %s196 = smul.addr %s195, 8
      %s197 = scalar_lea.vmem %s4, %s196
      %v198 = vld [vmem:[%s192] sm:$0xff]
      %v199 = vld [vmem:[%s192 + $0x8] sm:$0xff]
      %v200 = vld [vmem:[%s192 + $0x10] sm:$0xff]
      %v201 = vld [vmem:[%s192 + $0x18] sm:$0xff]
      %v202 = vld [vmem:[%s192 + $0x20] sm:$0xff]
      %v203 = vld [vmem:[%s192 + $0x28] sm:$0xff]
      %v204 = vld [vmem:[%s192 + $0x30] sm:$0xff]
      %v205 = vld [vmem:[%s192 + $0x38] sm:$0xff]
      %v206 = vld [vmem:[%s192 + $0x40] sm:$0xff]
      %v207 = vld [vmem:[%s192 + $0x48] sm:$0xff]
      %v208 = vld [vmem:[%s192 + $0x50] sm:$0xff]
      %v209 = vld [vmem:[%s192 + $0x58] sm:$0xff]
      %v210 = vld [vmem:[%s192 + $0x60] sm:$0xff]
      %v211 = vld [vmem:[%s192 + $0x68] sm:$0xff]
      %v212 = vld [vmem:[%s192 + $0x70] sm:$0xff]
      %v213 = vld [vmem:[%s192 + $0x78] sm:$0xff]
      %v214 = vld [vmem:[%s192 + $0x80] sm:$0xff]
      %v215 = vld [vmem:[%s192 + $0x88] sm:$0xff]
      %v216 = vld [vmem:[%s192 + $0x90] sm:$0xff]
      %v217 = vld [vmem:[%s192 + $0x98] sm:$0xff]
      %v218 = vld [vmem:[%s192 + $0xa0] sm:$0xff]
      %v219 = vld [vmem:[%s192 + $0xa8] sm:$0xff]
      %v220 = vld [vmem:[%s192 + $0xb0] sm:$0xff]
      %v221 = vld [vmem:[%s192 + $0xb8] sm:$0xff]
      %v222 = vld [vmem:[%s192 + $0xc0] sm:$0xff]
      %v223 = vld [vmem:[%s192 + $0xc8] sm:$0xff]
      %v224 = vld [vmem:[%s192 + $0xd0] sm:$0xff]
      %v225 = vld [vmem:[%s192 + $0xd8] sm:$0xff]
      %v226 = vld [vmem:[%s192 + $0xe0] sm:$0xff]
      %v227 = vld [vmem:[%s192 + $0xe8] sm:$0xff]
      %v228 = vld [vmem:[%s192 + $0xf0] sm:$0xff]
      %v229 = vld [vmem:[%s192 + $0xf8] sm:$0xff]
      %v230 = vld [vmem:[%s192 + $0x100] sm:$0xff]
      %v231 = vld [vmem:[%s192 + $0x108] sm:$0xff]
      %v232 = vld [vmem:[%s192 + $0x110] sm:$0xff]
      %v233 = vld [vmem:[%s192 + $0x118] sm:$0xff]
      %v234 = vld [vmem:[%s192 + $0x120] sm:$0xff]
      %v235 = vld [vmem:[%s192 + $0x128] sm:$0xff]
      %v236 = vld [vmem:[%s192 + $0x130] sm:$0xff]
      %v237 = vld [vmem:[%s192 + $0x138] sm:$0xff]
      %v238 = vld [vmem:[%s192 + $0x140] sm:$0xff]
      %v239 = vld [vmem:[%s192 + $0x148] sm:$0xff]
      %v240 = vld [vmem:[%s192 + $0x150] sm:$0xff]
      %v241 = vld [vmem:[%s192 + $0x158] sm:$0xff]
      %v242 = vld [vmem:[%s192 + $0x160] sm:$0xff]
      %v243 = vld [vmem:[%s192 + $0x168] sm:$0xff]
      %v244 = vld [vmem:[%s192 + $0x170] sm:$0xff]
      %v245 = vld [vmem:[%s192 + $0x178] sm:$0xff]
      %v246 = vld [vmem:[%s192 + $0x180] sm:$0xff]
      %v247 = vld [vmem:[%s192 + $0x188] sm:$0xff]
      %v248 = vld [vmem:[%s192 + $0x190] sm:$0xff]
      %v249 = vld [vmem:[%s192 + $0x198] sm:$0xff]
      %v250 = vld [vmem:[%s192 + $0x1a0] sm:$0xff]
      %v251 = vld [vmem:[%s192 + $0x1a8] sm:$0xff]
      %v252 = vld [vmem:[%s192 + $0x1b0] sm:$0xff]
      %v253 = vld [vmem:[%s192 + $0x1b8] sm:$0xff]
      %v254 = vld [vmem:[%s192 + $0x1c0] sm:$0xff]
      %v255 = vld [vmem:[%s192 + $0x1c8] sm:$0xff]
      %v256 = vld [vmem:[%s192 + $0x1d0] sm:$0xff]
      %v257 = vld [vmem:[%s192 + $0x1d8] sm:$0xff]
      %v258 = vld [vmem:[%s192 + $0x1e0] sm:$0xff]
      %v259 = vld [vmem:[%s192 + $0x1e8] sm:$0xff]
      %v260 = vld [vmem:[%s192 + $0x1f0] sm:$0xff]
      %v261 = vld [vmem:[%s192 + $0x1f8] sm:$0xff]
      %v262 = vld [vmem:[%s192 + $0x200] sm:$0xff]
      %v263 = vld [vmem:[%s192 + $0x208] sm:$0xff]
      %v264 = vld [vmem:[%s192 + $0x210] sm:$0xff]
      %v265 = vld [vmem:[%s192 + $0x218] sm:$0xff]
      %v266 = vld [vmem:[%s192 + $0x220] sm:$0xff]
      %v267 = vld [vmem:[%s192 + $0x228] sm:$0xff]
      %v268 = vld [vmem:[%s192 + $0x230] sm:$0xff]
      %v269 = vld [vmem:[%s192 + $0x238] sm:$0xff]
      %v270 = vld [vmem:[%s192 + $0x240] sm:$0x3f]
      %v271 = vld [vmem:[%s192 + $0x248] sm:$0x3f]
      %v272 = vld [vmem:[%s192 + $0x250] sm:$0x3f]
      %v273 = vld [vmem:[%s192 + $0x258] sm:$0x3f]
      %v274 = vld [vmem:[%s192 + $0x260] sm:$0x3f]
      %v275 = vld [vmem:[%s192 + $0x268] sm:$0x3f]
      %v276 = vld [vmem:[%s192 + $0x270] sm:$0x3f]
      %v277 = vld [vmem:[%s192 + $0x278] sm:$0x3f]
      %v278 = vld [vmem:[%s192 + $0x280] sm:$0x3f]
      %v279 = vld [vmem:[%s192 + $0x288] sm:$0x3f]
      %v280 = vld [vmem:[%s192 + $0x290] sm:$0x3f]
      %v281 = vld [vmem:[%s192 + $0x298] sm:$0x3f]
      %v282 = vld [vmem:[%s1] sm:$0xff]
      %vm283 = vcmask 441344
      %v285 = vsel %vm283, %v282, 0
      %vm287 = vcmask 1045504
      %v289 = vsel %vm287, %v270, 0
      %v292 = vsel %vm287, %v271, 0
      %v295 = vsel %vm287, %v272, 0
      %v298 = vsel %vm287, %v273, 0
      %v301 = vsel %vm287, %v274, 0
      %v304 = vsel %vm287, %v275, 0
      %v307 = vsel %vm287, %v276, 0
      %v310 = vsel %vm287, %v277, 0
      %v313 = vsel %vm287, %v278, 0
      %v316 = vsel %vm287, %v279, 0
      %v319 = vsel %vm287, %v280, 0
      %v322 = vsel %vm287, %v281, 0
      %324 = vmatpush.msra.mxu0 0.0
      %325 = vmatpush.msra.mxu0 0.0
      %326 = vmatpush.msra.mxu0 0.0
      %327 = vmatpush.msra.mxu0 0.0
      %328 = vmatpush.msra.mxu0 0.0
      %329 = vmatpush.msra.mxu0 0.0
      %330 = vmatpush.msra.mxu0 0.0
      %331 = vmatpush.msra.mxu0 0.0
      %332 = vmatpush.msra.mxu0 0.0
      %333 = vmatpush.msra.mxu0 %v289
      %334 = vmatpush.msra.mxu0 %v258
      %335 = vmatpush.msra.mxu0 %v246
      %336 = vmatpush.msra.mxu0 %v234
      %337 = vmatpush.msra.mxu0 %v222
      %338 = vmatpush.msra.mxu0 %v210
      %339 = vmatpush.msra.mxu0 %v198
      %340 = vmatmul.f32.gmra.mxu0 %v285
      %v341 = vpop.f32.mrf.mxu0
      %v342 = vadd.f32 0.0, %v341
      %343 = vdwg.mxu0
      %344 = vmatpush.msra.mxu0 0.0
      %345 = vmatpush.msra.mxu0 0.0
      %346 = vmatpush.msra.mxu0 0.0
      %347 = vmatpush.msra.mxu0 0.0
      %348 = vmatpush.msra.mxu0 0.0
      %349 = vmatpush.msra.mxu0 0.0
      %350 = vmatpush.msra.mxu0 0.0
      %351 = vmatpush.msra.mxu0 0.0
      %352 = vmatpush.msra.mxu0 0.0
      %353 = vmatpush.msra.mxu0 %v292
      %354 = vmatpush.msra.mxu0 %v259
      %355 = vmatpush.msra.mxu0 %v247
      %356 = vmatpush.msra.mxu0 %v235
      %357 = vmatpush.msra.mxu0 %v223
      %358 = vmatpush.msra.mxu0 %v211
      %359 = vmatpush.msra.mxu0 %v199
      %360 = vmatmul.f32.gmra.mxu0 %v285
      %v361 = vpop.f32.mrf.mxu0
      %v362 = vadd.f32 0.0, %v361
      %363 = vdwg.mxu0
      %364 = vmatpush.msra.mxu0 0.0
      %365 = vmatpush.msra.mxu0 0.0
      %366 = vmatpush.msra.mxu0 0.0
      %367 = vmatpush.msra.mxu0 0.0
      %368 = vmatpush.msra.mxu0 0.0
      %369 = vmatpush.msra.mxu0 0.0
      %370 = vmatpush.msra.mxu0 0.0
      %371 = vmatpush.msra.mxu0 0.0
      %372 = vmatpush.msra.mxu0 0.0
      %373 = vmatpush.msra.mxu0 %v295
      %374 = vmatpush.msra.mxu0 %v260
      %375 = vmatpush.msra.mxu0 %v248
      %376 = vmatpush.msra.mxu0 %v236
      %377 = vmatpush.msra.mxu0 %v224
      %378 = vmatpush.msra.mxu0 %v212
      %379 = vmatpush.msra.mxu0 %v200
      %380 = vmatmul.f32.gmra.mxu0 %v285
      %v381 = vpop.f32.mrf.mxu0
      %v382 = vadd.f32 0.0, %v381
      %383 = vdwg.mxu0
      %384 = vmatpush.msra.mxu0 0.0
      %385 = vmatpush.msra.mxu0 0.0
      %386 = vmatpush.msra.mxu0 0.0
      %387 = vmatpush.msra.mxu0 0.0
      %388 = vmatpush.msra.mxu0 0.0
      %389 = vmatpush.msra.mxu0 0.0
      %390 = vmatpush.msra.mxu0 0.0
      %391 = vmatpush.msra.mxu0 0.0
      %392 = vmatpush.msra.mxu0 0.0
      %393 = vmatpush.msra.mxu0 %v298
      %394 = vmatpush.msra.mxu0 %v261
      %395 = vmatpush.msra.mxu0 %v249
      %396 = vmatpush.msra.mxu0 %v237
      %397 = vmatpush.msra.mxu0 %v225
      %398 = vmatpush.msra.mxu0 %v213
      %399 = vmatpush.msra.mxu0 %v201
      %400 = vmatmul.f32.gmra.mxu0 %v285
      %v401 = vpop.f32.mrf.mxu0
      %v402 = vadd.f32 0.0, %v401
      %403 = vdwg.mxu0
      %404 = vmatpush.msra.mxu0 0.0
      %405 = vmatpush.msra.mxu0 0.0
      %406 = vmatpush.msra.mxu0 0.0
      %407 = vmatpush.msra.mxu0 0.0
      %408 = vmatpush.msra.mxu0 0.0
      %409 = vmatpush.msra.mxu0 0.0
      %410 = vmatpush.msra.mxu0 0.0
      %411 = vmatpush.msra.mxu0 0.0
      %412 = vmatpush.msra.mxu0 0.0
      %413 = vmatpush.msra.mxu0 %v301
      %414 = vmatpush.msra.mxu0 %v262
      %415 = vmatpush.msra.mxu0 %v250
      %416 = vmatpush.msra.mxu0 %v238
      %417 = vmatpush.msra.mxu0 %v226
      %418 = vmatpush.msra.mxu0 %v214
      %419 = vmatpush.msra.mxu0 %v202
      %420 = vmatmul.f32.gmra.mxu0 %v285
      %v421 = vpop.f32.mrf.mxu0
      %v422 = vadd.f32 0.0, %v421
      %423 = vdwg.mxu0
      %424 = vmatpush.msra.mxu0 0.0
      %425 = vmatpush.msra.mxu0 0.0
      %426 = vmatpush.msra.mxu0 0.0
      %427 = vmatpush.msra.mxu0 0.0
      %428 = vmatpush.msra.mxu0 0.0
      %429 = vmatpush.msra.mxu0 0.0
      %430 = vmatpush.msra.mxu0 0.0
      %431 = vmatpush.msra.mxu0 0.0
      %432 = vmatpush.msra.mxu0 0.0
      %433 = vmatpush.msra.mxu0 %v304
      %434 = vmatpush.msra.mxu0 %v263
      %435 = vmatpush.msra.mxu0 %v251
      %436 = vmatpush.msra.mxu0 %v239
      %437 = vmatpush.msra.mxu0 %v227
      %438 = vmatpush.msra.mxu0 %v215
      %439 = vmatpush.msra.mxu0 %v203
      %440 = vmatmul.f32.gmra.mxu0 %v285
      %v441 = vpop.f32.mrf.mxu0
      %v442 = vadd.f32 0.0, %v441
      %443 = vdwg.mxu0
      %444 = vmatpush.msra.mxu0 0.0
      %445 = vmatpush.msra.mxu0 0.0
      %446 = vmatpush.msra.mxu0 0.0
      %447 = vmatpush.msra.mxu0 0.0
      %448 = vmatpush.msra.mxu0 0.0
      %449 = vmatpush.msra.mxu0 0.0
      %450 = vmatpush.msra.mxu0 0.0
      %451 = vmatpush.msra.mxu0 0.0
      %452 = vmatpush.msra.mxu0 0.0
      %453 = vmatpush.msra.mxu0 %v307
      %454 = vmatpush.msra.mxu0 %v264
      %455 = vmatpush.msra.mxu0 %v252
      %456 = vmatpush.msra.mxu0 %v240
      %457 = vmatpush.msra.mxu0 %v228
      %458 = vmatpush.msra.mxu0 %v216
      %459 = vmatpush.msra.mxu0 %v204
      %460 = vmatmul.f32.gmra.mxu0 %v285
      %v461 = vpop.f32.mrf.mxu0
      %v462 = vadd.f32 0.0, %v461
      %463 = vdwg.mxu0
      %464 = vmatpush.msra.mxu0 0.0
      %465 = vmatpush.msra.mxu0 0.0
      %466 = vmatpush.msra.mxu0 0.0
      %467 = vmatpush.msra.mxu0 0.0
      %468 = vmatpush.msra.mxu0 0.0
      %469 = vmatpush.msra.mxu0 0.0
      %470 = vmatpush.msra.mxu0 0.0
      %471 = vmatpush.msra.mxu0 0.0
      %472 = vmatpush.msra.mxu0 0.0
      %473 = vmatpush.msra.mxu0 %v310
      %474 = vmatpush.msra.mxu0 %v265
      %475 = vmatpush.msra.mxu0 %v253
      %476 = vmatpush.msra.mxu0 %v241
      %477 = vmatpush.msra.mxu0 %v229
      %478 = vmatpush.msra.mxu0 %v217
      %479 = vmatpush.msra.mxu0 %v205
      %480 = vmatmul.f32.gmra.mxu0 %v285
      %v481 = vpop.f32.mrf.mxu0
      %v482 = vadd.f32 0.0, %v481
      %483 = vdwg.mxu0
      %484 = vmatpush.msra.mxu0 0.0
      %485 = vmatpush.msra.mxu0 0.0
      %486 = vmatpush.msra.mxu0 0.0
      %487 = vmatpush.msra.mxu0 0.0
      %488 = vmatpush.msra.mxu0 0.0
      %489 = vmatpush.msra.mxu0 0.0
      %490 = vmatpush.msra.mxu0 0.0
      %491 = vmatpush.msra.mxu0 0.0
      %492 = vmatpush.msra.mxu0 0.0
      %493 = vmatpush.msra.mxu0 %v313
      %494 = vmatpush.msra.mxu0 %v266
      %495 = vmatpush.msra.mxu0 %v254
      %496 = vmatpush.msra.mxu0 %v242
      %497 = vmatpush.msra.mxu0 %v230
      %498 = vmatpush.msra.mxu0 %v218
      %499 = vmatpush.msra.mxu0 %v206
      %500 = vmatmul.f32.gmra.mxu0 %v285
      %v501 = vpop.f32.mrf.mxu0
      %v502 = vadd.f32 0.0, %v501
      %503 = vdwg.mxu0
      %504 = vmatpush.msra.mxu0 0.0
      %505 = vmatpush.msra.mxu0 0.0
      %506 = vmatpush.msra.mxu0 0.0
      %507 = vmatpush.msra.mxu0 0.0
      %508 = vmatpush.msra.mxu0 0.0
      %509 = vmatpush.msra.mxu0 0.0
      %510 = vmatpush.msra.mxu0 0.0
      %511 = vmatpush.msra.mxu0 0.0
      %512 = vmatpush.msra.mxu0 0.0
      %513 = vmatpush.msra.mxu0 %v316
      %514 = vmatpush.msra.mxu0 %v267
      %515 = vmatpush.msra.mxu0 %v255
      %516 = vmatpush.msra.mxu0 %v243
      %517 = vmatpush.msra.mxu0 %v231
      %518 = vmatpush.msra.mxu0 %v219
      %519 = vmatpush.msra.mxu0 %v207
      %520 = vmatmul.f32.gmra.mxu0 %v285
      %v521 = vpop.f32.mrf.mxu0
      %v522 = vadd.f32 0.0, %v521
      %523 = vdwg.mxu0
      %524 = vmatpush.msra.mxu0 0.0
      %525 = vmatpush.msra.mxu0 0.0
      %526 = vmatpush.msra.mxu0 0.0
      %527 = vmatpush.msra.mxu0 0.0
      %528 = vmatpush.msra.mxu0 0.0
      %529 = vmatpush.msra.mxu0 0.0
      %530 = vmatpush.msra.mxu0 0.0
      %531 = vmatpush.msra.mxu0 0.0
      %532 = vmatpush.msra.mxu0 0.0
      %533 = vmatpush.msra.mxu0 %v319
      %534 = vmatpush.msra.mxu0 %v268
      %535 = vmatpush.msra.mxu0 %v256
      %536 = vmatpush.msra.mxu0 %v244
      %537 = vmatpush.msra.mxu0 %v232
      %538 = vmatpush.msra.mxu0 %v220
      %539 = vmatpush.msra.mxu0 %v208
      %540 = vmatmul.f32.gmra.mxu0 %v285
      %v541 = vpop.f32.mrf.mxu0
      %v542 = vadd.f32 0.0, %v541
      %543 = vdwg.mxu0
      %544 = vmatpush.msra.mxu0 0.0
      %545 = vmatpush.msra.mxu0 0.0
      %546 = vmatpush.msra.mxu0 0.0
      %547 = vmatpush.msra.mxu0 0.0
      %548 = vmatpush.msra.mxu0 0.0
      %549 = vmatpush.msra.mxu0 0.0
      %550 = vmatpush.msra.mxu0 0.0
      %551 = vmatpush.msra.mxu0 0.0
      %552 = vmatpush.msra.mxu0 0.0
      %553 = vmatpush.msra.mxu0 %v322
      %554 = vmatpush.msra.mxu0 %v269
      %555 = vmatpush.msra.mxu0 %v257
      %556 = vmatpush.msra.mxu0 %v245
      %557 = vmatpush.msra.mxu0 %v233
      %558 = vmatpush.msra.mxu0 %v221
      %559 = vmatpush.msra.mxu0 %v209
      %560 = vmatmul.f32.gmra.mxu0 %v285
      %v561 = vpop.f32.mrf.mxu0
      %v562 = vadd.f32 0.0, %v561
      %563 = vdwg.mxu0
      %v564 = vld [vmem:[%s2] sm:$0xff]
      %566 = vset.pattern.permute.xlu0 0
      %567 = vperm.xlu0 %566, %v564
      %v568 = vpop.permute.xlu0 %567
      %v570 = vmul.f32 %v342, %v568
      %v571 = vmul.f32 %v362, %v568
      %v572 = vmul.f32 %v382, %v568
      %v573 = vmul.f32 %v402, %v568
      %v574 = vmul.f32 %v422, %v568
      %v575 = vmul.f32 %v442, %v568
      %v576 = vmul.f32 %v462, %v568
      %v577 = vmul.f32 %v482, %v568
      %v578 = vmul.f32 %v502, %v568
      %v579 = vmul.f32 %v522, %v568
      %v580 = vmul.f32 %v542, %v568
      %v581 = vmul.f32 %v562, %v568
      %v582 = vld [vmem:[%s3] sm:$0xff]
      %584 = vset.pattern.permute.xlu0 0
      %585 = vperm.xlu0 %584, %v582
      %v586 = vpop.permute.xlu0 %585
      %v588 = vadd.f32 %v570, %v586
      %v589 = vadd.f32 %v571, %v586
      %v590 = vadd.f32 %v572, %v586
      %v591 = vadd.f32 %v573, %v586
      %v592 = vadd.f32 %v574, %v586
      %v593 = vadd.f32 %v575, %v586
      %v594 = vadd.f32 %v576, %v586
      %v595 = vadd.f32 %v577, %v586
      %v596 = vadd.f32 %v578, %v586
      %v597 = vadd.f32 %v579, %v586
      %v598 = vadd.f32 %v580, %v586
      %v599 = vadd.f32 %v581, %v586
      %600 = vst [vmem:[%s197] sm:$0xff] %v588
      %601 = vst [vmem:[%s197 + $0x8] sm:$0xff] %v589
      %602 = vst [vmem:[%s197 + $0x10] sm:$0xff] %v590
      %603 = vst [vmem:[%s197 + $0x18] sm:$0xff] %v591
      %604 = vst [vmem:[%s197 + $0x20] sm:$0xff] %v592
      %605 = vst [vmem:[%s197 + $0x28] sm:$0xff] %v593
      %606 = vst [vmem:[%s197 + $0x30] sm:$0xff] %v594
      %607 = vst [vmem:[%s197 + $0x38] sm:$0xff] %v595
      %608 = vst [vmem:[%s197 + $0x40] sm:$0xff] %v596
      %609 = vst [vmem:[%s197 + $0x48] sm:$0xff] %v597
      %610 = vst [vmem:[%s197 + $0x50] sm:$0xff] %v598
      %vm611 = vcmask 179200
      %612 = vst.msk [vmem:[%s197 + $0x58] sm:$0xff] %vm611, %v599
      %p613 = scmp.lt.s32.totalorder %s15, 1
      %s614 = scalar_select %p613, %s15, 1
      %s615 = smul.addr %s614, 12
      %s616 = smul.addr %s615, 8
      %s617 = scalar_lea.vmem %s4, %s616
      // Predicated region
      $region37: #{mldg_forward.15} parent=35 // pred_check
        %p618 = pneg %p122
      $region38: #{mldg_forward.15} parent=35 // pred_check_branch
        %620 = sbr.rel (%p618) target = $region40
      $region39: #{mldg_forward.15} parent=35 // pred_region
        _
      $region40: #{mldg_forward.15} parent=35 // pred_fallthru
        _
    $region36: #{mldg_forward.15} parent=5 // pred_fallthru
      _
    %p621 = scmp.le.s32.totalorder 2, %s10
    // Predicated region
    $region41: #{mldg_forward.15} parent=5 // pred_check
      %p622 = pneg %p621
    $region42: #{mldg_forward.15} parent=5 // pred_check_branch
      %624 = sbr.rel (%p622) target = $region44
    $region43: #{mldg_forward.15} parent=5 // pred_region
      %s625 = ssub.s32 %s10, 2
      // Predicated region
      $region45: #{mldg_forward.15} parent=43 // pred_check
        %p626 = pneg %p128
      $region46: #{mldg_forward.15} parent=43 // pred_check_branch
        %628 = sbr.rel (%p626) target = $region48
      $region47: #{mldg_forward.15} parent=43 // pred_region
        %p629 = scmp.lt.s32.totalorder %s16, 1
        %s630 = scalar_select %p629, %s16, 1
        %s631 = smul.addr %s630, 12
        %s632 = smul.addr %s631, 8
        %s633 = scalar_lea.vmem %s4, %s632
      $region48: #{mldg_forward.15} parent=43 // pred_fallthru
        _
    $region44: #{mldg_forward.15} parent=5 // pred_fallthru
      _
  $region6: #{mldg_forward.15} parent=0 // loop_footer
    %s14 = sadd.s32 1, %s10
  $region7: #{mldg_forward.15} parent=0 // loop_footer_branch
    %9 = sbr.rel target = $region3
  $region8: #{mldg_forward.15} parent=0 // loop_exit
    _

// kernel: mldg_forward.16
$region0: #{mldg_forward.16}
  #allocation0 [shape = 'u32[]', space=smem, size = 0x4, offset = 0x4, fixed_abs, tag = 'smem constant byte address 0x4 - core index']
  #allocation1 [shape = 'u32[72,128]{1,0:T(1,128)}', space=vmem, size = 0x9000, scoped, tag = 'internal scratch']
  %s0 = inlined_call_operand.vmem [shape: f32[2,72,1430], index: 0, kind: input, shape index: {}]
  %s1 = inlined_call_operand.vmem [shape: f32[8,72], index: 1, kind: input, shape index: {}]
  %s2 = inlined_call_operand.vmem [shape: f32[8,1], index: 2, kind: input, shape index: {}]
  %s3 = inlined_call_operand.vmem [shape: f32[8,1], index: 3, kind: input, shape index: {}]
  %s4 = inlined_call_operand.vmem [shape: f32[2,8,1430], index: 4, kind: input, shape index: {}]
  %s5 = inlined_call_operand.vmem [shape: f32[2,8,1430], index: 5, kind: output, shape index: {}]
  %s6 = sld [smem:[#allocation0]]
  $region53: #{mldg_forward.16} parent=0
    _
  %s8 = ssub.s32 1, %s6
  %s9 = scalar_select 0, %s8, %s6
  loop: start=0, step=1, limit=4
  $region2: #{mldg_forward.16} parent=0 // loop_pre_header
    _
  $region3: #{mldg_forward.16} parent=0 // loop_header
    %s11 = sphi 0, %s15
    %p12 = scmp.ge.s32.totalorder %s11, 4
    %s21 = sphi 0, %s23
    %s24 = sphi 0, %s21
    %s25 = sphi 0, %s24
    %s41 = sphi 0, %s25
    %s45 = sphi 0, %s45
    %s47 = sphi 0, %s45
    %s48 = sphi 0, %s47
    %s62 = sphi 0, %s48
    %s66 = sphi 0, %s66
    %s68 = sphi 0, %s66
    %s69 = sphi 0, %s68
    %s83 = sphi 0, %s69
    %s87 = sphi 0, %s87
    %s89 = sphi 0, %s87
    %s90 = sphi 0, %s89
    %s104 = sphi 0, %s90
    %s110 = sphi 0, %s112
    %s113 = sphi 0, %s110
    %s114 = sphi 0, %s113
    %s130 = sphi 0, %s114
    %s136 = sphi 0, %s138
    %s139 = sphi 0, %s136
    %s140 = sphi 0, %s139
    %s156 = sphi 0, %s140
  $region4: #{mldg_forward.16} parent=0 // loop_header_branch
    %14 = sbr.rel (%p12) target = $region8
  $region5: #{mldg_forward.16} parent=0 // loop_body
    %s16 = ssub.s32 %s11, 1
    %s17 = ssub.s32 %s11, 2
    %s18 = sadd.s32 %s11, 1
    %s19 = ssub.s32 %s11, %s18
    %p20 = scmp.eq.s32.totalorder %s19, 0
    %s22 = sadd.s32 %s21, 1
    %s23 = scalar_select %p20, %s21, %s22
    %p26 = pneg %p20
    %p27 = scmp.eq.s32.totalorder %s11, 1
    %p28 = por %p26, %p27
    %p29 = scmp.ne.s32.totalorder %s21, %s24
    %p30 = scmp.eq.s32.totalorder %s11, 0
    %p31 = por %p29, %p30
    %p32 = scmp.ne.s32.totalorder %s21, %s24
    %p33 = scmp.eq.s32.totalorder %s16, 1
    %p34 = por %p32, %p33
    %p35 = scmp.ne.s32.totalorder %s24, %s25
    %p36 = scmp.eq.s32.totalorder %s16, 0
    %p37 = por %p35, %p36
    %p38 = scmp.ne.s32.totalorder %s24, %s25
    %p39 = scmp.eq.s32.totalorder %s17, 1
    %p40 = por %p38, %p39
    %p42 = scmp.ne.s32.totalorder %s25, %s41
    %p43 = scmp.eq.s32.totalorder %s17, 0
    %p44 = por %p42, %p43
    %s46 = sadd.s32 %s45, 1
    %p49 = scmp.eq.s32.totalorder %s11, 1
    %p50 = scmp.ne.s32.totalorder %s45, %s47
    %p51 = scmp.eq.s32.totalorder %s11, 0
    %p52 = por %p50, %p51
    %p53 = scmp.ne.s32.totalorder %s45, %s47
    %p54 = scmp.eq.s32.totalorder %s16, 1
    %p55 = por %p53, %p54
    %p56 = scmp.ne.s32.totalorder %s47, %s48
    %p57 = scmp.eq.s32.totalorder %s16, 0
    %p58 = por %p56, %p57
    %p59 = scmp.ne.s32.totalorder %s47, %s48
    %p60 = scmp.eq.s32.totalorder %s17, 1
    %p61 = por %p59, %p60
    %p63 = scmp.ne.s32.totalorder %s48, %s62
    %p64 = scmp.eq.s32.totalorder %s17, 0
    %p65 = por %p63, %p64
    %s67 = sadd.s32 %s66, 1
    %p70 = scmp.eq.s32.totalorder %s11, 1
    %p71 = scmp.ne.s32.totalorder %s66, %s68
    %p72 = scmp.eq.s32.totalorder %s11, 0
    %p73 = por %p71, %p72
    %p74 = scmp.ne.s32.totalorder %s66, %s68
    %p75 = scmp.eq.s32.totalorder %s16, 1
    %p76 = por %p74, %p75
    %p77 = scmp.ne.s32.totalorder %s68, %s69
    %p78 = scmp.eq.s32.totalorder %s16, 0
    %p79 = por %p77, %p78
    %p80 = scmp.ne.s32.totalorder %s68, %s69
    %p81 = scmp.eq.s32.totalorder %s17, 1
    %p82 = por %p80, %p81
    %p84 = scmp.ne.s32.totalorder %s69, %s83
    %p85 = scmp.eq.s32.totalorder %s17, 0
    %p86 = por %p84, %p85
    %s88 = sadd.s32 %s87, 1
    %p91 = scmp.eq.s32.totalorder %s11, 1
    %p92 = scmp.ne.s32.totalorder %s87, %s89
    %p93 = scmp.eq.s32.totalorder %s11, 0
    %p94 = por %p92, %p93
    %p95 = scmp.ne.s32.totalorder %s87, %s89
    %p96 = scmp.eq.s32.totalorder %s16, 1
    %p97 = por %p95, %p96
    %p98 = scmp.ne.s32.totalorder %s89, %s90
    %p99 = scmp.eq.s32.totalorder %s16, 0
    %p100 = por %p98, %p99
    %p101 = scmp.ne.s32.totalorder %s89, %s90
    %p102 = scmp.eq.s32.totalorder %s17, 1
    %p103 = por %p101, %p102
    %p105 = scmp.ne.s32.totalorder %s90, %s104
    %p106 = scmp.eq.s32.totalorder %s17, 0
    %p107 = por %p105, %p106
    %s108 = ssub.s32 %s11, %s18
    %p109 = scmp.eq.s32.totalorder %s108, 0
    %s111 = sadd.s32 %s110, 1
    %s112 = scalar_select %p109, %s110, %s111
    %p115 = pneg %p109
    %p116 = scmp.eq.s32.totalorder %s11, 1
    %p117 = por %p115, %p116
    %p118 = scmp.ne.s32.totalorder %s110, %s113
    %p119 = scmp.eq.s32.totalorder %s11, 0
    %p120 = por %p118, %p119
    %p121 = scmp.ne.s32.totalorder %s110, %s113
    %p122 = scmp.eq.s32.totalorder %s16, 1
    %p123 = por %p121, %p122
    %p124 = scmp.ne.s32.totalorder %s113, %s114
    %p125 = scmp.eq.s32.totalorder %s16, 0
    %p126 = por %p124, %p125
    %p127 = scmp.ne.s32.totalorder %s113, %s114
    %p128 = scmp.eq.s32.totalorder %s17, 1
    %p129 = por %p127, %p128
    %p131 = scmp.ne.s32.totalorder %s114, %s130
    %p132 = scmp.eq.s32.totalorder %s17, 0
    %p133 = por %p131, %p132
    %s134 = ssub.s32 %s11, %s18
    %p135 = scmp.eq.s32.totalorder %s134, 0
    %s137 = sadd.s32 %s136, 1
    %s138 = scalar_select %p135, %s136, %s137
    %p141 = pneg %p135
    %p142 = scmp.eq.s32.totalorder %s11, 1
    %p143 = por %p141, %p142
    %p144 = scmp.ne.s32.totalorder %s136, %s139
    %p145 = scmp.eq.s32.totalorder %s11, 0
    %p146 = por %p144, %p145
    %p147 = scmp.ne.s32.totalorder %s136, %s139
    %p148 = scmp.eq.s32.totalorder %s16, 1
    %p149 = por %p147, %p148
    %p150 = scmp.ne.s32.totalorder %s139, %s140
    %p151 = scmp.eq.s32.totalorder %s16, 0
    %p152 = por %p150, %p151
    %p153 = scmp.ne.s32.totalorder %s139, %s140
    %p154 = scmp.eq.s32.totalorder %s17, 1
    %p155 = por %p153, %p154
    %p157 = scmp.ne.s32.totalorder %s140, %s156
    %p158 = scmp.eq.s32.totalorder %s17, 0
    %p159 = por %p157, %p158
    %p160 = scmp.le.s32.totalorder 1, %s11
    %p161 = scmp.lt.s32.totalorder %s11, 3
    %p162 = pnand %p160, %p161
    %p163 = pneg %p162
    // Predicated region
    $region9: #{mldg_forward.16} parent=5 // pred_check
      _
    $region10: #{mldg_forward.16} parent=5 // pred_check_branch
      %165 = sbr.rel (%p162) target = $region12
    $region11: #{mldg_forward.16} parent=5 // pred_region
      %s166 = ssub.s32 %s11, 1
      // Predicated region
      $region13: #{mldg_forward.16} parent=11 // pred_check
        %p167 = pneg %p58
      $region14: #{mldg_forward.16} parent=11 // pred_check_branch
        %169 = sbr.rel (%p167) target = $region16
      $region15: #{mldg_forward.16} parent=11 // pred_region
        _
      $region16: #{mldg_forward.16} parent=11 // pred_fallthru
        _
      // Predicated region
      $region17: #{mldg_forward.16} parent=11 // pred_check
        %p170 = pneg %p79
      $region18: #{mldg_forward.16} parent=11 // pred_check_branch
        %172 = sbr.rel (%p170) target = $region20
      $region19: #{mldg_forward.16} parent=11 // pred_region
        _
      $region20: #{mldg_forward.16} parent=11 // pred_fallthru
        _
      // Predicated region
      $region21: #{mldg_forward.16} parent=11 // pred_check
        %p173 = pneg %p100
      $region22: #{mldg_forward.16} parent=11 // pred_check_branch
        %175 = sbr.rel (%p173) target = $region24
      $region23: #{mldg_forward.16} parent=11 // pred_region
        _
      $region24: #{mldg_forward.16} parent=11 // pred_fallthru
        _
    $region12: #{mldg_forward.16} parent=5 // pred_fallthru
      _
    %p176 = scmp.lt.s32.totalorder %s11, 2
    // Predicated region
    $region25: #{mldg_forward.16} parent=5 // pred_check
      %p177 = pneg %p176
    $region26: #{mldg_forward.16} parent=5 // pred_check_branch
      %179 = sbr.rel (%p177) target = $region28
    $region27: #{mldg_forward.16} parent=5 // pred_region
      // Predicated region
      $region29: #{mldg_forward.16} parent=27 // pred_check
        %p180 = pneg %p31
      $region30: #{mldg_forward.16} parent=27 // pred_check_branch
        %182 = sbr.rel (%p180) target = $region32
      $region31: #{mldg_forward.16} parent=27 // pred_region
        %p183 = scmp.lt.s32.totalorder %s11, 1
        %s184 = scalar_select %p183, %s11, 1
        %s185 = smul.addr %s184, 108
        %s186 = smul.addr %s185, 8
        %s187 = scalar_lea.vmem %s0, %s186
      $region32: #{mldg_forward.16} parent=27 // pred_fallthru
        _
      // Predicated region
      $region33: #{mldg_forward.16} parent=27 // pred_check
        %p188 = pneg %p120
      $region34: #{mldg_forward.16} parent=27 // pred_check_branch
        %190 = sbr.rel (%p188) target = $region36
      $region35: #{mldg_forward.16} parent=27 // pred_region
        %p191 = scmp.lt.s32.totalorder %s11, 1
        %s192 = scalar_select %p191, %s11, 1
        %s193 = smul.addr %s192, 12
        %s194 = smul.addr %s193, 8
        %s195 = scalar_lea.vmem %s4, %s194
      $region36: #{mldg_forward.16} parent=27 // pred_fallthru
        _
    $region28: #{mldg_forward.16} parent=5 // pred_fallthru
      _
    %p196 = scmp.le.s32.totalorder 1, %s11
    %p197 = scmp.lt.s32.totalorder %s11, 3
    %p198 = pnand %p196, %p197
    %p199 = pneg %p198
    // Predicated region
    $region37: #{mldg_forward.16} parent=5 // pred_check
      _
    $region38: #{mldg_forward.16} parent=5 // pred_check_branch
      %201 = sbr.rel (%p198) target = $region40
    $region39: #{mldg_forward.16} parent=5 // pred_region
      %s202 = ssub.s32 %s11, 1
      %p203 = scmp.lt.s32.totalorder %s16, 1
      %s204 = scalar_select %p203, %s16, 1
      %s205 = smul.addr %s204, 108
      %s206 = smul.addr %s205, 8
      %s207 = scalar_lea.vmem %s0, %s206
      %p208 = pneg %p37
      %p209 = pneg %p34
      %p210 = pneg %p58
      %p211 = pneg %p55
      %p212 = pneg %p79
      %p213 = pneg %p76
      %p214 = pneg %p100
      %p215 = pneg %p97
      %p216 = scmp.lt.s32.totalorder %s16, 1
      %s217 = scalar_select %p216, %s16, 1
      %s218 = smul.addr %s217, 12
      %s219 = smul.addr %s218, 8
      %s220 = scalar_lea.vmem %s4, %s219
      %p221 = pneg %p126
      %p222 = pneg %p123
      %p223 = pneg %p152
      %p224 = pneg %p149
      %p225 = scmp.lt.s32.totalorder %s16, 1
      %s226 = scalar_select %p225, %s16, 1
      %s227 = smul.addr %s226, 12
      %s228 = smul.addr %s227, 8
      %s229 = scalar_lea.vmem %s5, %s228
      %p230 = scmp.lt.s32.totalorder %s16, 1
      %s231 = scalar_select %p230, %s16, 1
      %s232 = smul.addr %s231, 108
      %s233 = smul.addr %s232, 8
      %s234 = scalar_lea.vmem %s0, %s233
      %p235 = scmp.lt.s32.totalorder %s16, 1
      %s236 = scalar_select %p235, %s16, 1
      %s237 = smul.addr %s236, 12
      %s238 = smul.addr %s237, 8
      %s239 = scalar_lea.vmem %s4, %s238
      %p240 = scmp.lt.s32.totalorder %s16, 1
      %s241 = scalar_select %p240, %s16, 1
      %s242 = smul.addr %s241, 12
      %s243 = smul.addr %s242, 8
      %s244 = scalar_lea.vmem %s5, %s243
      %v245 = vld [vmem:[%s234] sm:$0xff]
      %v246 = vld [vmem:[%s234 + $0x8] sm:$0xff]
      %v247 = vld [vmem:[%s234 + $0x10] sm:$0xff]
      %v248 = vld [vmem:[%s234 + $0x18] sm:$0xff]
      %v249 = vld [vmem:[%s234 + $0x20] sm:$0xff]
      %v250 = vld [vmem:[%s234 + $0x28] sm:$0xff]
      %v251 = vld [vmem:[%s234 + $0x30] sm:$0xff]
      %v252 = vld [vmem:[%s234 + $0x38] sm:$0xff]
      %v253 = vld [vmem:[%s234 + $0x40] sm:$0xff]
      %v254 = vld [vmem:[%s234 + $0x48] sm:$0xff]
      %v255 = vld [vmem:[%s234 + $0x50] sm:$0xff]
      %v256 = vld [vmem:[%s234 + $0x58] sm:$0xff]
      %v257 = vld [vmem:[%s234 + $0x60] sm:$0xff]
      %v258 = vld [vmem:[%s234 + $0x68] sm:$0xff]
      %v259 = vld [vmem:[%s234 + $0x70] sm:$0xff]
      %v260 = vld [vmem:[%s234 + $0x78] sm:$0xff]
      %v261 = vld [vmem:[%s234 + $0x80] sm:$0xff]
      %v262 = vld [vmem:[%s234 + $0x88] sm:$0xff]
      %v263 = vld [vmem:[%s234 + $0x90] sm:$0xff]
      %v264 = vld [vmem:[%s234 + $0x98] sm:$0xff]
      %v265 = vld [vmem:[%s234 + $0xa0] sm:$0xff]
      %v266 = vld [vmem:[%s234 + $0xa8] sm:$0xff]
      %v267 = vld [vmem:[%s234 + $0xb0] sm:$0xff]
      %v268 = vld [vmem:[%s234 + $0xb8] sm:$0xff]
      %v269 = vld [vmem:[%s234 + $0xc0] sm:$0xff]
      %v270 = vld [vmem:[%s234 + $0xc8] sm:$0xff]
      %v271 = vld [vmem:[%s234 + $0xd0] sm:$0xff]
      %v272 = vld [vmem:[%s234 + $0xd8] sm:$0xff]
      %v273 = vld [vmem:[%s234 + $0xe0] sm:$0xff]
      %v274 = vld [vmem:[%s234 + $0xe8] sm:$0xff]
      %v275 = vld [vmem:[%s234 + $0xf0] sm:$0xff]
      %v276 = vld [vmem:[%s234 + $0xf8] sm:$0xff]
      %v277 = vld [vmem:[%s234 + $0x100] sm:$0xff]
      %v278 = vld [vmem:[%s234 + $0x108] sm:$0xff]
      %v279 = vld [vmem:[%s234 + $0x110] sm:$0xff]
      %v280 = vld [vmem:[%s234 + $0x118] sm:$0xff]
      %v281 = vld [vmem:[%s234 + $0x120] sm:$0xff]
      %v282 = vld [vmem:[%s234 + $0x128] sm:$0xff]
      %v283 = vld [vmem:[%s234 + $0x130] sm:$0xff]
      %v284 = vld [vmem:[%s234 + $0x138] sm:$0xff]
      %v285 = vld [vmem:[%s234 + $0x140] sm:$0xff]
      %v286 = vld [vmem:[%s234 + $0x148] sm:$0xff]
      %v287 = vld [vmem:[%s234 + $0x150] sm:$0xff]
      %v288 = vld [vmem:[%s234 + $0x158] sm:$0xff]
      %v289 = vld [vmem:[%s234 + $0x160] sm:$0xff]
      %v290 = vld [vmem:[%s234 + $0x168] sm:$0xff]
      %v291 = vld [vmem:[%s234 + $0x170] sm:$0xff]
      %v292 = vld [vmem:[%s234 + $0x178] sm:$0xff]
      %v293 = vld [vmem:[%s234 + $0x180] sm:$0xff]
      %v294 = vld [vmem:[%s234 + $0x188] sm:$0xff]
      %v295 = vld [vmem:[%s234 + $0x190] sm:$0xff]
      %v296 = vld [vmem:[%s234 + $0x198] sm:$0xff]
      %v297 = vld [vmem:[%s234 + $0x1a0] sm:$0xff]
      %v298 = vld [vmem:[%s234 + $0x1a8] sm:$0xff]
      %v299 = vld [vmem:[%s234 + $0x1b0] sm:$0xff]
      %v300 = vld [vmem:[%s234 + $0x1b8] sm:$0xff]
      %v301 = vld [vmem:[%s234 + $0x1c0] sm:$0xff]
      %v302 = vld [vmem:[%s234 + $0x1c8] sm:$0xff]
      %v303 = vld [vmem:[%s234 + $0x1d0] sm:$0xff]
      %v304 = vld [vmem:[%s234 + $0x1d8] sm:$0xff]
      %v305 = vld [vmem:[%s234 + $0x1e0] sm:$0xff]
      %v306 = vld [vmem:[%s234 + $0x1e8] sm:$0xff]
      %v307 = vld [vmem:[%s234 + $0x1f0] sm:$0xff]
      %v308 = vld [vmem:[%s234 + $0x1f8] sm:$0xff]
      %v309 = vld [vmem:[%s234 + $0x200] sm:$0xff]
      %v310 = vld [vmem:[%s234 + $0x208] sm:$0xff]
      %v311 = vld [vmem:[%s234 + $0x210] sm:$0xff]
      %v312 = vld [vmem:[%s234 + $0x218] sm:$0xff]
      %v313 = vld [vmem:[%s234 + $0x220] sm:$0xff]
      %v314 = vld [vmem:[%s234 + $0x228] sm:$0xff]
      %v315 = vld [vmem:[%s234 + $0x230] sm:$0xff]
      %v316 = vld [vmem:[%s234 + $0x238] sm:$0xff]
      %v317 = vld [vmem:[%s234 + $0x240] sm:$0xff]
      %v318 = vld [vmem:[%s234 + $0x248] sm:$0xff]
      %v319 = vld [vmem:[%s234 + $0x250] sm:$0xff]
      %v320 = vld [vmem:[%s234 + $0x258] sm:$0xff]
      %v321 = vld [vmem:[%s234 + $0x260] sm:$0xff]
      %v322 = vld [vmem:[%s234 + $0x268] sm:$0xff]
      %v323 = vld [vmem:[%s234 + $0x270] sm:$0xff]
      %v324 = vld [vmem:[%s234 + $0x278] sm:$0xff]
      %v325 = vld [vmem:[%s234 + $0x280] sm:$0xff]
      %v326 = vld [vmem:[%s234 + $0x288] sm:$0xff]
      %v327 = vld [vmem:[%s234 + $0x290] sm:$0xff]
      %v328 = vld [vmem:[%s234 + $0x298] sm:$0xff]
      %v329 = vld [vmem:[%s234 + $0x2a0] sm:$0xff]
      %v330 = vld [vmem:[%s234 + $0x2a8] sm:$0xff]
      %v331 = vld [vmem:[%s234 + $0x2b0] sm:$0xff]
      %v332 = vld [vmem:[%s234 + $0x2b8] sm:$0xff]
      %v333 = vld [vmem:[%s234 + $0x2c0] sm:$0xff]
      %v334 = vld [vmem:[%s234 + $0x2c8] sm:$0xff]
      %v335 = vld [vmem:[%s234 + $0x2d0] sm:$0xff]
      %v336 = vld [vmem:[%s234 + $0x2d8] sm:$0xff]
      %v337 = vld [vmem:[%s234 + $0x2e0] sm:$0xff]
      %v338 = vld [vmem:[%s234 + $0x2e8] sm:$0xff]
      %v339 = vld [vmem:[%s234 + $0x2f0] sm:$0xff]
      %v340 = vld [vmem:[%s234 + $0x2f8] sm:$0xff]
      %v341 = vld [vmem:[%s234 + $0x300] sm:$0xff]
      %v342 = vld [vmem:[%s234 + $0x308] sm:$0xff]
      %v343 = vld [vmem:[%s234 + $0x310] sm:$0xff]
      %v344 = vld [vmem:[%s234 + $0x318] sm:$0xff]
      %v345 = vld [vmem:[%s234 + $0x320] sm:$0xff]
      %v346 = vld [vmem:[%s234 + $0x328] sm:$0xff]
      %v347 = vld [vmem:[%s234 + $0x330] sm:$0xff]
      %v348 = vld [vmem:[%s234 + $0x338] sm:$0xff]
      %v349 = vld [vmem:[%s234 + $0x340] sm:$0xff]
      %v350 = vld [vmem:[%s234 + $0x348] sm:$0xff]
      %v351 = vld [vmem:[%s234 + $0x350] sm:$0xff]
      %v352 = vld [vmem:[%s234 + $0x358] sm:$0xff]
      %v353 = vld [vmem:[%s1] sm:$0xff]
      %vm354 = vcmask 588800
      %v356 = vsel %vm354, %v353, 0
      %358 = vmatpush.msra.mxu0 0.0
      %359 = vmatpush.msra.mxu0 0.0
      %360 = vmatpush.msra.mxu0 0.0
      %361 = vmatpush.msra.mxu0 0.0
      %362 = vmatpush.msra.mxu0 0.0
      %363 = vmatpush.msra.mxu0 0.0
      %364 = vmatpush.msra.mxu0 0.0
      %365 = vmatpush.msra.mxu0 %v341
      %366 = vmatpush.msra.mxu0 %v329
      %367 = vmatpush.msra.mxu0 %v317
      %368 = vmatpush.msra.mxu0 %v305
      %369 = vmatpush.msra.mxu0 %v293
      %370 = vmatpush.msra.mxu0 %v281
      %371 = vmatpush.msra.mxu0 %v269
      %372 = vmatpush.msra.mxu0 %v257
      %373 = vmatpush.msra.mxu0 %v245
      %374 = vmatmul.f32.gmra.mxu0 %v356
      %v375 = vpop.f32.mrf.mxu0
      %v376 = vadd.f32 0.0, %v375
      %377 = vdwg.mxu0
      %378 = vmatpush.msra.mxu0 0.0
      %379 = vmatpush.msra.mxu0 0.0
      %380 = vmatpush.msra.mxu0 0.0
      %381 = vmatpush.msra.mxu0 0.0
      %382 = vmatpush.msra.mxu0 0.0
      %383 = vmatpush.msra.mxu0 0.0
      %384 = vmatpush.msra.mxu0 0.0
      %385 = vmatpush.msra.mxu0 %v342
      %386 = vmatpush.msra.mxu0 %v330
      %387 = vmatpush.msra.mxu0 %v318
      %388 = vmatpush.msra.mxu0 %v306
      %389 = vmatpush.msra.mxu0 %v294
      %390 = vmatpush.msra.mxu0 %v282
      %391 = vmatpush.msra.mxu0 %v270
      %392 = vmatpush.msra.mxu0 %v258
      %393 = vmatpush.msra.mxu0 %v246
      %394 = vmatmul.f32.gmra.mxu0 %v356
      %v395 = vpop.f32.mrf.mxu0
      %v396 = vadd.f32 0.0, %v395
      %397 = vdwg.mxu0
      %398 = vmatpush.msra.mxu0 0.0
      %399 = vmatpush.msra.mxu0 0.0
      %400 = vmatpush.msra.mxu0 0.0
      %401 = vmatpush.msra.mxu0 0.0
      %402 = vmatpush.msra.mxu0 0.0
      %403 = vmatpush.msra.mxu0 0.0
      %404 = vmatpush.msra.mxu0 0.0
      %405 = vmatpush.msra.mxu0 %v343
      %406 = vmatpush.msra.mxu0 %v331
      %407 = vmatpush.msra.mxu0 %v319
      %408 = vmatpush.msra.mxu0 %v307
      %409 = vmatpush.msra.mxu0 %v295
      %410 = vmatpush.msra.mxu0 %v283
      %411 = vmatpush.msra.mxu0 %v271
      %412 = vmatpush.msra.mxu0 %v259
      %413 = vmatpush.msra.mxu0 %v247
      %414 = vmatmul.f32.gmra.mxu0 %v356
      %v415 = vpop.f32.mrf.mxu0
      %v416 = vadd.f32 0.0, %v415
      %417 = vdwg.mxu0
      %418 = vmatpush.msra.mxu0 0.0
      %419 = vmatpush.msra.mxu0 0.0
      %420 = vmatpush.msra.mxu0 0.0
      %421 = vmatpush.msra.mxu0 0.0
      %422 = vmatpush.msra.mxu0 0.0
      %423 = vmatpush.msra.mxu0 0.0
      %424 = vmatpush.msra.mxu0 0.0
      %425 = vmatpush.msra.mxu0 %v344
      %426 = vmatpush.msra.mxu0 %v332
      %427 = vmatpush.msra.mxu0 %v320
      %428 = vmatpush.msra.mxu0 %v308
      %429 = vmatpush.msra.mxu0 %v296
      %430 = vmatpush.msra.mxu0 %v284
      %431 = vmatpush.msra.mxu0 %v272
      %432 = vmatpush.msra.mxu0 %v260
      %433 = vmatpush.msra.mxu0 %v248
      %434 = vmatmul.f32.gmra.mxu0 %v356
      %v435 = vpop.f32.mrf.mxu0
      %v436 = vadd.f32 0.0, %v435
      %437 = vdwg.mxu0
      %438 = vmatpush.msra.mxu0 0.0
      %439 = vmatpush.msra.mxu0 0.0
      %440 = vmatpush.msra.mxu0 0.0
      %441 = vmatpush.msra.mxu0 0.0
      %442 = vmatpush.msra.mxu0 0.0
      %443 = vmatpush.msra.mxu0 0.0
      %444 = vmatpush.msra.mxu0 0.0
      %445 = vmatpush.msra.mxu0 %v345
      %446 = vmatpush.msra.mxu0 %v333
      %447 = vmatpush.msra.mxu0 %v321
      %448 = vmatpush.msra.mxu0 %v309
      %449 = vmatpush.msra.mxu0 %v297
      %450 = vmatpush.msra.mxu0 %v285
      %451 = vmatpush.msra.mxu0 %v273
      %452 = vmatpush.msra.mxu0 %v261
      %453 = vmatpush.msra.mxu0 %v249
      %454 = vmatmul.f32.gmra.mxu0 %v356
      %v455 = vpop.f32.mrf.mxu0
      %v456 = vadd.f32 0.0, %v455
      %457 = vdwg.mxu0
      %458 = vmatpush.msra.mxu0 0.0
      %459 = vmatpush.msra.mxu0 0.0
      %460 = vmatpush.msra.mxu0 0.0
      %461 = vmatpush.msra.mxu0 0.0
      %462 = vmatpush.msra.mxu0 0.0
      %463 = vmatpush.msra.mxu0 0.0
      %464 = vmatpush.msra.mxu0 0.0
      %465 = vmatpush.msra.mxu0 %v346
      %466 = vmatpush.msra.mxu0 %v334
      %467 = vmatpush.msra.mxu0 %v322
      %468 = vmatpush.msra.mxu0 %v310
      %469 = vmatpush.msra.mxu0 %v298
      %470 = vmatpush.msra.mxu0 %v286
      %471 = vmatpush.msra.mxu0 %v274
      %472 = vmatpush.msra.mxu0 %v262
      %473 = vmatpush.msra.mxu0 %v250
      %474 = vmatmul.f32.gmra.mxu0 %v356
      %v475 = vpop.f32.mrf.mxu0
      %v476 = vadd.f32 0.0, %v475
      %477 = vdwg.mxu0
      %478 = vmatpush.msra.mxu0 0.0
      %479 = vmatpush.msra.mxu0 0.0
      %480 = vmatpush.msra.mxu0 0.0
      %481 = vmatpush.msra.mxu0 0.0
      %482 = vmatpush.msra.mxu0 0.0
      %483 = vmatpush.msra.mxu0 0.0
      %484 = vmatpush.msra.mxu0 0.0
      %485 = vmatpush.msra.mxu0 %v347
      %486 = vmatpush.msra.mxu0 %v335
      %487 = vmatpush.msra.mxu0 %v323
      %488 = vmatpush.msra.mxu0 %v311
      %489 = vmatpush.msra.mxu0 %v299
      %490 = vmatpush.msra.mxu0 %v287
      %491 = vmatpush.msra.mxu0 %v275
      %492 = vmatpush.msra.mxu0 %v263
      %493 = vmatpush.msra.mxu0 %v251
      %494 = vmatmul.f32.gmra.mxu0 %v356
      %v495 = vpop.f32.mrf.mxu0
      %v496 = vadd.f32 0.0, %v495
      %497 = vdwg.mxu0
      %498 = vmatpush.msra.mxu0 0.0
      %499 = vmatpush.msra.mxu0 0.0
      %500 = vmatpush.msra.mxu0 0.0
      %501 = vmatpush.msra.mxu0 0.0
      %502 = vmatpush.msra.mxu0 0.0
      %503 = vmatpush.msra.mxu0 0.0
      %504 = vmatpush.msra.mxu0 0.0
      %505 = vmatpush.msra.mxu0 %v348
      %506 = vmatpush.msra.mxu0 %v336
      %507 = vmatpush.msra.mxu0 %v324
      %508 = vmatpush.msra.mxu0 %v312
      %509 = vmatpush.msra.mxu0 %v300
      %510 = vmatpush.msra.mxu0 %v288
      %511 = vmatpush.msra.mxu0 %v276
      %512 = vmatpush.msra.mxu0 %v264
      %513 = vmatpush.msra.mxu0 %v252
      %514 = vmatmul.f32.gmra.mxu0 %v356
      %v515 = vpop.f32.mrf.mxu0
      %v516 = vadd.f32 0.0, %v515
      %517 = vdwg.mxu0
      %518 = vmatpush.msra.mxu0 0.0
      %519 = vmatpush.msra.mxu0 0.0
      %520 = vmatpush.msra.mxu0 0.0
      %521 = vmatpush.msra.mxu0 0.0
      %522 = vmatpush.msra.mxu0 0.0
      %523 = vmatpush.msra.mxu0 0.0
      %524 = vmatpush.msra.mxu0 0.0
      %525 = vmatpush.msra.mxu0 %v349
      %526 = vmatpush.msra.mxu0 %v337
      %527 = vmatpush.msra.mxu0 %v325
      %528 = vmatpush.msra.mxu0 %v313
      %529 = vmatpush.msra.mxu0 %v301
      %530 = vmatpush.msra.mxu0 %v289
      %531 = vmatpush.msra.mxu0 %v277
      %532 = vmatpush.msra.mxu0 %v265
      %533 = vmatpush.msra.mxu0 %v253
      %534 = vmatmul.f32.gmra.mxu0 %v356
      %v535 = vpop.f32.mrf.mxu0
      %v536 = vadd.f32 0.0, %v535
      %537 = vdwg.mxu0
      %538 = vmatpush.msra.mxu0 0.0
      %539 = vmatpush.msra.mxu0 0.0
      %540 = vmatpush.msra.mxu0 0.0
      %541 = vmatpush.msra.mxu0 0.0
      %542 = vmatpush.msra.mxu0 0.0
      %543 = vmatpush.msra.mxu0 0.0
      %544 = vmatpush.msra.mxu0 0.0
      %545 = vmatpush.msra.mxu0 %v350
      %546 = vmatpush.msra.mxu0 %v338
      %547 = vmatpush.msra.mxu0 %v326
      %548 = vmatpush.msra.mxu0 %v314
      %549 = vmatpush.msra.mxu0 %v302
      %550 = vmatpush.msra.mxu0 %v290
      %551 = vmatpush.msra.mxu0 %v278
      %552 = vmatpush.msra.mxu0 %v266
      %553 = vmatpush.msra.mxu0 %v254
      %554 = vmatmul.f32.gmra.mxu0 %v356
      %v555 = vpop.f32.mrf.mxu0
      %v556 = vadd.f32 0.0, %v555
      %557 = vdwg.mxu0
      %558 = vmatpush.msra.mxu0 0.0
      %559 = vmatpush.msra.mxu0 0.0
      %560 = vmatpush.msra.mxu0 0.0
      %561 = vmatpush.msra.mxu0 0.0
      %562 = vmatpush.msra.mxu0 0.0
      %563 = vmatpush.msra.mxu0 0.0
      %564 = vmatpush.msra.mxu0 0.0
      %565 = vmatpush.msra.mxu0 %v351
      %566 = vmatpush.msra.mxu0 %v339
      %567 = vmatpush.msra.mxu0 %v327
      %568 = vmatpush.msra.mxu0 %v315
      %569 = vmatpush.msra.mxu0 %v303
      %570 = vmatpush.msra.mxu0 %v291
      %571 = vmatpush.msra.mxu0 %v279
      %572 = vmatpush.msra.mxu0 %v267
      %573 = vmatpush.msra.mxu0 %v255
      %574 = vmatmul.f32.gmra.mxu0 %v356
      %v575 = vpop.f32.mrf.mxu0
      %v576 = vadd.f32 0.0, %v575
      %577 = vdwg.mxu0
      %578 = vmatpush.msra.mxu0 0.0
      %579 = vmatpush.msra.mxu0 0.0
      %580 = vmatpush.msra.mxu0 0.0
      %581 = vmatpush.msra.mxu0 0.0
      %582 = vmatpush.msra.mxu0 0.0
      %583 = vmatpush.msra.mxu0 0.0
      %584 = vmatpush.msra.mxu0 0.0
      %585 = vmatpush.msra.mxu0 %v352
      %586 = vmatpush.msra.mxu0 %v340
      %587 = vmatpush.msra.mxu0 %v328
      %588 = vmatpush.msra.mxu0 %v316
      %589 = vmatpush.msra.mxu0 %v304
      %590 = vmatpush.msra.mxu0 %v292
      %591 = vmatpush.msra.mxu0 %v280
      %592 = vmatpush.msra.mxu0 %v268
      %593 = vmatpush.msra.mxu0 %v256
      %594 = vmatmul.f32.gmra.mxu0 %v356
      %v595 = vpop.f32.mrf.mxu0
      %v596 = vadd.f32 0.0, %v595
      %597 = vdwg.mxu0
      %v598 = vld [vmem:[%s2] sm:$0xff]
      %600 = vset.pattern.permute.xlu0 0
      %601 = vperm.xlu0 %600, %v598
      %v602 = vpop.permute.xlu0 %601
      %v604 = vmul.f32 %v376, %v602
      %v605 = vmul.f32 %v396, %v602
      %v606 = vmul.f32 %v416, %v602
      %v607 = vmul.f32 %v436, %v602
      %v608 = vmul.f32 %v456, %v602
      %v609 = vmul.f32 %v476, %v602
      %v610 = vmul.f32 %v496, %v602
      %v611 = vmul.f32 %v516, %v602
      %v612 = vmul.f32 %v536, %v602
      %v613 = vmul.f32 %v556, %v602
      %v614 = vmul.f32 %v576, %v602
      %v615 = vmul.f32 %v596, %v602
      %v616 = vld [vmem:[%s3] sm:$0xff]
      %618 = vset.pattern.permute.xlu0 0
      %619 = vperm.xlu0 %618, %v616
      %v620 = vpop.permute.xlu0 %619
      %v622 = vadd.f32 %v604, %v620
      %v623 = vadd.f32 %v605, %v620
      %v624 = vadd.f32 %v606, %v620
      %v625 = vadd.f32 %v607, %v620
      %v626 = vadd.f32 %v608, %v620
      %v627 = vadd.f32 %v609, %v620
      %v628 = vadd.f32 %v610, %v620
      %v629 = vadd.f32 %v611, %v620
      %v630 = vadd.f32 %v612, %v620
      %v631 = vadd.f32 %v613, %v620
      %v632 = vadd.f32 %v614, %v620
      %v633 = vadd.f32 %v615, %v620
      %v634 = vld [vmem:[%s239] sm:$0xff]
      %v635 = vld [vmem:[%s239 + $0x8] sm:$0xff]
      %v636 = vld [vmem:[%s239 + $0x10] sm:$0xff]
      %v637 = vld [vmem:[%s239 + $0x18] sm:$0xff]
      %v638 = vld [vmem:[%s239 + $0x20] sm:$0xff]
      %v639 = vld [vmem:[%s239 + $0x28] sm:$0xff]
      %v640 = vld [vmem:[%s239 + $0x30] sm:$0xff]
      %v641 = vld [vmem:[%s239 + $0x38] sm:$0xff]
      %v642 = vld [vmem:[%s239 + $0x40] sm:$0xff]
      %v643 = vld [vmem:[%s239 + $0x48] sm:$0xff]
      %v644 = vld [vmem:[%s239 + $0x50] sm:$0xff]
      %v645 = vld [vmem:[%s239 + $0x58] sm:$0xff]
      %v646 = vadd.f32 %v622, %v634
      %v647 = vadd.f32 %v623, %v635
      %v648 = vadd.f32 %v624, %v636
      %v649 = vadd.f32 %v625, %v637
      %v650 = vadd.f32 %v626, %v638
      %v651 = vadd.f32 %v627, %v639
      %v652 = vadd.f32 %v628, %v640
      %v653 = vadd.f32 %v629, %v641
      %v654 = vadd.f32 %v630, %v642
      %v655 = vadd.f32 %v631, %v643
      %v656 = vadd.f32 %v632, %v644
      %v657 = vadd.f32 %v633, %v645
      %658 = vst [vmem:[%s244] sm:$0xff] %v646
      %659 = vst [vmem:[%s244 + $0x8] sm:$0xff] %v647
      %660 = vst [vmem:[%s244 + $0x10] sm:$0xff] %v648
      %661 = vst [vmem:[%s244 + $0x18] sm:$0xff] %v649
      %662 = vst [vmem:[%s244 + $0x20] sm:$0xff] %v650
      %663 = vst [vmem:[%s244 + $0x28] sm:$0xff] %v651
      %664 = vst [vmem:[%s244 + $0x30] sm:$0xff] %v652
      %665 = vst [vmem:[%s244 + $0x38] sm:$0xff] %v653
      %666 = vst [vmem:[%s244 + $0x40] sm:$0xff] %v654
      %667 = vst [vmem:[%s244 + $0x48] sm:$0xff] %v655
      %668 = vst [vmem:[%s244 + $0x50] sm:$0xff] %v656
      %vm669 = vcmask 179200
      %670 = vst.msk [vmem:[%s244 + $0x58] sm:$0xff] %vm669, %v657
      %p671 = scmp.lt.s32.totalorder %s16, 1
      %s672 = scalar_select %p671, %s16, 1
      %s673 = smul.addr %s672, 12
      %s674 = smul.addr %s673, 8
      %s675 = scalar_lea.vmem %s5, %s674
      // Predicated region
      $region41: #{mldg_forward.16} parent=39 // pred_check
        %p676 = pneg %p149
      $region42: #{mldg_forward.16} parent=39 // pred_check_branch
        %678 = sbr.rel (%p676) target = $region44
      $region43: #{mldg_forward.16} parent=39 // pred_region
        _
      $region44: #{mldg_forward.16} parent=39 // pred_fallthru
        _
    $region40: #{mldg_forward.16} parent=5 // pred_fallthru
      _
    %p679 = scmp.le.s32.totalorder 2, %s11
    // Predicated region
    $region45: #{mldg_forward.16} parent=5 // pred_check
      %p680 = pneg %p679
    $region46: #{mldg_forward.16} parent=5 // pred_check_branch
      %682 = sbr.rel (%p680) target = $region48
    $region47: #{mldg_forward.16} parent=5 // pred_region
      %s683 = ssub.s32 %s11, 2
      // Predicated region
      $region49: #{mldg_forward.16} parent=47 // pred_check
        %p684 = pneg %p155
      $region50: #{mldg_forward.16} parent=47 // pred_check_branch
        %686 = sbr.rel (%p684) target = $region52
      $region51: #{mldg_forward.16} parent=47 // pred_region
        %p687 = scmp.lt.s32.totalorder %s17, 1
        %s688 = scalar_select %p687, %s17, 1
        %s689 = smul.addr %s688, 12
        %s690 = smul.addr %s689, 8
        %s691 = scalar_lea.vmem %s5, %s690
      $region52: #{mldg_forward.16} parent=47 // pred_fallthru
        _
    $region48: #{mldg_forward.16} parent=5 // pred_fallthru
      _
  $region6: #{mldg_forward.16} parent=0 // loop_footer
    %s15 = sadd.s32 1, %s11
  $region7: #{mldg_forward.16} parent=0 // loop_footer_branch
    %10 = sbr.rel target = $region3
  $region8: #{mldg_forward.16} parent=0 // loop_exit
    _

// kernel: mldg_forward.17
$region0: #{mldg_forward.17}
  #allocation0 [shape = 'u32[]', space=smem, size = 0x4, offset = 0x4, fixed_abs, tag = 'smem constant byte address 0x4 - core index']
  #allocation1 [shape = 'u32[72,128]{1,0:T(1,128)}', space=vmem, size = 0x9000, scoped, tag = 'internal scratch']
  %s0 = inlined_call_operand.vmem [shape: f32[2,72,363], index: 0, kind: input, shape index: {}]
  %s1 = inlined_call_operand.vmem [shape: f32[16,72], index: 1, kind: input, shape index: {}]
  %s2 = inlined_call_operand.vmem [shape: f32[16,1], index: 2, kind: input, shape index: {}]
  %s3 = inlined_call_operand.vmem [shape: f32[16,1], index: 3, kind: input, shape index: {}]
  %s4 = inlined_call_operand.vmem [shape: f32[2,16,363], index: 4, kind: output, shape index: {}]
  %s5 = sld [smem:[#allocation0]]
  $region49: #{mldg_forward.17} parent=0
    _
  %s7 = ssub.s32 1, %s5
  %s8 = scalar_select 0, %s7, %s5
  loop: start=0, step=1, limit=4
  $region2: #{mldg_forward.17} parent=0 // loop_pre_header
    _
  $region3: #{mldg_forward.17} parent=0 // loop_header
    %s10 = sphi 0, %s14
    %p11 = scmp.ge.s32.totalorder %s10, 4
    %s20 = sphi 0, %s22
    %s23 = sphi 0, %s20
    %s24 = sphi 0, %s23
    %s40 = sphi 0, %s24
    %s44 = sphi 0, %s44
    %s46 = sphi 0, %s44
    %s47 = sphi 0, %s46
    %s61 = sphi 0, %s47
    %s65 = sphi 0, %s65
    %s67 = sphi 0, %s65
    %s68 = sphi 0, %s67
    %s82 = sphi 0, %s68
    %s86 = sphi 0, %s86
    %s88 = sphi 0, %s86
    %s89 = sphi 0, %s88
    %s103 = sphi 0, %s89
    %s109 = sphi 0, %s111
    %s112 = sphi 0, %s109
    %s113 = sphi 0, %s112
    %s129 = sphi 0, %s113
  $region4: #{mldg_forward.17} parent=0 // loop_header_branch
    %13 = sbr.rel (%p11) target = $region8
  $region5: #{mldg_forward.17} parent=0 // loop_body
    %s15 = ssub.s32 %s10, 1
    %s16 = ssub.s32 %s10, 2
    %s17 = sadd.s32 %s10, 1
    %s18 = ssub.s32 %s10, %s17
    %p19 = scmp.eq.s32.totalorder %s18, 0
    %s21 = sadd.s32 %s20, 1
    %s22 = scalar_select %p19, %s20, %s21
    %p25 = pneg %p19
    %p26 = scmp.eq.s32.totalorder %s10, 1
    %p27 = por %p25, %p26
    %p28 = scmp.ne.s32.totalorder %s20, %s23
    %p29 = scmp.eq.s32.totalorder %s10, 0
    %p30 = por %p28, %p29
    %p31 = scmp.ne.s32.totalorder %s20, %s23
    %p32 = scmp.eq.s32.totalorder %s15, 1
    %p33 = por %p31, %p32
    %p34 = scmp.ne.s32.totalorder %s23, %s24
    %p35 = scmp.eq.s32.totalorder %s15, 0
    %p36 = por %p34, %p35
    %p37 = scmp.ne.s32.totalorder %s23, %s24
    %p38 = scmp.eq.s32.totalorder %s16, 1
    %p39 = por %p37, %p38
    %p41 = scmp.ne.s32.totalorder %s24, %s40
    %p42 = scmp.eq.s32.totalorder %s16, 0
    %p43 = por %p41, %p42
    %s45 = sadd.s32 %s44, 1
    %p48 = scmp.eq.s32.totalorder %s10, 1
    %p49 = scmp.ne.s32.totalorder %s44, %s46
    %p50 = scmp.eq.s32.totalorder %s10, 0
    %p51 = por %p49, %p50
    %p52 = scmp.ne.s32.totalorder %s44, %s46
    %p53 = scmp.eq.s32.totalorder %s15, 1
    %p54 = por %p52, %p53
    %p55 = scmp.ne.s32.totalorder %s46, %s47
    %p56 = scmp.eq.s32.totalorder %s15, 0
    %p57 = por %p55, %p56
    %p58 = scmp.ne.s32.totalorder %s46, %s47
    %p59 = scmp.eq.s32.totalorder %s16, 1
    %p60 = por %p58, %p59
    %p62 = scmp.ne.s32.totalorder %s47, %s61
    %p63 = scmp.eq.s32.totalorder %s16, 0
    %p64 = por %p62, %p63
    %s66 = sadd.s32 %s65, 1
    %p69 = scmp.eq.s32.totalorder %s10, 1
    %p70 = scmp.ne.s32.totalorder %s65, %s67
    %p71 = scmp.eq.s32.totalorder %s10, 0
    %p72 = por %p70, %p71
    %p73 = scmp.ne.s32.totalorder %s65, %s67
    %p74 = scmp.eq.s32.totalorder %s15, 1
    %p75 = por %p73, %p74
    %p76 = scmp.ne.s32.totalorder %s67, %s68
    %p77 = scmp.eq.s32.totalorder %s15, 0
    %p78 = por %p76, %p77
    %p79 = scmp.ne.s32.totalorder %s67, %s68
    %p80 = scmp.eq.s32.totalorder %s16, 1
    %p81 = por %p79, %p80
    %p83 = scmp.ne.s32.totalorder %s68, %s82
    %p84 = scmp.eq.s32.totalorder %s16, 0
    %p85 = por %p83, %p84
    %s87 = sadd.s32 %s86, 1
    %p90 = scmp.eq.s32.totalorder %s10, 1
    %p91 = scmp.ne.s32.totalorder %s86, %s88
    %p92 = scmp.eq.s32.totalorder %s10, 0
    %p93 = por %p91, %p92
    %p94 = scmp.ne.s32.totalorder %s86, %s88
    %p95 = scmp.eq.s32.totalorder %s15, 1
    %p96 = por %p94, %p95
    %p97 = scmp.ne.s32.totalorder %s88, %s89
    %p98 = scmp.eq.s32.totalorder %s15, 0
    %p99 = por %p97, %p98
    %p100 = scmp.ne.s32.totalorder %s88, %s89
    %p101 = scmp.eq.s32.totalorder %s16, 1
    %p102 = por %p100, %p101
    %p104 = scmp.ne.s32.totalorder %s89, %s103
    %p105 = scmp.eq.s32.totalorder %s16, 0
    %p106 = por %p104, %p105
    %s107 = ssub.s32 %s10, %s17
    %p108 = scmp.eq.s32.totalorder %s107, 0
    %s110 = sadd.s32 %s109, 1
    %s111 = scalar_select %p108, %s109, %s110
    %p114 = pneg %p108
    %p115 = scmp.eq.s32.totalorder %s10, 1
    %p116 = por %p114, %p115
    %p117 = scmp.ne.s32.totalorder %s109, %s112
    %p118 = scmp.eq.s32.totalorder %s10, 0
    %p119 = por %p117, %p118
    %p120 = scmp.ne.s32.totalorder %s109, %s112
    %p121 = scmp.eq.s32.totalorder %s15, 1
    %p122 = por %p120, %p121
    %p123 = scmp.ne.s32.totalorder %s112, %s113
    %p124 = scmp.eq.s32.totalorder %s15, 0
    %p125 = por %p123, %p124
    %p126 = scmp.ne.s32.totalorder %s112, %s113
    %p127 = scmp.eq.s32.totalorder %s16, 1
    %p128 = por %p126, %p127
    %p130 = scmp.ne.s32.totalorder %s113, %s129
    %p131 = scmp.eq.s32.totalorder %s16, 0
    %p132 = por %p130, %p131
    %p133 = scmp.le.s32.totalorder 1, %s10
    %p134 = scmp.lt.s32.totalorder %s10, 3
    %p135 = pnand %p133, %p134
    %p136 = pneg %p135
    // Predicated region
    $region9: #{mldg_forward.17} parent=5 // pred_check
      _
    $region10: #{mldg_forward.17} parent=5 // pred_check_branch
      %138 = sbr.rel (%p135) target = $region12
    $region11: #{mldg_forward.17} parent=5 // pred_region
      %s139 = ssub.s32 %s10, 1
      // Predicated region
      $region13: #{mldg_forward.17} parent=11 // pred_check
        %p140 = pneg %p57
      $region14: #{mldg_forward.17} parent=11 // pred_check_branch
        %142 = sbr.rel (%p140) target = $region16
      $region15: #{mldg_forward.17} parent=11 // pred_region
        _
      $region16: #{mldg_forward.17} parent=11 // pred_fallthru
        _
      // Predicated region
      $region17: #{mldg_forward.17} parent=11 // pred_check
        %p143 = pneg %p78
      $region18: #{mldg_forward.17} parent=11 // pred_check_branch
        %145 = sbr.rel (%p143) target = $region20
      $region19: #{mldg_forward.17} parent=11 // pred_region
        _
      $region20: #{mldg_forward.17} parent=11 // pred_fallthru
        _
      // Predicated region
      $region21: #{mldg_forward.17} parent=11 // pred_check
        %p146 = pneg %p99
      $region22: #{mldg_forward.17} parent=11 // pred_check_branch
        %148 = sbr.rel (%p146) target = $region24
      $region23: #{mldg_forward.17} parent=11 // pred_region
        _
      $region24: #{mldg_forward.17} parent=11 // pred_fallthru
        _
    $region12: #{mldg_forward.17} parent=5 // pred_fallthru
      _
    %p149 = scmp.lt.s32.totalorder %s10, 2
    // Predicated region
    $region25: #{mldg_forward.17} parent=5 // pred_check
      %p150 = pneg %p149
    $region26: #{mldg_forward.17} parent=5 // pred_check_branch
      %152 = sbr.rel (%p150) target = $region28
    $region27: #{mldg_forward.17} parent=5 // pred_region
      // Predicated region
      $region29: #{mldg_forward.17} parent=27 // pred_check
        %p153 = pneg %p30
      $region30: #{mldg_forward.17} parent=27 // pred_check_branch
        %155 = sbr.rel (%p153) target = $region32
      $region31: #{mldg_forward.17} parent=27 // pred_region
        %p156 = scmp.lt.s32.totalorder %s10, 1
        %s157 = scalar_select %p156, %s10, 1
        %s158 = smul.addr %s157, 27
        %s159 = smul.addr %s158, 8
        %s160 = scalar_lea.vmem %s0, %s159
      $region32: #{mldg_forward.17} parent=27 // pred_fallthru
        _
    $region28: #{mldg_forward.17} parent=5 // pred_fallthru
      _
    %p161 = scmp.le.s32.totalorder 1, %s10
    %p162 = scmp.lt.s32.totalorder %s10, 3
    %p163 = pnand %p161, %p162
    %p164 = pneg %p163
    // Predicated region
    $region33: #{mldg_forward.17} parent=5 // pred_check
      _
    $region34: #{mldg_forward.17} parent=5 // pred_check_branch
      %166 = sbr.rel (%p163) target = $region36
    $region35: #{mldg_forward.17} parent=5 // pred_region
      %s167 = ssub.s32 %s10, 1
      %p168 = scmp.lt.s32.totalorder %s15, 1
      %s169 = scalar_select %p168, %s15, 1
      %s170 = smul.addr %s169, 27
      %s171 = smul.addr %s170, 8
      %s172 = scalar_lea.vmem %s0, %s171
      %p173 = pneg %p36
      %p174 = pneg %p33
      %p175 = pneg %p57
      %p176 = pneg %p54
      %p177 = pneg %p78
      %p178 = pneg %p75
      %p179 = pneg %p99
      %p180 = pneg %p96
      %p181 = pneg %p125
      %p182 = pneg %p122
      %p183 = scmp.lt.s32.totalorder %s15, 1
      %s184 = scalar_select %p183, %s15, 1
      %s185 = smul.addr %s184, 6
      %s186 = smul.addr %s185, 8
      %s187 = scalar_lea.vmem %s4, %s186
      %p188 = scmp.lt.s32.totalorder %s15, 1
      %s189 = scalar_select %p188, %s15, 1
      %s190 = smul.addr %s189, 27
      %s191 = smul.addr %s190, 8
      %s192 = scalar_lea.vmem %s0, %s191
      %p193 = scmp.lt.s32.totalorder %s15, 1
      %s194 = scalar_select %p193, %s15, 1
      %s195 = smul.addr %s194, 6
      %s196 = smul.addr %s195, 8
      %s197 = scalar_lea.vmem %s4, %s196
      %v198 = vld [vmem:[%s192] sm:$0xff]
      %v199 = vld [vmem:[%s192 + $0x8] sm:$0xff]
      %v200 = vld [vmem:[%s192 + $0x10] sm:$0xff]
      %v201 = vld [vmem:[%s192 + $0x18] sm:$0xff]
      %v202 = vld [vmem:[%s192 + $0x20] sm:$0xff]
      %v203 = vld [vmem:[%s192 + $0x28] sm:$0xff]
      %v204 = vld [vmem:[%s192 + $0x30] sm:$0xff]
      %v205 = vld [vmem:[%s192 + $0x38] sm:$0xff]
      %v206 = vld [vmem:[%s192 + $0x40] sm:$0xff]
      %v207 = vld [vmem:[%s192 + $0x48] sm:$0xff]
      %v208 = vld [vmem:[%s192 + $0x50] sm:$0xff]
      %v209 = vld [vmem:[%s192 + $0x58] sm:$0xff]
      %v210 = vld [vmem:[%s192 + $0x60] sm:$0xff]
      %v211 = vld [vmem:[%s192 + $0x68] sm:$0xff]
      %v212 = vld [vmem:[%s192 + $0x70] sm:$0xff]
      %v213 = vld [vmem:[%s192 + $0x78] sm:$0xff]
      %v214 = vld [vmem:[%s192 + $0x80] sm:$0xff]
      %v215 = vld [vmem:[%s192 + $0x88] sm:$0xff]
      %v216 = vld [vmem:[%s192 + $0x90] sm:$0xff]
      %v217 = vld [vmem:[%s192 + $0x98] sm:$0xff]
      %v218 = vld [vmem:[%s192 + $0xa0] sm:$0xff]
      %v219 = vld [vmem:[%s192 + $0xa8] sm:$0xff]
      %v220 = vld [vmem:[%s192 + $0xb0] sm:$0xff]
      %v221 = vld [vmem:[%s192 + $0xb8] sm:$0xff]
      %v222 = vld [vmem:[%s192 + $0xc0] sm:$0xff]
      %v223 = vld [vmem:[%s192 + $0xc8] sm:$0xff]
      %v224 = vld [vmem:[%s192 + $0xd0] sm:$0xff]
      %v225 = vld [vmem:[%s1] sm:$0xff]
      %v226 = vld [vmem:[%s1 + $0x8] sm:$0xff]
      %vm227 = vcmask 588800
      %v229 = vsel %vm227, %v225, 0
      %v232 = vsel %vm227, %v226, 0
      %234 = vmatpush.msra.mxu0 0.0
      %235 = vmatpush.msra.mxu0 0.0
      %236 = vmatpush.msra.mxu0 0.0
      %237 = vmatpush.msra.mxu0 0.0
      %238 = vmatpush.msra.mxu0 0.0
      %239 = vmatpush.msra.mxu0 0.0
      %240 = vmatpush.msra.mxu0 0.0
      %241 = vmatpush.msra.mxu0 %v222
      %242 = vmatpush.msra.mxu0 %v219
      %243 = vmatpush.msra.mxu0 %v216
      %244 = vmatpush.msra.mxu0 %v213
      %245 = vmatpush.msra.mxu0 %v210
      %246 = vmatpush.msra.mxu0 %v207
      %247 = vmatpush.msra.mxu0 %v204
      %248 = vmatpush.msra.mxu0 %v201
      %249 = vmatpush.msra.mxu0 %v198
      %250 = vmatmul.f32.gmra.mxu0 %v229
      %v251 = vpop.f32.mrf.mxu0
      %v252 = vadd.f32 0.0, %v251
      %253 = vmatmul.f32.gmra.mxu0 %v232
      %v254 = vpop.f32.mrf.mxu0
      %v255 = vadd.f32 0.0, %v254
      %256 = vdwg.mxu0
      %257 = vmatpush.msra.mxu0 0.0
      %258 = vmatpush.msra.mxu0 0.0
      %259 = vmatpush.msra.mxu0 0.0
      %260 = vmatpush.msra.mxu0 0.0
      %261 = vmatpush.msra.mxu0 0.0
      %262 = vmatpush.msra.mxu0 0.0
      %263 = vmatpush.msra.mxu0 0.0
      %264 = vmatpush.msra.mxu0 %v223
      %265 = vmatpush.msra.mxu0 %v220
      %266 = vmatpush.msra.mxu0 %v217
      %267 = vmatpush.msra.mxu0 %v214
      %268 = vmatpush.msra.mxu0 %v211
      %269 = vmatpush.msra.mxu0 %v208
      %270 = vmatpush.msra.mxu0 %v205
      %271 = vmatpush.msra.mxu0 %v202
      %272 = vmatpush.msra.mxu0 %v199
      %273 = vmatmul.f32.gmra.mxu0 %v229
      %v274 = vpop.f32.mrf.mxu0
      %v275 = vadd.f32 0.0, %v274
      %276 = vmatmul.f32.gmra.mxu0 %v232
      %v277 = vpop.f32.mrf.mxu0
      %v278 = vadd.f32 0.0, %v277
      %279 = vdwg.mxu0
      %280 = vmatpush.msra.mxu0 0.0
      %281 = vmatpush.msra.mxu0 0.0
      %282 = vmatpush.msra.mxu0 0.0
      %283 = vmatpush.msra.mxu0 0.0
      %284 = vmatpush.msra.mxu0 0.0
      %285 = vmatpush.msra.mxu0 0.0
      %286 = vmatpush.msra.mxu0 0.0
      %287 = vmatpush.msra.mxu0 %v224
      %288 = vmatpush.msra.mxu0 %v221
      %289 = vmatpush.msra.mxu0 %v218
      %290 = vmatpush.msra.mxu0 %v215
      %291 = vmatpush.msra.mxu0 %v212
      %292 = vmatpush.msra.mxu0 %v209
      %293 = vmatpush.msra.mxu0 %v206
      %294 = vmatpush.msra.mxu0 %v203
      %295 = vmatpush.msra.mxu0 %v200
      %296 = vmatmul.f32.gmra.mxu0 %v229
      %v297 = vpop.f32.mrf.mxu0
      %v298 = vadd.f32 0.0, %v297
      %299 = vmatmul.f32.gmra.mxu0 %v232
      %v300 = vpop.f32.mrf.mxu0
      %v301 = vadd.f32 0.0, %v300
      %302 = vdwg.mxu0
      %v303 = vld [vmem:[%s2] sm:$0xff]
      %v304 = vld [vmem:[%s2 + $0x8] sm:$0xff]
      %306 = vset.pattern.permute.xlu0 0
      %307 = vperm.xlu0 %306, %v303
      %v308 = vpop.permute.xlu0 %307
      %311 = vset.pattern.permute.xlu0 0
      %312 = vperm.xlu0 %311, %v304
      %v313 = vpop.permute.xlu0 %312
      %v315 = vmul.f32 %v252, %v308
      %v316 = vmul.f32 %v275, %v308
      %v317 = vmul.f32 %v298, %v308
      %v318 = vmul.f32 %v255, %v313
      %v319 = vmul.f32 %v278, %v313
      %v320 = vmul.f32 %v301, %v313
      %v321 = vld [vmem:[%s3] sm:$0xff]
      %v322 = vld [vmem:[%s3 + $0x8] sm:$0xff]
      %324 = vset.pattern.permute.xlu0 0
      %325 = vperm.xlu0 %324, %v321
      %v326 = vpop.permute.xlu0 %325
      %329 = vset.pattern.permute.xlu0 0
      %330 = vperm.xlu0 %329, %v322
      %v331 = vpop.permute.xlu0 %330
      %v333 = vadd.f32 %v315, %v326
      %v334 = vadd.f32 %v316, %v326
      %v335 = vadd.f32 %v317, %v326
      %v336 = vadd.f32 %v318, %v331
      %v337 = vadd.f32 %v319, %v331
      %v338 = vadd.f32 %v320, %v331
      %vm339 = vcmp.gt.f32.partialorder %v333, 0.0
      %vm340 = vcmp.gt.f32.partialorder %v334, 0.0
      %vm341 = vcmp.gt.f32.partialorder %v335, 0.0
      %vm342 = vcmp.gt.f32.partialorder %v336, 0.0
      %vm343 = vcmp.gt.f32.partialorder %v337, 0.0
      %vm344 = vcmp.gt.f32.partialorder %v338, 0.0
      %v345 = vmin.f32 %v333, 0.0
      %v346 = vmin.f32 %v334, 0.0
      %v347 = vmin.f32 %v335, 0.0
      %v348 = vmin.f32 %v336, 0.0
      %v349 = vmin.f32 %v337, 0.0
      %v350 = vmin.f32 %v338, 0.0
      %v351 = vmul.f32 %v345, 1.442695
      %v352 = vpow.pop %v351
      %v353 = vmul.f32 %v346, 1.442695
      %v354 = vpow.pop %v353
      %v355 = vmul.f32 %v347, 1.442695
      %v356 = vpow.pop %v355
      %v357 = vmul.f32 %v348, 1.442695
      %v358 = vpow.pop %v357
      %v359 = vmul.f32 %v349, 1.442695
      %v360 = vpow.pop %v359
      %v361 = vmul.f32 %v350, 1.442695
      %v362 = vpow.pop %v361
      %v363 = vsub.f32 %v352, 1.0
      %v364 = vsub.f32 %v354, 1.0
      %v365 = vsub.f32 %v356, 1.0
      %v366 = vsub.f32 %v358, 1.0
      %v367 = vsub.f32 %v360, 1.0
      %v368 = vsub.f32 %v362, 1.0
      %v369 = vsel %vm339, %v333, %v363
      %v370 = vsel %vm340, %v334, %v364
      %v371 = vsel %vm341, %v335, %v365
      %v372 = vsel %vm342, %v336, %v366
      %v373 = vsel %vm343, %v337, %v367
      %v374 = vsel %vm344, %v338, %v368
      %375 = vst [vmem:[%s197] sm:$0xff] %v369
      %376 = vst [vmem:[%s197 + $0x8] sm:$0xff] %v370
      %vm377 = vcmask 875520
      %378 = vst.msk [vmem:[%s197 + $0x10] sm:$0xff] %vm377, %v371
      %379 = vst [vmem:[%s197 + $0x18] sm:$0xff] %v372
      %380 = vst [vmem:[%s197 + $0x20] sm:$0xff] %v373
      %381 = vst.msk [vmem:[%s197 + $0x28] sm:$0xff] %vm377, %v374
      %p382 = scmp.lt.s32.totalorder %s15, 1
      %s383 = scalar_select %p382, %s15, 1
      %s384 = smul.addr %s383, 6
      %s385 = smul.addr %s384, 8
      %s386 = scalar_lea.vmem %s4, %s385
      // Predicated region
      $region37: #{mldg_forward.17} parent=35 // pred_check
        %p387 = pneg %p122
      $region38: #{mldg_forward.17} parent=35 // pred_check_branch
        %389 = sbr.rel (%p387) target = $region40
      $region39: #{mldg_forward.17} parent=35 // pred_region
        _
      $region40: #{mldg_forward.17} parent=35 // pred_fallthru
        _
    $region36: #{mldg_forward.17} parent=5 // pred_fallthru
      _
    %p390 = scmp.le.s32.totalorder 2, %s10
    // Predicated region
    $region41: #{mldg_forward.17} parent=5 // pred_check
      %p391 = pneg %p390
    $region42: #{mldg_forward.17} parent=5 // pred_check_branch
      %393 = sbr.rel (%p391) target = $region44
    $region43: #{mldg_forward.17} parent=5 // pred_region
      %s394 = ssub.s32 %s10, 2
      // Predicated region
      $region45: #{mldg_forward.17} parent=43 // pred_check
        %p395 = pneg %p128
      $region46: #{mldg_forward.17} parent=43 // pred_check_branch
        %397 = sbr.rel (%p395) target = $region48
      $region47: #{mldg_forward.17} parent=43 // pred_region
        %p398 = scmp.lt.s32.totalorder %s16, 1
        %s399 = scalar_select %p398, %s16, 1
        %s400 = smul.addr %s399, 6
        %s401 = smul.addr %s400, 8
        %s402 = scalar_lea.vmem %s4, %s401
      $region48: #{mldg_forward.17} parent=43 // pred_fallthru
        _
    $region44: #{mldg_forward.17} parent=5 // pred_fallthru
      _
  $region6: #{mldg_forward.17} parent=0 // loop_footer
    %s14 = sadd.s32 1, %s10
  $region7: #{mldg_forward.17} parent=0 // loop_footer_branch
    %9 = sbr.rel target = $region3
  $region8: #{mldg_forward.17} parent=0 // loop_exit
    _

// kernel: mldg_forward.18
$region0: #{mldg_forward.18}
  #allocation0 [shape = 'u32[]', space=smem, size = 0x4, offset = 0x4, fixed_abs, tag = 'smem constant byte address 0x4 - core index']
  #allocation1 [shape = 'u32[72,128]{1,0:T(1,128)}', space=vmem, size = 0x9000, scoped, tag = 'internal scratch']
  %s0 = inlined_call_operand.vmem [shape: f32[2,72,363], index: 0, kind: input, shape index: {}]
  %s1 = inlined_call_operand.vmem [shape: f32[16,72], index: 1, kind: input, shape index: {}]
  %s2 = inlined_call_operand.vmem [shape: f32[16,1], index: 2, kind: input, shape index: {}]
  %s3 = inlined_call_operand.vmem [shape: f32[16,1], index: 3, kind: input, shape index: {}]
  %s4 = inlined_call_operand.vmem [shape: f32[2,16,363], index: 4, kind: output, shape index: {}]
  %s5 = sld [smem:[#allocation0]]
  $region49: #{mldg_forward.18} parent=0
    _
  %s7 = ssub.s32 1, %s5
  %s8 = scalar_select 0, %s7, %s5
  loop: start=0, step=1, limit=4
  $region2: #{mldg_forward.18} parent=0 // loop_pre_header
    _
  $region3: #{mldg_forward.18} parent=0 // loop_header
    %s10 = sphi 0, %s14
    %p11 = scmp.ge.s32.totalorder %s10, 4
    %s20 = sphi 0, %s22
    %s23 = sphi 0, %s20
    %s24 = sphi 0, %s23
    %s40 = sphi 0, %s24
    %s44 = sphi 0, %s44
    %s46 = sphi 0, %s44
    %s47 = sphi 0, %s46
    %s61 = sphi 0, %s47
    %s65 = sphi 0, %s65
    %s67 = sphi 0, %s65
    %s68 = sphi 0, %s67
    %s82 = sphi 0, %s68
    %s86 = sphi 0, %s86
    %s88 = sphi 0, %s86
    %s89 = sphi 0, %s88
    %s103 = sphi 0, %s89
    %s109 = sphi 0, %s111
    %s112 = sphi 0, %s109
    %s113 = sphi 0, %s112
    %s129 = sphi 0, %s113
  $region4: #{mldg_forward.18} parent=0 // loop_header_branch
    %13 = sbr.rel (%p11) target = $region8
  $region5: #{mldg_forward.18} parent=0 // loop_body
    %s15 = ssub.s32 %s10, 1
    %s16 = ssub.s32 %s10, 2
    %s17 = sadd.s32 %s10, 1
    %s18 = ssub.s32 %s10, %s17
    %p19 = scmp.eq.s32.totalorder %s18, 0
    %s21 = sadd.s32 %s20, 1
    %s22 = scalar_select %p19, %s20, %s21
    %p25 = pneg %p19
    %p26 = scmp.eq.s32.totalorder %s10, 1
    %p27 = por %p25, %p26
    %p28 = scmp.ne.s32.totalorder %s20, %s23
    %p29 = scmp.eq.s32.totalorder %s10, 0
    %p30 = por %p28, %p29
    %p31 = scmp.ne.s32.totalorder %s20, %s23
    %p32 = scmp.eq.s32.totalorder %s15, 1
    %p33 = por %p31, %p32
    %p34 = scmp.ne.s32.totalorder %s23, %s24
    %p35 = scmp.eq.s32.totalorder %s15, 0
    %p36 = por %p34, %p35
    %p37 = scmp.ne.s32.totalorder %s23, %s24
    %p38 = scmp.eq.s32.totalorder %s16, 1
    %p39 = por %p37, %p38
    %p41 = scmp.ne.s32.totalorder %s24, %s40
    %p42 = scmp.eq.s32.totalorder %s16, 0
    %p43 = por %p41, %p42
    %s45 = sadd.s32 %s44, 1
    %p48 = scmp.eq.s32.totalorder %s10, 1
    %p49 = scmp.ne.s32.totalorder %s44, %s46
    %p50 = scmp.eq.s32.totalorder %s10, 0
    %p51 = por %p49, %p50
    %p52 = scmp.ne.s32.totalorder %s44, %s46
    %p53 = scmp.eq.s32.totalorder %s15, 1
    %p54 = por %p52, %p53
    %p55 = scmp.ne.s32.totalorder %s46, %s47
    %p56 = scmp.eq.s32.totalorder %s15, 0
    %p57 = por %p55, %p56
    %p58 = scmp.ne.s32.totalorder %s46, %s47
    %p59 = scmp.eq.s32.totalorder %s16, 1
    %p60 = por %p58, %p59
    %p62 = scmp.ne.s32.totalorder %s47, %s61
    %p63 = scmp.eq.s32.totalorder %s16, 0
    %p64 = por %p62, %p63
    %s66 = sadd.s32 %s65, 1
    %p69 = scmp.eq.s32.totalorder %s10, 1
    %p70 = scmp.ne.s32.totalorder %s65, %s67
    %p71 = scmp.eq.s32.totalorder %s10, 0
    %p72 = por %p70, %p71
    %p73 = scmp.ne.s32.totalorder %s65, %s67
    %p74 = scmp.eq.s32.totalorder %s15, 1
    %p75 = por %p73, %p74
    %p76 = scmp.ne.s32.totalorder %s67, %s68
    %p77 = scmp.eq.s32.totalorder %s15, 0
    %p78 = por %p76, %p77
    %p79 = scmp.ne.s32.totalorder %s67, %s68
    %p80 = scmp.eq.s32.totalorder %s16, 1
    %p81 = por %p79, %p80
    %p83 = scmp.ne.s32.totalorder %s68, %s82
    %p84 = scmp.eq.s32.totalorder %s16, 0
    %p85 = por %p83, %p84
    %s87 = sadd.s32 %s86, 1
    %p90 = scmp.eq.s32.totalorder %s10, 1
    %p91 = scmp.ne.s32.totalorder %s86, %s88
    %p92 = scmp.eq.s32.totalorder %s10, 0
    %p93 = por %p91, %p92
    %p94 = scmp.ne.s32.totalorder %s86, %s88
    %p95 = scmp.eq.s32.totalorder %s15, 1
    %p96 = por %p94, %p95
    %p97 = scmp.ne.s32.totalorder %s88, %s89
    %p98 = scmp.eq.s32.totalorder %s15, 0
    %p99 = por %p97, %p98
    %p100 = scmp.ne.s32.totalorder %s88, %s89
    %p101 = scmp.eq.s32.totalorder %s16, 1
    %p102 = por %p100, %p101
    %p104 = scmp.ne.s32.totalorder %s89, %s103
    %p105 = scmp.eq.s32.totalorder %s16, 0
    %p106 = por %p104, %p105
    %s107 = ssub.s32 %s10, %s17
    %p108 = scmp.eq.s32.totalorder %s107, 0
    %s110 = sadd.s32 %s109, 1
    %s111 = scalar_select %p108, %s109, %s110
    %p114 = pneg %p108
    %p115 = scmp.eq.s32.totalorder %s10, 1
    %p116 = por %p114, %p115
    %p117 = scmp.ne.s32.totalorder %s109, %s112
    %p118 = scmp.eq.s32.totalorder %s10, 0
    %p119 = por %p117, %p118
    %p120 = scmp.ne.s32.totalorder %s109, %s112
    %p121 = scmp.eq.s32.totalorder %s15, 1
    %p122 = por %p120, %p121
    %p123 = scmp.ne.s32.totalorder %s112, %s113
    %p124 = scmp.eq.s32.totalorder %s15, 0
    %p125 = por %p123, %p124
    %p126 = scmp.ne.s32.totalorder %s112, %s113
    %p127 = scmp.eq.s32.totalorder %s16, 1
    %p128 = por %p126, %p127
    %p130 = scmp.ne.s32.totalorder %s113, %s129
    %p131 = scmp.eq.s32.totalorder %s16, 0
    %p132 = por %p130, %p131
    %p133 = scmp.le.s32.totalorder 1, %s10
    %p134 = scmp.lt.s32.totalorder %s10, 3
    %p135 = pnand %p133, %p134
    %p136 = pneg %p135
    // Predicated region
    $region9: #{mldg_forward.18} parent=5 // pred_check
      _
    $region10: #{mldg_forward.18} parent=5 // pred_check_branch
      %138 = sbr.rel (%p135) target = $region12
    $region11: #{mldg_forward.18} parent=5 // pred_region
      %s139 = ssub.s32 %s10, 1
      // Predicated region
      $region13: #{mldg_forward.18} parent=11 // pred_check
        %p140 = pneg %p57
      $region14: #{mldg_forward.18} parent=11 // pred_check_branch
        %142 = sbr.rel (%p140) target = $region16
      $region15: #{mldg_forward.18} parent=11 // pred_region
        _
      $region16: #{mldg_forward.18} parent=11 // pred_fallthru
        _
      // Predicated region
      $region17: #{mldg_forward.18} parent=11 // pred_check
        %p143 = pneg %p78
      $region18: #{mldg_forward.18} parent=11 // pred_check_branch
        %145 = sbr.rel (%p143) target = $region20
      $region19: #{mldg_forward.18} parent=11 // pred_region
        _
      $region20: #{mldg_forward.18} parent=11 // pred_fallthru
        _
      // Predicated region
      $region21: #{mldg_forward.18} parent=11 // pred_check
        %p146 = pneg %p99
      $region22: #{mldg_forward.18} parent=11 // pred_check_branch
        %148 = sbr.rel (%p146) target = $region24
      $region23: #{mldg_forward.18} parent=11 // pred_region
        _
      $region24: #{mldg_forward.18} parent=11 // pred_fallthru
        _
    $region12: #{mldg_forward.18} parent=5 // pred_fallthru
      _
    %p149 = scmp.lt.s32.totalorder %s10, 2
    // Predicated region
    $region25: #{mldg_forward.18} parent=5 // pred_check
      %p150 = pneg %p149
    $region26: #{mldg_forward.18} parent=5 // pred_check_branch
      %152 = sbr.rel (%p150) target = $region28
    $region27: #{mldg_forward.18} parent=5 // pred_region
      // Predicated region
      $region29: #{mldg_forward.18} parent=27 // pred_check
        %p153 = pneg %p30
      $region30: #{mldg_forward.18} parent=27 // pred_check_branch
        %155 = sbr.rel (%p153) target = $region32
      $region31: #{mldg_forward.18} parent=27 // pred_region
        %p156 = scmp.lt.s32.totalorder %s10, 1
        %s157 = scalar_select %p156, %s10, 1
        %s158 = smul.addr %s157, 27
        %s159 = smul.addr %s158, 8
        %s160 = scalar_lea.vmem %s0, %s159
      $region32: #{mldg_forward.18} parent=27 // pred_fallthru
        _
    $region28: #{mldg_forward.18} parent=5 // pred_fallthru
      _
    %p161 = scmp.le.s32.totalorder 1, %s10
    %p162 = scmp.lt.s32.totalorder %s10, 3
    %p163 = pnand %p161, %p162
    %p164 = pneg %p163
    // Predicated region
    $region33: #{mldg_forward.18} parent=5 // pred_check
      _
    $region34: #{mldg_forward.18} parent=5 // pred_check_branch
      %166 = sbr.rel (%p163) target = $region36
    $region35: #{mldg_forward.18} parent=5 // pred_region
      %s167 = ssub.s32 %s10, 1
      %p168 = scmp.lt.s32.totalorder %s15, 1
      %s169 = scalar_select %p168, %s15, 1
      %s170 = smul.addr %s169, 27
      %s171 = smul.addr %s170, 8
      %s172 = scalar_lea.vmem %s0, %s171
      %p173 = pneg %p36
      %p174 = pneg %p33
      %p175 = pneg %p57
      %p176 = pneg %p54
      %p177 = pneg %p78
      %p178 = pneg %p75
      %p179 = pneg %p99
      %p180 = pneg %p96
      %p181 = pneg %p125
      %p182 = pneg %p122
      %p183 = scmp.lt.s32.totalorder %s15, 1
      %s184 = scalar_select %p183, %s15, 1
      %s185 = smul.addr %s184, 6
      %s186 = smul.addr %s185, 8
      %s187 = scalar_lea.vmem %s4, %s186
      %p188 = scmp.lt.s32.totalorder %s15, 1
      %s189 = scalar_select %p188, %s15, 1
      %s190 = smul.addr %s189, 27
      %s191 = smul.addr %s190, 8
      %s192 = scalar_lea.vmem %s0, %s191
      %p193 = scmp.lt.s32.totalorder %s15, 1
      %s194 = scalar_select %p193, %s15, 1
      %s195 = smul.addr %s194, 6
      %s196 = smul.addr %s195, 8
      %s197 = scalar_lea.vmem %s4, %s196
      %v198 = vld [vmem:[%s192] sm:$0xff]
      %v199 = vld [vmem:[%s192 + $0x8] sm:$0xff]
      %v200 = vld [vmem:[%s192 + $0x10] sm:$0xff]
      %v201 = vld [vmem:[%s192 + $0x18] sm:$0xff]
      %v202 = vld [vmem:[%s192 + $0x20] sm:$0xff]
      %v203 = vld [vmem:[%s192 + $0x28] sm:$0xff]
      %v204 = vld [vmem:[%s192 + $0x30] sm:$0xff]
      %v205 = vld [vmem:[%s192 + $0x38] sm:$0xff]
      %v206 = vld [vmem:[%s192 + $0x40] sm:$0xff]
      %v207 = vld [vmem:[%s192 + $0x48] sm:$0xff]
      %v208 = vld [vmem:[%s192 + $0x50] sm:$0xff]
      %v209 = vld [vmem:[%s192 + $0x58] sm:$0xff]
      %v210 = vld [vmem:[%s192 + $0x60] sm:$0xff]
      %v211 = vld [vmem:[%s192 + $0x68] sm:$0xff]
      %v212 = vld [vmem:[%s192 + $0x70] sm:$0xff]
      %v213 = vld [vmem:[%s192 + $0x78] sm:$0xff]
      %v214 = vld [vmem:[%s192 + $0x80] sm:$0xff]
      %v215 = vld [vmem:[%s192 + $0x88] sm:$0xff]
      %v216 = vld [vmem:[%s192 + $0x90] sm:$0xff]
      %v217 = vld [vmem:[%s192 + $0x98] sm:$0xff]
      %v218 = vld [vmem:[%s192 + $0xa0] sm:$0xff]
      %v219 = vld [vmem:[%s192 + $0xa8] sm:$0xff]
      %v220 = vld [vmem:[%s192 + $0xb0] sm:$0xff]
      %v221 = vld [vmem:[%s192 + $0xb8] sm:$0xff]
      %v222 = vld [vmem:[%s192 + $0xc0] sm:$0xff]
      %v223 = vld [vmem:[%s192 + $0xc8] sm:$0xff]
      %v224 = vld [vmem:[%s192 + $0xd0] sm:$0xff]
      %v225 = vld [vmem:[%s1] sm:$0xff]
      %v226 = vld [vmem:[%s1 + $0x8] sm:$0xff]
      %vm227 = vcmask 588800
      %v229 = vsel %vm227, %v225, 0
      %v232 = vsel %vm227, %v226, 0
      %234 = vmatpush.msra.mxu0 0.0
      %235 = vmatpush.msra.mxu0 0.0
      %236 = vmatpush.msra.mxu0 0.0
      %237 = vmatpush.msra.mxu0 0.0
      %238 = vmatpush.msra.mxu0 0.0
      %239 = vmatpush.msra.mxu0 0.0
      %240 = vmatpush.msra.mxu0 0.0
      %241 = vmatpush.msra.mxu0 %v222
      %242 = vmatpush.msra.mxu0 %v219
      %243 = vmatpush.msra.mxu0 %v216
      %244 = vmatpush.msra.mxu0 %v213
      %245 = vmatpush.msra.mxu0 %v210
      %246 = vmatpush.msra.mxu0 %v207
      %247 = vmatpush.msra.mxu0 %v204
      %248 = vmatpush.msra.mxu0 %v201
      %249 = vmatpush.msra.mxu0 %v198
      %250 = vmatmul.f32.gmra.mxu0 %v229
      %v251 = vpop.f32.mrf.mxu0
      %v252 = vadd.f32 0.0, %v251
      %253 = vmatmul.f32.gmra.mxu0 %v232
      %v254 = vpop.f32.mrf.mxu0
      %v255 = vadd.f32 0.0, %v254
      %256 = vdwg.mxu0
      %257 = vmatpush.msra.mxu0 0.0
      %258 = vmatpush.msra.mxu0 0.0
      %259 = vmatpush.msra.mxu0 0.0
      %260 = vmatpush.msra.mxu0 0.0
      %261 = vmatpush.msra.mxu0 0.0
      %262 = vmatpush.msra.mxu0 0.0
      %263 = vmatpush.msra.mxu0 0.0
      %264 = vmatpush.msra.mxu0 %v223
      %265 = vmatpush.msra.mxu0 %v220
      %266 = vmatpush.msra.mxu0 %v217
      %267 = vmatpush.msra.mxu0 %v214
      %268 = vmatpush.msra.mxu0 %v211
      %269 = vmatpush.msra.mxu0 %v208
      %270 = vmatpush.msra.mxu0 %v205
      %271 = vmatpush.msra.mxu0 %v202
      %272 = vmatpush.msra.mxu0 %v199
      %273 = vmatmul.f32.gmra.mxu0 %v229
      %v274 = vpop.f32.mrf.mxu0
      %v275 = vadd.f32 0.0, %v274
      %276 = vmatmul.f32.gmra.mxu0 %v232
      %v277 = vpop.f32.mrf.mxu0
      %v278 = vadd.f32 0.0, %v277
      %279 = vdwg.mxu0
      %280 = vmatpush.msra.mxu0 0.0
      %281 = vmatpush.msra.mxu0 0.0
      %282 = vmatpush.msra.mxu0 0.0
      %283 = vmatpush.msra.mxu0 0.0
      %284 = vmatpush.msra.mxu0 0.0
      %285 = vmatpush.msra.mxu0 0.0
      %286 = vmatpush.msra.mxu0 0.0
      %287 = vmatpush.msra.mxu0 %v224
      %288 = vmatpush.msra.mxu0 %v221
      %289 = vmatpush.msra.mxu0 %v218
      %290 = vmatpush.msra.mxu0 %v215
      %291 = vmatpush.msra.mxu0 %v212
      %292 = vmatpush.msra.mxu0 %v209
      %293 = vmatpush.msra.mxu0 %v206
      %294 = vmatpush.msra.mxu0 %v203
      %295 = vmatpush.msra.mxu0 %v200
      %296 = vmatmul.f32.gmra.mxu0 %v229
      %v297 = vpop.f32.mrf.mxu0
      %v298 = vadd.f32 0.0, %v297
      %299 = vmatmul.f32.gmra.mxu0 %v232
      %v300 = vpop.f32.mrf.mxu0
      %v301 = vadd.f32 0.0, %v300
      %302 = vdwg.mxu0
      %v303 = vld [vmem:[%s2] sm:$0xff]
      %v304 = vld [vmem:[%s2 + $0x8] sm:$0xff]
      %306 = vset.pattern.permute.xlu0 0
      %307 = vperm.xlu0 %306, %v303
      %v308 = vpop.permute.xlu0 %307
      %311 = vset.pattern.permute.xlu0 0
      %312 = vperm.xlu0 %311, %v304
      %v313 = vpop.permute.xlu0 %312
      %v315 = vmul.f32 %v252, %v308
      %v316 = vmul.f32 %v275, %v308
      %v317 = vmul.f32 %v298, %v308
      %v318 = vmul.f32 %v255, %v313
      %v319 = vmul.f32 %v278, %v313
      %v320 = vmul.f32 %v301, %v313
      %v321 = vld [vmem:[%s3] sm:$0xff]
      %v322 = vld [vmem:[%s3 + $0x8] sm:$0xff]
      %324 = vset.pattern.permute.xlu0 0
      %325 = vperm.xlu0 %324, %v321
      %v326 = vpop.permute.xlu0 %325
      %329 = vset.pattern.permute.xlu0 0
      %330 = vperm.xlu0 %329, %v322
      %v331 = vpop.permute.xlu0 %330
      %v333 = vadd.f32 %v315, %v326
      %v334 = vadd.f32 %v316, %v326
      %v335 = vadd.f32 %v317, %v326
      %v336 = vadd.f32 %v318, %v331
      %v337 = vadd.f32 %v319, %v331
      %v338 = vadd.f32 %v320, %v331
      %339 = vst [vmem:[%s197] sm:$0xff] %v333
      %340 = vst [vmem:[%s197 + $0x8] sm:$0xff] %v334
      %vm341 = vcmask 875520
      %342 = vst.msk [vmem:[%s197 + $0x10] sm:$0xff] %vm341, %v335
      %343 = vst [vmem:[%s197 + $0x18] sm:$0xff] %v336
      %344 = vst [vmem:[%s197 + $0x20] sm:$0xff] %v337
      %345 = vst.msk [vmem:[%s197 + $0x28] sm:$0xff] %vm341, %v338
      %p346 = scmp.lt.s32.totalorder %s15, 1
      %s347 = scalar_select %p346, %s15, 1
      %s348 = smul.addr %s347, 6
      %s349 = smul.addr %s348, 8
      %s350 = scalar_lea.vmem %s4, %s349
      // Predicated region
      $region37: #{mldg_forward.18} parent=35 // pred_check
        %p351 = pneg %p122
      $region38: #{mldg_forward.18} parent=35 // pred_check_branch
        %353 = sbr.rel (%p351) target = $region40
      $region39: #{mldg_forward.18} parent=35 // pred_region
        _
      $region40: #{mldg_forward.18} parent=35 // pred_fallthru
        _
    $region36: #{mldg_forward.18} parent=5 // pred_fallthru
      _
    %p354 = scmp.le.s32.totalorder 2, %s10
    // Predicated region
    $region41: #{mldg_forward.18} parent=5 // pred_check
      %p355 = pneg %p354
    $region42: #{mldg_forward.18} parent=5 // pred_check_branch
      %357 = sbr.rel (%p355) target = $region44
    $region43: #{mldg_forward.18} parent=5 // pred_region
      %s358 = ssub.s32 %s10, 2
      // Predicated region
      $region45: #{mldg_forward.18} parent=43 // pred_check
        %p359 = pneg %p128
      $region46: #{mldg_forward.18} parent=43 // pred_check_branch
        %361 = sbr.rel (%p359) target = $region48
      $region47: #{mldg_forward.18} parent=43 // pred_region
        %p362 = scmp.lt.s32.totalorder %s16, 1
        %s363 = scalar_select %p362, %s16, 1
        %s364 = smul.addr %s363, 6
        %s365 = smul.addr %s364, 8
        %s366 = scalar_lea.vmem %s4, %s365
      $region48: #{mldg_forward.18} parent=43 // pred_fallthru
        _
    $region44: #{mldg_forward.18} parent=5 // pred_fallthru
      _
  $region6: #{mldg_forward.18} parent=0 // loop_footer
    %s14 = sadd.s32 1, %s10
  $region7: #{mldg_forward.18} parent=0 // loop_footer_branch
    %9 = sbr.rel target = $region3
  $region8: #{mldg_forward.18} parent=0 // loop_exit
    _

// kernel: mldg_forward.19
$region0: #{mldg_forward.19}
  #allocation0 [shape = 'u32[]', space=smem, size = 0x4, offset = 0x4, fixed_abs, tag = 'smem constant byte address 0x4 - core index']
  #allocation1 [shape = 'u32[72,128]{1,0:T(1,128)}', space=vmem, size = 0x9000, scoped, tag = 'internal scratch']
  %s0 = inlined_call_operand.vmem [shape: f32[2,144,363], index: 0, kind: input, shape index: {}]
  %s1 = inlined_call_operand.vmem [shape: f32[16,144], index: 1, kind: input, shape index: {}]
  %s2 = inlined_call_operand.vmem [shape: f32[16,1], index: 2, kind: input, shape index: {}]
  %s3 = inlined_call_operand.vmem [shape: f32[16,1], index: 3, kind: input, shape index: {}]
  %s4 = inlined_call_operand.vmem [shape: f32[2,16,363], index: 4, kind: input, shape index: {}]
  %s5 = inlined_call_operand.vmem [shape: f32[2,16,363], index: 5, kind: output, shape index: {}]
  %s6 = sld [smem:[#allocation0]]
  $region53: #{mldg_forward.19} parent=0
    _
  %s8 = ssub.s32 1, %s6
  %s9 = scalar_select 0, %s8, %s6
  loop: start=0, step=1, limit=4
  $region2: #{mldg_forward.19} parent=0 // loop_pre_header
    _
  $region3: #{mldg_forward.19} parent=0 // loop_header
    %s11 = sphi 0, %s15
    %p12 = scmp.ge.s32.totalorder %s11, 4
    %s21 = sphi 0, %s23
    %s24 = sphi 0, %s21
    %s25 = sphi 0, %s24
    %s41 = sphi 0, %s25
    %s45 = sphi 0, %s45
    %s47 = sphi 0, %s45
    %s48 = sphi 0, %s47
    %s62 = sphi 0, %s48
    %s66 = sphi 0, %s66
    %s68 = sphi 0, %s66
    %s69 = sphi 0, %s68
    %s83 = sphi 0, %s69
    %s87 = sphi 0, %s87
    %s89 = sphi 0, %s87
    %s90 = sphi 0, %s89
    %s104 = sphi 0, %s90
    %s110 = sphi 0, %s112
    %s113 = sphi 0, %s110
    %s114 = sphi 0, %s113
    %s130 = sphi 0, %s114
    %s136 = sphi 0, %s138
    %s139 = sphi 0, %s136
    %s140 = sphi 0, %s139
    %s156 = sphi 0, %s140
  $region4: #{mldg_forward.19} parent=0 // loop_header_branch
    %14 = sbr.rel (%p12) target = $region8
  $region5: #{mldg_forward.19} parent=0 // loop_body
    %s16 = ssub.s32 %s11, 1
    %s17 = ssub.s32 %s11, 2
    %s18 = sadd.s32 %s11, 1
    %s19 = ssub.s32 %s11, %s18
    %p20 = scmp.eq.s32.totalorder %s19, 0
    %s22 = sadd.s32 %s21, 1
    %s23 = scalar_select %p20, %s21, %s22
    %p26 = pneg %p20
    %p27 = scmp.eq.s32.totalorder %s11, 1
    %p28 = por %p26, %p27
    %p29 = scmp.ne.s32.totalorder %s21, %s24
    %p30 = scmp.eq.s32.totalorder %s11, 0
    %p31 = por %p29, %p30
    %p32 = scmp.ne.s32.totalorder %s21, %s24
    %p33 = scmp.eq.s32.totalorder %s16, 1
    %p34 = por %p32, %p33
    %p35 = scmp.ne.s32.totalorder %s24, %s25
    %p36 = scmp.eq.s32.totalorder %s16, 0
    %p37 = por %p35, %p36
    %p38 = scmp.ne.s32.totalorder %s24, %s25
    %p39 = scmp.eq.s32.totalorder %s17, 1
    %p40 = por %p38, %p39
    %p42 = scmp.ne.s32.totalorder %s25, %s41
    %p43 = scmp.eq.s32.totalorder %s17, 0
    %p44 = por %p42, %p43
    %s46 = sadd.s32 %s45, 1
    %p49 = scmp.eq.s32.totalorder %s11, 1
    %p50 = scmp.ne.s32.totalorder %s45, %s47
    %p51 = scmp.eq.s32.totalorder %s11, 0
    %p52 = por %p50, %p51
    %p53 = scmp.ne.s32.totalorder %s45, %s47
    %p54 = scmp.eq.s32.totalorder %s16, 1
    %p55 = por %p53, %p54
    %p56 = scmp.ne.s32.totalorder %s47, %s48
    %p57 = scmp.eq.s32.totalorder %s16, 0
    %p58 = por %p56, %p57
    %p59 = scmp.ne.s32.totalorder %s47, %s48
    %p60 = scmp.eq.s32.totalorder %s17, 1
    %p61 = por %p59, %p60
    %p63 = scmp.ne.s32.totalorder %s48, %s62
    %p64 = scmp.eq.s32.totalorder %s17, 0
    %p65 = por %p63, %p64
    %s67 = sadd.s32 %s66, 1
    %p70 = scmp.eq.s32.totalorder %s11, 1
    %p71 = scmp.ne.s32.totalorder %s66, %s68
    %p72 = scmp.eq.s32.totalorder %s11, 0
    %p73 = por %p71, %p72
    %p74 = scmp.ne.s32.totalorder %s66, %s68
    %p75 = scmp.eq.s32.totalorder %s16, 1
    %p76 = por %p74, %p75
    %p77 = scmp.ne.s32.totalorder %s68, %s69
    %p78 = scmp.eq.s32.totalorder %s16, 0
    %p79 = por %p77, %p78
    %p80 = scmp.ne.s32.totalorder %s68, %s69
    %p81 = scmp.eq.s32.totalorder %s17, 1
    %p82 = por %p80, %p81
    %p84 = scmp.ne.s32.totalorder %s69, %s83
    %p85 = scmp.eq.s32.totalorder %s17, 0
    %p86 = por %p84, %p85
    %s88 = sadd.s32 %s87, 1
    %p91 = scmp.eq.s32.totalorder %s11, 1
    %p92 = scmp.ne.s32.totalorder %s87, %s89
    %p93 = scmp.eq.s32.totalorder %s11, 0
    %p94 = por %p92, %p93
    %p95 = scmp.ne.s32.totalorder %s87, %s89
    %p96 = scmp.eq.s32.totalorder %s16, 1
    %p97 = por %p95, %p96
    %p98 = scmp.ne.s32.totalorder %s89, %s90
    %p99 = scmp.eq.s32.totalorder %s16, 0
    %p100 = por %p98, %p99
    %p101 = scmp.ne.s32.totalorder %s89, %s90
    %p102 = scmp.eq.s32.totalorder %s17, 1
    %p103 = por %p101, %p102
    %p105 = scmp.ne.s32.totalorder %s90, %s104
    %p106 = scmp.eq.s32.totalorder %s17, 0
    %p107 = por %p105, %p106
    %s108 = ssub.s32 %s11, %s18
    %p109 = scmp.eq.s32.totalorder %s108, 0
    %s111 = sadd.s32 %s110, 1
    %s112 = scalar_select %p109, %s110, %s111
    %p115 = pneg %p109
    %p116 = scmp.eq.s32.totalorder %s11, 1
    %p117 = por %p115, %p116
    %p118 = scmp.ne.s32.totalorder %s110, %s113
    %p119 = scmp.eq.s32.totalorder %s11, 0
    %p120 = por %p118, %p119
    %p121 = scmp.ne.s32.totalorder %s110, %s113
    %p122 = scmp.eq.s32.totalorder %s16, 1
    %p123 = por %p121, %p122
    %p124 = scmp.ne.s32.totalorder %s113, %s114
    %p125 = scmp.eq.s32.totalorder %s16, 0
    %p126 = por %p124, %p125
    %p127 = scmp.ne.s32.totalorder %s113, %s114
    %p128 = scmp.eq.s32.totalorder %s17, 1
    %p129 = por %p127, %p128
    %p131 = scmp.ne.s32.totalorder %s114, %s130
    %p132 = scmp.eq.s32.totalorder %s17, 0
    %p133 = por %p131, %p132
    %s134 = ssub.s32 %s11, %s18
    %p135 = scmp.eq.s32.totalorder %s134, 0
    %s137 = sadd.s32 %s136, 1
    %s138 = scalar_select %p135, %s136, %s137
    %p141 = pneg %p135
    %p142 = scmp.eq.s32.totalorder %s11, 1
    %p143 = por %p141, %p142
    %p144 = scmp.ne.s32.totalorder %s136, %s139
    %p145 = scmp.eq.s32.totalorder %s11, 0
    %p146 = por %p144, %p145
    %p147 = scmp.ne.s32.totalorder %s136, %s139
    %p148 = scmp.eq.s32.totalorder %s16, 1
    %p149 = por %p147, %p148
    %p150 = scmp.ne.s32.totalorder %s139, %s140
    %p151 = scmp.eq.s32.totalorder %s16, 0
    %p152 = por %p150, %p151
    %p153 = scmp.ne.s32.totalorder %s139, %s140
    %p154 = scmp.eq.s32.totalorder %s17, 1
    %p155 = por %p153, %p154
    %p157 = scmp.ne.s32.totalorder %s140, %s156
    %p158 = scmp.eq.s32.totalorder %s17, 0
    %p159 = por %p157, %p158
    %p160 = scmp.le.s32.totalorder 1, %s11
    %p161 = scmp.lt.s32.totalorder %s11, 3
    %p162 = pnand %p160, %p161
    %p163 = pneg %p162
    // Predicated region
    $region9: #{mldg_forward.19} parent=5 // pred_check
      _
    $region10: #{mldg_forward.19} parent=5 // pred_check_branch
      %165 = sbr.rel (%p162) target = $region12
    $region11: #{mldg_forward.19} parent=5 // pred_region
      %s166 = ssub.s32 %s11, 1
      // Predicated region
      $region13: #{mldg_forward.19} parent=11 // pred_check
        %p167 = pneg %p58
      $region14: #{mldg_forward.19} parent=11 // pred_check_branch
        %169 = sbr.rel (%p167) target = $region16
      $region15: #{mldg_forward.19} parent=11 // pred_region
        _
      $region16: #{mldg_forward.19} parent=11 // pred_fallthru
        _
      // Predicated region
      $region17: #{mldg_forward.19} parent=11 // pred_check
        %p170 = pneg %p79
      $region18: #{mldg_forward.19} parent=11 // pred_check_branch
        %172 = sbr.rel (%p170) target = $region20
      $region19: #{mldg_forward.19} parent=11 // pred_region
        _
      $region20: #{mldg_forward.19} parent=11 // pred_fallthru
        _
      // Predicated region
      $region21: #{mldg_forward.19} parent=11 // pred_check
        %p173 = pneg %p100
      $region22: #{mldg_forward.19} parent=11 // pred_check_branch
        %175 = sbr.rel (%p173) target = $region24
      $region23: #{mldg_forward.19} parent=11 // pred_region
        _
      $region24: #{mldg_forward.19} parent=11 // pred_fallthru
        _
    $region12: #{mldg_forward.19} parent=5 // pred_fallthru
      _
    %p176 = scmp.lt.s32.totalorder %s11, 2
    // Predicated region
    $region25: #{mldg_forward.19} parent=5 // pred_check
      %p177 = pneg %p176
    $region26: #{mldg_forward.19} parent=5 // pred_check_branch
      %179 = sbr.rel (%p177) target = $region28
    $region27: #{mldg_forward.19} parent=5 // pred_region
      // Predicated region
      $region29: #{mldg_forward.19} parent=27 // pred_check
        %p180 = pneg %p31
      $region30: #{mldg_forward.19} parent=27 // pred_check_branch
        %182 = sbr.rel (%p180) target = $region32
      $region31: #{mldg_forward.19} parent=27 // pred_region
        %p183 = scmp.lt.s32.totalorder %s11, 1
        %s184 = scalar_select %p183, %s11, 1
        %s185 = smul.addr %s184, 54
        %s186 = smul.addr %s185, 8
        %s187 = scalar_lea.vmem %s0, %s186
      $region32: #{mldg_forward.19} parent=27 // pred_fallthru
        _
      // Predicated region
      $region33: #{mldg_forward.19} parent=27 // pred_check
        %p188 = pneg %p120
      $region34: #{mldg_forward.19} parent=27 // pred_check_branch
        %190 = sbr.rel (%p188) target = $region36
      $region35: #{mldg_forward.19} parent=27 // pred_region
        %p191 = scmp.lt.s32.totalorder %s11, 1
        %s192 = scalar_select %p191, %s11, 1
        %s193 = smul.addr %s192, 6
        %s194 = smul.addr %s193, 8
        %s195 = scalar_lea.vmem %s4, %s194
      $region36: #{mldg_forward.19} parent=27 // pred_fallthru
        _
    $region28: #{mldg_forward.19} parent=5 // pred_fallthru
      _
    %p196 = scmp.le.s32.totalorder 1, %s11
    %p197 = scmp.lt.s32.totalorder %s11, 3
    %p198 = pnand %p196, %p197
    %p199 = pneg %p198
    // Predicated region
    $region37: #{mldg_forward.19} parent=5 // pred_check
      _
    $region38: #{mldg_forward.19} parent=5 // pred_check_branch
      %201 = sbr.rel (%p198) target = $region40
    $region39: #{mldg_forward.19} parent=5 // pred_region
      %s202 = ssub.s32 %s11, 1
      %p203 = scmp.lt.s32.totalorder %s16, 1
      %s204 = scalar_select %p203, %s16, 1
      %s205 = smul.addr %s204, 54
      %s206 = smul.addr %s205, 8
      %s207 = scalar_lea.vmem %s0, %s206
      %p208 = pneg %p37
      %p209 = pneg %p34
      %p210 = pneg %p58
      %p211 = pneg %p55
      %p212 = pneg %p79
      %p213 = pneg %p76
      %p214 = pneg %p100
      %p215 = pneg %p97
      %p216 = scmp.lt.s32.totalorder %s16, 1
      %s217 = scalar_select %p216, %s16, 1
      %s218 = smul.addr %s217, 6
      %s219 = smul.addr %s218, 8
      %s220 = scalar_lea.vmem %s4, %s219
      %p221 = pneg %p126
      %p222 = pneg %p123
      %p223 = pneg %p152
      %p224 = pneg %p149
      %p225 = scmp.lt.s32.totalorder %s16, 1
      %s226 = scalar_select %p225, %s16, 1
      %s227 = smul.addr %s226, 6
      %s228 = smul.addr %s227, 8
      %s229 = scalar_lea.vmem %s5, %s228
      %p230 = scmp.lt.s32.totalorder %s16, 1
      %s231 = scalar_select %p230, %s16, 1
      %s232 = smul.addr %s231, 54
      %s233 = smul.addr %s232, 8
      %s234 = scalar_lea.vmem %s0, %s233
      %p235 = scmp.lt.s32.totalorder %s16, 1
      %s236 = scalar_select %p235, %s16, 1
      %s237 = smul.addr %s236, 6
      %s238 = smul.addr %s237, 8
      %s239 = scalar_lea.vmem %s4, %s238
      %p240 = scmp.lt.s32.totalorder %s16, 1
      %s241 = scalar_select %p240, %s16, 1
      %s242 = smul.addr %s241, 6
      %s243 = smul.addr %s242, 8
      %s244 = scalar_lea.vmem %s5, %s243
      %v245 = vld [vmem:[%s234] sm:$0xff]
      %v246 = vld [vmem:[%s234 + $0x8] sm:$0xff]
      %v247 = vld [vmem:[%s234 + $0x10] sm:$0xff]
      %v248 = vld [vmem:[%s234 + $0x18] sm:$0xff]
      %v249 = vld [vmem:[%s234 + $0x20] sm:$0xff]
      %v250 = vld [vmem:[%s234 + $0x28] sm:$0xff]
      %v251 = vld [vmem:[%s234 + $0x30] sm:$0xff]
      %v252 = vld [vmem:[%s234 + $0x38] sm:$0xff]
      %v253 = vld [vmem:[%s234 + $0x40] sm:$0xff]
      %v254 = vld [vmem:[%s234 + $0x48] sm:$0xff]
      %v255 = vld [vmem:[%s234 + $0x50] sm:$0xff]
      %v256 = vld [vmem:[%s234 + $0x58] sm:$0xff]
      %v257 = vld [vmem:[%s234 + $0x60] sm:$0xff]
      %v258 = vld [vmem:[%s234 + $0x68] sm:$0xff]
      %v259 = vld [vmem:[%s234 + $0x70] sm:$0xff]
      %v260 = vld [vmem:[%s234 + $0x78] sm:$0xff]
      %v261 = vld [vmem:[%s234 + $0x80] sm:$0xff]
      %v262 = vld [vmem:[%s234 + $0x88] sm:$0xff]
      %v263 = vld [vmem:[%s234 + $0x90] sm:$0xff]
      %v264 = vld [vmem:[%s234 + $0x98] sm:$0xff]
      %v265 = vld [vmem:[%s234 + $0xa0] sm:$0xff]
      %v266 = vld [vmem:[%s234 + $0xa8] sm:$0xff]
      %v267 = vld [vmem:[%s234 + $0xb0] sm:$0xff]
      %v268 = vld [vmem:[%s234 + $0xb8] sm:$0xff]
      %v269 = vld [vmem:[%s234 + $0xc0] sm:$0xff]
      %v270 = vld [vmem:[%s234 + $0xc8] sm:$0xff]
      %v271 = vld [vmem:[%s234 + $0xd0] sm:$0xff]
      %v272 = vld [vmem:[%s234 + $0xd8] sm:$0xff]
      %v273 = vld [vmem:[%s234 + $0xe0] sm:$0xff]
      %v274 = vld [vmem:[%s234 + $0xe8] sm:$0xff]
      %v275 = vld [vmem:[%s234 + $0xf0] sm:$0xff]
      %v276 = vld [vmem:[%s234 + $0xf8] sm:$0xff]
      %v277 = vld [vmem:[%s234 + $0x100] sm:$0xff]
      %v278 = vld [vmem:[%s234 + $0x108] sm:$0xff]
      %v279 = vld [vmem:[%s234 + $0x110] sm:$0xff]
      %v280 = vld [vmem:[%s234 + $0x118] sm:$0xff]
      %v281 = vld [vmem:[%s234 + $0x120] sm:$0xff]
      %v282 = vld [vmem:[%s234 + $0x128] sm:$0xff]
      %v283 = vld [vmem:[%s234 + $0x130] sm:$0xff]
      %v284 = vld [vmem:[%s234 + $0x138] sm:$0xff]
      %v285 = vld [vmem:[%s234 + $0x140] sm:$0xff]
      %v286 = vld [vmem:[%s234 + $0x148] sm:$0xff]
      %v287 = vld [vmem:[%s234 + $0x150] sm:$0xff]
      %v288 = vld [vmem:[%s234 + $0x158] sm:$0xff]
      %v289 = vld [vmem:[%s234 + $0x160] sm:$0xff]
      %v290 = vld [vmem:[%s234 + $0x168] sm:$0xff]
      %v291 = vld [vmem:[%s234 + $0x170] sm:$0xff]
      %v292 = vld [vmem:[%s234 + $0x178] sm:$0xff]
      %v293 = vld [vmem:[%s234 + $0x180] sm:$0xff]
      %v294 = vld [vmem:[%s234 + $0x188] sm:$0xff]
      %v295 = vld [vmem:[%s234 + $0x190] sm:$0xff]
      %v296 = vld [vmem:[%s234 + $0x198] sm:$0xff]
      %v297 = vld [vmem:[%s234 + $0x1a0] sm:$0xff]
      %v298 = vld [vmem:[%s234 + $0x1a8] sm:$0xff]
      %v299 = vld [vmem:[%s1] sm:$0xff]
      %v300 = vld [vmem:[%s1 + $0x8] sm:$0xff]
      %v301 = vld [vmem:[%s1 + $0x10] sm:$0xff]
      %v302 = vld [vmem:[%s1 + $0x18] sm:$0xff]
      %vm303 = vcmask 130048
      %v305 = vsel %vm303, %v300, 0
      %v308 = vsel %vm303, %v302, 0
      %310 = vmatpush.msra.mxu0 %v290
      %311 = vmatpush.msra.mxu0 %v287
      %312 = vmatpush.msra.mxu0 %v284
      %313 = vmatpush.msra.mxu0 %v281
      %314 = vmatpush.msra.mxu0 %v278
      %315 = vmatpush.msra.mxu0 %v275
      %316 = vmatpush.msra.mxu0 %v272
      %317 = vmatpush.msra.mxu0 %v269
      %318 = vmatpush.msra.mxu0 %v266
      %319 = vmatpush.msra.mxu0 %v263
      %320 = vmatpush.msra.mxu0 %v260
      %321 = vmatpush.msra.mxu0 %v257
      %322 = vmatpush.msra.mxu0 %v254
      %323 = vmatpush.msra.mxu0 %v251
      %324 = vmatpush.msra.mxu0 %v248
      %325 = vmatpush.msra.mxu0 %v245
      %326 = vmatmul.f32.gmra.mxu0 %v299
      %v327 = vpop.f32.mrf.mxu0
      %v328 = vadd.f32 0.0, %v327
      %329 = vmatmul.f32.gmra.mxu0 %v301
      %v330 = vpop.f32.mrf.mxu0
      %v331 = vadd.f32 0.0, %v330
      %332 = vdwg.mxu0
      %333 = vmatpush.msra.mxu0 0.0
      %334 = vmatpush.msra.mxu0 0.0
      %335 = vmatpush.msra.mxu0 0.0
      %336 = vmatpush.msra.mxu0 0.0
      %337 = vmatpush.msra.mxu0 0.0
      %338 = vmatpush.msra.mxu0 0.0
      %339 = vmatpush.msra.mxu0 0.0
      %340 = vmatpush.msra.mxu0 0.0
      %341 = vmatpush.msra.mxu0 0.0
      %342 = vmatpush.msra.mxu0 0.0
      %343 = vmatpush.msra.mxu0 0.0
      %344 = vmatpush.msra.mxu0 0.0
      %345 = vmatpush.msra.mxu0 0.0
      %346 = vmatpush.msra.mxu0 0.0
      %347 = vmatpush.msra.mxu0 %v296
      %348 = vmatpush.msra.mxu0 %v293
      %349 = vmatmul.f32.gmra.mxu0 %v305
      %v350 = vpop.f32.mrf.mxu0
      %v351 = vadd.f32 %v328, %v350
      %352 = vmatmul.f32.gmra.mxu0 %v308
      %v353 = vpop.f32.mrf.mxu0
      %v354 = vadd.f32 %v331, %v353
      %355 = vdwg.mxu0
      %356 = vmatpush.msra.mxu0 %v291
      %357 = vmatpush.msra.mxu0 %v288
      %358 = vmatpush.msra.mxu0 %v285
      %359 = vmatpush.msra.mxu0 %v282
      %360 = vmatpush.msra.mxu0 %v279
      %361 = vmatpush.msra.mxu0 %v276
      %362 = vmatpush.msra.mxu0 %v273
      %363 = vmatpush.msra.mxu0 %v270
      %364 = vmatpush.msra.mxu0 %v267
      %365 = vmatpush.msra.mxu0 %v264
      %366 = vmatpush.msra.mxu0 %v261
      %367 = vmatpush.msra.mxu0 %v258
      %368 = vmatpush.msra.mxu0 %v255
      %369 = vmatpush.msra.mxu0 %v252
      %370 = vmatpush.msra.mxu0 %v249
      %371 = vmatpush.msra.mxu0 %v246
      %372 = vmatmul.f32.gmra.mxu0 %v299
      %v373 = vpop.f32.mrf.mxu0
      %v374 = vadd.f32 0.0, %v373
      %375 = vmatmul.f32.gmra.mxu0 %v301
      %v376 = vpop.f32.mrf.mxu0
      %v377 = vadd.f32 0.0, %v376
      %378 = vdwg.mxu0
      %379 = vmatpush.msra.mxu0 0.0
      %380 = vmatpush.msra.mxu0 0.0
      %381 = vmatpush.msra.mxu0 0.0
      %382 = vmatpush.msra.mxu0 0.0
      %383 = vmatpush.msra.mxu0 0.0
      %384 = vmatpush.msra.mxu0 0.0
      %385 = vmatpush.msra.mxu0 0.0
      %386 = vmatpush.msra.mxu0 0.0
      %387 = vmatpush.msra.mxu0 0.0
      %388 = vmatpush.msra.mxu0 0.0
      %389 = vmatpush.msra.mxu0 0.0
      %390 = vmatpush.msra.mxu0 0.0
      %391 = vmatpush.msra.mxu0 0.0
      %392 = vmatpush.msra.mxu0 0.0
      %393 = vmatpush.msra.mxu0 %v297
      %394 = vmatpush.msra.mxu0 %v294
      %395 = vmatmul.f32.gmra.mxu0 %v305
      %v396 = vpop.f32.mrf.mxu0
      %v397 = vadd.f32 %v374, %v396
      %398 = vmatmul.f32.gmra.mxu0 %v308
      %v399 = vpop.f32.mrf.mxu0
      %v400 = vadd.f32 %v377, %v399
      %401 = vdwg.mxu0
      %402 = vmatpush.msra.mxu0 %v292
      %403 = vmatpush.msra.mxu0 %v289
      %404 = vmatpush.msra.mxu0 %v286
      %405 = vmatpush.msra.mxu0 %v283
      %406 = vmatpush.msra.mxu0 %v280
      %407 = vmatpush.msra.mxu0 %v277
      %408 = vmatpush.msra.mxu0 %v274
      %409 = vmatpush.msra.mxu0 %v271
      %410 = vmatpush.msra.mxu0 %v268
      %411 = vmatpush.msra.mxu0 %v265
      %412 = vmatpush.msra.mxu0 %v262
      %413 = vmatpush.msra.mxu0 %v259
      %414 = vmatpush.msra.mxu0 %v256
      %415 = vmatpush.msra.mxu0 %v253
      %416 = vmatpush.msra.mxu0 %v250
      %417 = vmatpush.msra.mxu0 %v247
      %418 = vmatmul.f32.gmra.mxu0 %v299
      %v419 = vpop.f32.mrf.mxu0
      %v420 = vadd.f32 0.0, %v419
      %421 = vmatmul.f32.gmra.mxu0 %v301
      %v422 = vpop.f32.mrf.mxu0
      %v423 = vadd.f32 0.0, %v422
      %424 = vdwg.mxu0
      %425 = vmatpush.msra.mxu0 0.0
      %426 = vmatpush.msra.mxu0 0.0
      %427 = vmatpush.msra.mxu0 0.0
      %428 = vmatpush.msra.mxu0 0.0
      %429 = vmatpush.msra.mxu0 0.0
      %430 = vmatpush.msra.mxu0 0.0
      %431 = vmatpush.msra.mxu0 0.0
      %432 = vmatpush.msra.mxu0 0.0
      %433 = vmatpush.msra.mxu0 0.0
      %434 = vmatpush.msra.mxu0 0.0
      %435 = vmatpush.msra.mxu0 0.0
      %436 = vmatpush.msra.mxu0 0.0
      %437 = vmatpush.msra.mxu0 0.0
      %438 = vmatpush.msra.mxu0 0.0
      %439 = vmatpush.msra.mxu0 %v298
      %440 = vmatpush.msra.mxu0 %v295
      %441 = vmatmul.f32.gmra.mxu0 %v305
      %v442 = vpop.f32.mrf.mxu0
      %v443 = vadd.f32 %v420, %v442
      %444 = vmatmul.f32.gmra.mxu0 %v308
      %v445 = vpop.f32.mrf.mxu0
      %v446 = vadd.f32 %v423, %v445
      %447 = vdwg.mxu0
      %v448 = vld [vmem:[%s2] sm:$0xff]
      %v449 = vld [vmem:[%s2 + $0x8] sm:$0xff]
      %451 = vset.pattern.permute.xlu0 0
      %452 = vperm.xlu0 %451, %v448
      %v453 = vpop.permute.xlu0 %452
      %456 = vset.pattern.permute.xlu0 0
      %457 = vperm.xlu0 %456, %v449
      %v458 = vpop.permute.xlu0 %457
      %v460 = vmul.f32 %v351, %v453
      %v461 = vmul.f32 %v397, %v453
      %v462 = vmul.f32 %v443, %v453
      %v463 = vmul.f32 %v354, %v458
      %v464 = vmul.f32 %v400, %v458
      %v465 = vmul.f32 %v446, %v458
      %v466 = vld [vmem:[%s3] sm:$0xff]
      %v467 = vld [vmem:[%s3 + $0x8] sm:$0xff]
      %469 = vset.pattern.permute.xlu0 0
      %470 = vperm.xlu0 %469, %v466
      %v471 = vpop.permute.xlu0 %470
      %474 = vset.pattern.permute.xlu0 0
      %475 = vperm.xlu0 %474, %v467
      %v476 = vpop.permute.xlu0 %475
      %v478 = vadd.f32 %v460, %v471
      %v479 = vadd.f32 %v461, %v471
      %v480 = vadd.f32 %v462, %v471
      %v481 = vadd.f32 %v463, %v476
      %v482 = vadd.f32 %v464, %v476
      %v483 = vadd.f32 %v465, %v476
      %v484 = vld [vmem:[%s239] sm:$0xff]
      %v485 = vld [vmem:[%s239 + $0x8] sm:$0xff]
      %v486 = vld [vmem:[%s239 + $0x10] sm:$0xff]
      %v487 = vld [vmem:[%s239 + $0x18] sm:$0xff]
      %v488 = vld [vmem:[%s239 + $0x20] sm:$0xff]
      %v489 = vld [vmem:[%s239 + $0x28] sm:$0xff]
      %v490 = vadd.f32 %v478, %v484
      %v491 = vadd.f32 %v479, %v485
      %v492 = vadd.f32 %v480, %v486
      %v493 = vadd.f32 %v481, %v487
      %v494 = vadd.f32 %v482, %v488
      %v495 = vadd.f32 %v483, %v489
      %496 = vst [vmem:[%s244] sm:$0xff] %v490
      %497 = vst [vmem:[%s244 + $0x8] sm:$0xff] %v491
      %vm498 = vcmask 875520
      %499 = vst.msk [vmem:[%s244 + $0x10] sm:$0xff] %vm498, %v492
      %500 = vst [vmem:[%s244 + $0x18] sm:$0xff] %v493
      %501 = vst [vmem:[%s244 + $0x20] sm:$0xff] %v494
      %502 = vst.msk [vmem:[%s244 + $0x28] sm:$0xff] %vm498, %v495
      %p503 = scmp.lt.s32.totalorder %s16, 1
      %s504 = scalar_select %p503, %s16, 1
      %s505 = smul.addr %s504, 6
      %s506 = smul.addr %s505, 8
      %s507 = scalar_lea.vmem %s5, %s506
      // Predicated region
      $region41: #{mldg_forward.19} parent=39 // pred_check
        %p508 = pneg %p149
      $region42: #{mldg_forward.19} parent=39 // pred_check_branch
        %510 = sbr.rel (%p508) target = $region44
      $region43: #{mldg_forward.19} parent=39 // pred_region
        _
      $region44: #{mldg_forward.19} parent=39 // pred_fallthru
        _
    $region40: #{mldg_forward.19} parent=5 // pred_fallthru
      _
    %p511 = scmp.le.s32.totalorder 2, %s11
    // Predicated region
    $region45: #{mldg_forward.19} parent=5 // pred_check
      %p512 = pneg %p511
    $region46: #{mldg_forward.19} parent=5 // pred_check_branch
      %514 = sbr.rel (%p512) target = $region48
    $region47: #{mldg_forward.19} parent=5 // pred_region
      %s515 = ssub.s32 %s11, 2
      // Predicated region
      $region49: #{mldg_forward.19} parent=47 // pred_check
        %p516 = pneg %p155
      $region50: #{mldg_forward.19} parent=47 // pred_check_branch
        %518 = sbr.rel (%p516) target = $region52
      $region51: #{mldg_forward.19} parent=47 // pred_region
        %p519 = scmp.lt.s32.totalorder %s17, 1
        %s520 = scalar_select %p519, %s17, 1
        %s521 = smul.addr %s520, 6
        %s522 = smul.addr %s521, 8
        %s523 = scalar_lea.vmem %s5, %s522
      $region52: #{mldg_forward.19} parent=47 // pred_fallthru
        _
    $region48: #{mldg_forward.19} parent=5 // pred_fallthru
      _
  $region6: #{mldg_forward.19} parent=0 // loop_footer
    %s15 = sadd.s32 1, %s11
  $region7: #{mldg_forward.19} parent=0 // loop_footer_branch
    %10 = sbr.rel target = $region3
  $region8: #{mldg_forward.19} parent=0 // loop_exit
    _

// kernel: mldg_forward.20
$region0: #{mldg_forward.20}
  #allocation0 [shape = 'u32[]', space=smem, size = 0x4, offset = 0x4, fixed_abs, tag = 'smem constant byte address 0x4 - core index']
  #allocation1 [shape = 'u32[72,128]{1,0:T(1,128)}', space=vmem, size = 0x9000, scoped, tag = 'internal scratch']
  %s0 = inlined_call_operand.vmem [shape: f32[2,144,24], index: 0, kind: input, shape index: {}]
  %s1 = inlined_call_operand.vmem [shape: f32[32,144], index: 1, kind: input, shape index: {}]
  %s2 = inlined_call_operand.vmem [shape: f32[32,1], index: 2, kind: input, shape index: {}]
  %s3 = inlined_call_operand.vmem [shape: f32[32,1], index: 3, kind: input, shape index: {}]
  %s4 = inlined_call_operand.vmem [shape: f32[2,32,24], index: 4, kind: output, shape index: {}]
  %s5 = sld [smem:[#allocation0]]
  $region49: #{mldg_forward.20} parent=0
    _
  %s7 = ssub.s32 1, %s5
  %s8 = scalar_select 0, %s7, %s5
  loop: start=0, step=1, limit=4
  $region2: #{mldg_forward.20} parent=0 // loop_pre_header
    _
  $region3: #{mldg_forward.20} parent=0 // loop_header
    %s10 = sphi 0, %s14
    %p11 = scmp.ge.s32.totalorder %s10, 4
    %s20 = sphi 0, %s22
    %s23 = sphi 0, %s20
    %s24 = sphi 0, %s23
    %s40 = sphi 0, %s24
    %s44 = sphi 0, %s44
    %s46 = sphi 0, %s44
    %s47 = sphi 0, %s46
    %s61 = sphi 0, %s47
    %s65 = sphi 0, %s65
    %s67 = sphi 0, %s65
    %s68 = sphi 0, %s67
    %s82 = sphi 0, %s68
    %s86 = sphi 0, %s86
    %s88 = sphi 0, %s86
    %s89 = sphi 0, %s88
    %s103 = sphi 0, %s89
    %s109 = sphi 0, %s111
    %s112 = sphi 0, %s109
    %s113 = sphi 0, %s112
    %s129 = sphi 0, %s113
  $region4: #{mldg_forward.20} parent=0 // loop_header_branch
    %13 = sbr.rel (%p11) target = $region8
  $region5: #{mldg_forward.20} parent=0 // loop_body
    %s15 = ssub.s32 %s10, 1
    %s16 = ssub.s32 %s10, 2
    %s17 = sadd.s32 %s10, 1
    %s18 = ssub.s32 %s10, %s17
    %p19 = scmp.eq.s32.totalorder %s18, 0
    %s21 = sadd.s32 %s20, 1
    %s22 = scalar_select %p19, %s20, %s21
    %p25 = pneg %p19
    %p26 = scmp.eq.s32.totalorder %s10, 1
    %p27 = por %p25, %p26
    %p28 = scmp.ne.s32.totalorder %s20, %s23
    %p29 = scmp.eq.s32.totalorder %s10, 0
    %p30 = por %p28, %p29
    %p31 = scmp.ne.s32.totalorder %s20, %s23
    %p32 = scmp.eq.s32.totalorder %s15, 1
    %p33 = por %p31, %p32
    %p34 = scmp.ne.s32.totalorder %s23, %s24
    %p35 = scmp.eq.s32.totalorder %s15, 0
    %p36 = por %p34, %p35
    %p37 = scmp.ne.s32.totalorder %s23, %s24
    %p38 = scmp.eq.s32.totalorder %s16, 1
    %p39 = por %p37, %p38
    %p41 = scmp.ne.s32.totalorder %s24, %s40
    %p42 = scmp.eq.s32.totalorder %s16, 0
    %p43 = por %p41, %p42
    %s45 = sadd.s32 %s44, 1
    %p48 = scmp.eq.s32.totalorder %s10, 1
    %p49 = scmp.ne.s32.totalorder %s44, %s46
    %p50 = scmp.eq.s32.totalorder %s10, 0
    %p51 = por %p49, %p50
    %p52 = scmp.ne.s32.totalorder %s44, %s46
    %p53 = scmp.eq.s32.totalorder %s15, 1
    %p54 = por %p52, %p53
    %p55 = scmp.ne.s32.totalorder %s46, %s47
    %p56 = scmp.eq.s32.totalorder %s15, 0
    %p57 = por %p55, %p56
    %p58 = scmp.ne.s32.totalorder %s46, %s47
    %p59 = scmp.eq.s32.totalorder %s16, 1
    %p60 = por %p58, %p59
    %p62 = scmp.ne.s32.totalorder %s47, %s61
    %p63 = scmp.eq.s32.totalorder %s16, 0
    %p64 = por %p62, %p63
    %s66 = sadd.s32 %s65, 1
    %p69 = scmp.eq.s32.totalorder %s10, 1
    %p70 = scmp.ne.s32.totalorder %s65, %s67
    %p71 = scmp.eq.s32.totalorder %s10, 0
    %p72 = por %p70, %p71
    %p73 = scmp.ne.s32.totalorder %s65, %s67
    %p74 = scmp.eq.s32.totalorder %s15, 1
    %p75 = por %p73, %p74
    %p76 = scmp.ne.s32.totalorder %s67, %s68
    %p77 = scmp.eq.s32.totalorder %s15, 0
    %p78 = por %p76, %p77
    %p79 = scmp.ne.s32.totalorder %s67, %s68
    %p80 = scmp.eq.s32.totalorder %s16, 1
    %p81 = por %p79, %p80
    %p83 = scmp.ne.s32.totalorder %s68, %s82
    %p84 = scmp.eq.s32.totalorder %s16, 0
    %p85 = por %p83, %p84
    %s87 = sadd.s32 %s86, 1
    %p90 = scmp.eq.s32.totalorder %s10, 1
    %p91 = scmp.ne.s32.totalorder %s86, %s88
    %p92 = scmp.eq.s32.totalorder %s10, 0
    %p93 = por %p91, %p92
    %p94 = scmp.ne.s32.totalorder %s86, %s88
    %p95 = scmp.eq.s32.totalorder %s15, 1
    %p96 = por %p94, %p95
    %p97 = scmp.ne.s32.totalorder %s88, %s89
    %p98 = scmp.eq.s32.totalorder %s15, 0
    %p99 = por %p97, %p98
    %p100 = scmp.ne.s32.totalorder %s88, %s89
    %p101 = scmp.eq.s32.totalorder %s16, 1
    %p102 = por %p100, %p101
    %p104 = scmp.ne.s32.totalorder %s89, %s103
    %p105 = scmp.eq.s32.totalorder %s16, 0
    %p106 = por %p104, %p105
    %s107 = ssub.s32 %s10, %s17
    %p108 = scmp.eq.s32.totalorder %s107, 0
    %s110 = sadd.s32 %s109, 1
    %s111 = scalar_select %p108, %s109, %s110
    %p114 = pneg %p108
    %p115 = scmp.eq.s32.totalorder %s10, 1
    %p116 = por %p114, %p115
    %p117 = scmp.ne.s32.totalorder %s109, %s112
    %p118 = scmp.eq.s32.totalorder %s10, 0
    %p119 = por %p117, %p118
    %p120 = scmp.ne.s32.totalorder %s109, %s112
    %p121 = scmp.eq.s32.totalorder %s15, 1
    %p122 = por %p120, %p121
    %p123 = scmp.ne.s32.totalorder %s112, %s113
    %p124 = scmp.eq.s32.totalorder %s15, 0
    %p125 = por %p123, %p124
    %p126 = scmp.ne.s32.totalorder %s112, %s113
    %p127 = scmp.eq.s32.totalorder %s16, 1
    %p128 = por %p126, %p127
    %p130 = scmp.ne.s32.totalorder %s113, %s129
    %p131 = scmp.eq.s32.totalorder %s16, 0
    %p132 = por %p130, %p131
    %p133 = scmp.le.s32.totalorder 1, %s10
    %p134 = scmp.lt.s32.totalorder %s10, 3
    %p135 = pnand %p133, %p134
    %p136 = pneg %p135
    // Predicated region
    $region9: #{mldg_forward.20} parent=5 // pred_check
      _
    $region10: #{mldg_forward.20} parent=5 // pred_check_branch
      %138 = sbr.rel (%p135) target = $region12
    $region11: #{mldg_forward.20} parent=5 // pred_region
      %s139 = ssub.s32 %s10, 1
      // Predicated region
      $region13: #{mldg_forward.20} parent=11 // pred_check
        %p140 = pneg %p57
      $region14: #{mldg_forward.20} parent=11 // pred_check_branch
        %142 = sbr.rel (%p140) target = $region16
      $region15: #{mldg_forward.20} parent=11 // pred_region
        _
      $region16: #{mldg_forward.20} parent=11 // pred_fallthru
        _
      // Predicated region
      $region17: #{mldg_forward.20} parent=11 // pred_check
        %p143 = pneg %p78
      $region18: #{mldg_forward.20} parent=11 // pred_check_branch
        %145 = sbr.rel (%p143) target = $region20
      $region19: #{mldg_forward.20} parent=11 // pred_region
        _
      $region20: #{mldg_forward.20} parent=11 // pred_fallthru
        _
      // Predicated region
      $region21: #{mldg_forward.20} parent=11 // pred_check
        %p146 = pneg %p99
      $region22: #{mldg_forward.20} parent=11 // pred_check_branch
        %148 = sbr.rel (%p146) target = $region24
      $region23: #{mldg_forward.20} parent=11 // pred_region
        _
      $region24: #{mldg_forward.20} parent=11 // pred_fallthru
        _
    $region12: #{mldg_forward.20} parent=5 // pred_fallthru
      _
    %p149 = scmp.lt.s32.totalorder %s10, 2
    // Predicated region
    $region25: #{mldg_forward.20} parent=5 // pred_check
      %p150 = pneg %p149
    $region26: #{mldg_forward.20} parent=5 // pred_check_branch
      %152 = sbr.rel (%p150) target = $region28
    $region27: #{mldg_forward.20} parent=5 // pred_region
      // Predicated region
      $region29: #{mldg_forward.20} parent=27 // pred_check
        %p153 = pneg %p30
      $region30: #{mldg_forward.20} parent=27 // pred_check_branch
        %155 = sbr.rel (%p153) target = $region32
      $region31: #{mldg_forward.20} parent=27 // pred_region
        %p156 = scmp.lt.s32.totalorder %s10, 1
        %s157 = scalar_select %p156, %s10, 1
        %s158 = smul.addr %s157, 18
        %s159 = smul.addr %s158, 8
        %s160 = scalar_lea.vmem %s0, %s159
      $region32: #{mldg_forward.20} parent=27 // pred_fallthru
        _
    $region28: #{mldg_forward.20} parent=5 // pred_fallthru
      _
    %p161 = scmp.le.s32.totalorder 1, %s10
    %p162 = scmp.lt.s32.totalorder %s10, 3
    %p163 = pnand %p161, %p162
    %p164 = pneg %p163
    // Predicated region
    $region33: #{mldg_forward.20} parent=5 // pred_check
      _
    $region34: #{mldg_forward.20} parent=5 // pred_check_branch
      %166 = sbr.rel (%p163) target = $region36
    $region35: #{mldg_forward.20} parent=5 // pred_region
      %s167 = ssub.s32 %s10, 1
      %p168 = scmp.lt.s32.totalorder %s15, 1
      %s169 = scalar_select %p168, %s15, 1
      %s170 = smul.addr %s169, 18
      %s171 = smul.addr %s170, 8
      %s172 = scalar_lea.vmem %s0, %s171
      %p173 = pneg %p36
      %p174 = pneg %p33
      %p175 = pneg %p57
      %p176 = pneg %p54
      %p177 = pneg %p78
      %p178 = pneg %p75
      %p179 = pneg %p99
      %p180 = pneg %p96
      %p181 = pneg %p125
      %p182 = pneg %p122
      %p183 = scmp.lt.s32.totalorder %s15, 1
      %s184 = scalar_select %p183, %s15, 1
      %s185 = smul.addr %s184, 4
      %s186 = smul.addr %s185, 8
      %s187 = scalar_lea.vmem %s4, %s186
      %p188 = scmp.lt.s32.totalorder %s15, 1
      %s189 = scalar_select %p188, %s15, 1
      %s190 = smul.addr %s189, 18
      %s191 = smul.addr %s190, 8
      %s192 = scalar_lea.vmem %s0, %s191
      %p193 = scmp.lt.s32.totalorder %s15, 1
      %s194 = scalar_select %p193, %s15, 1
      %s195 = smul.addr %s194, 4
      %s196 = smul.addr %s195, 8
      %s197 = scalar_lea.vmem %s4, %s196
      %v198 = vld [vmem:[%s192] sm:$0xff]
      %v199 = vld [vmem:[%s192 + $0x8] sm:$0xff]
      %v200 = vld [vmem:[%s192 + $0x10] sm:$0xff]
      %v201 = vld [vmem:[%s192 + $0x18] sm:$0xff]
      %v202 = vld [vmem:[%s192 + $0x20] sm:$0xff]
      %v203 = vld [vmem:[%s192 + $0x28] sm:$0xff]
      %v204 = vld [vmem:[%s192 + $0x30] sm:$0xff]
      %v205 = vld [vmem:[%s192 + $0x38] sm:$0xff]
      %v206 = vld [vmem:[%s192 + $0x40] sm:$0xff]
      %v207 = vld [vmem:[%s192 + $0x48] sm:$0xff]
      %v208 = vld [vmem:[%s192 + $0x50] sm:$0xff]
      %v209 = vld [vmem:[%s192 + $0x58] sm:$0xff]
      %v210 = vld [vmem:[%s192 + $0x60] sm:$0xff]
      %v211 = vld [vmem:[%s192 + $0x68] sm:$0xff]
      %v212 = vld [vmem:[%s192 + $0x70] sm:$0xff]
      %v213 = vld [vmem:[%s192 + $0x78] sm:$0xff]
      %v214 = vld [vmem:[%s192 + $0x80] sm:$0xff]
      %v215 = vld [vmem:[%s192 + $0x88] sm:$0xff]
      %v216 = vld [vmem:[%s1] sm:$0xff]
      %v217 = vld [vmem:[%s1 + $0x8] sm:$0xff]
      %v218 = vld [vmem:[%s1 + $0x10] sm:$0xff]
      %v219 = vld [vmem:[%s1 + $0x18] sm:$0xff]
      %v220 = vld [vmem:[%s1 + $0x20] sm:$0xff]
      %v221 = vld [vmem:[%s1 + $0x28] sm:$0xff]
      %v222 = vld [vmem:[%s1 + $0x30] sm:$0xff]
      %v223 = vld [vmem:[%s1 + $0x38] sm:$0xff]
      %vm224 = vcmask 130048
      %v226 = vsel %vm224, %v217, 0
      %v229 = vsel %vm224, %v219, 0
      %v232 = vsel %vm224, %v221, 0
      %v235 = vsel %vm224, %v223, 0
      %237 = vmatpush.msra.mxu0 %v213
      %238 = vmatpush.msra.mxu0 %v212
      %239 = vmatpush.msra.mxu0 %v211
      %240 = vmatpush.msra.mxu0 %v210
      %241 = vmatpush.msra.mxu0 %v209
      %242 = vmatpush.msra.mxu0 %v208
      %243 = vmatpush.msra.mxu0 %v207
      %244 = vmatpush.msra.mxu0 %v206
      %245 = vmatpush.msra.mxu0 %v205
      %246 = vmatpush.msra.mxu0 %v204
      %247 = vmatpush.msra.mxu0 %v203
      %248 = vmatpush.msra.mxu0 %v202
      %249 = vmatpush.msra.mxu0 %v201
      %250 = vmatpush.msra.mxu0 %v200
      %251 = vmatpush.msra.mxu0 %v199
      %252 = vmatpush.msra.mxu0 %v198
      %253 = vmatmul.f32.gmra.mxu0 %v216
      %v254 = vpop.f32.mrf.mxu0
      %v255 = vadd.f32 0.0, %v254
      %256 = vmatmul.f32.gmra.mxu0 %v218
      %v257 = vpop.f32.mrf.mxu0
      %v258 = vadd.f32 0.0, %v257
      %259 = vmatmul.f32.gmra.mxu0 %v220
      %v260 = vpop.f32.mrf.mxu0
      %v261 = vadd.f32 0.0, %v260
      %262 = vmatmul.f32.gmra.mxu0 %v222
      %v263 = vpop.f32.mrf.mxu0
      %v264 = vadd.f32 0.0, %v263
      %265 = vdwg.mxu0
      %266 = vmatpush.msra.mxu0 0.0
      %267 = vmatpush.msra.mxu0 0.0
      %268 = vmatpush.msra.mxu0 0.0
      %269 = vmatpush.msra.mxu0 0.0
      %270 = vmatpush.msra.mxu0 0.0
      %271 = vmatpush.msra.mxu0 0.0
      %272 = vmatpush.msra.mxu0 0.0
      %273 = vmatpush.msra.mxu0 0.0
      %274 = vmatpush.msra.mxu0 0.0
      %275 = vmatpush.msra.mxu0 0.0
      %276 = vmatpush.msra.mxu0 0.0
      %277 = vmatpush.msra.mxu0 0.0
      %278 = vmatpush.msra.mxu0 0.0
      %279 = vmatpush.msra.mxu0 0.0
      %280 = vmatpush.msra.mxu0 %v215
      %281 = vmatpush.msra.mxu0 %v214
      %282 = vmatmul.f32.gmra.mxu0 %v226
      %v283 = vpop.f32.mrf.mxu0
      %v284 = vadd.f32 %v255, %v283
      %285 = vmatmul.f32.gmra.mxu0 %v229
      %v286 = vpop.f32.mrf.mxu0
      %v287 = vadd.f32 %v258, %v286
      %288 = vmatmul.f32.gmra.mxu0 %v232
      %v289 = vpop.f32.mrf.mxu0
      %v290 = vadd.f32 %v261, %v289
      %291 = vmatmul.f32.gmra.mxu0 %v235
      %v292 = vpop.f32.mrf.mxu0
      %v293 = vadd.f32 %v264, %v292
      %294 = vdwg.mxu0
      %v295 = vld [vmem:[%s2] sm:$0xff]
      %v296 = vld [vmem:[%s2 + $0x8] sm:$0xff]
      %v297 = vld [vmem:[%s2 + $0x10] sm:$0xff]
      %v298 = vld [vmem:[%s2 + $0x18] sm:$0xff]
      %300 = vset.pattern.permute.xlu0 0
      %301 = vperm.xlu0 %300, %v295
      %v302 = vpop.permute.xlu0 %301
      %305 = vset.pattern.permute.xlu0 0
      %306 = vperm.xlu0 %305, %v296
      %v307 = vpop.permute.xlu0 %306
      %310 = vset.pattern.permute.xlu0 0
      %311 = vperm.xlu0 %310, %v297
      %v312 = vpop.permute.xlu0 %311
      %315 = vset.pattern.permute.xlu0 0
      %316 = vperm.xlu0 %315, %v298
      %v317 = vpop.permute.xlu0 %316
      %v319 = vmul.f32 %v284, %v302
      %v320 = vmul.f32 %v287, %v307
      %v321 = vmul.f32 %v290, %v312
      %v322 = vmul.f32 %v293, %v317
      %v323 = vld [vmem:[%s3] sm:$0xff]
      %v324 = vld [vmem:[%s3 + $0x8] sm:$0xff]
      %v325 = vld [vmem:[%s3 + $0x10] sm:$0xff]
      %v326 = vld [vmem:[%s3 + $0x18] sm:$0xff]
      %328 = vset.pattern.permute.xlu0 0
      %329 = vperm.xlu0 %328, %v323
      %v330 = vpop.permute.xlu0 %329
      %333 = vset.pattern.permute.xlu0 0
      %334 = vperm.xlu0 %333, %v324
      %v335 = vpop.permute.xlu0 %334
      %338 = vset.pattern.permute.xlu0 0
      %339 = vperm.xlu0 %338, %v325
      %v340 = vpop.permute.xlu0 %339
      %343 = vset.pattern.permute.xlu0 0
      %344 = vperm.xlu0 %343, %v326
      %v345 = vpop.permute.xlu0 %344
      %v347 = vadd.f32 %v319, %v330
      %v348 = vadd.f32 %v320, %v335
      %v349 = vadd.f32 %v321, %v340
      %v350 = vadd.f32 %v322, %v345
      %vm351 = vcmp.gt.f32.partialorder %v347, 0.0
      %vm352 = vcmp.gt.f32.partialorder %v348, 0.0
      %vm353 = vcmp.gt.f32.partialorder %v349, 0.0
      %vm354 = vcmp.gt.f32.partialorder %v350, 0.0
      %v355 = vmin.f32 %v347, 0.0
      %v356 = vmin.f32 %v348, 0.0
      %v357 = vmin.f32 %v349, 0.0
      %v358 = vmin.f32 %v350, 0.0
      %v359 = vmul.f32 %v355, 1.442695
      %v360 = vpow.pop %v359
      %v361 = vmul.f32 %v356, 1.442695
      %v362 = vpow.pop %v361
      %v363 = vmul.f32 %v357, 1.442695
      %v364 = vpow.pop %v363
      %v365 = vmul.f32 %v358, 1.442695
      %v366 = vpow.pop %v365
      %v367 = vsub.f32 %v360, 1.0
      %v368 = vsub.f32 %v362, 1.0
      %v369 = vsub.f32 %v364, 1.0
      %v370 = vsub.f32 %v366, 1.0
      %v371 = vsel %vm351, %v347, %v367
      %v372 = vsel %vm352, %v348, %v368
      %v373 = vsel %vm353, %v349, %v369
      %v374 = vsel %vm354, %v350, %v370
      %vm375 = vcmask 195584
      %376 = vst.msk [vmem:[%s197] sm:$0xff] %vm375, %v371
      %377 = vst.msk [vmem:[%s197 + $0x8] sm:$0xff] %vm375, %v372
      %378 = vst.msk [vmem:[%s197 + $0x10] sm:$0xff] %vm375, %v373
      %379 = vst.msk [vmem:[%s197 + $0x18] sm:$0xff] %vm375, %v374
      %p380 = scmp.lt.s32.totalorder %s15, 1
      %s381 = scalar_select %p380, %s15, 1
      %s382 = smul.addr %s381, 4
      %s383 = smul.addr %s382, 8
      %s384 = scalar_lea.vmem %s4, %s383
      // Predicated region
      $region37: #{mldg_forward.20} parent=35 // pred_check
        %p385 = pneg %p122
      $region38: #{mldg_forward.20} parent=35 // pred_check_branch
        %387 = sbr.rel (%p385) target = $region40
      $region39: #{mldg_forward.20} parent=35 // pred_region
        _
      $region40: #{mldg_forward.20} parent=35 // pred_fallthru
        _
    $region36: #{mldg_forward.20} parent=5 // pred_fallthru
      _
    %p388 = scmp.le.s32.totalorder 2, %s10
    // Predicated region
    $region41: #{mldg_forward.20} parent=5 // pred_check
      %p389 = pneg %p388
    $region42: #{mldg_forward.20} parent=5 // pred_check_branch
      %391 = sbr.rel (%p389) target = $region44
    $region43: #{mldg_forward.20} parent=5 // pred_region
      %s392 = ssub.s32 %s10, 2
      // Predicated region
      $region45: #{mldg_forward.20} parent=43 // pred_check
        %p393 = pneg %p128
      $region46: #{mldg_forward.20} parent=43 // pred_check_branch
        %395 = sbr.rel (%p393) target = $region48
      $region47: #{mldg_forward.20} parent=43 // pred_region
        %p396 = scmp.lt.s32.totalorder %s16, 1
        %s397 = scalar_select %p396, %s16, 1
        %s398 = smul.addr %s397, 4
        %s399 = smul.addr %s398, 8
        %s400 = scalar_lea.vmem %s4, %s399
      $region48: #{mldg_forward.20} parent=43 // pred_fallthru
        _
    $region44: #{mldg_forward.20} parent=5 // pred_fallthru
      _
  $region6: #{mldg_forward.20} parent=0 // loop_footer
    %s14 = sadd.s32 1, %s10
  $region7: #{mldg_forward.20} parent=0 // loop_footer_branch
    %9 = sbr.rel target = $region3
  $region8: #{mldg_forward.20} parent=0 // loop_exit
    _

// kernel: mldg_forward.21
$region0: #{mldg_forward.21}
  #allocation0 [shape = 'u32[]', space=smem, size = 0x4, offset = 0x4, fixed_abs, tag = 'smem constant byte address 0x4 - core index']
  #allocation1 [shape = 'u32[72,128]{1,0:T(1,128)}', space=vmem, size = 0x9000, scoped, tag = 'internal scratch']
  %s0 = inlined_call_operand.vmem [shape: f32[2,144,24], index: 0, kind: input, shape index: {}]
  %s1 = inlined_call_operand.vmem [shape: f32[32,144], index: 1, kind: input, shape index: {}]
  %s2 = inlined_call_operand.vmem [shape: f32[32,1], index: 2, kind: input, shape index: {}]
  %s3 = inlined_call_operand.vmem [shape: f32[32,1], index: 3, kind: input, shape index: {}]
  %s4 = inlined_call_operand.vmem [shape: f32[2,32,24], index: 4, kind: output, shape index: {}]
  %s5 = sld [smem:[#allocation0]]
  $region49: #{mldg_forward.21} parent=0
    _
  %s7 = ssub.s32 1, %s5
  %s8 = scalar_select 0, %s7, %s5
  loop: start=0, step=1, limit=4
  $region2: #{mldg_forward.21} parent=0 // loop_pre_header
    _
  $region3: #{mldg_forward.21} parent=0 // loop_header
    %s10 = sphi 0, %s14
    %p11 = scmp.ge.s32.totalorder %s10, 4
    %s20 = sphi 0, %s22
    %s23 = sphi 0, %s20
    %s24 = sphi 0, %s23
    %s40 = sphi 0, %s24
    %s44 = sphi 0, %s44
    %s46 = sphi 0, %s44
    %s47 = sphi 0, %s46
    %s61 = sphi 0, %s47
    %s65 = sphi 0, %s65
    %s67 = sphi 0, %s65
    %s68 = sphi 0, %s67
    %s82 = sphi 0, %s68
    %s86 = sphi 0, %s86
    %s88 = sphi 0, %s86
    %s89 = sphi 0, %s88
    %s103 = sphi 0, %s89
    %s109 = sphi 0, %s111
    %s112 = sphi 0, %s109
    %s113 = sphi 0, %s112
    %s129 = sphi 0, %s113
  $region4: #{mldg_forward.21} parent=0 // loop_header_branch
    %13 = sbr.rel (%p11) target = $region8
  $region5: #{mldg_forward.21} parent=0 // loop_body
    %s15 = ssub.s32 %s10, 1
    %s16 = ssub.s32 %s10, 2
    %s17 = sadd.s32 %s10, 1
    %s18 = ssub.s32 %s10, %s17
    %p19 = scmp.eq.s32.totalorder %s18, 0
    %s21 = sadd.s32 %s20, 1
    %s22 = scalar_select %p19, %s20, %s21
    %p25 = pneg %p19
    %p26 = scmp.eq.s32.totalorder %s10, 1
    %p27 = por %p25, %p26
    %p28 = scmp.ne.s32.totalorder %s20, %s23
    %p29 = scmp.eq.s32.totalorder %s10, 0
    %p30 = por %p28, %p29
    %p31 = scmp.ne.s32.totalorder %s20, %s23
    %p32 = scmp.eq.s32.totalorder %s15, 1
    %p33 = por %p31, %p32
    %p34 = scmp.ne.s32.totalorder %s23, %s24
    %p35 = scmp.eq.s32.totalorder %s15, 0
    %p36 = por %p34, %p35
    %p37 = scmp.ne.s32.totalorder %s23, %s24
    %p38 = scmp.eq.s32.totalorder %s16, 1
    %p39 = por %p37, %p38
    %p41 = scmp.ne.s32.totalorder %s24, %s40
    %p42 = scmp.eq.s32.totalorder %s16, 0
    %p43 = por %p41, %p42
    %s45 = sadd.s32 %s44, 1
    %p48 = scmp.eq.s32.totalorder %s10, 1
    %p49 = scmp.ne.s32.totalorder %s44, %s46
    %p50 = scmp.eq.s32.totalorder %s10, 0
    %p51 = por %p49, %p50
    %p52 = scmp.ne.s32.totalorder %s44, %s46
    %p53 = scmp.eq.s32.totalorder %s15, 1
    %p54 = por %p52, %p53
    %p55 = scmp.ne.s32.totalorder %s46, %s47
    %p56 = scmp.eq.s32.totalorder %s15, 0
    %p57 = por %p55, %p56
    %p58 = scmp.ne.s32.totalorder %s46, %s47
    %p59 = scmp.eq.s32.totalorder %s16, 1
    %p60 = por %p58, %p59
    %p62 = scmp.ne.s32.totalorder %s47, %s61
    %p63 = scmp.eq.s32.totalorder %s16, 0
    %p64 = por %p62, %p63
    %s66 = sadd.s32 %s65, 1
    %p69 = scmp.eq.s32.totalorder %s10, 1
    %p70 = scmp.ne.s32.totalorder %s65, %s67
    %p71 = scmp.eq.s32.totalorder %s10, 0
    %p72 = por %p70, %p71
    %p73 = scmp.ne.s32.totalorder %s65, %s67
    %p74 = scmp.eq.s32.totalorder %s15, 1
    %p75 = por %p73, %p74
    %p76 = scmp.ne.s32.totalorder %s67, %s68
    %p77 = scmp.eq.s32.totalorder %s15, 0
    %p78 = por %p76, %p77
    %p79 = scmp.ne.s32.totalorder %s67, %s68
    %p80 = scmp.eq.s32.totalorder %s16, 1
    %p81 = por %p79, %p80
    %p83 = scmp.ne.s32.totalorder %s68, %s82
    %p84 = scmp.eq.s32.totalorder %s16, 0
    %p85 = por %p83, %p84
    %s87 = sadd.s32 %s86, 1
    %p90 = scmp.eq.s32.totalorder %s10, 1
    %p91 = scmp.ne.s32.totalorder %s86, %s88
    %p92 = scmp.eq.s32.totalorder %s10, 0
    %p93 = por %p91, %p92
    %p94 = scmp.ne.s32.totalorder %s86, %s88
    %p95 = scmp.eq.s32.totalorder %s15, 1
    %p96 = por %p94, %p95
    %p97 = scmp.ne.s32.totalorder %s88, %s89
    %p98 = scmp.eq.s32.totalorder %s15, 0
    %p99 = por %p97, %p98
    %p100 = scmp.ne.s32.totalorder %s88, %s89
    %p101 = scmp.eq.s32.totalorder %s16, 1
    %p102 = por %p100, %p101
    %p104 = scmp.ne.s32.totalorder %s89, %s103
    %p105 = scmp.eq.s32.totalorder %s16, 0
    %p106 = por %p104, %p105
    %s107 = ssub.s32 %s10, %s17
    %p108 = scmp.eq.s32.totalorder %s107, 0
    %s110 = sadd.s32 %s109, 1
    %s111 = scalar_select %p108, %s109, %s110
    %p114 = pneg %p108
    %p115 = scmp.eq.s32.totalorder %s10, 1
    %p116 = por %p114, %p115
    %p117 = scmp.ne.s32.totalorder %s109, %s112
    %p118 = scmp.eq.s32.totalorder %s10, 0
    %p119 = por %p117, %p118
    %p120 = scmp.ne.s32.totalorder %s109, %s112
    %p121 = scmp.eq.s32.totalorder %s15, 1
    %p122 = por %p120, %p121
    %p123 = scmp.ne.s32.totalorder %s112, %s113
    %p124 = scmp.eq.s32.totalorder %s15, 0
    %p125 = por %p123, %p124
    %p126 = scmp.ne.s32.totalorder %s112, %s113
    %p127 = scmp.eq.s32.totalorder %s16, 1
    %p128 = por %p126, %p127
    %p130 = scmp.ne.s32.totalorder %s113, %s129
    %p131 = scmp.eq.s32.totalorder %s16, 0
    %p132 = por %p130, %p131
    %p133 = scmp.le.s32.totalorder 1, %s10
    %p134 = scmp.lt.s32.totalorder %s10, 3
    %p135 = pnand %p133, %p134
    %p136 = pneg %p135
    // Predicated region
    $region9: #{mldg_forward.21} parent=5 // pred_check
      _
    $region10: #{mldg_forward.21} parent=5 // pred_check_branch
      %138 = sbr.rel (%p135) target = $region12
    $region11: #{mldg_forward.21} parent=5 // pred_region
      %s139 = ssub.s32 %s10, 1
      // Predicated region
      $region13: #{mldg_forward.21} parent=11 // pred_check
        %p140 = pneg %p57
      $region14: #{mldg_forward.21} parent=11 // pred_check_branch
        %142 = sbr.rel (%p140) target = $region16
      $region15: #{mldg_forward.21} parent=11 // pred_region
        _
      $region16: #{mldg_forward.21} parent=11 // pred_fallthru
        _
      // Predicated region
      $region17: #{mldg_forward.21} parent=11 // pred_check
        %p143 = pneg %p78
      $region18: #{mldg_forward.21} parent=11 // pred_check_branch
        %145 = sbr.rel (%p143) target = $region20
      $region19: #{mldg_forward.21} parent=11 // pred_region
        _
      $region20: #{mldg_forward.21} parent=11 // pred_fallthru
        _
      // Predicated region
      $region21: #{mldg_forward.21} parent=11 // pred_check
        %p146 = pneg %p99
      $region22: #{mldg_forward.21} parent=11 // pred_check_branch
        %148 = sbr.rel (%p146) target = $region24
      $region23: #{mldg_forward.21} parent=11 // pred_region
        _
      $region24: #{mldg_forward.21} parent=11 // pred_fallthru
        _
    $region12: #{mldg_forward.21} parent=5 // pred_fallthru
      _
    %p149 = scmp.lt.s32.totalorder %s10, 2
    // Predicated region
    $region25: #{mldg_forward.21} parent=5 // pred_check
      %p150 = pneg %p149
    $region26: #{mldg_forward.21} parent=5 // pred_check_branch
      %152 = sbr.rel (%p150) target = $region28
    $region27: #{mldg_forward.21} parent=5 // pred_region
      // Predicated region
      $region29: #{mldg_forward.21} parent=27 // pred_check
        %p153 = pneg %p30
      $region30: #{mldg_forward.21} parent=27 // pred_check_branch
        %155 = sbr.rel (%p153) target = $region32
      $region31: #{mldg_forward.21} parent=27 // pred_region
        %p156 = scmp.lt.s32.totalorder %s10, 1
        %s157 = scalar_select %p156, %s10, 1
        %s158 = smul.addr %s157, 18
        %s159 = smul.addr %s158, 8
        %s160 = scalar_lea.vmem %s0, %s159
      $region32: #{mldg_forward.21} parent=27 // pred_fallthru
        _
    $region28: #{mldg_forward.21} parent=5 // pred_fallthru
      _
    %p161 = scmp.le.s32.totalorder 1, %s10
    %p162 = scmp.lt.s32.totalorder %s10, 3
    %p163 = pnand %p161, %p162
    %p164 = pneg %p163
    // Predicated region
    $region33: #{mldg_forward.21} parent=5 // pred_check
      _
    $region34: #{mldg_forward.21} parent=5 // pred_check_branch
      %166 = sbr.rel (%p163) target = $region36
    $region35: #{mldg_forward.21} parent=5 // pred_region
      %s167 = ssub.s32 %s10, 1
      %p168 = scmp.lt.s32.totalorder %s15, 1
      %s169 = scalar_select %p168, %s15, 1
      %s170 = smul.addr %s169, 18
      %s171 = smul.addr %s170, 8
      %s172 = scalar_lea.vmem %s0, %s171
      %p173 = pneg %p36
      %p174 = pneg %p33
      %p175 = pneg %p57
      %p176 = pneg %p54
      %p177 = pneg %p78
      %p178 = pneg %p75
      %p179 = pneg %p99
      %p180 = pneg %p96
      %p181 = pneg %p125
      %p182 = pneg %p122
      %p183 = scmp.lt.s32.totalorder %s15, 1
      %s184 = scalar_select %p183, %s15, 1
      %s185 = smul.addr %s184, 4
      %s186 = smul.addr %s185, 8
      %s187 = scalar_lea.vmem %s4, %s186
      %p188 = scmp.lt.s32.totalorder %s15, 1
      %s189 = scalar_select %p188, %s15, 1
      %s190 = smul.addr %s189, 18
      %s191 = smul.addr %s190, 8
      %s192 = scalar_lea.vmem %s0, %s191
      %p193 = scmp.lt.s32.totalorder %s15, 1
      %s194 = scalar_select %p193, %s15, 1
      %s195 = smul.addr %s194, 4
      %s196 = smul.addr %s195, 8
      %s197 = scalar_lea.vmem %s4, %s196
      %v198 = vld [vmem:[%s192] sm:$0xff]
      %v199 = vld [vmem:[%s192 + $0x8] sm:$0xff]
      %v200 = vld [vmem:[%s192 + $0x10] sm:$0xff]
      %v201 = vld [vmem:[%s192 + $0x18] sm:$0xff]
      %v202 = vld [vmem:[%s192 + $0x20] sm:$0xff]
      %v203 = vld [vmem:[%s192 + $0x28] sm:$0xff]
      %v204 = vld [vmem:[%s192 + $0x30] sm:$0xff]
      %v205 = vld [vmem:[%s192 + $0x38] sm:$0xff]
      %v206 = vld [vmem:[%s192 + $0x40] sm:$0xff]
      %v207 = vld [vmem:[%s192 + $0x48] sm:$0xff]
      %v208 = vld [vmem:[%s192 + $0x50] sm:$0xff]
      %v209 = vld [vmem:[%s192 + $0x58] sm:$0xff]
      %v210 = vld [vmem:[%s192 + $0x60] sm:$0xff]
      %v211 = vld [vmem:[%s192 + $0x68] sm:$0xff]
      %v212 = vld [vmem:[%s192 + $0x70] sm:$0xff]
      %v213 = vld [vmem:[%s192 + $0x78] sm:$0xff]
      %v214 = vld [vmem:[%s192 + $0x80] sm:$0xff]
      %v215 = vld [vmem:[%s192 + $0x88] sm:$0xff]
      %v216 = vld [vmem:[%s1] sm:$0xff]
      %v217 = vld [vmem:[%s1 + $0x8] sm:$0xff]
      %v218 = vld [vmem:[%s1 + $0x10] sm:$0xff]
      %v219 = vld [vmem:[%s1 + $0x18] sm:$0xff]
      %v220 = vld [vmem:[%s1 + $0x20] sm:$0xff]
      %v221 = vld [vmem:[%s1 + $0x28] sm:$0xff]
      %v222 = vld [vmem:[%s1 + $0x30] sm:$0xff]
      %v223 = vld [vmem:[%s1 + $0x38] sm:$0xff]
      %vm224 = vcmask 130048
      %v226 = vsel %vm224, %v217, 0
      %v229 = vsel %vm224, %v219, 0
      %v232 = vsel %vm224, %v221, 0
      %v235 = vsel %vm224, %v223, 0
      %237 = vmatpush.msra.mxu0 %v213
      %238 = vmatpush.msra.mxu0 %v212
      %239 = vmatpush.msra.mxu0 %v211
      %240 = vmatpush.msra.mxu0 %v210
      %241 = vmatpush.msra.mxu0 %v209
      %242 = vmatpush.msra.mxu0 %v208
      %243 = vmatpush.msra.mxu0 %v207
      %244 = vmatpush.msra.mxu0 %v206
      %245 = vmatpush.msra.mxu0 %v205
      %246 = vmatpush.msra.mxu0 %v204
      %247 = vmatpush.msra.mxu0 %v203
      %248 = vmatpush.msra.mxu0 %v202
      %249 = vmatpush.msra.mxu0 %v201
      %250 = vmatpush.msra.mxu0 %v200
      %251 = vmatpush.msra.mxu0 %v199
      %252 = vmatpush.msra.mxu0 %v198
      %253 = vmatmul.f32.gmra.mxu0 %v216
      %v254 = vpop.f32.mrf.mxu0
      %v255 = vadd.f32 0.0, %v254
      %256 = vmatmul.f32.gmra.mxu0 %v218
      %v257 = vpop.f32.mrf.mxu0
      %v258 = vadd.f32 0.0, %v257
      %259 = vmatmul.f32.gmra.mxu0 %v220
      %v260 = vpop.f32.mrf.mxu0
      %v261 = vadd.f32 0.0, %v260
      %262 = vmatmul.f32.gmra.mxu0 %v222
      %v263 = vpop.f32.mrf.mxu0
      %v264 = vadd.f32 0.0, %v263
      %265 = vdwg.mxu0
      %266 = vmatpush.msra.mxu0 0.0
      %267 = vmatpush.msra.mxu0 0.0
      %268 = vmatpush.msra.mxu0 0.0
      %269 = vmatpush.msra.mxu0 0.0
      %270 = vmatpush.msra.mxu0 0.0
      %271 = vmatpush.msra.mxu0 0.0
      %272 = vmatpush.msra.mxu0 0.0
      %273 = vmatpush.msra.mxu0 0.0
      %274 = vmatpush.msra.mxu0 0.0
      %275 = vmatpush.msra.mxu0 0.0
      %276 = vmatpush.msra.mxu0 0.0
      %277 = vmatpush.msra.mxu0 0.0
      %278 = vmatpush.msra.mxu0 0.0
      %279 = vmatpush.msra.mxu0 0.0
      %280 = vmatpush.msra.mxu0 %v215
      %281 = vmatpush.msra.mxu0 %v214
      %282 = vmatmul.f32.gmra.mxu0 %v226
      %v283 = vpop.f32.mrf.mxu0
      %v284 = vadd.f32 %v255, %v283
      %285 = vmatmul.f32.gmra.mxu0 %v229
      %v286 = vpop.f32.mrf.mxu0
      %v287 = vadd.f32 %v258, %v286
      %288 = vmatmul.f32.gmra.mxu0 %v232
      %v289 = vpop.f32.mrf.mxu0
      %v290 = vadd.f32 %v261, %v289
      %291 = vmatmul.f32.gmra.mxu0 %v235
      %v292 = vpop.f32.mrf.mxu0
      %v293 = vadd.f32 %v264, %v292
      %294 = vdwg.mxu0
      %v295 = vld [vmem:[%s2] sm:$0xff]
      %v296 = vld [vmem:[%s2 + $0x8] sm:$0xff]
      %v297 = vld [vmem:[%s2 + $0x10] sm:$0xff]
      %v298 = vld [vmem:[%s2 + $0x18] sm:$0xff]
      %300 = vset.pattern.permute.xlu0 0
      %301 = vperm.xlu0 %300, %v295
      %v302 = vpop.permute.xlu0 %301
      %305 = vset.pattern.permute.xlu0 0
      %306 = vperm.xlu0 %305, %v296
      %v307 = vpop.permute.xlu0 %306
      %310 = vset.pattern.permute.xlu0 0
      %311 = vperm.xlu0 %310, %v297
      %v312 = vpop.permute.xlu0 %311
      %315 = vset.pattern.permute.xlu0 0
      %316 = vperm.xlu0 %315, %v298
      %v317 = vpop.permute.xlu0 %316
      %v319 = vmul.f32 %v284, %v302
      %v320 = vmul.f32 %v287, %v307
      %v321 = vmul.f32 %v290, %v312
      %v322 = vmul.f32 %v293, %v317
      %v323 = vld [vmem:[%s3] sm:$0xff]
      %v324 = vld [vmem:[%s3 + $0x8] sm:$0xff]
      %v325 = vld [vmem:[%s3 + $0x10] sm:$0xff]
      %v326 = vld [vmem:[%s3 + $0x18] sm:$0xff]
      %328 = vset.pattern.permute.xlu0 0
      %329 = vperm.xlu0 %328, %v323
      %v330 = vpop.permute.xlu0 %329
      %333 = vset.pattern.permute.xlu0 0
      %334 = vperm.xlu0 %333, %v324
      %v335 = vpop.permute.xlu0 %334
      %338 = vset.pattern.permute.xlu0 0
      %339 = vperm.xlu0 %338, %v325
      %v340 = vpop.permute.xlu0 %339
      %343 = vset.pattern.permute.xlu0 0
      %344 = vperm.xlu0 %343, %v326
      %v345 = vpop.permute.xlu0 %344
      %v347 = vadd.f32 %v319, %v330
      %v348 = vadd.f32 %v320, %v335
      %v349 = vadd.f32 %v321, %v340
      %v350 = vadd.f32 %v322, %v345
      %vm351 = vcmask 195584
      %352 = vst.msk [vmem:[%s197] sm:$0xff] %vm351, %v347
      %353 = vst.msk [vmem:[%s197 + $0x8] sm:$0xff] %vm351, %v348
      %354 = vst.msk [vmem:[%s197 + $0x10] sm:$0xff] %vm351, %v349
      %355 = vst.msk [vmem:[%s197 + $0x18] sm:$0xff] %vm351, %v350
      %p356 = scmp.lt.s32.totalorder %s15, 1
      %s357 = scalar_select %p356, %s15, 1
      %s358 = smul.addr %s357, 4
      %s359 = smul.addr %s358, 8
      %s360 = scalar_lea.vmem %s4, %s359
      // Predicated region
      $region37: #{mldg_forward.21} parent=35 // pred_check
        %p361 = pneg %p122
      $region38: #{mldg_forward.21} parent=35 // pred_check_branch
        %363 = sbr.rel (%p361) target = $region40
      $region39: #{mldg_forward.21} parent=35 // pred_region
        _
      $region40: #{mldg_forward.21} parent=35 // pred_fallthru
        _
    $region36: #{mldg_forward.21} parent=5 // pred_fallthru
      _
    %p364 = scmp.le.s32.totalorder 2, %s10
    // Predicated region
    $region41: #{mldg_forward.21} parent=5 // pred_check
      %p365 = pneg %p364
    $region42: #{mldg_forward.21} parent=5 // pred_check_branch
      %367 = sbr.rel (%p365) target = $region44
    $region43: #{mldg_forward.21} parent=5 // pred_region
      %s368 = ssub.s32 %s10, 2
      // Predicated region
      $region45: #{mldg_forward.21} parent=43 // pred_check
        %p369 = pneg %p128
      $region46: #{mldg_forward.21} parent=43 // pred_check_branch
        %371 = sbr.rel (%p369) target = $region48
      $region47: #{mldg_forward.21} parent=43 // pred_region
        %p372 = scmp.lt.s32.totalorder %s16, 1
        %s373 = scalar_select %p372, %s16, 1
        %s374 = smul.addr %s373, 4
        %s375 = smul.addr %s374, 8
        %s376 = scalar_lea.vmem %s4, %s375
      $region48: #{mldg_forward.21} parent=43 // pred_fallthru
        _
    $region44: #{mldg_forward.21} parent=5 // pred_fallthru
      _
  $region6: #{mldg_forward.21} parent=0 // loop_footer
    %s14 = sadd.s32 1, %s10
  $region7: #{mldg_forward.21} parent=0 // loop_footer_branch
    %9 = sbr.rel target = $region3
  $region8: #{mldg_forward.21} parent=0 // loop_exit
    _

// kernel: mldg_forward.22
$region0: #{mldg_forward.22}
  #allocation0 [shape = 'u32[]', space=smem, size = 0x4, offset = 0x4, fixed_abs, tag = 'smem constant byte address 0x4 - core index']
  #allocation1 [shape = 'u32[72,128]{1,0:T(1,128)}', space=vmem, size = 0x9000, scoped, tag = 'internal scratch']
  %s0 = inlined_call_operand.vmem [shape: f32[2,288,24], index: 0, kind: input, shape index: {}]
  %s1 = inlined_call_operand.vmem [shape: f32[32,288], index: 1, kind: input, shape index: {}]
  %s2 = inlined_call_operand.vmem [shape: f32[32,1], index: 2, kind: input, shape index: {}]
  %s3 = inlined_call_operand.vmem [shape: f32[32,1], index: 3, kind: input, shape index: {}]
  %s4 = inlined_call_operand.vmem [shape: f32[2,32,24], index: 4, kind: input, shape index: {}]
  %s5 = inlined_call_operand.vmem [shape: f32[2,32,24], index: 5, kind: output, shape index: {}]
  %s6 = sld [smem:[#allocation0]]
  $region53: #{mldg_forward.22} parent=0
    _
  %s8 = ssub.s32 1, %s6
  %s9 = scalar_select 0, %s8, %s6
  loop: start=0, step=1, limit=4
  $region2: #{mldg_forward.22} parent=0 // loop_pre_header
    _
  $region3: #{mldg_forward.22} parent=0 // loop_header
    %s11 = sphi 0, %s15
    %p12 = scmp.ge.s32.totalorder %s11, 4
    %s21 = sphi 0, %s23
    %s24 = sphi 0, %s21
    %s25 = sphi 0, %s24
    %s41 = sphi 0, %s25
    %s45 = sphi 0, %s45
    %s47 = sphi 0, %s45
    %s48 = sphi 0, %s47
    %s62 = sphi 0, %s48
    %s66 = sphi 0, %s66
    %s68 = sphi 0, %s66
    %s69 = sphi 0, %s68
    %s83 = sphi 0, %s69
    %s87 = sphi 0, %s87
    %s89 = sphi 0, %s87
    %s90 = sphi 0, %s89
    %s104 = sphi 0, %s90
    %s110 = sphi 0, %s112
    %s113 = sphi 0, %s110
    %s114 = sphi 0, %s113
    %s130 = sphi 0, %s114
    %s136 = sphi 0, %s138
    %s139 = sphi 0, %s136
    %s140 = sphi 0, %s139
    %s156 = sphi 0, %s140
  $region4: #{mldg_forward.22} parent=0 // loop_header_branch
    %14 = sbr.rel (%p12) target = $region8
  $region5: #{mldg_forward.22} parent=0 // loop_body
    %s16 = ssub.s32 %s11, 1
    %s17 = ssub.s32 %s11, 2
    %s18 = sadd.s32 %s11, 1
    %s19 = ssub.s32 %s11, %s18
    %p20 = scmp.eq.s32.totalorder %s19, 0
    %s22 = sadd.s32 %s21, 1
    %s23 = scalar_select %p20, %s21, %s22
    %p26 = pneg %p20
    %p27 = scmp.eq.s32.totalorder %s11, 1
    %p28 = por %p26, %p27
    %p29 = scmp.ne.s32.totalorder %s21, %s24
    %p30 = scmp.eq.s32.totalorder %s11, 0
    %p31 = por %p29, %p30
    %p32 = scmp.ne.s32.totalorder %s21, %s24
    %p33 = scmp.eq.s32.totalorder %s16, 1
    %p34 = por %p32, %p33
    %p35 = scmp.ne.s32.totalorder %s24, %s25
    %p36 = scmp.eq.s32.totalorder %s16, 0
    %p37 = por %p35, %p36
    %p38 = scmp.ne.s32.totalorder %s24, %s25
    %p39 = scmp.eq.s32.totalorder %s17, 1
    %p40 = por %p38, %p39
    %p42 = scmp.ne.s32.totalorder %s25, %s41
    %p43 = scmp.eq.s32.totalorder %s17, 0
    %p44 = por %p42, %p43
    %s46 = sadd.s32 %s45, 1
    %p49 = scmp.eq.s32.totalorder %s11, 1
    %p50 = scmp.ne.s32.totalorder %s45, %s47
    %p51 = scmp.eq.s32.totalorder %s11, 0
    %p52 = por %p50, %p51
    %p53 = scmp.ne.s32.totalorder %s45, %s47
    %p54 = scmp.eq.s32.totalorder %s16, 1
    %p55 = por %p53, %p54
    %p56 = scmp.ne.s32.totalorder %s47, %s48
    %p57 = scmp.eq.s32.totalorder %s16, 0
    %p58 = por %p56, %p57
    %p59 = scmp.ne.s32.totalorder %s47, %s48
    %p60 = scmp.eq.s32.totalorder %s17, 1
    %p61 = por %p59, %p60
    %p63 = scmp.ne.s32.totalorder %s48, %s62
    %p64 = scmp.eq.s32.totalorder %s17, 0
    %p65 = por %p63, %p64
    %s67 = sadd.s32 %s66, 1
    %p70 = scmp.eq.s32.totalorder %s11, 1
    %p71 = scmp.ne.s32.totalorder %s66, %s68
    %p72 = scmp.eq.s32.totalorder %s11, 0
    %p73 = por %p71, %p72
    %p74 = scmp.ne.s32.totalorder %s66, %s68
    %p75 = scmp.eq.s32.totalorder %s16, 1
    %p76 = por %p74, %p75
    %p77 = scmp.ne.s32.totalorder %s68, %s69
    %p78 = scmp.eq.s32.totalorder %s16, 0
    %p79 = por %p77, %p78
    %p80 = scmp.ne.s32.totalorder %s68, %s69
    %p81 = scmp.eq.s32.totalorder %s17, 1
    %p82 = por %p80, %p81
    %p84 = scmp.ne.s32.totalorder %s69, %s83
    %p85 = scmp.eq.s32.totalorder %s17, 0
    %p86 = por %p84, %p85
    %s88 = sadd.s32 %s87, 1
    %p91 = scmp.eq.s32.totalorder %s11, 1
    %p92 = scmp.ne.s32.totalorder %s87, %s89
    %p93 = scmp.eq.s32.totalorder %s11, 0
    %p94 = por %p92, %p93
    %p95 = scmp.ne.s32.totalorder %s87, %s89
    %p96 = scmp.eq.s32.totalorder %s16, 1
    %p97 = por %p95, %p96
    %p98 = scmp.ne.s32.totalorder %s89, %s90
    %p99 = scmp.eq.s32.totalorder %s16, 0
    %p100 = por %p98, %p99
    %p101 = scmp.ne.s32.totalorder %s89, %s90
    %p102 = scmp.eq.s32.totalorder %s17, 1
    %p103 = por %p101, %p102
    %p105 = scmp.ne.s32.totalorder %s90, %s104
    %p106 = scmp.eq.s32.totalorder %s17, 0
    %p107 = por %p105, %p106
    %s108 = ssub.s32 %s11, %s18
    %p109 = scmp.eq.s32.totalorder %s108, 0
    %s111 = sadd.s32 %s110, 1
    %s112 = scalar_select %p109, %s110, %s111
    %p115 = pneg %p109
    %p116 = scmp.eq.s32.totalorder %s11, 1
    %p117 = por %p115, %p116
    %p118 = scmp.ne.s32.totalorder %s110, %s113
    %p119 = scmp.eq.s32.totalorder %s11, 0
    %p120 = por %p118, %p119
    %p121 = scmp.ne.s32.totalorder %s110, %s113
    %p122 = scmp.eq.s32.totalorder %s16, 1
    %p123 = por %p121, %p122
    %p124 = scmp.ne.s32.totalorder %s113, %s114
    %p125 = scmp.eq.s32.totalorder %s16, 0
    %p126 = por %p124, %p125
    %p127 = scmp.ne.s32.totalorder %s113, %s114
    %p128 = scmp.eq.s32.totalorder %s17, 1
    %p129 = por %p127, %p128
    %p131 = scmp.ne.s32.totalorder %s114, %s130
    %p132 = scmp.eq.s32.totalorder %s17, 0
    %p133 = por %p131, %p132
    %s134 = ssub.s32 %s11, %s18
    %p135 = scmp.eq.s32.totalorder %s134, 0
    %s137 = sadd.s32 %s136, 1
    %s138 = scalar_select %p135, %s136, %s137
    %p141 = pneg %p135
    %p142 = scmp.eq.s32.totalorder %s11, 1
    %p143 = por %p141, %p142
    %p144 = scmp.ne.s32.totalorder %s136, %s139
    %p145 = scmp.eq.s32.totalorder %s11, 0
    %p146 = por %p144, %p145
    %p147 = scmp.ne.s32.totalorder %s136, %s139
    %p148 = scmp.eq.s32.totalorder %s16, 1
    %p149 = por %p147, %p148
    %p150 = scmp.ne.s32.totalorder %s139, %s140
    %p151 = scmp.eq.s32.totalorder %s16, 0
    %p152 = por %p150, %p151
    %p153 = scmp.ne.s32.totalorder %s139, %s140
    %p154 = scmp.eq.s32.totalorder %s17, 1
    %p155 = por %p153, %p154
    %p157 = scmp.ne.s32.totalorder %s140, %s156
    %p158 = scmp.eq.s32.totalorder %s17, 0
    %p159 = por %p157, %p158
    %p160 = scmp.le.s32.totalorder 1, %s11
    %p161 = scmp.lt.s32.totalorder %s11, 3
    %p162 = pnand %p160, %p161
    %p163 = pneg %p162
    // Predicated region
    $region9: #{mldg_forward.22} parent=5 // pred_check
      _
    $region10: #{mldg_forward.22} parent=5 // pred_check_branch
      %165 = sbr.rel (%p162) target = $region12
    $region11: #{mldg_forward.22} parent=5 // pred_region
      %s166 = ssub.s32 %s11, 1
      // Predicated region
      $region13: #{mldg_forward.22} parent=11 // pred_check
        %p167 = pneg %p58
      $region14: #{mldg_forward.22} parent=11 // pred_check_branch
        %169 = sbr.rel (%p167) target = $region16
      $region15: #{mldg_forward.22} parent=11 // pred_region
        _
      $region16: #{mldg_forward.22} parent=11 // pred_fallthru
        _
      // Predicated region
      $region17: #{mldg_forward.22} parent=11 // pred_check
        %p170 = pneg %p79
      $region18: #{mldg_forward.22} parent=11 // pred_check_branch
        %172 = sbr.rel (%p170) target = $region20
      $region19: #{mldg_forward.22} parent=11 // pred_region
        _
      $region20: #{mldg_forward.22} parent=11 // pred_fallthru
        _
      // Predicated region
      $region21: #{mldg_forward.22} parent=11 // pred_check
        %p173 = pneg %p100
      $region22: #{mldg_forward.22} parent=11 // pred_check_branch
        %175 = sbr.rel (%p173) target = $region24
      $region23: #{mldg_forward.22} parent=11 // pred_region
        _
      $region24: #{mldg_forward.22} parent=11 // pred_fallthru
        _
    $region12: #{mldg_forward.22} parent=5 // pred_fallthru
      _
    %p176 = scmp.lt.s32.totalorder %s11, 2
    // Predicated region
    $region25: #{mldg_forward.22} parent=5 // pred_check
      %p177 = pneg %p176
    $region26: #{mldg_forward.22} parent=5 // pred_check_branch
      %179 = sbr.rel (%p177) target = $region28
    $region27: #{mldg_forward.22} parent=5 // pred_region
      // Predicated region
      $region29: #{mldg_forward.22} parent=27 // pred_check
        %p180 = pneg %p31
      $region30: #{mldg_forward.22} parent=27 // pred_check_branch
        %182 = sbr.rel (%p180) target = $region32
      $region31: #{mldg_forward.22} parent=27 // pred_region
        %p183 = scmp.lt.s32.totalorder %s11, 1
        %s184 = scalar_select %p183, %s11, 1
        %s185 = smul.addr %s184, 36
        %s186 = smul.addr %s185, 8
        %s187 = scalar_lea.vmem %s0, %s186
      $region32: #{mldg_forward.22} parent=27 // pred_fallthru
        _
      // Predicated region
      $region33: #{mldg_forward.22} parent=27 // pred_check
        %p188 = pneg %p120
      $region34: #{mldg_forward.22} parent=27 // pred_check_branch
        %190 = sbr.rel (%p188) target = $region36
      $region35: #{mldg_forward.22} parent=27 // pred_region
        %p191 = scmp.lt.s32.totalorder %s11, 1
        %s192 = scalar_select %p191, %s11, 1
        %s193 = smul.addr %s192, 4
        %s194 = smul.addr %s193, 8
        %s195 = scalar_lea.vmem %s4, %s194
      $region36: #{mldg_forward.22} parent=27 // pred_fallthru
        _
    $region28: #{mldg_forward.22} parent=5 // pred_fallthru
      _
    %p196 = scmp.le.s32.totalorder 1, %s11
    %p197 = scmp.lt.s32.totalorder %s11, 3
    %p198 = pnand %p196, %p197
    %p199 = pneg %p198
    // Predicated region
    $region37: #{mldg_forward.22} parent=5 // pred_check
      _
    $region38: #{mldg_forward.22} parent=5 // pred_check_branch
      %201 = sbr.rel (%p198) target = $region40
    $region39: #{mldg_forward.22} parent=5 // pred_region
      %s202 = ssub.s32 %s11, 1
      %p203 = scmp.lt.s32.totalorder %s16, 1
      %s204 = scalar_select %p203, %s16, 1
      %s205 = smul.addr %s204, 36
      %s206 = smul.addr %s205, 8
      %s207 = scalar_lea.vmem %s0, %s206
      %p208 = pneg %p37
      %p209 = pneg %p34
      %p210 = pneg %p58
      %p211 = pneg %p55
      %p212 = pneg %p79
      %p213 = pneg %p76
      %p214 = pneg %p100
      %p215 = pneg %p97
      %p216 = scmp.lt.s32.totalorder %s16, 1
      %s217 = scalar_select %p216, %s16, 1
      %s218 = smul.addr %s217, 4
      %s219 = smul.addr %s218, 8
      %s220 = scalar_lea.vmem %s4, %s219
      %p221 = pneg %p126
      %p222 = pneg %p123
      %p223 = pneg %p152
      %p224 = pneg %p149
      %p225 = scmp.lt.s32.totalorder %s16, 1
      %s226 = scalar_select %p225, %s16, 1
      %s227 = smul.addr %s226, 4
      %s228 = smul.addr %s227, 8
      %s229 = scalar_lea.vmem %s5, %s228
      %p230 = scmp.lt.s32.totalorder %s16, 1
      %s231 = scalar_select %p230, %s16, 1
      %s232 = smul.addr %s231, 36
      %s233 = smul.addr %s232, 8
      %s234 = scalar_lea.vmem %s0, %s233
      %p235 = scmp.lt.s32.totalorder %s16, 1
      %s236 = scalar_select %p235, %s16, 1
      %s237 = smul.addr %s236, 4
      %s238 = smul.addr %s237, 8
      %s239 = scalar_lea.vmem %s4, %s238
      %p240 = scmp.lt.s32.totalorder %s16, 1
      %s241 = scalar_select %p240, %s16, 1
      %s242 = smul.addr %s241, 4
      %s243 = smul.addr %s242, 8
      %s244 = scalar_lea.vmem %s5, %s243
      %v245 = vld [vmem:[%s234] sm:$0xff]
      %v246 = vld [vmem:[%s234 + $0x8] sm:$0xff]
      %v247 = vld [vmem:[%s234 + $0x10] sm:$0xff]
      %v248 = vld [vmem:[%s234 + $0x18] sm:$0xff]
      %v249 = vld [vmem:[%s234 + $0x20] sm:$0xff]
      %v250 = vld [vmem:[%s234 + $0x28] sm:$0xff]
      %v251 = vld [vmem:[%s234 + $0x30] sm:$0xff]
      %v252 = vld [vmem:[%s234 + $0x38] sm:$0xff]
      %v253 = vld [vmem:[%s234 + $0x40] sm:$0xff]
      %v254 = vld [vmem:[%s234 + $0x48] sm:$0xff]
      %v255 = vld [vmem:[%s234 + $0x50] sm:$0xff]
      %v256 = vld [vmem:[%s234 + $0x58] sm:$0xff]
      %v257 = vld [vmem:[%s234 + $0x60] sm:$0xff]
      %v258 = vld [vmem:[%s234 + $0x68] sm:$0xff]
      %v259 = vld [vmem:[%s234 + $0x70] sm:$0xff]
      %v260 = vld [vmem:[%s234 + $0x78] sm:$0xff]
      %v261 = vld [vmem:[%s234 + $0x80] sm:$0xff]
      %v262 = vld [vmem:[%s234 + $0x88] sm:$0xff]
      %v263 = vld [vmem:[%s234 + $0x90] sm:$0xff]
      %v264 = vld [vmem:[%s234 + $0x98] sm:$0xff]
      %v265 = vld [vmem:[%s234 + $0xa0] sm:$0xff]
      %v266 = vld [vmem:[%s234 + $0xa8] sm:$0xff]
      %v267 = vld [vmem:[%s234 + $0xb0] sm:$0xff]
      %v268 = vld [vmem:[%s234 + $0xb8] sm:$0xff]
      %v269 = vld [vmem:[%s234 + $0xc0] sm:$0xff]
      %v270 = vld [vmem:[%s234 + $0xc8] sm:$0xff]
      %v271 = vld [vmem:[%s234 + $0xd0] sm:$0xff]
      %v272 = vld [vmem:[%s234 + $0xd8] sm:$0xff]
      %v273 = vld [vmem:[%s234 + $0xe0] sm:$0xff]
      %v274 = vld [vmem:[%s234 + $0xe8] sm:$0xff]
      %v275 = vld [vmem:[%s234 + $0xf0] sm:$0xff]
      %v276 = vld [vmem:[%s234 + $0xf8] sm:$0xff]
      %v277 = vld [vmem:[%s234 + $0x100] sm:$0xff]
      %v278 = vld [vmem:[%s234 + $0x108] sm:$0xff]
      %v279 = vld [vmem:[%s234 + $0x110] sm:$0xff]
      %v280 = vld [vmem:[%s234 + $0x118] sm:$0xff]
      %v281 = vld [vmem:[%s1] sm:$0xff]
      %v282 = vld [vmem:[%s1 + $0x8] sm:$0xff]
      %v283 = vld [vmem:[%s1 + $0x10] sm:$0xff]
      %v284 = vld [vmem:[%s1 + $0x18] sm:$0xff]
      %v285 = vld [vmem:[%s1 + $0x20] sm:$0xff]
      %v286 = vld [vmem:[%s1 + $0x28] sm:$0xff]
      %v287 = vld [vmem:[%s1 + $0x30] sm:$0xff]
      %v288 = vld [vmem:[%s1 + $0x38] sm:$0xff]
      %v289 = vld [vmem:[%s1 + $0x40] sm:$0xff]
      %v290 = vld [vmem:[%s1 + $0x48] sm:$0xff]
      %v291 = vld [vmem:[%s1 + $0x50] sm:$0xff]
      %v292 = vld [vmem:[%s1 + $0x58] sm:$0xff]
      %vm293 = vcmask 261120
      %v295 = vsel %vm293, %v283, 0
      %v298 = vsel %vm293, %v286, 0
      %v301 = vsel %vm293, %v289, 0
      %v304 = vsel %vm293, %v292, 0
      %306 = vmatpush.msra.mxu0 %v260
      %307 = vmatpush.msra.mxu0 %v259
      %308 = vmatpush.msra.mxu0 %v258
      %309 = vmatpush.msra.mxu0 %v257
      %310 = vmatpush.msra.mxu0 %v256
      %311 = vmatpush.msra.mxu0 %v255
      %312 = vmatpush.msra.mxu0 %v254
      %313 = vmatpush.msra.mxu0 %v253
      %314 = vmatpush.msra.mxu0 %v252
      %315 = vmatpush.msra.mxu0 %v251
      %316 = vmatpush.msra.mxu0 %v250
      %317 = vmatpush.msra.mxu0 %v249
      %318 = vmatpush.msra.mxu0 %v248
      %319 = vmatpush.msra.mxu0 %v247
      %320 = vmatpush.msra.mxu0 %v246
      %321 = vmatpush.msra.mxu0 %v245
      %322 = vmatmul.f32.gmra.mxu0 %v281
      %v323 = vpop.f32.mrf.mxu0
      %v324 = vadd.f32 0.0, %v323
      %325 = vmatmul.f32.gmra.mxu0 %v284
      %v326 = vpop.f32.mrf.mxu0
      %v327 = vadd.f32 0.0, %v326
      %328 = vmatmul.f32.gmra.mxu0 %v287
      %v329 = vpop.f32.mrf.mxu0
      %v330 = vadd.f32 0.0, %v329
      %331 = vmatmul.f32.gmra.mxu0 %v290
      %v332 = vpop.f32.mrf.mxu0
      %v333 = vadd.f32 0.0, %v332
      %334 = vdwg.mxu0
      %335 = vmatpush.msra.mxu0 %v276
      %336 = vmatpush.msra.mxu0 %v275
      %337 = vmatpush.msra.mxu0 %v274
      %338 = vmatpush.msra.mxu0 %v273
      %339 = vmatpush.msra.mxu0 %v272
      %340 = vmatpush.msra.mxu0 %v271
      %341 = vmatpush.msra.mxu0 %v270
      %342 = vmatpush.msra.mxu0 %v269
      %343 = vmatpush.msra.mxu0 %v268
      %344 = vmatpush.msra.mxu0 %v267
      %345 = vmatpush.msra.mxu0 %v266
      %346 = vmatpush.msra.mxu0 %v265
      %347 = vmatpush.msra.mxu0 %v264
      %348 = vmatpush.msra.mxu0 %v263
      %349 = vmatpush.msra.mxu0 %v262
      %350 = vmatpush.msra.mxu0 %v261
      %351 = vmatmul.f32.gmra.mxu0 %v282
      %v352 = vpop.f32.mrf.mxu0
      %v353 = vadd.f32 %v324, %v352
      %354 = vmatmul.f32.gmra.mxu0 %v285
      %v355 = vpop.f32.mrf.mxu0
      %v356 = vadd.f32 %v327, %v355
      %357 = vmatmul.f32.gmra.mxu0 %v288
      %v358 = vpop.f32.mrf.mxu0
      %v359 = vadd.f32 %v330, %v358
      %360 = vmatmul.f32.gmra.mxu0 %v291
      %v361 = vpop.f32.mrf.mxu0
      %v362 = vadd.f32 %v333, %v361
      %363 = vdwg.mxu0
      %364 = vmatpush.msra.mxu0 0.0
      %365 = vmatpush.msra.mxu0 0.0
      %366 = vmatpush.msra.mxu0 0.0
      %367 = vmatpush.msra.mxu0 0.0
      %368 = vmatpush.msra.mxu0 0.0
      %369 = vmatpush.msra.mxu0 0.0
      %370 = vmatpush.msra.mxu0 0.0
      %371 = vmatpush.msra.mxu0 0.0
      %372 = vmatpush.msra.mxu0 0.0
      %373 = vmatpush.msra.mxu0 0.0
      %374 = vmatpush.msra.mxu0 0.0
      %375 = vmatpush.msra.mxu0 0.0
      %376 = vmatpush.msra.mxu0 %v280
      %377 = vmatpush.msra.mxu0 %v279
      %378 = vmatpush.msra.mxu0 %v278
      %379 = vmatpush.msra.mxu0 %v277
      %380 = vmatmul.f32.gmra.mxu0 %v295
      %v381 = vpop.f32.mrf.mxu0
      %v382 = vadd.f32 %v353, %v381
      %383 = vmatmul.f32.gmra.mxu0 %v298
      %v384 = vpop.f32.mrf.mxu0
      %v385 = vadd.f32 %v356, %v384
      %386 = vmatmul.f32.gmra.mxu0 %v301
      %v387 = vpop.f32.mrf.mxu0
      %v388 = vadd.f32 %v359, %v387
      %389 = vmatmul.f32.gmra.mxu0 %v304
      %v390 = vpop.f32.mrf.mxu0
      %v391 = vadd.f32 %v362, %v390
      %392 = vdwg.mxu0
      %v393 = vld [vmem:[%s2] sm:$0xff]
      %v394 = vld [vmem:[%s2 + $0x8] sm:$0xff]
      %v395 = vld [vmem:[%s2 + $0x10] sm:$0xff]
      %v396 = vld [vmem:[%s2 + $0x18] sm:$0xff]
      %398 = vset.pattern.permute.xlu0 0
      %399 = vperm.xlu0 %398, %v393
      %v400 = vpop.permute.xlu0 %399
      %403 = vset.pattern.permute.xlu0 0
      %404 = vperm.xlu0 %403, %v394
      %v405 = vpop.permute.xlu0 %404
      %408 = vset.pattern.permute.xlu0 0
      %409 = vperm.xlu0 %408, %v395
      %v410 = vpop.permute.xlu0 %409
      %413 = vset.pattern.permute.xlu0 0
      %414 = vperm.xlu0 %413, %v396
      %v415 = vpop.permute.xlu0 %414
      %v417 = vmul.f32 %v382, %v400
      %v418 = vmul.f32 %v385, %v405
      %v419 = vmul.f32 %v388, %v410
      %v420 = vmul.f32 %v391, %v415
      %v421 = vld [vmem:[%s3] sm:$0xff]
      %v422 = vld [vmem:[%s3 + $0x8] sm:$0xff]
      %v423 = vld [vmem:[%s3 + $0x10] sm:$0xff]
      %v424 = vld [vmem:[%s3 + $0x18] sm:$0xff]
      %426 = vset.pattern.permute.xlu0 0
      %427 = vperm.xlu0 %426, %v421
      %v428 = vpop.permute.xlu0 %427
      %431 = vset.pattern.permute.xlu0 0
      %432 = vperm.xlu0 %431, %v422
      %v433 = vpop.permute.xlu0 %432
      %436 = vset.pattern.permute.xlu0 0
      %437 = vperm.xlu0 %436, %v423
      %v438 = vpop.permute.xlu0 %437
      %441 = vset.pattern.permute.xlu0 0
      %442 = vperm.xlu0 %441, %v424
      %v443 = vpop.permute.xlu0 %442
      %v445 = vadd.f32 %v417, %v428
      %v446 = vadd.f32 %v418, %v433
      %v447 = vadd.f32 %v419, %v438
      %v448 = vadd.f32 %v420, %v443
      %v449 = vld [vmem:[%s239] sm:$0xff]
      %v450 = vld [vmem:[%s239 + $0x8] sm:$0xff]
      %v451 = vld [vmem:[%s239 + $0x10] sm:$0xff]
      %v452 = vld [vmem:[%s239 + $0x18] sm:$0xff]
      %v453 = vadd.f32 %v445, %v449
      %v454 = vadd.f32 %v446, %v450
      %v455 = vadd.f32 %v447, %v451
      %v456 = vadd.f32 %v448, %v452
      %vm457 = vcmask 195584
      %458 = vst.msk [vmem:[%s244] sm:$0xff] %vm457, %v453
      %459 = vst.msk [vmem:[%s244 + $0x8] sm:$0xff] %vm457, %v454
      %460 = vst.msk [vmem:[%s244 + $0x10] sm:$0xff] %vm457, %v455
      %461 = vst.msk [vmem:[%s244 + $0x18] sm:$0xff] %vm457, %v456
      %p462 = scmp.lt.s32.totalorder %s16, 1
      %s463 = scalar_select %p462, %s16, 1
      %s464 = smul.addr %s463, 4
      %s465 = smul.addr %s464, 8
      %s466 = scalar_lea.vmem %s5, %s465
      // Predicated region
      $region41: #{mldg_forward.22} parent=39 // pred_check
        %p467 = pneg %p149
      $region42: #{mldg_forward.22} parent=39 // pred_check_branch
        %469 = sbr.rel (%p467) target = $region44
      $region43: #{mldg_forward.22} parent=39 // pred_region
        _
      $region44: #{mldg_forward.22} parent=39 // pred_fallthru
        _
    $region40: #{mldg_forward.22} parent=5 // pred_fallthru
      _
    %p470 = scmp.le.s32.totalorder 2, %s11
    // Predicated region
    $region45: #{mldg_forward.22} parent=5 // pred_check
      %p471 = pneg %p470
    $region46: #{mldg_forward.22} parent=5 // pred_check_branch
      %473 = sbr.rel (%p471) target = $region48
    $region47: #{mldg_forward.22} parent=5 // pred_region
      %s474 = ssub.s32 %s11, 2
      // Predicated region
      $region49: #{mldg_forward.22} parent=47 // pred_check
        %p475 = pneg %p155
      $region50: #{mldg_forward.22} parent=47 // pred_check_branch
        %477 = sbr.rel (%p475) target = $region52
      $region51: #{mldg_forward.22} parent=47 // pred_region
        %p478 = scmp.lt.s32.totalorder %s17, 1
        %s479 = scalar_select %p478, %s17, 1
        %s480 = smul.addr %s479, 4
        %s481 = smul.addr %s480, 8
        %s482 = scalar_lea.vmem %s5, %s481
      $region52: #{mldg_forward.22} parent=47 // pred_fallthru
        _
    $region48: #{mldg_forward.22} parent=5 // pred_fallthru
      _
  $region6: #{mldg_forward.22} parent=0 // loop_footer
    %s15 = sadd.s32 1, %s11
  $region7: #{mldg_forward.22} parent=0 // loop_footer_branch
    %10 = sbr.rel target = $region3
  $region8: #{mldg_forward.22} parent=0 // loop_exit
    _

// kernel: mldg_forward.23
$region0: #{mldg_forward.23}
  #allocation0 [shape = 'u32[]', space=smem, size = 0x4, offset = 0x4, fixed_abs, tag = 'smem constant byte address 0x4 - core index']
  #allocation1 [shape = 'u32[72,128]{1,0:T(1,128)}', space=vmem, size = 0x9000, scoped, tag = 'internal scratch']
  %s0 = inlined_call_operand.vmem [shape: f32[2,128], index: 0, kind: input, shape index: {}]
  %s1 = inlined_call_operand.vmem [shape: f32[32,128], index: 1, kind: input, shape index: {}]
  %s2 = inlined_call_operand.vmem [shape: f32[1,32], index: 2, kind: input, shape index: {}]
  %s3 = inlined_call_operand.vmem [shape: f32[5,32], index: 3, kind: input, shape index: {}]
  %s4 = inlined_call_operand.vmem [shape: f32[1,5], index: 4, kind: input, shape index: {}]
  %s5 = inlined_call_operand.hbm [shape: f32[2,5], index: 5, kind: output, shape index: {}]
  %s6 = sld [smem:[#allocation0]]
  $region30: #{mldg_forward.23} parent=0
    _
  %s8 = ssub.s32 1, %s6
  %s9 = scalar_select 0, %s8, %s6
  $region1: #{mldg_forward.23} parent=0
    #allocation2 [shape = 'u8[1024]{0}', space=vmem, size = 0x400, scoped, tag = 'output window, operand 0, single buffered']
    #allocation3 [shape = 's32[1]{0}', space=sflag, size = 0x4, scoped, tag = 'scoped memory for mldg_forward.23']
    %10 = vsyncpa [#allocation3], 0
    // Predicated region
    $region2: #{mldg_forward.23} parent=1 // pred_check
      _
    $region3: #{mldg_forward.23} parent=1 // pred_check_branch
      %12 = sbr.rel (0) target = $region5
    $region4: #{mldg_forward.23} parent=1 // pred_region
      _
    $region5: #{mldg_forward.23} parent=1 // pred_fallthru
      _
    // Predicated region
    $region6: #{mldg_forward.23} parent=1 // pred_check
      _
    $region7: #{mldg_forward.23} parent=1 // pred_check_branch
      %14 = sbr.rel (0) target = $region9
    $region8: #{mldg_forward.23} parent=1 // pred_region
      _
    $region9: #{mldg_forward.23} parent=1 // pred_fallthru
      _
    // Predicated region
    $region10: #{mldg_forward.23} parent=1 // pred_check
      _
    $region11: #{mldg_forward.23} parent=1 // pred_check_branch
      %16 = sbr.rel (0) target = $region13
    $region12: #{mldg_forward.23} parent=1 // pred_region
      _
    $region13: #{mldg_forward.23} parent=1 // pred_fallthru
      _
    // Predicated region
    $region14: #{mldg_forward.23} parent=1 // pred_check
      _
    $region15: #{mldg_forward.23} parent=1 // pred_check_branch
      %18 = sbr.rel (0) target = $region17
    $region16: #{mldg_forward.23} parent=1 // pred_region
      _
    $region17: #{mldg_forward.23} parent=1 // pred_fallthru
      _
    // Predicated region
    $region18: #{mldg_forward.23} parent=1 // pred_check
      _
    $region19: #{mldg_forward.23} parent=1 // pred_check_branch
      %20 = sbr.rel (0) target = $region21
    $region20: #{mldg_forward.23} parent=1 // pred_region
      _
    $region21: #{mldg_forward.23} parent=1 // pred_fallthru
      _
    %v21 = vld [vmem:[%s0] sm:$0x3]
    %v22 = vld [vmem:[%s1] sm:$0xff]
    %v23 = vld [vmem:[%s1 + $0x8] sm:$0xff]
    %v24 = vld [vmem:[%s1 + $0x10] sm:$0xff]
    %v25 = vld [vmem:[%s1 + $0x18] sm:$0xff]
    %v26 = vld [vmem:[%s2] sm:$0x1]
    %v28 = vperm.slane %v26, 0
    %30 = vmatpush.xpose.msra.mxu0 0.0
    %31 = vmatpush.xpose.msra.mxu0 0.0
    %32 = vmatpush.xpose.msra.mxu0 0.0
    %33 = vmatpush.xpose.msra.mxu0 0.0
    %34 = vmatpush.xpose.msra.mxu0 0.0
    %35 = vmatpush.xpose.msra.mxu0 0.0
    %36 = vmatpush.xpose.msra.mxu0 0.0
    %37 = vmatpush.xpose.msra.mxu0 0.0
    %38 = vmatpush.xpose.msra.mxu0 0.0
    %39 = vmatpush.xpose.msra.mxu0 0.0
    %40 = vmatpush.xpose.msra.mxu0 0.0
    %41 = vmatpush.xpose.msra.mxu0 0.0
    %42 = vmatpush.xpose.msra.mxu0 %v25
    %43 = vmatpush.xpose.msra.mxu0 %v24
    %44 = vmatpush.xpose.msra.mxu0 %v23
    %45 = vmatpush.xpose.msra.mxu0 %v22
    %46 = vmatmul.f32.gmra.mxu0 %v21
    %v47 = vpop.f32.mrf.mxu0
    %v48 = vadd.f32 %v28, %v47
    %49 = vdwg.mxu0
    %v50 = vmax.f32 %v48, 0.0
    %v51 = vld [vmem:[%s3] sm:$0x1f]
    %v52 = vld [vmem:[%s4] sm:$0x1]
    %v54 = vperm.slane %v52, 0
    %vm56 = vcmask 261120
    %v58 = vsel %vm56, %v50, 0
    %v61 = vsel %vm56, %v51, 0
    %63 = vmatpush.xpose.msra.mxu0 0.0
    %64 = vmatpush.xpose.msra.mxu0 0.0
    %65 = vmatpush.xpose.msra.mxu0 0.0
    %66 = vmatpush.xpose.msra.mxu0 0.0
    %67 = vmatpush.xpose.msra.mxu0 0.0
    %68 = vmatpush.xpose.msra.mxu0 0.0
    %69 = vmatpush.xpose.msra.mxu0 0.0
    %70 = vmatpush.xpose.msra.mxu0 0.0
    %71 = vmatpush.xpose.msra.mxu0 0.0
    %72 = vmatpush.xpose.msra.mxu0 0.0
    %73 = vmatpush.xpose.msra.mxu0 0.0
    %74 = vmatpush.xpose.msra.mxu0 0.0
    %75 = vmatpush.xpose.msra.mxu0 0.0
    %76 = vmatpush.xpose.msra.mxu0 0.0
    %77 = vmatpush.xpose.msra.mxu0 0.0
    %78 = vmatpush.xpose.msra.mxu0 %v61
    %79 = vmatmul.f32.gmra.mxu0 %v58
    %v80 = vpop.f32.mrf.mxu0
    %v81 = vadd.f32 %v54, %v80
    %82 = vdwg.mxu0
    %vm83 = vcmask 33792
    %84 = vst.msk [vmem:[#allocation2] sm:$0x3] %vm83, %v81
    // Predicated region
    $region22: #{mldg_forward.23} parent=1 // pred_check
      _
    $region23: #{mldg_forward.23} parent=1 // pred_check_branch
      %86 = sbr.rel (0) target = $region25
    $region24: #{mldg_forward.23} parent=1 // pred_region
      %88 = vsyncadd [#allocation3], 0
      %s90 = sshll.u32 [#allocation2], 4
      %s91 = int_to_ptr.vmem [resolvable:$true] %s90
      %s92 = sshll.u32 %s5, 4
      %s93 = int_to_ptr.hbm [resolvable:$true] %s92
      %95 = dma.vmem_to_hbm [thread:$0]  %s91, 32, %s93, [#allocation3]
    $region25: #{mldg_forward.23} parent=1 // pred_fallthru
      _
    // Predicated region
    $region26: #{mldg_forward.23} parent=1 // pred_check
      _
    $region27: #{mldg_forward.23} parent=1 // pred_check_branch
      %97 = sbr.rel (0) target = $region29
    $region28: #{mldg_forward.23} parent=1 // pred_region
      %99 = dma.done [#allocation3], 32
    $region29: #{mldg_forward.23} parent=1 // pred_fallthru
      _
    %100 = vsyncpa [#allocation3], 1

</llo_original>
